<compile_context>
chip_gen: v6e
topology: v6e:2x2x1
jax: 0.10.0
libtpu: 0.0.40
codegen_flags: <defaults>
</compile_context>

<pallas_src>
import functools

import jax
import jax.numpy as jnp
from jax import lax
from jax.experimental import pallas as pl
from jax.experimental.pallas import tpu as pltpu


def _round_up(v, m):
    return -(-v // m) * m


# --------------------------------------------------------------------------- #
# Fused kernel: normalize-apply + QKV proj + causal attention + proj_out + res
# --------------------------------------------------------------------------- #
def _fused_attn_kernel(x_ref, stat_ref, gamma_ref, beta_ref,
                       wqkv_ref, bqkv_ref, wp_ref, bp_ref, o_ref,
                       *, scale, seq, per_frame):
    f32 = jnp.float32
    rows, c = x_ref.shape                          # rows = blk * T
    blk = rows // seq

    # --- CausalNormalize apply (stats precomputed in the wrapper) ---
    if per_frame:                                  # num_groups == 1: per-(b, t) stats
        st = stat_ref[...]                         # (rows, 2): [mean | rstd]
        hn = (x_ref[...].astype(f32) - st[:, 0:1]) * st[:, 1:2]
        hn = hn * gamma_ref[...] + beta_ref[...]
    else:                                          # num_groups > 1: per-(row, c) affine
        st = stat_ref[...]                         # (blk, 2C): [scale | shift] (gamma/beta folded)
        sc = st[:, :c].reshape(blk, 1, c)
        sh = st[:, c:].reshape(blk, 1, c)
        hn = (x_ref[...].astype(f32).reshape(blk, seq, c) * sc + sh).reshape(rows, c)

    # --- fused Q|K|V projection: one (blk*T, C) x (C, 3C) MXU matmul ---
    cdt = wqkv_ref.dtype
    qkv = jnp.dot(hn.astype(cdt), wqkv_ref[...],
                  preferred_element_type=f32) + bqkv_ref[...]
    q3 = qkv[:, :c].reshape(blk, seq, c)
    k3 = qkv[:, c:2 * c].reshape(blk, seq, c)
    v3 = qkv[:, 2 * c:].reshape(blk, seq, c)

    # --- causal temporal attention, statically unrolled over the (small) T axis.
    #     VPU/XLU formulation: no `blk` serialized tiny (T,C)x(C,T) MXU matmuls,
    #     no per-row K transposes.  Logits / softmax stay f32 throughout. ---
    t_idx = lax.broadcasted_iota(jnp.int32, (blk, seq), 1)
    neg = jnp.float32(-1e30)                       # finite mask (no inf-inf NaN risk)
    cols = []
    for s in range(seq):
        dot_s = jnp.sum(q3 * k3[:, s:s + 1, :], axis=-1) * scale   # (blk, T)
        cols.append(jnp.where(t_idx >= s, dot_s, neg))
    m = cols[0]
    for s in range(1, seq):
        m = jnp.maximum(m, cols[s])
    ps = [jnp.exp(cols[s] - m) for s in range(seq)]
    l = ps[0]
    for s in range(1, seq):
        l = l + ps[s]
    inv = pl.reciprocal(l, approx=True)            # EUP slot
    inv = inv * (2.0 - l * inv)                    # one Newton step -> ~f32 accuracy
    ctx = (ps[0] * inv)[:, :, None] * v3[:, 0:1, :]
    for s in range(1, seq):
        ctx = ctx + (ps[s] * inv)[:, :, None] * v3[:, s:s + 1, :]

    # --- proj_out + residual (x_ref re-read here: no f32 input copy live across) ---
    out = jnp.dot(ctx.reshape(rows, c).astype(cdt), wp_ref[...],
                  preferred_element_type=f32) + bp_ref[...]
    o_ref[...] = (x_ref[...].astype(f32) + out).astype(o_ref.dtype)


# --------------------------------------------------------------------------- #
# Per-generation configuration / tile sizing
# --------------------------------------------------------------------------- #
def _generation_config():
    try:
        kind = jax.devices()[0].device_kind.lower()
    except Exception:
        kind = ""
    if "v7" in kind:
        # 64 MiB physical VMEM, 2 TensorCores per chip (megacore).
        return dict(vmem_limit=48 * 2**20, min_rows=1024, megacore=True,
                    single_buffer_weights=True)
    if "v6" in kind:
        return dict(vmem_limit=96 * 2**20, min_rows=1024, megacore=False,
                    single_buffer_weights=False)
    if "v5 lite" in kind or "v5lite" in kind or "v5e" in kind:
        # 128-wide MXU: 512 rows already fill the M dim.
        return dict(vmem_limit=96 * 2**20, min_rows=512, megacore=False,
                    single_buffer_weights=False)
    if "v5" in kind or "v4" in kind:
        return dict(vmem_limit=96 * 2**20, min_rows=1024, megacore=False,
                    single_buffer_weights=False)
    return dict(vmem_limit=64 * 2**20, min_rows=1024, megacore=False,
                single_buffer_weights=False)


def _choose_tiling(n, t, c, per_frame, act_itemsize, wt_bytes, wt_bufs, cfg):
    """Pick rows-per-step `blk` (multiple of 8) and padded row count `n_pad`."""
    gran = 8                                      # keeps every block sublane-aligned
    n_gran = _round_up(n, gran)
    budget = int(cfg["vmem_limit"] * 0.8)         # utilization target

    def vmem_est(b):
        act = b * t * c
        stat = (b * t * 2) if per_frame else (b * 2 * c)
        streamed = 2 * (2 * act * act_itemsize + stat * 4)      # x in + out + stats, double-buffered
        live_f32 = 9 * act * 4 + 4 * b * t * t * 4              # hn/qkv/q/k/v/ctx/out + logit columns
        return streamed + wt_bufs * wt_bytes + live_f32

    # MXU-fill rows are a FLOOR; shrink only if VMEM forces it, then GROW to budget.
    blk = min(n_gran, _round_up(max(1, -(-cfg["min_rows"] // t)), gran))
    while blk > gran and vmem_est(blk) > budget:
        blk = _round_up(blk // 2, gran)
    while blk < n_gran and vmem_est(min(blk * 2, n_gran)) <= budget:
        blk = min(blk * 2, n_gran)

    if cfg["megacore"] and n_gran >= 2 * gran:
        # v7x: >= 2 grid steps, rounded to an even count so both TCs get equal work.
        steps = _round_up(max(2, -(-n_gran // blk)), 2)
        blk = _round_up(-(-n_gran // steps), gran)
        return blk, blk * steps
    return blk, _round_up(n, blk)


# --------------------------------------------------------------------------- #
# Module wrapper
# --------------------------------------------------------------------------- #
def causal_temporal_attn_block(x, params, num_groups, block_rows=None,
                               matmul_dtype=None, eps=1e-6):
    """Forward pass of CausalTemporalAttnBlock.  x: (B, C, T, H, W)."""
    gamma, beta, wq, bq, wk, bk, wv, bv, wp, bp = params
    B, C, T, H, W = x.shape
    G = int(num_groups)
    assert C % G == 0
    n = B * H * W
    f32 = jnp.float32
    per_frame = (G == 1)

    # --- space2batch ONCE: (B,C,T,H,W) -> rows (b,h,w) x (T, C); the stats below
    #     are computed from this same layout (no second full-tensor read of x). ---
    x_t = jnp.transpose(x, (0, 3, 4, 2, 1))                                 # (B,H,W,T,C)
    x2 = x_t.reshape(n * T, C)

    gamma_c = gamma.reshape(1, C).astype(f32)
    beta_c = beta.reshape(1, C).astype(f32)

    # --- normalization statistics: tiny cross-tile reduction in plain JAX
    #     (single pass via E[x^2] - E[x]^2); the affine apply is fused in-kernel. ---
    if per_frame:
        # cosmos "causal" path: per-frame GroupNorm(1, C) -> stats per (b, t)
        x4 = x_t.reshape(B, H * W, T, C).astype(f32)
        mean = jnp.mean(x4, axis=(1, 3))                                    # (B, T)
        var = jnp.maximum(jnp.mean(jnp.square(x4), axis=(1, 3)) - jnp.square(mean), 0.0)
        rstd = lax.rsqrt(var + eps)
        stat = jnp.stack([mean, rstd], axis=-1)                             # (B, T, 2)
        stats = jnp.broadcast_to(stat[:, None], (B, H * W, T, 2)).reshape(n * T, 2)
    else:
        # plain GroupNorm(G, C): stats per (b, group); fold gamma/beta into one
        # per-(row, channel) scale/shift pair (constant over t, h, w).
        x5 = x_t.reshape(B, H * W, T, G, C // G).astype(f32)
        mean_g = jnp.mean(x5, axis=(1, 2, 4))                               # (B, G)
        var_g = jnp.maximum(jnp.mean(jnp.square(x5), axis=(1, 2, 4)) - jnp.square(mean_g), 0.0)
        rstd_g = lax.rsqrt(var_g + eps)
        scale_c = jnp.repeat(rstd_g, C // G, axis=1) * gamma_c              # (B, C)
        shift_c = beta_c - jnp.repeat(mean_g, C // G, axis=1) * scale_c
        stat = jnp.concatenate([scale_c, shift_c], axis=-1)                 # (B, 2C)
        stats = jnp.broadcast_to(stat[:, None], (B, H * W, 2 * C)).reshape(n, 2 * C)

    # --- fused weights: Q|K|V as one (C, 3C) matrix; MXU operands in matmul_dtype
    #     (default: model dtype), f32 accumulation in-kernel; softmax stays f32. ---
    mm_dt = matmul_dtype if matmul_dtype is not None else x.dtype
    wqkv = jnp.concatenate([wq.T, wk.T, wv.T], axis=1).astype(mm_dt)        # (C, 3C)
    bqkv = jnp.concatenate([bq, bk, bv]).reshape(1, 3 * C).astype(f32)
    wp_t = wp.T.astype(mm_dt)                                               # (C, C)
    bp_r = bp.reshape(1, C).astype(f32)

    cfg = _generation_config()
    wt_itemsize = wqkv.dtype.itemsize
    wt_bytes = 4 * C * C * wt_itemsize + 8 * C * 4
    # Single-buffer the constant weight blocks only where the duplicate actually
    # costs VMEM (v7x, larger C); tiny weight tiles keep the default pipelining.
    single_buf = cfg["single_buffer_weights"] and wt_bytes >= (2 << 20)
    wt_bufs = 1 if single_buf else 2

    if block_rows is not None:
        blk = max(8, _round_up(int(block_rows), 8))
        n_pad = _round_up(n, blk)
    else:
        blk, n_pad = _choose_tiling(n, T, C, per_frame, x.dtype.itemsize,
                                    wt_bytes, wt_bufs, cfg)

    if n_pad != n:
        pad_rows = n_pad - n
        x2 = jnp.pad(x2, ((0, pad_rows * T), (0, 0)))
        if per_frame:
            stats = jnp.pad(stats, ((0, pad_rows * T), (0, 0)))
        else:
            stats = jnp.pad(stats, ((0, pad_rows), (0, 0)))

    # Weight / bias blocks use a constant index_map (DMA'd once).  On v7x they are
    # additionally single-buffered to free VMEM for larger row tiles.
    wt_kwargs = {"pipeline_mode": pl.Buffered(1)} if single_buf else {}

    def const_spec(shape):
        return pl.BlockSpec(shape, lambda i: (0,) * len(shape), **wt_kwargs)

    row_spec = pl.BlockSpec((blk * T, C), lambda i: (i, 0))
    stat_spec = (pl.BlockSpec((blk * T, 2), lambda i: (i, 0)) if per_frame
                 else pl.BlockSpec((blk, 2 * C), lambda i: (i, 0)))

    kernel = functools.partial(_fused_attn_kernel, scale=float(C) ** -0.5,
                               seq=T, per_frame=per_frame)
    out = pl.pallas_call(
        kernel,
        out_shape=jax.ShapeDtypeStruct((n_pad * T, C), x.dtype),
        grid=(n_pad // blk,),
        in_specs=[row_spec, stat_spec,
                  const_spec((1, C)), const_spec((1, C)),
                  const_spec((C, 3 * C)), const_spec((1, 3 * C)),
                  const_spec((C, C)), const_spec((1, C))],
        out_specs=row_spec,
        compiler_params=pltpu.CompilerParams(
            dimension_semantics=("parallel",),
            vmem_limit_bytes=cfg["vmem_limit"]),
    )(x2, stats, gamma_c, beta_c, wqkv, bqkv, wp_t, bp_r)

    # --- batch2space: (n*T, C) -> (B, C, T, H, W) ---
    # TODO(synk): the NCDHW<->rows transposes stay as XLA ops; folding them into
    # the kernel needs lane-dense W (>=128), which typical tokenizer latents lack.
    return out[:n * T].reshape(B, H, W, T, C).transpose(0, 4, 3, 1, 2)


# ------------------------------ pure-JAX reference ---------------------------
def reference_forward(x, params, num_groups, eps=1e-6):
    gamma, beta, wq, bq, wk, bk, wv, bv, wp, bp = params
    B, C, T, H, W = x.shape
    if num_groups == 1:
        xr = jnp.transpose(x, (0, 2, 1, 3, 4)).reshape(B * T, C, H * W)
        mean = xr.mean(axis=(1, 2), keepdims=True)
        var = ((xr - mean) ** 2).mean(axis=(1, 2), keepdims=True)
        hn = (xr - mean) / jnp.sqrt(var + eps) * gamma.reshape(1, C, 1) + beta.reshape(1, C, 1)
        hn = hn.reshape(B, T, C, H, W).transpose(0, 2, 1, 3, 4)
    else:
        g = num_groups
        xr = x.reshape(B, g, C // g, T * H * W)
        mean = xr.mean(axis=(2, 3), keepdims=True)
        var = ((xr - mean) ** 2).mean(axis=(2, 3), keepdims=True)
        hn = ((xr - mean) / jnp.sqrt(var + eps)).reshape(B, C, T, H, W)
        hn = hn * gamma.reshape(1, C, 1, 1, 1) + beta.reshape(1, C, 1, 1, 1)

    def pw(a, w, b):  # pointwise 1x1x1 conv3d, w: (Cout, Cin)
        return jnp.einsum("bcthw,dc->bdthw", a, w) + b.reshape(1, C, 1, 1, 1)

    q, k, v = pw(hn, wq, bq), pw(hn, wk, bk), pw(hn, wv, bv)

    def s2b(a):
        return jnp.transpose(a, (0, 3, 4, 2, 1)).reshape(B * H * W, T, C)

    qb, kb, vb = s2b(q), s2b(k), s2b(v)
    w_ = jnp.einsum("ntc,nsc->nts", qb, kb) * (float(C) ** -0.5)
    row = jnp.arange(T)[:, None]
    col = jnp.arange(T)[None, :]
    w_ = jnp.where((col <= row)[None], w_, -jnp.inf)
    w_ = jax.nn.softmax(w_, axis=-1)
    hb = jnp.einsum("nts,nsc->ntc", w_, vb)
    hs = hb.reshape(B, H, W, T, C).transpose(0, 4, 3, 1, 2)
    return x + pw(hs, wp, bp)


if __name__ == "__main__":
    B, C, T, H, W = 2, 128, 8, 4, 4     # C multiple of 128 -> lane-dense tiles

    key = jax.random.PRNGKey(0)
    ks = jax.random.split(key, 8)
    x = jax.random.normal(ks[0], (B, C, T, H, W), jnp.float32)
    gamma = 1.0 + 0.1 * jax.random.normal(ks[1], (C, 1), jnp.float32)
    beta = 0.1 * jax.random.normal(ks[2], (C, 1), jnp.float32)

    def conv_init(k):
        kw, kb = jax.random.split(k)
        w = jax.random.normal(kw, (C, C), jnp.float32) / jnp.sqrt(C)
        b = 0.05 * jax.random.normal(kb, (C,), jnp.float32)
        return w, b

    wq, bq = conv_init(ks[3])
    wk, bk = conv_init(ks[4])
    wv, bv = conv_init(ks[5])
    wp, bp = conv_init(ks[6])
    params = (gamma, beta, wq, bq, wk, bk, wv, bv, wp, bp)

    for num_groups in (1, 8):            # 1 = cosmos "causal" per-frame path
        fwd = jax.jit(functools.partial(causal_temporal_attn_block,
                                        num_groups=num_groups))
        out = jax.block_until_ready(fwd(x, params))
        ref = reference_forward(x, params, num_groups)
        assert out.shape == x.shape
        max_err = float(jnp.max(jnp.abs(out - ref)))
        assert jnp.allclose(out, ref, atol=5e-4, rtol=5e-4), (num_groups, max_err)

    print("KERNEL_OK")
</pallas_src>

<mosaic_0001>
module attributes {stable_mosaic.version = 11 : i64} {
  func.func @_fused_attn_kernel(%arg0: i32, %arg1: memref<256x128xf32, #tpu.memory_space<vmem>>, %arg2: memref<256x2xf32, #tpu.memory_space<vmem>>, %arg3: memref<1x128xf32, #tpu.memory_space<vmem>>, %arg4: memref<1x128xf32, #tpu.memory_space<vmem>>, %arg5: memref<128x384xf32, #tpu.memory_space<vmem>>, %arg6: memref<1x384xf32, #tpu.memory_space<vmem>>, %arg7: memref<128x128xf32, #tpu.memory_space<vmem>>, %arg8: memref<1x128xf32, #tpu.memory_space<vmem>>, %arg9: memref<256x128xf32, #tpu.memory_space<vmem>>) attributes {dimension_semantics = [#tpu.dimension_semantics<parallel>], iteration_bounds = array<i64: 1>, scalar_prefetch = 0 : i64, scratch_operands = 0 : i64, tpu.core_type = #tpu.core_type<tc>, window_params = [{transform_indices = @transform_0, window_bounds = array<i64: 256, 128>}, {transform_indices = @transform_1, window_bounds = array<i64: 256, 2>}, {pipeline_mode = #tpu.pipeline_mode<synchronous>, transform_indices = @transform_2, window_bounds = array<i64: 1, 128>}, {pipeline_mode = #tpu.pipeline_mode<synchronous>, transform_indices = @transform_3, window_bounds = array<i64: 1, 128>}, {pipeline_mode = #tpu.pipeline_mode<synchronous>, transform_indices = @transform_4, window_bounds = array<i64: 128, 384>}, {pipeline_mode = #tpu.pipeline_mode<synchronous>, transform_indices = @transform_5, window_bounds = array<i64: 1, 384>}, {pipeline_mode = #tpu.pipeline_mode<synchronous>, transform_indices = @transform_6, window_bounds = array<i64: 128, 128>}, {pipeline_mode = #tpu.pipeline_mode<synchronous>, transform_indices = @transform_7, window_bounds = array<i64: 1, 128>}, {transform_indices = @transform_8, window_bounds = array<i64: 256, 128>}]} {
    %c0 = arith.constant 0 : index
    %c0_0 = arith.constant 0 : index
    %0 = vector.load %arg2[%c0, %c0_0] : memref<256x2xf32, #tpu.memory_space<vmem>>, vector<256x2xf32>
    %c0_1 = arith.constant 0 : index
    %c0_2 = arith.constant 0 : index
    %1 = vector.load %arg1[%c0_1, %c0_2] : memref<256x128xf32, #tpu.memory_space<vmem>>, vector<256x128xf32>
    %2 = vector.extract_strided_slice %0 {offsets = [0, 0], sizes = [256, 1], strides = [1, 1]} : vector<256x2xf32> to vector<256x1xf32>
    %3 = vector.broadcast %2 : vector<256x1xf32> to vector<256x128xf32>
    %4 = arith.subf %1, %3 : vector<256x128xf32>
    %5 = vector.extract_strided_slice %0 {offsets = [0, 1], sizes = [256, 1], strides = [1, 1]} : vector<256x2xf32> to vector<256x1xf32>
    %6 = vector.broadcast %5 : vector<256x1xf32> to vector<256x128xf32>
    %7 = arith.mulf %4, %6 : vector<256x128xf32>
    %c0_3 = arith.constant 0 : index
    %c0_4 = arith.constant 0 : index
    %8 = vector.load %arg3[%c0_3, %c0_4] : memref<1x128xf32, #tpu.memory_space<vmem>>, vector<1x128xf32>
    %9 = vector.broadcast %8 : vector<1x128xf32> to vector<256x128xf32>
    %10 = arith.mulf %7, %9 : vector<256x128xf32>
    %c0_5 = arith.constant 0 : index
    %c0_6 = arith.constant 0 : index
    %11 = vector.load %arg4[%c0_5, %c0_6] : memref<1x128xf32, #tpu.memory_space<vmem>>, vector<1x128xf32>
    %12 = vector.broadcast %11 : vector<1x128xf32> to vector<256x128xf32>
    %13 = arith.addf %10, %12 : vector<256x128xf32>
    %c0_7 = arith.constant 0 : index
    %c0_8 = arith.constant 0 : index
    %14 = vector.load %arg5[%c0_7, %c0_8] : memref<128x384xf32, #tpu.memory_space<vmem>>, vector<128x384xf32>
    %cst = arith.constant dense<0.000000e+00> : vector<256x384xf32>
    %15 = tpu.matmul %13, %14, %cst {dimension_numbers = #tpu.dot_dimension_numbers<[1], [0], [0], [1], [0, 0, 1, 1], [], []>} : vector<256x128xf32>, vector<128x384xf32>, vector<256x384xf32> -> vector<256x384xf32>
    %c0_9 = arith.constant 0 : index
    %c0_10 = arith.constant 0 : index
    %16 = vector.load %arg6[%c0_9, %c0_10] : memref<1x384xf32, #tpu.memory_space<vmem>>, vector<1x384xf32>
    %17 = vector.broadcast %16 : vector<1x384xf32> to vector<256x384xf32>
    %18 = arith.addf %15, %17 : vector<256x384xf32>
    %19 = vector.extract_strided_slice %18 {offsets = [0, 0], sizes = [256, 128], strides = [1, 1]} : vector<256x384xf32> to vector<256x128xf32>
    %20 = vector.shape_cast %19 : vector<256x128xf32> to vector<32x8x128xf32>
    %21 = vector.extract_strided_slice %18 {offsets = [0, 128], sizes = [256, 128], strides = [1, 1]} : vector<256x384xf32> to vector<256x128xf32>
    %22 = vector.shape_cast %21 : vector<256x128xf32> to vector<32x8x128xf32>
    %23 = vector.extract_strided_slice %18 {offsets = [0, 256], sizes = [256, 128], strides = [1, 1]} : vector<256x384xf32> to vector<256x128xf32>
    %24 = vector.shape_cast %23 : vector<256x128xf32> to vector<32x8x128xf32>
    %25 = tpu.iota {dimensions = array<i32: 1>} : vector<32x8xi32>
    %26 = vector.extract_strided_slice %22 {offsets = [0, 0, 0], sizes = [32, 1, 128], strides = [1, 1, 1]} : vector<32x8x128xf32> to vector<32x1x128xf32>
    %27 = vector.broadcast %26 : vector<32x1x128xf32> to vector<32x8x128xf32>
    %28 = arith.mulf %20, %27 : vector<32x8x128xf32>
    %cst_11 = arith.constant dense<0.000000e+00> : vector<32x8xf32>
    %29 = vector.multi_reduction <add>, %28, %cst_11 [2] : vector<32x8x128xf32> to vector<32x8xf32>
    %cst_12 = arith.constant 0.0883883461 : f32
    %30 = vector.broadcast %cst_12 : f32 to vector<32x8xf32>
    %31 = arith.mulf %29, %30 : vector<32x8xf32>
    %c0_i32 = arith.constant 0 : i32
    %32 = vector.broadcast %c0_i32 : i32 to vector<32x8xi32>
    %33 = arith.cmpi sge, %25, %32 : vector<32x8xi32>
    %cst_13 = arith.constant -1.000000e+30 : f32
    %34 = vector.broadcast %cst_13 : f32 to vector<32x8xf32>
    %35 = arith.select %33, %31, %34 : vector<32x8xi1>, vector<32x8xf32>
    %36 = vector.extract_strided_slice %22 {offsets = [0, 1, 0], sizes = [32, 1, 128], strides = [1, 1, 1]} : vector<32x8x128xf32> to vector<32x1x128xf32>
    %37 = vector.broadcast %36 : vector<32x1x128xf32> to vector<32x8x128xf32>
    %38 = arith.mulf %20, %37 : vector<32x8x128xf32>
    %cst_14 = arith.constant dense<0.000000e+00> : vector<32x8xf32>
    %39 = vector.multi_reduction <add>, %38, %cst_14 [2] : vector<32x8x128xf32> to vector<32x8xf32>
    %cst_15 = arith.constant 0.0883883461 : f32
    %40 = vector.broadcast %cst_15 : f32 to vector<32x8xf32>
    %41 = arith.mulf %39, %40 : vector<32x8xf32>
    %c1_i32 = arith.constant 1 : i32
    %42 = vector.broadcast %c1_i32 : i32 to vector<32x8xi32>
    %43 = arith.cmpi sge, %25, %42 : vector<32x8xi32>
    %cst_16 = arith.constant -1.000000e+30 : f32
    %44 = vector.broadcast %cst_16 : f32 to vector<32x8xf32>
    %45 = arith.select %43, %41, %44 : vector<32x8xi1>, vector<32x8xf32>
    %46 = vector.extract_strided_slice %22 {offsets = [0, 2, 0], sizes = [32, 1, 128], strides = [1, 1, 1]} : vector<32x8x128xf32> to vector<32x1x128xf32>
    %47 = vector.broadcast %46 : vector<32x1x128xf32> to vector<32x8x128xf32>
    %48 = arith.mulf %20, %47 : vector<32x8x128xf32>
    %cst_17 = arith.constant dense<0.000000e+00> : vector<32x8xf32>
    %49 = vector.multi_reduction <add>, %48, %cst_17 [2] : vector<32x8x128xf32> to vector<32x8xf32>
    %cst_18 = arith.constant 0.0883883461 : f32
    %50 = vector.broadcast %cst_18 : f32 to vector<32x8xf32>
    %51 = arith.mulf %49, %50 : vector<32x8xf32>
    %c2_i32 = arith.constant 2 : i32
    %52 = vector.broadcast %c2_i32 : i32 to vector<32x8xi32>
    %53 = arith.cmpi sge, %25, %52 : vector<32x8xi32>
    %cst_19 = arith.constant -1.000000e+30 : f32
    %54 = vector.broadcast %cst_19 : f32 to vector<32x8xf32>
    %55 = arith.select %53, %51, %54 : vector<32x8xi1>, vector<32x8xf32>
    %56 = vector.extract_strided_slice %22 {offsets = [0, 3, 0], sizes = [32, 1, 128], strides = [1, 1, 1]} : vector<32x8x128xf32> to vector<32x1x128xf32>
    %57 = vector.broadcast %56 : vector<32x1x128xf32> to vector<32x8x128xf32>
    %58 = arith.mulf %20, %57 : vector<32x8x128xf32>
    %cst_20 = arith.constant dense<0.000000e+00> : vector<32x8xf32>
    %59 = vector.multi_reduction <add>, %58, %cst_20 [2] : vector<32x8x128xf32> to vector<32x8xf32>
    %cst_21 = arith.constant 0.0883883461 : f32
    %60 = vector.broadcast %cst_21 : f32 to vector<32x8xf32>
    %61 = arith.mulf %59, %60 : vector<32x8xf32>
    %c3_i32 = arith.constant 3 : i32
    %62 = vector.broadcast %c3_i32 : i32 to vector<32x8xi32>
    %63 = arith.cmpi sge, %25, %62 : vector<32x8xi32>
    %cst_22 = arith.constant -1.000000e+30 : f32
    %64 = vector.broadcast %cst_22 : f32 to vector<32x8xf32>
    %65 = arith.select %63, %61, %64 : vector<32x8xi1>, vector<32x8xf32>
    %66 = vector.extract_strided_slice %22 {offsets = [0, 4, 0], sizes = [32, 1, 128], strides = [1, 1, 1]} : vector<32x8x128xf32> to vector<32x1x128xf32>
    %67 = vector.broadcast %66 : vector<32x1x128xf32> to vector<32x8x128xf32>
    %68 = arith.mulf %20, %67 : vector<32x8x128xf32>
    %cst_23 = arith.constant dense<0.000000e+00> : vector<32x8xf32>
    %69 = vector.multi_reduction <add>, %68, %cst_23 [2] : vector<32x8x128xf32> to vector<32x8xf32>
    %cst_24 = arith.constant 0.0883883461 : f32
    %70 = vector.broadcast %cst_24 : f32 to vector<32x8xf32>
    %71 = arith.mulf %69, %70 : vector<32x8xf32>
    %c4_i32 = arith.constant 4 : i32
    %72 = vector.broadcast %c4_i32 : i32 to vector<32x8xi32>
    %73 = arith.cmpi sge, %25, %72 : vector<32x8xi32>
    %cst_25 = arith.constant -1.000000e+30 : f32
    %74 = vector.broadcast %cst_25 : f32 to vector<32x8xf32>
    %75 = arith.select %73, %71, %74 : vector<32x8xi1>, vector<32x8xf32>
    %76 = vector.extract_strided_slice %22 {offsets = [0, 5, 0], sizes = [32, 1, 128], strides = [1, 1, 1]} : vector<32x8x128xf32> to vector<32x1x128xf32>
    %77 = vector.broadcast %76 : vector<32x1x128xf32> to vector<32x8x128xf32>
    %78 = arith.mulf %20, %77 : vector<32x8x128xf32>
    %cst_26 = arith.constant dense<0.000000e+00> : vector<32x8xf32>
    %79 = vector.multi_reduction <add>, %78, %cst_26 [2] : vector<32x8x128xf32> to vector<32x8xf32>
    %cst_27 = arith.constant 0.0883883461 : f32
    %80 = vector.broadcast %cst_27 : f32 to vector<32x8xf32>
    %81 = arith.mulf %79, %80 : vector<32x8xf32>
    %c5_i32 = arith.constant 5 : i32
    %82 = vector.broadcast %c5_i32 : i32 to vector<32x8xi32>
    %83 = arith.cmpi sge, %25, %82 : vector<32x8xi32>
    %cst_28 = arith.constant -1.000000e+30 : f32
    %84 = vector.broadcast %cst_28 : f32 to vector<32x8xf32>
    %85 = arith.select %83, %81, %84 : vector<32x8xi1>, vector<32x8xf32>
    %86 = vector.extract_strided_slice %22 {offsets = [0, 6, 0], sizes = [32, 1, 128], strides = [1, 1, 1]} : vector<32x8x128xf32> to vector<32x1x128xf32>
    %87 = vector.broadcast %86 : vector<32x1x128xf32> to vector<32x8x128xf32>
    %88 = arith.mulf %20, %87 : vector<32x8x128xf32>
    %cst_29 = arith.constant dense<0.000000e+00> : vector<32x8xf32>
    %89 = vector.multi_reduction <add>, %88, %cst_29 [2] : vector<32x8x128xf32> to vector<32x8xf32>
    %cst_30 = arith.constant 0.0883883461 : f32
    %90 = vector.broadcast %cst_30 : f32 to vector<32x8xf32>
    %91 = arith.mulf %89, %90 : vector<32x8xf32>
    %c6_i32 = arith.constant 6 : i32
    %92 = vector.broadcast %c6_i32 : i32 to vector<32x8xi32>
    %93 = arith.cmpi sge, %25, %92 : vector<32x8xi32>
    %cst_31 = arith.constant -1.000000e+30 : f32
    %94 = vector.broadcast %cst_31 : f32 to vector<32x8xf32>
    %95 = arith.select %93, %91, %94 : vector<32x8xi1>, vector<32x8xf32>
    %96 = vector.extract_strided_slice %22 {offsets = [0, 7, 0], sizes = [32, 1, 128], strides = [1, 1, 1]} : vector<32x8x128xf32> to vector<32x1x128xf32>
    %97 = vector.broadcast %96 : vector<32x1x128xf32> to vector<32x8x128xf32>
    %98 = arith.mulf %20, %97 : vector<32x8x128xf32>
    %cst_32 = arith.constant dense<0.000000e+00> : vector<32x8xf32>
    %99 = vector.multi_reduction <add>, %98, %cst_32 [2] : vector<32x8x128xf32> to vector<32x8xf32>
    %cst_33 = arith.constant 0.0883883461 : f32
    %100 = vector.broadcast %cst_33 : f32 to vector<32x8xf32>
    %101 = arith.mulf %99, %100 : vector<32x8xf32>
    %c7_i32 = arith.constant 7 : i32
    %102 = vector.broadcast %c7_i32 : i32 to vector<32x8xi32>
    %103 = arith.cmpi sge, %25, %102 : vector<32x8xi32>
    %cst_34 = arith.constant -1.000000e+30 : f32
    %104 = vector.broadcast %cst_34 : f32 to vector<32x8xf32>
    %105 = arith.select %103, %101, %104 : vector<32x8xi1>, vector<32x8xf32>
    %106 = arith.maximumf %35, %45 : vector<32x8xf32>
    %107 = arith.maximumf %106, %55 : vector<32x8xf32>
    %108 = arith.maximumf %107, %65 : vector<32x8xf32>
    %109 = arith.maximumf %108, %75 : vector<32x8xf32>
    %110 = arith.maximumf %109, %85 : vector<32x8xf32>
    %111 = arith.maximumf %110, %95 : vector<32x8xf32>
    %112 = arith.maximumf %111, %105 : vector<32x8xf32>
    %113 = arith.subf %35, %112 : vector<32x8xf32>
    %114 = math.exp %113 : vector<32x8xf32>
    %115 = arith.subf %45, %112 : vector<32x8xf32>
    %116 = math.exp %115 : vector<32x8xf32>
    %117 = arith.subf %55, %112 : vector<32x8xf32>
    %118 = math.exp %117 : vector<32x8xf32>
    %119 = arith.subf %65, %112 : vector<32x8xf32>
    %120 = math.exp %119 : vector<32x8xf32>
    %121 = arith.subf %75, %112 : vector<32x8xf32>
    %122 = math.exp %121 : vector<32x8xf32>
    %123 = arith.subf %85, %112 : vector<32x8xf32>
    %124 = math.exp %123 : vector<32x8xf32>
    %125 = arith.subf %95, %112 : vector<32x8xf32>
    %126 = math.exp %125 : vector<32x8xf32>
    %127 = arith.subf %105, %112 : vector<32x8xf32>
    %128 = math.exp %127 : vector<32x8xf32>
    %129 = arith.addf %114, %116 : vector<32x8xf32>
    %130 = arith.addf %129, %118 : vector<32x8xf32>
    %131 = arith.addf %130, %120 : vector<32x8xf32>
    %132 = arith.addf %131, %122 : vector<32x8xf32>
    %133 = arith.addf %132, %124 : vector<32x8xf32>
    %134 = arith.addf %133, %126 : vector<32x8xf32>
    %135 = arith.addf %134, %128 : vector<32x8xf32>
    %136 = tpu.reciprocal %135 {approx = true} : vector<32x8xf32> -> vector<32x8xf32>
    %137 = arith.mulf %135, %136 : vector<32x8xf32>
    %cst_35 = arith.constant 2.000000e+00 : f32
    %138 = vector.broadcast %cst_35 : f32 to vector<32x8xf32>
    %139 = arith.subf %138, %137 : vector<32x8xf32>
    %140 = arith.mulf %136, %139 : vector<32x8xf32>
    %141 = arith.mulf %114, %140 : vector<32x8xf32>
    %142 = vector.shape_cast %141 : vector<32x8xf32> to vector<32x8x1xf32>
    %143 = vector.extract_strided_slice %24 {offsets = [0, 0, 0], sizes = [32, 1, 128], strides = [1, 1, 1]} : vector<32x8x128xf32> to vector<32x1x128xf32>
    %144 = vector.broadcast %142 : vector<32x8x1xf32> to vector<32x8x128xf32>
    %145 = vector.broadcast %143 : vector<32x1x128xf32> to vector<32x8x128xf32>
    %146 = arith.mulf %144, %145 : vector<32x8x128xf32>
    %147 = arith.mulf %116, %140 : vector<32x8xf32>
    %148 = vector.shape_cast %147 : vector<32x8xf32> to vector<32x8x1xf32>
    %149 = vector.extract_strided_slice %24 {offsets = [0, 1, 0], sizes = [32, 1, 128], strides = [1, 1, 1]} : vector<32x8x128xf32> to vector<32x1x128xf32>
    %150 = vector.broadcast %148 : vector<32x8x1xf32> to vector<32x8x128xf32>
    %151 = vector.broadcast %149 : vector<32x1x128xf32> to vector<32x8x128xf32>
    %152 = arith.mulf %150, %151 : vector<32x8x128xf32>
    %153 = arith.addf %146, %152 : vector<32x8x128xf32>
    %154 = arith.mulf %118, %140 : vector<32x8xf32>
    %155 = vector.shape_cast %154 : vector<32x8xf32> to vector<32x8x1xf32>
    %156 = vector.extract_strided_slice %24 {offsets = [0, 2, 0], sizes = [32, 1, 128], strides = [1, 1, 1]} : vector<32x8x128xf32> to vector<32x1x128xf32>
    %157 = vector.broadcast %155 : vector<32x8x1xf32> to vector<32x8x128xf32>
    %158 = vector.broadcast %156 : vector<32x1x128xf32> to vector<32x8x128xf32>
    %159 = arith.mulf %157, %158 : vector<32x8x128xf32>
    %160 = arith.addf %153, %159 : vector<32x8x128xf32>
    %161 = arith.mulf %120, %140 : vector<32x8xf32>
    %162 = vector.shape_cast %161 : vector<32x8xf32> to vector<32x8x1xf32>
    %163 = vector.extract_strided_slice %24 {offsets = [0, 3, 0], sizes = [32, 1, 128], strides = [1, 1, 1]} : vector<32x8x128xf32> to vector<32x1x128xf32>
    %164 = vector.broadcast %162 : vector<32x8x1xf32> to vector<32x8x128xf32>
    %165 = vector.broadcast %163 : vector<32x1x128xf32> to vector<32x8x128xf32>
    %166 = arith.mulf %164, %165 : vector<32x8x128xf32>
    %167 = arith.addf %160, %166 : vector<32x8x128xf32>
    %168 = arith.mulf %122, %140 : vector<32x8xf32>
    %169 = vector.shape_cast %168 : vector<32x8xf32> to vector<32x8x1xf32>
    %170 = vector.extract_strided_slice %24 {offsets = [0, 4, 0], sizes = [32, 1, 128], strides = [1, 1, 1]} : vector<32x8x128xf32> to vector<32x1x128xf32>
    %171 = vector.broadcast %169 : vector<32x8x1xf32> to vector<32x8x128xf32>
    %172 = vector.broadcast %170 : vector<32x1x128xf32> to vector<32x8x128xf32>
    %173 = arith.mulf %171, %172 : vector<32x8x128xf32>
    %174 = arith.addf %167, %173 : vector<32x8x128xf32>
    %175 = arith.mulf %124, %140 : vector<32x8xf32>
    %176 = vector.shape_cast %175 : vector<32x8xf32> to vector<32x8x1xf32>
    %177 = vector.extract_strided_slice %24 {offsets = [0, 5, 0], sizes = [32, 1, 128], strides = [1, 1, 1]} : vector<32x8x128xf32> to vector<32x1x128xf32>
    %178 = vector.broadcast %176 : vector<32x8x1xf32> to vector<32x8x128xf32>
    %179 = vector.broadcast %177 : vector<32x1x128xf32> to vector<32x8x128xf32>
    %180 = arith.mulf %178, %179 : vector<32x8x128xf32>
    %181 = arith.addf %174, %180 : vector<32x8x128xf32>
    %182 = arith.mulf %126, %140 : vector<32x8xf32>
    %183 = vector.shape_cast %182 : vector<32x8xf32> to vector<32x8x1xf32>
    %184 = vector.extract_strided_slice %24 {offsets = [0, 6, 0], sizes = [32, 1, 128], strides = [1, 1, 1]} : vector<32x8x128xf32> to vector<32x1x128xf32>
    %185 = vector.broadcast %183 : vector<32x8x1xf32> to vector<32x8x128xf32>
    %186 = vector.broadcast %184 : vector<32x1x128xf32> to vector<32x8x128xf32>
    %187 = arith.mulf %185, %186 : vector<32x8x128xf32>
    %188 = arith.addf %181, %187 : vector<32x8x128xf32>
    %189 = arith.mulf %128, %140 : vector<32x8xf32>
    %190 = vector.shape_cast %189 : vector<32x8xf32> to vector<32x8x1xf32>
    %191 = vector.extract_strided_slice %24 {offsets = [0, 7, 0], sizes = [32, 1, 128], strides = [1, 1, 1]} : vector<32x8x128xf32> to vector<32x1x128xf32>
    %192 = vector.broadcast %190 : vector<32x8x1xf32> to vector<32x8x128xf32>
    %193 = vector.broadcast %191 : vector<32x1x128xf32> to vector<32x8x128xf32>
    %194 = arith.mulf %192, %193 : vector<32x8x128xf32>
    %195 = arith.addf %188, %194 : vector<32x8x128xf32>
    %196 = vector.shape_cast %195 : vector<32x8x128xf32> to vector<256x128xf32>
    %c0_36 = arith.constant 0 : index
    %c0_37 = arith.constant 0 : index
    %197 = vector.load %arg7[%c0_36, %c0_37] : memref<128x128xf32, #tpu.memory_space<vmem>>, vector<128x128xf32>
    %cst_38 = arith.constant dense<0.000000e+00> : vector<256x128xf32>
    %198 = tpu.matmul %196, %197, %cst_38 {dimension_numbers = #tpu.dot_dimension_numbers<[1], [0], [0], [1], [0, 0, 1, 1], [], []>} : vector<256x128xf32>, vector<128x128xf32>, vector<256x128xf32> -> vector<256x128xf32>
    %c0_39 = arith.constant 0 : index
    %c0_40 = arith.constant 0 : index
    %199 = vector.load %arg8[%c0_39, %c0_40] : memref<1x128xf32, #tpu.memory_space<vmem>>, vector<1x128xf32>
    %200 = vector.broadcast %199 : vector<1x128xf32> to vector<256x128xf32>
    %201 = arith.addf %198, %200 : vector<256x128xf32>
    %c0_41 = arith.constant 0 : index
    %c0_42 = arith.constant 0 : index
    %202 = vector.load %arg1[%c0_41, %c0_42] : memref<256x128xf32, #tpu.memory_space<vmem>>, vector<256x128xf32>
    %203 = arith.addf %202, %201 : vector<256x128xf32>
    %c0_43 = arith.constant 0 : index
    %c0_44 = arith.constant 0 : index
    %204 = vector.load %arg9[%c0_43, %c0_44] : memref<256x128xf32, #tpu.memory_space<vmem>>, vector<256x128xf32>
    tpu.vector_store %arg9[%c0_43, %c0_44], %203 {strides = array<i32>} : memref<256x128xf32, #tpu.memory_space<vmem>>, vector<256x128xf32>,
    return
  }
  func.func @transform_0(%arg0: i32) -> (i32, i32) {
    %c0_i32 = arith.constant 0 : i32
    %c0_i32_0 = arith.constant 0 : i32
    return %arg0, %c0_i32 : i32, i32
  }
  func.func @transform_1(%arg0: i32) -> (i32, i32) {
    %c0_i32 = arith.constant 0 : i32
    %c0_i32_0 = arith.constant 0 : i32
    return %arg0, %c0_i32 : i32, i32
  }
  func.func @transform_2(%arg0: i32) -> (i32, i32) {
    %c0_i32 = arith.constant 0 : i32
    %c0_i32_0 = arith.constant 0 : i32
    %c0_i32_1 = arith.constant 0 : i32
    return %c0_i32, %c0_i32_0 : i32, i32
  }
  func.func @transform_3(%arg0: i32) -> (i32, i32) {
    %c0_i32 = arith.constant 0 : i32
    %c0_i32_0 = arith.constant 0 : i32
    %c0_i32_1 = arith.constant 0 : i32
    return %c0_i32, %c0_i32_0 : i32, i32
  }
  func.func @transform_4(%arg0: i32) -> (i32, i32) {
    %c0_i32 = arith.constant 0 : i32
    %c0_i32_0 = arith.constant 0 : i32
    %c0_i32_1 = arith.constant 0 : i32
    return %c0_i32, %c0_i32_0 : i32, i32
  }
  func.func @transform_5(%arg0: i32) -> (i32, i32) {
    %c0_i32 = arith.constant 0 : i32
    %c0_i32_0 = arith.constant 0 : i32
    %c0_i32_1 = arith.constant 0 : i32
    return %c0_i32, %c0_i32_0 : i32, i32
  }
  func.func @transform_6(%arg0: i32) -> (i32, i32) {
    %c0_i32 = arith.constant 0 : i32
    %c0_i32_0 = arith.constant 0 : i32
    %c0_i32_1 = arith.constant 0 : i32
    return %c0_i32, %c0_i32_0 : i32, i32
  }
  func.func @transform_7(%arg0: i32) -> (i32, i32) {
    %c0_i32 = arith.constant 0 : i32
    %c0_i32_0 = arith.constant 0 : i32
    %c0_i32_1 = arith.constant 0 : i32
    return %c0_i32, %c0_i32_0 : i32, i32
  }
  func.func @transform_8(%arg0: i32) -> (i32, i32) {
    %c0_i32 = arith.constant 0 : i32
    %c0_i32_0 = arith.constant 0 : i32
    return %arg0, %c0_i32 : i32, i32
  }
}

</mosaic_0001>

<llo_original>
// kernel: causal_temporal_attn_block.1
$region0: #{causal_temporal_attn_block.1}
  #allocation0 [shape = 'u32[]', space=smem, size = 0x4, offset = 0x4, fixed_abs, tag = 'smem constant byte address 0x4 - core index']
  #allocation1 [shape = 'u32[144,128]{1,0:T(1,128)}', space=vmem, size = 0x12000, scoped, tag = 'internal scratch']
  %s0 = inlined_call_operand.vmem [shape: f32[256,128], index: 0, kind: input, shape index: {}]
  %s1 = inlined_call_operand.vmem [shape: f32[256,2], index: 1, kind: input, shape index: {}]
  %s2 = inlined_call_operand.vmem [shape: f32[1,128], index: 2, kind: input, shape index: {}]
  %s3 = inlined_call_operand.vmem [shape: f32[1,128], index: 3, kind: input, shape index: {}]
  %s4 = inlined_call_operand.vmem [shape: f32[128,384], index: 4, kind: input, shape index: {}]
  %s5 = inlined_call_operand.vmem [shape: f32[1,384], index: 5, kind: input, shape index: {}]
  %s6 = inlined_call_operand.vmem [shape: f32[128,128], index: 6, kind: input, shape index: {}]
  %s7 = inlined_call_operand.vmem [shape: f32[1,128], index: 7, kind: input, shape index: {}]
  %s8 = inlined_call_operand.vmem [shape: f32[256,128], index: 8, kind: output, shape index: {}]
  %s9 = sld [smem:[#allocation0]]
  $region42: #{causal_temporal_attn_block.1} parent=0
    _
  %s11 = ssub.s32 1, %s9
  %s12 = scalar_select 0, %s11, %s9
  // Predicated region
  $region2: #{causal_temporal_attn_block.1} parent=0 // pred_check
    _
  $region3: #{causal_temporal_attn_block.1} parent=0 // pred_check_branch
    %14 = sbr.rel (0) target = $region5
  $region4: #{causal_temporal_attn_block.1} parent=0 // pred_region
    _
  $region5: #{causal_temporal_attn_block.1} parent=0 // pred_fallthru
    _
  // Predicated region
  $region6: #{causal_temporal_attn_block.1} parent=0 // pred_check
    _
  $region7: #{causal_temporal_attn_block.1} parent=0 // pred_check_branch
    %16 = sbr.rel (0) target = $region9
  $region8: #{causal_temporal_attn_block.1} parent=0 // pred_region
    _
  $region9: #{causal_temporal_attn_block.1} parent=0 // pred_fallthru
    _
  // Predicated region
  $region10: #{causal_temporal_attn_block.1} parent=0 // pred_check
    _
  $region11: #{causal_temporal_attn_block.1} parent=0 // pred_check_branch
    %18 = sbr.rel (0) target = $region13
  $region12: #{causal_temporal_attn_block.1} parent=0 // pred_region
    _
  $region13: #{causal_temporal_attn_block.1} parent=0 // pred_fallthru
    _
  // Predicated region
  $region14: #{causal_temporal_attn_block.1} parent=0 // pred_check
    _
  $region15: #{causal_temporal_attn_block.1} parent=0 // pred_check_branch
    %20 = sbr.rel (0) target = $region17
  $region16: #{causal_temporal_attn_block.1} parent=0 // pred_region
    _
  $region17: #{causal_temporal_attn_block.1} parent=0 // pred_fallthru
    _
  // Predicated region
  $region18: #{causal_temporal_attn_block.1} parent=0 // pred_check
    _
  $region19: #{causal_temporal_attn_block.1} parent=0 // pred_check_branch
    %22 = sbr.rel (0) target = $region21
  $region20: #{causal_temporal_attn_block.1} parent=0 // pred_region
    _
  $region21: #{causal_temporal_attn_block.1} parent=0 // pred_fallthru
    _
  // Predicated region
  $region22: #{causal_temporal_attn_block.1} parent=0 // pred_check
    _
  $region23: #{causal_temporal_attn_block.1} parent=0 // pred_check_branch
    %24 = sbr.rel (0) target = $region25
  $region24: #{causal_temporal_attn_block.1} parent=0 // pred_region
    _
  $region25: #{causal_temporal_attn_block.1} parent=0 // pred_fallthru
    _
  // Predicated region
  $region26: #{causal_temporal_attn_block.1} parent=0 // pred_check
    _
  $region27: #{causal_temporal_attn_block.1} parent=0 // pred_check_branch
    %26 = sbr.rel (0) target = $region29
  $region28: #{causal_temporal_attn_block.1} parent=0 // pred_region
    _
  $region29: #{causal_temporal_attn_block.1} parent=0 // pred_fallthru
    _
  // Predicated region
  $region30: #{causal_temporal_attn_block.1} parent=0 // pred_check
    _
  $region31: #{causal_temporal_attn_block.1} parent=0 // pred_check_branch
    %28 = sbr.rel (0) target = $region33
  $region32: #{causal_temporal_attn_block.1} parent=0 // pred_region
    _
  $region33: #{causal_temporal_attn_block.1} parent=0 // pred_fallthru
    _
  %v29 = vld [vmem:[%s1] sm:$0xff]
  %v30 = vld [vmem:[%s1 + $0x8] sm:$0xff]
  %v31 = vld [vmem:[%s1 + $0x10] sm:$0xff]
  %v32 = vld [vmem:[%s1 + $0x18] sm:$0xff]
  %v33 = vld [vmem:[%s1 + $0x20] sm:$0xff]
  %v34 = vld [vmem:[%s1 + $0x28] sm:$0xff]
  %v35 = vld [vmem:[%s1 + $0x30] sm:$0xff]
  %v36 = vld [vmem:[%s1 + $0x38] sm:$0xff]
  %v37 = vld [vmem:[%s1 + $0x40] sm:$0xff]
  %v38 = vld [vmem:[%s1 + $0x48] sm:$0xff]
  %v39 = vld [vmem:[%s1 + $0x50] sm:$0xff]
  %v40 = vld [vmem:[%s1 + $0x58] sm:$0xff]
  %v41 = vld [vmem:[%s1 + $0x60] sm:$0xff]
  %v42 = vld [vmem:[%s1 + $0x68] sm:$0xff]
  %v43 = vld [vmem:[%s1 + $0x70] sm:$0xff]
  %v44 = vld [vmem:[%s1 + $0x78] sm:$0xff]
  %v45 = vld [vmem:[%s1 + $0x80] sm:$0xff]
  %v46 = vld [vmem:[%s1 + $0x88] sm:$0xff]
  %v47 = vld [vmem:[%s1 + $0x90] sm:$0xff]
  %v48 = vld [vmem:[%s1 + $0x98] sm:$0xff]
  %v49 = vld [vmem:[%s1 + $0xa0] sm:$0xff]
  %v50 = vld [vmem:[%s1 + $0xa8] sm:$0xff]
  %v51 = vld [vmem:[%s1 + $0xb0] sm:$0xff]
  %v52 = vld [vmem:[%s1 + $0xb8] sm:$0xff]
  %v53 = vld [vmem:[%s1 + $0xc0] sm:$0xff]
  %v54 = vld [vmem:[%s1 + $0xc8] sm:$0xff]
  %v55 = vld [vmem:[%s1 + $0xd0] sm:$0xff]
  %v56 = vld [vmem:[%s1 + $0xd8] sm:$0xff]
  %v57 = vld [vmem:[%s1 + $0xe0] sm:$0xff]
  %v58 = vld [vmem:[%s1 + $0xe8] sm:$0xff]
  %v59 = vld [vmem:[%s1 + $0xf0] sm:$0xff]
  %v60 = vld [vmem:[%s1 + $0xf8] sm:$0xff]
  %v61 = vld [vmem:[%s0] sm:$0xff]
  %v62 = vld [vmem:[%s0 + $0x8] sm:$0xff]
  %v63 = vld [vmem:[%s0 + $0x10] sm:$0xff]
  %v64 = vld [vmem:[%s0 + $0x18] sm:$0xff]
  %v65 = vld [vmem:[%s0 + $0x20] sm:$0xff]
  %v66 = vld [vmem:[%s0 + $0x28] sm:$0xff]
  %v67 = vld [vmem:[%s0 + $0x30] sm:$0xff]
  %v68 = vld [vmem:[%s0 + $0x38] sm:$0xff]
  %v69 = vld [vmem:[%s0 + $0x40] sm:$0xff]
  %v70 = vld [vmem:[%s0 + $0x48] sm:$0xff]
  %v71 = vld [vmem:[%s0 + $0x50] sm:$0xff]
  %v72 = vld [vmem:[%s0 + $0x58] sm:$0xff]
  %v73 = vld [vmem:[%s0 + $0x60] sm:$0xff]
  %v74 = vld [vmem:[%s0 + $0x68] sm:$0xff]
  %v75 = vld [vmem:[%s0 + $0x70] sm:$0xff]
  %v76 = vld [vmem:[%s0 + $0x78] sm:$0xff]
  %v77 = vld [vmem:[%s0 + $0x80] sm:$0xff]
  %v78 = vld [vmem:[%s0 + $0x88] sm:$0xff]
  %v79 = vld [vmem:[%s0 + $0x90] sm:$0xff]
  %v80 = vld [vmem:[%s0 + $0x98] sm:$0xff]
  %v81 = vld [vmem:[%s0 + $0xa0] sm:$0xff]
  %v82 = vld [vmem:[%s0 + $0xa8] sm:$0xff]
  %v83 = vld [vmem:[%s0 + $0xb0] sm:$0xff]
  %v84 = vld [vmem:[%s0 + $0xb8] sm:$0xff]
  %v85 = vld [vmem:[%s0 + $0xc0] sm:$0xff]
  %v86 = vld [vmem:[%s0 + $0xc8] sm:$0xff]
  %v87 = vld [vmem:[%s0 + $0xd0] sm:$0xff]
  %v88 = vld [vmem:[%s0 + $0xd8] sm:$0xff]
  %v89 = vld [vmem:[%s0 + $0xe0] sm:$0xff]
  %v90 = vld [vmem:[%s0 + $0xe8] sm:$0xff]
  %v91 = vld [vmem:[%s0 + $0xf0] sm:$0xff]
  %v92 = vld [vmem:[%s0 + $0xf8] sm:$0xff]
  %94 = vset.pattern.permute.xlu0 0
  %95 = vperm.xlu0 %94, %v29
  %v96 = vpop.permute.xlu0 %95
  %99 = vset.pattern.permute.xlu0 0
  %100 = vperm.xlu0 %99, %v30
  %v101 = vpop.permute.xlu0 %100
  %104 = vset.pattern.permute.xlu0 0
  %105 = vperm.xlu0 %104, %v31
  %v106 = vpop.permute.xlu0 %105
  %109 = vset.pattern.permute.xlu0 0
  %110 = vperm.xlu0 %109, %v32
  %v111 = vpop.permute.xlu0 %110
  %114 = vset.pattern.permute.xlu0 0
  %115 = vperm.xlu0 %114, %v33
  %v116 = vpop.permute.xlu0 %115
  %119 = vset.pattern.permute.xlu0 0
  %120 = vperm.xlu0 %119, %v34
  %v121 = vpop.permute.xlu0 %120
  %124 = vset.pattern.permute.xlu0 0
  %125 = vperm.xlu0 %124, %v35
  %v126 = vpop.permute.xlu0 %125
  %129 = vset.pattern.permute.xlu0 0
  %130 = vperm.xlu0 %129, %v36
  %v131 = vpop.permute.xlu0 %130
  %134 = vset.pattern.permute.xlu0 0
  %135 = vperm.xlu0 %134, %v37
  %v136 = vpop.permute.xlu0 %135
  %139 = vset.pattern.permute.xlu0 0
  %140 = vperm.xlu0 %139, %v38
  %v141 = vpop.permute.xlu0 %140
  %144 = vset.pattern.permute.xlu0 0
  %145 = vperm.xlu0 %144, %v39
  %v146 = vpop.permute.xlu0 %145
  %149 = vset.pattern.permute.xlu0 0
  %150 = vperm.xlu0 %149, %v40
  %v151 = vpop.permute.xlu0 %150
  %154 = vset.pattern.permute.xlu0 0
  %155 = vperm.xlu0 %154, %v41
  %v156 = vpop.permute.xlu0 %155
  %159 = vset.pattern.permute.xlu0 0
  %160 = vperm.xlu0 %159, %v42
  %v161 = vpop.permute.xlu0 %160
  %164 = vset.pattern.permute.xlu0 0
  %165 = vperm.xlu0 %164, %v43
  %v166 = vpop.permute.xlu0 %165
  %169 = vset.pattern.permute.xlu0 0
  %170 = vperm.xlu0 %169, %v44
  %v171 = vpop.permute.xlu0 %170
  %174 = vset.pattern.permute.xlu0 0
  %175 = vperm.xlu0 %174, %v45
  %v176 = vpop.permute.xlu0 %175
  %179 = vset.pattern.permute.xlu0 0
  %180 = vperm.xlu0 %179, %v46
  %v181 = vpop.permute.xlu0 %180
  %184 = vset.pattern.permute.xlu0 0
  %185 = vperm.xlu0 %184, %v47
  %v186 = vpop.permute.xlu0 %185
  %189 = vset.pattern.permute.xlu0 0
  %190 = vperm.xlu0 %189, %v48
  %v191 = vpop.permute.xlu0 %190
  %194 = vset.pattern.permute.xlu0 0
  %195 = vperm.xlu0 %194, %v49
  %v196 = vpop.permute.xlu0 %195
  %199 = vset.pattern.permute.xlu0 0
  %200 = vperm.xlu0 %199, %v50
  %v201 = vpop.permute.xlu0 %200
  %204 = vset.pattern.permute.xlu0 0
  %205 = vperm.xlu0 %204, %v51
  %v206 = vpop.permute.xlu0 %205
  %209 = vset.pattern.permute.xlu0 0
  %210 = vperm.xlu0 %209, %v52
  %v211 = vpop.permute.xlu0 %210
  %214 = vset.pattern.permute.xlu0 0
  %215 = vperm.xlu0 %214, %v53
  %v216 = vpop.permute.xlu0 %215
  %219 = vset.pattern.permute.xlu0 0
  %220 = vperm.xlu0 %219, %v54
  %v221 = vpop.permute.xlu0 %220
  %224 = vset.pattern.permute.xlu0 0
  %225 = vperm.xlu0 %224, %v55
  %v226 = vpop.permute.xlu0 %225
  %229 = vset.pattern.permute.xlu0 0
  %230 = vperm.xlu0 %229, %v56
  %v231 = vpop.permute.xlu0 %230
  %234 = vset.pattern.permute.xlu0 0
  %235 = vperm.xlu0 %234, %v57
  %v236 = vpop.permute.xlu0 %235
  %239 = vset.pattern.permute.xlu0 0
  %240 = vperm.xlu0 %239, %v58
  %v241 = vpop.permute.xlu0 %240
  %244 = vset.pattern.permute.xlu0 0
  %245 = vperm.xlu0 %244, %v59
  %v246 = vpop.permute.xlu0 %245
  %249 = vset.pattern.permute.xlu0 0
  %250 = vperm.xlu0 %249, %v60
  %v251 = vpop.permute.xlu0 %250
  %v253 = vsub.f32 %v61, %v96
  %v254 = vsub.f32 %v62, %v101
  %v255 = vsub.f32 %v63, %v106
  %v256 = vsub.f32 %v64, %v111
  %v257 = vsub.f32 %v65, %v116
  %v258 = vsub.f32 %v66, %v121
  %v259 = vsub.f32 %v67, %v126
  %v260 = vsub.f32 %v68, %v131
  %v261 = vsub.f32 %v69, %v136
  %v262 = vsub.f32 %v70, %v141
  %v263 = vsub.f32 %v71, %v146
  %v264 = vsub.f32 %v72, %v151
  %v265 = vsub.f32 %v73, %v156
  %v266 = vsub.f32 %v74, %v161
  %v267 = vsub.f32 %v75, %v166
  %v268 = vsub.f32 %v76, %v171
  %v269 = vsub.f32 %v77, %v176
  %v270 = vsub.f32 %v78, %v181
  %v271 = vsub.f32 %v79, %v186
  %v272 = vsub.f32 %v80, %v191
  %v273 = vsub.f32 %v81, %v196
  %v274 = vsub.f32 %v82, %v201
  %v275 = vsub.f32 %v83, %v206
  %v276 = vsub.f32 %v84, %v211
  %v277 = vsub.f32 %v85, %v216
  %v278 = vsub.f32 %v86, %v221
  %v279 = vsub.f32 %v87, %v226
  %v280 = vsub.f32 %v88, %v231
  %v281 = vsub.f32 %v89, %v236
  %v282 = vsub.f32 %v90, %v241
  %v283 = vsub.f32 %v91, %v246
  %v284 = vsub.f32 %v92, %v251
  %285 = vset.pattern.permute.xlu0 1
  %286 = vperm.xlu0 %285, %v29
  %v287 = vpop.permute.xlu0 %286
  %289 = vset.pattern.permute.xlu0 1
  %290 = vperm.xlu0 %289, %v30
  %v291 = vpop.permute.xlu0 %290
  %293 = vset.pattern.permute.xlu0 1
  %294 = vperm.xlu0 %293, %v31
  %v295 = vpop.permute.xlu0 %294
  %297 = vset.pattern.permute.xlu0 1
  %298 = vperm.xlu0 %297, %v32
  %v299 = vpop.permute.xlu0 %298
  %301 = vset.pattern.permute.xlu0 1
  %302 = vperm.xlu0 %301, %v33
  %v303 = vpop.permute.xlu0 %302
  %305 = vset.pattern.permute.xlu0 1
  %306 = vperm.xlu0 %305, %v34
  %v307 = vpop.permute.xlu0 %306
  %309 = vset.pattern.permute.xlu0 1
  %310 = vperm.xlu0 %309, %v35
  %v311 = vpop.permute.xlu0 %310
  %313 = vset.pattern.permute.xlu0 1
  %314 = vperm.xlu0 %313, %v36
  %v315 = vpop.permute.xlu0 %314
  %317 = vset.pattern.permute.xlu0 1
  %318 = vperm.xlu0 %317, %v37
  %v319 = vpop.permute.xlu0 %318
  %321 = vset.pattern.permute.xlu0 1
  %322 = vperm.xlu0 %321, %v38
  %v323 = vpop.permute.xlu0 %322
  %325 = vset.pattern.permute.xlu0 1
  %326 = vperm.xlu0 %325, %v39
  %v327 = vpop.permute.xlu0 %326
  %329 = vset.pattern.permute.xlu0 1
  %330 = vperm.xlu0 %329, %v40
  %v331 = vpop.permute.xlu0 %330
  %333 = vset.pattern.permute.xlu0 1
  %334 = vperm.xlu0 %333, %v41
  %v335 = vpop.permute.xlu0 %334
  %337 = vset.pattern.permute.xlu0 1
  %338 = vperm.xlu0 %337, %v42
  %v339 = vpop.permute.xlu0 %338
  %341 = vset.pattern.permute.xlu0 1
  %342 = vperm.xlu0 %341, %v43
  %v343 = vpop.permute.xlu0 %342
  %345 = vset.pattern.permute.xlu0 1
  %346 = vperm.xlu0 %345, %v44
  %v347 = vpop.permute.xlu0 %346
  %349 = vset.pattern.permute.xlu0 1
  %350 = vperm.xlu0 %349, %v45
  %v351 = vpop.permute.xlu0 %350
  %353 = vset.pattern.permute.xlu0 1
  %354 = vperm.xlu0 %353, %v46
  %v355 = vpop.permute.xlu0 %354
  %357 = vset.pattern.permute.xlu0 1
  %358 = vperm.xlu0 %357, %v47
  %v359 = vpop.permute.xlu0 %358
  %361 = vset.pattern.permute.xlu0 1
  %362 = vperm.xlu0 %361, %v48
  %v363 = vpop.permute.xlu0 %362
  %365 = vset.pattern.permute.xlu0 1
  %366 = vperm.xlu0 %365, %v49
  %v367 = vpop.permute.xlu0 %366
  %369 = vset.pattern.permute.xlu0 1
  %370 = vperm.xlu0 %369, %v50
  %v371 = vpop.permute.xlu0 %370
  %373 = vset.pattern.permute.xlu0 1
  %374 = vperm.xlu0 %373, %v51
  %v375 = vpop.permute.xlu0 %374
  %377 = vset.pattern.permute.xlu0 1
  %378 = vperm.xlu0 %377, %v52
  %v379 = vpop.permute.xlu0 %378
  %381 = vset.pattern.permute.xlu0 1
  %382 = vperm.xlu0 %381, %v53
  %v383 = vpop.permute.xlu0 %382
  %385 = vset.pattern.permute.xlu0 1
  %386 = vperm.xlu0 %385, %v54
  %v387 = vpop.permute.xlu0 %386
  %389 = vset.pattern.permute.xlu0 1
  %390 = vperm.xlu0 %389, %v55
  %v391 = vpop.permute.xlu0 %390
  %393 = vset.pattern.permute.xlu0 1
  %394 = vperm.xlu0 %393, %v56
  %v395 = vpop.permute.xlu0 %394
  %397 = vset.pattern.permute.xlu0 1
  %398 = vperm.xlu0 %397, %v57
  %v399 = vpop.permute.xlu0 %398
  %401 = vset.pattern.permute.xlu0 1
  %402 = vperm.xlu0 %401, %v58
  %v403 = vpop.permute.xlu0 %402
  %405 = vset.pattern.permute.xlu0 1
  %406 = vperm.xlu0 %405, %v59
  %v407 = vpop.permute.xlu0 %406
  %409 = vset.pattern.permute.xlu0 1
  %410 = vperm.xlu0 %409, %v60
  %v411 = vpop.permute.xlu0 %410
  %v413 = vmul.f32 %v253, %v287
  %v414 = vmul.f32 %v254, %v291
  %v415 = vmul.f32 %v255, %v295
  %v416 = vmul.f32 %v256, %v299
  %v417 = vmul.f32 %v257, %v303
  %v418 = vmul.f32 %v258, %v307
  %v419 = vmul.f32 %v259, %v311
  %v420 = vmul.f32 %v260, %v315
  %v421 = vmul.f32 %v261, %v319
  %v422 = vmul.f32 %v262, %v323
  %v423 = vmul.f32 %v263, %v327
  %v424 = vmul.f32 %v264, %v331
  %v425 = vmul.f32 %v265, %v335
  %v426 = vmul.f32 %v266, %v339
  %v427 = vmul.f32 %v267, %v343
  %v428 = vmul.f32 %v268, %v347
  %v429 = vmul.f32 %v269, %v351
  %v430 = vmul.f32 %v270, %v355
  %v431 = vmul.f32 %v271, %v359
  %v432 = vmul.f32 %v272, %v363
  %v433 = vmul.f32 %v273, %v367
  %v434 = vmul.f32 %v274, %v371
  %v435 = vmul.f32 %v275, %v375
  %v436 = vmul.f32 %v276, %v379
  %v437 = vmul.f32 %v277, %v383
  %v438 = vmul.f32 %v278, %v387
  %v439 = vmul.f32 %v279, %v391
  %v440 = vmul.f32 %v280, %v395
  %v441 = vmul.f32 %v281, %v399
  %v442 = vmul.f32 %v282, %v403
  %v443 = vmul.f32 %v283, %v407
  %v444 = vmul.f32 %v284, %v411
  %v445 = vld [vmem:[%s2] sm:$0x1]
  %v447 = vlaneseq
  %v448 = vshrl.u32 %v447, 7
  %v449 = vsub.s32 0, %v448
  %v450 = vrot.slane %v445, %v449
  %v452 = vmul.f32 %v413, %v450
  %v453 = vmul.f32 %v414, %v450
  %v454 = vmul.f32 %v415, %v450
  %v455 = vmul.f32 %v416, %v450
  %v456 = vmul.f32 %v417, %v450
  %v457 = vmul.f32 %v418, %v450
  %v458 = vmul.f32 %v419, %v450
  %v459 = vmul.f32 %v420, %v450
  %v460 = vmul.f32 %v421, %v450
  %v461 = vmul.f32 %v422, %v450
  %v462 = vmul.f32 %v423, %v450
  %v463 = vmul.f32 %v424, %v450
  %v464 = vmul.f32 %v425, %v450
  %v465 = vmul.f32 %v426, %v450
  %v466 = vmul.f32 %v427, %v450
  %v467 = vmul.f32 %v428, %v450
  %v468 = vmul.f32 %v429, %v450
  %v469 = vmul.f32 %v430, %v450
  %v470 = vmul.f32 %v431, %v450
  %v471 = vmul.f32 %v432, %v450
  %v472 = vmul.f32 %v433, %v450
  %v473 = vmul.f32 %v434, %v450
  %v474 = vmul.f32 %v435, %v450
  %v475 = vmul.f32 %v436, %v450
  %v476 = vmul.f32 %v437, %v450
  %v477 = vmul.f32 %v438, %v450
  %v478 = vmul.f32 %v439, %v450
  %v479 = vmul.f32 %v440, %v450
  %v480 = vmul.f32 %v441, %v450
  %v481 = vmul.f32 %v442, %v450
  %v482 = vmul.f32 %v443, %v450
  %v483 = vmul.f32 %v444, %v450
  %v484 = vld [vmem:[%s3] sm:$0x1]
  %v486 = vlaneseq
  %v487 = vshrl.u32 %v486, 7
  %v488 = vsub.s32 0, %v487
  %v489 = vrot.slane %v484, %v488
  %v491 = vadd.f32 %v452, %v489
  %v492 = vadd.f32 %v453, %v489
  %v493 = vadd.f32 %v454, %v489
  %v494 = vadd.f32 %v455, %v489
  %v495 = vadd.f32 %v456, %v489
  %v496 = vadd.f32 %v457, %v489
  %v497 = vadd.f32 %v458, %v489
  %v498 = vadd.f32 %v459, %v489
  %v499 = vadd.f32 %v460, %v489
  %v500 = vadd.f32 %v461, %v489
  %v501 = vadd.f32 %v462, %v489
  %v502 = vadd.f32 %v463, %v489
  %v503 = vadd.f32 %v464, %v489
  %v504 = vadd.f32 %v465, %v489
  %v505 = vadd.f32 %v466, %v489
  %v506 = vadd.f32 %v467, %v489
  %v507 = vadd.f32 %v468, %v489
  %v508 = vadd.f32 %v469, %v489
  %v509 = vadd.f32 %v470, %v489
  %v510 = vadd.f32 %v471, %v489
  %v511 = vadd.f32 %v472, %v489
  %v512 = vadd.f32 %v473, %v489
  %v513 = vadd.f32 %v474, %v489
  %v514 = vadd.f32 %v475, %v489
  %v515 = vadd.f32 %v476, %v489
  %v516 = vadd.f32 %v477, %v489
  %v517 = vadd.f32 %v478, %v489
  %v518 = vadd.f32 %v479, %v489
  %v519 = vadd.f32 %v480, %v489
  %v520 = vadd.f32 %v481, %v489
  %v521 = vadd.f32 %v482, %v489
  %v522 = vadd.f32 %v483, %v489
  %v523 = vld [vmem:[%s4] sm:$0xff]
  %v524 = vld [vmem:[%s4 + $0x8] sm:$0xff]
  %v525 = vld [vmem:[%s4 + $0x10] sm:$0xff]
  %v526 = vld [vmem:[%s4 + $0x18] sm:$0xff]
  %v527 = vld [vmem:[%s4 + $0x20] sm:$0xff]
  %v528 = vld [vmem:[%s4 + $0x28] sm:$0xff]
  %v529 = vld [vmem:[%s4 + $0x30] sm:$0xff]
  %v530 = vld [vmem:[%s4 + $0x38] sm:$0xff]
  %v531 = vld [vmem:[%s4 + $0x40] sm:$0xff]
  %v532 = vld [vmem:[%s4 + $0x48] sm:$0xff]
  %v533 = vld [vmem:[%s4 + $0x50] sm:$0xff]
  %v534 = vld [vmem:[%s4 + $0x58] sm:$0xff]
  %v535 = vld [vmem:[%s4 + $0x60] sm:$0xff]
  %v536 = vld [vmem:[%s4 + $0x68] sm:$0xff]
  %v537 = vld [vmem:[%s4 + $0x70] sm:$0xff]
  %v538 = vld [vmem:[%s4 + $0x78] sm:$0xff]
  %v539 = vld [vmem:[%s4 + $0x80] sm:$0xff]
  %v540 = vld [vmem:[%s4 + $0x88] sm:$0xff]
  %v541 = vld [vmem:[%s4 + $0x90] sm:$0xff]
  %v542 = vld [vmem:[%s4 + $0x98] sm:$0xff]
  %v543 = vld [vmem:[%s4 + $0xa0] sm:$0xff]
  %v544 = vld [vmem:[%s4 + $0xa8] sm:$0xff]
  %v545 = vld [vmem:[%s4 + $0xb0] sm:$0xff]
  %v546 = vld [vmem:[%s4 + $0xb8] sm:$0xff]
  %v547 = vld [vmem:[%s4 + $0xc0] sm:$0xff]
  %v548 = vld [vmem:[%s4 + $0xc8] sm:$0xff]
  %v549 = vld [vmem:[%s4 + $0xd0] sm:$0xff]
  %v550 = vld [vmem:[%s4 + $0xd8] sm:$0xff]
  %v551 = vld [vmem:[%s4 + $0xe0] sm:$0xff]
  %v552 = vld [vmem:[%s4 + $0xe8] sm:$0xff]
  %v553 = vld [vmem:[%s4 + $0xf0] sm:$0xff]
  %v554 = vld [vmem:[%s4 + $0xf8] sm:$0xff]
  %v555 = vld [vmem:[%s4 + $0x100] sm:$0xff]
  %v556 = vld [vmem:[%s4 + $0x108] sm:$0xff]
  %v557 = vld [vmem:[%s4 + $0x110] sm:$0xff]
  %v558 = vld [vmem:[%s4 + $0x118] sm:$0xff]
  %v559 = vld [vmem:[%s4 + $0x120] sm:$0xff]
  %v560 = vld [vmem:[%s4 + $0x128] sm:$0xff]
  %v561 = vld [vmem:[%s4 + $0x130] sm:$0xff]
  %v562 = vld [vmem:[%s4 + $0x138] sm:$0xff]
  %v563 = vld [vmem:[%s4 + $0x140] sm:$0xff]
  %v564 = vld [vmem:[%s4 + $0x148] sm:$0xff]
  %v565 = vld [vmem:[%s4 + $0x150] sm:$0xff]
  %v566 = vld [vmem:[%s4 + $0x158] sm:$0xff]
  %v567 = vld [vmem:[%s4 + $0x160] sm:$0xff]
  %v568 = vld [vmem:[%s4 + $0x168] sm:$0xff]
  %v569 = vld [vmem:[%s4 + $0x170] sm:$0xff]
  %v570 = vld [vmem:[%s4 + $0x178] sm:$0xff]
  %v571 = vld [vmem:[%s5] sm:$0x7]
  %v573 = vlaneseq
  %v574 = vshrl.u32 %v573, 7
  %v575 = vsub.s32 0, %v574
  %v576 = vrot.slane %v571, %v575
  %v577 = vlaneseq
  %v578 = vshrl.u32 %v577, 7
  %v579 = vsub.s32 1, %v578
  %v580 = vrot.slane %v571, %v579
  %v581 = vlaneseq
  %v582 = vshrl.u32 %v581, 7
  %v583 = vsub.s32 2, %v582
  %v584 = vrot.slane %v571, %v583
  %588 = vmatprep.subr.mxu0 %v569
  %589 = vmatpush1.msra.mxu0 %v568
  %590 = vmatprep.subr.mxu0 %v566
  %591 = vmatpush1.msra.mxu0 %v565
  %592 = vmatprep.subr.mxu0 %v563
  %593 = vmatpush1.msra.mxu0 %v562
  %594 = vmatprep.subr.mxu0 %v560
  %595 = vmatpush1.msra.mxu0 %v559
  %596 = vmatprep.subr.mxu0 %v557
  %597 = vmatpush1.msra.mxu0 %v556
  %598 = vmatprep.subr.mxu0 %v554
  %599 = vmatpush1.msra.mxu0 %v553
  %600 = vmatprep.subr.mxu0 %v551
  %601 = vmatpush1.msra.mxu0 %v550
  %602 = vmatprep.subr.mxu0 %v548
  %603 = vmatpush1.msra.mxu0 %v547
  %604 = vmatprep.subr.mxu0 %v545
  %605 = vmatpush1.msra.mxu0 %v544
  %606 = vmatprep.subr.mxu0 %v542
  %607 = vmatpush1.msra.mxu0 %v541
  %608 = vmatprep.subr.mxu0 %v539
  %609 = vmatpush1.msra.mxu0 %v538
  %610 = vmatprep.subr.mxu0 %v536
  %611 = vmatpush1.msra.mxu0 %v535
  %612 = vmatprep.subr.mxu0 %v533
  %613 = vmatpush1.msra.mxu0 %v532
  %614 = vmatprep.subr.mxu0 %v530
  %615 = vmatpush1.msra.mxu0 %v529
  %616 = vmatprep.subr.mxu0 %v527
  %617 = vmatpush1.msra.mxu0 %v526
  %618 = vmatprep.subr.mxu0 %v524
  %619 = vmatpush1.msra.mxu0 %v523
  %620 = vmatprep.subr.mxu0 0.0
  %621 = vmatpush2.msra.mxu0 0.0
  %622 = vmatprep.subr.mxu0 0.0
  %623 = vmatpush2.msra.mxu0 0.0
  %624 = vmatprep.subr.mxu0 0.0
  %625 = vmatpush2.msra.mxu0 0.0
  %626 = vmatprep.subr.mxu0 0.0
  %627 = vmatpush2.msra.mxu0 0.0
  %628 = vmatprep.subr.mxu0 0.0
  %629 = vmatpush2.msra.mxu0 0.0
  %630 = vmatprep.subr.mxu0 0.0
  %631 = vmatpush2.msra.mxu0 0.0
  %632 = vmatprep.subr.mxu0 0.0
  %633 = vmatpush2.msra.mxu0 0.0
  %634 = vmatprep.subr.mxu0 0.0
  %635 = vmatpush2.msra.mxu0 0.0
  %636 = vmatprep.subr.mxu0 0.0
  %637 = vmatpush2.msra.mxu0 0.0
  %638 = vmatprep.subr.mxu0 0.0
  %639 = vmatpush2.msra.mxu0 0.0
  %640 = vmatprep.subr.mxu0 0.0
  %641 = vmatpush2.msra.mxu0 0.0
  %642 = vmatprep.subr.mxu0 0.0
  %643 = vmatpush2.msra.mxu0 0.0
  %644 = vmatprep.subr.mxu0 0.0
  %645 = vmatpush2.msra.mxu0 0.0
  %646 = vmatprep.subr.mxu0 0.0
  %647 = vmatpush2.msra.mxu0 0.0
  %648 = vmatprep.subr.mxu0 0.0
  %649 = vmatpush2.msra.mxu0 0.0
  %650 = vmatprep.subr.mxu0 0.0
  %651 = vmatpush2.msra.mxu0 0.0
  %652 = vmatprep.mubr.f32.mxu0 0.0
  %653 = vmatmul.mubr.f32.gmra.mxu0 %v491
  %v654 = vpop.f32.mrf.mxu0
  %v655 = vadd.f32 %v576, %v654
  %v656 = vpop.f32.mrf.mxu0
  %v657 = vadd.f32 %v580, %v656
  %658 = vmatprep.mubr.f32.mxu0 0.0
  %659 = vmatmul.mubr.f32.gmra.mxu0 %v492
  %v660 = vpop.f32.mrf.mxu0
  %v661 = vadd.f32 %v576, %v660
  %v662 = vpop.f32.mrf.mxu0
  %v663 = vadd.f32 %v580, %v662
  %664 = vmatprep.mubr.f32.mxu0 0.0
  %665 = vmatmul.mubr.f32.gmra.mxu0 %v493
  %v666 = vpop.f32.mrf.mxu0
  %v667 = vadd.f32 %v576, %v666
  %v668 = vpop.f32.mrf.mxu0
  %v669 = vadd.f32 %v580, %v668
  %670 = vmatprep.mubr.f32.mxu0 0.0
  %671 = vmatmul.mubr.f32.gmra.mxu0 %v494
  %v672 = vpop.f32.mrf.mxu0
  %v673 = vadd.f32 %v576, %v672
  %v674 = vpop.f32.mrf.mxu0
  %v675 = vadd.f32 %v580, %v674
  %676 = vmatprep.mubr.f32.mxu0 0.0
  %677 = vmatmul.mubr.f32.gmra.mxu0 %v495
  %v678 = vpop.f32.mrf.mxu0
  %v679 = vadd.f32 %v576, %v678
  %v680 = vpop.f32.mrf.mxu0
  %v681 = vadd.f32 %v580, %v680
  %682 = vmatprep.mubr.f32.mxu0 0.0
  %683 = vmatmul.mubr.f32.gmra.mxu0 %v496
  %v684 = vpop.f32.mrf.mxu0
  %v685 = vadd.f32 %v576, %v684
  %v686 = vpop.f32.mrf.mxu0
  %v687 = vadd.f32 %v580, %v686
  %688 = vmatprep.mubr.f32.mxu0 0.0
  %689 = vmatmul.mubr.f32.gmra.mxu0 %v497
  %v690 = vpop.f32.mrf.mxu0
  %v691 = vadd.f32 %v576, %v690
  %v692 = vpop.f32.mrf.mxu0
  %v693 = vadd.f32 %v580, %v692
  %694 = vmatprep.mubr.f32.mxu0 0.0
  %695 = vmatmul.mubr.f32.gmra.mxu0 %v498
  %v696 = vpop.f32.mrf.mxu0
  %v697 = vadd.f32 %v576, %v696
  %v698 = vpop.f32.mrf.mxu0
  %v699 = vadd.f32 %v580, %v698
  %700 = vmatprep.mubr.f32.mxu0 0.0
  %701 = vmatmul.mubr.f32.gmra.mxu0 %v499
  %v702 = vpop.f32.mrf.mxu0
  %v703 = vadd.f32 %v576, %v702
  %v704 = vpop.f32.mrf.mxu0
  %v705 = vadd.f32 %v580, %v704
  %706 = vmatprep.mubr.f32.mxu0 0.0
  %707 = vmatmul.mubr.f32.gmra.mxu0 %v500
  %v708 = vpop.f32.mrf.mxu0
  %v709 = vadd.f32 %v576, %v708
  %v710 = vpop.f32.mrf.mxu0
  %v711 = vadd.f32 %v580, %v710
  %712 = vmatprep.mubr.f32.mxu0 0.0
  %713 = vmatmul.mubr.f32.gmra.mxu0 %v501
  %v714 = vpop.f32.mrf.mxu0
  %v715 = vadd.f32 %v576, %v714
  %v716 = vpop.f32.mrf.mxu0
  %v717 = vadd.f32 %v580, %v716
  %718 = vmatprep.mubr.f32.mxu0 0.0
  %719 = vmatmul.mubr.f32.gmra.mxu0 %v502
  %v720 = vpop.f32.mrf.mxu0
  %v721 = vadd.f32 %v576, %v720
  %v722 = vpop.f32.mrf.mxu0
  %v723 = vadd.f32 %v580, %v722
  %724 = vmatprep.mubr.f32.mxu0 0.0
  %725 = vmatmul.mubr.f32.gmra.mxu0 %v503
  %v726 = vpop.f32.mrf.mxu0
  %v727 = vadd.f32 %v576, %v726
  %v728 = vpop.f32.mrf.mxu0
  %v729 = vadd.f32 %v580, %v728
  %730 = vmatprep.mubr.f32.mxu0 0.0
  %731 = vmatmul.mubr.f32.gmra.mxu0 %v504
  %v732 = vpop.f32.mrf.mxu0
  %v733 = vadd.f32 %v576, %v732
  %v734 = vpop.f32.mrf.mxu0
  %v735 = vadd.f32 %v580, %v734
  %736 = vmatprep.mubr.f32.mxu0 0.0
  %737 = vmatmul.mubr.f32.gmra.mxu0 %v505
  %v738 = vpop.f32.mrf.mxu0
  %v739 = vadd.f32 %v576, %v738
  %v740 = vpop.f32.mrf.mxu0
  %v741 = vadd.f32 %v580, %v740
  %742 = vmatprep.mubr.f32.mxu0 0.0
  %743 = vmatmul.mubr.f32.gmra.mxu0 %v506
  %v744 = vpop.f32.mrf.mxu0
  %v745 = vadd.f32 %v576, %v744
  %v746 = vpop.f32.mrf.mxu0
  %v747 = vadd.f32 %v580, %v746
  %748 = vmatprep.mubr.f32.mxu0 0.0
  %749 = vmatmul.mubr.f32.gmra.mxu0 %v507
  %v750 = vpop.f32.mrf.mxu0
  %v751 = vadd.f32 %v576, %v750
  %v752 = vpop.f32.mrf.mxu0
  %v753 = vadd.f32 %v580, %v752
  %754 = vmatprep.mubr.f32.mxu0 0.0
  %755 = vmatmul.mubr.f32.gmra.mxu0 %v508
  %v756 = vpop.f32.mrf.mxu0
  %v757 = vadd.f32 %v576, %v756
  %v758 = vpop.f32.mrf.mxu0
  %v759 = vadd.f32 %v580, %v758
  %760 = vmatprep.mubr.f32.mxu0 0.0
  %761 = vmatmul.mubr.f32.gmra.mxu0 %v509
  %v762 = vpop.f32.mrf.mxu0
  %v763 = vadd.f32 %v576, %v762
  %v764 = vpop.f32.mrf.mxu0
  %v765 = vadd.f32 %v580, %v764
  %766 = vmatprep.mubr.f32.mxu0 0.0
  %767 = vmatmul.mubr.f32.gmra.mxu0 %v510
  %v768 = vpop.f32.mrf.mxu0
  %v769 = vadd.f32 %v576, %v768
  %v770 = vpop.f32.mrf.mxu0
  %v771 = vadd.f32 %v580, %v770
  %772 = vmatprep.mubr.f32.mxu0 0.0
  %773 = vmatmul.mubr.f32.gmra.mxu0 %v511
  %v774 = vpop.f32.mrf.mxu0
  %v775 = vadd.f32 %v576, %v774
  %v776 = vpop.f32.mrf.mxu0
  %v777 = vadd.f32 %v580, %v776
  %778 = vmatprep.mubr.f32.mxu0 0.0
  %779 = vmatmul.mubr.f32.gmra.mxu0 %v512
  %v780 = vpop.f32.mrf.mxu0
  %v781 = vadd.f32 %v576, %v780
  %v782 = vpop.f32.mrf.mxu0
  %v783 = vadd.f32 %v580, %v782
  %784 = vmatprep.mubr.f32.mxu0 0.0
  %785 = vmatmul.mubr.f32.gmra.mxu0 %v513
  %v786 = vpop.f32.mrf.mxu0
  %v787 = vadd.f32 %v576, %v786
  %v788 = vpop.f32.mrf.mxu0
  %v789 = vadd.f32 %v580, %v788
  %790 = vmatprep.mubr.f32.mxu0 0.0
  %791 = vmatmul.mubr.f32.gmra.mxu0 %v514
  %v792 = vpop.f32.mrf.mxu0
  %v793 = vadd.f32 %v576, %v792
  %v794 = vpop.f32.mrf.mxu0
  %v795 = vadd.f32 %v580, %v794
  %796 = vmatprep.mubr.f32.mxu0 0.0
  %797 = vmatmul.mubr.f32.gmra.mxu0 %v515
  %v798 = vpop.f32.mrf.mxu0
  %v799 = vadd.f32 %v576, %v798
  %v800 = vpop.f32.mrf.mxu0
  %v801 = vadd.f32 %v580, %v800
  %802 = vmatprep.mubr.f32.mxu0 0.0
  %803 = vmatmul.mubr.f32.gmra.mxu0 %v516
  %v804 = vpop.f32.mrf.mxu0
  %v805 = vadd.f32 %v576, %v804
  %v806 = vpop.f32.mrf.mxu0
  %v807 = vadd.f32 %v580, %v806
  %808 = vmatprep.mubr.f32.mxu0 0.0
  %809 = vmatmul.mubr.f32.gmra.mxu0 %v517
  %v810 = vpop.f32.mrf.mxu0
  %v811 = vadd.f32 %v576, %v810
  %v812 = vpop.f32.mrf.mxu0
  %v813 = vadd.f32 %v580, %v812
  %814 = vmatprep.mubr.f32.mxu0 0.0
  %815 = vmatmul.mubr.f32.gmra.mxu0 %v518
  %v816 = vpop.f32.mrf.mxu0
  %v817 = vadd.f32 %v576, %v816
  %v818 = vpop.f32.mrf.mxu0
  %v819 = vadd.f32 %v580, %v818
  %820 = vmatprep.mubr.f32.mxu0 0.0
  %821 = vmatmul.mubr.f32.gmra.mxu0 %v519
  %v822 = vpop.f32.mrf.mxu0
  %v823 = vadd.f32 %v576, %v822
  %v824 = vpop.f32.mrf.mxu0
  %v825 = vadd.f32 %v580, %v824
  %826 = vmatprep.mubr.f32.mxu0 0.0
  %827 = vmatmul.mubr.f32.gmra.mxu0 %v520
  %v828 = vpop.f32.mrf.mxu0
  %v829 = vadd.f32 %v576, %v828
  %v830 = vpop.f32.mrf.mxu0
  %v831 = vadd.f32 %v580, %v830
  %832 = vmatprep.mubr.f32.mxu0 0.0
  %833 = vmatmul.mubr.f32.gmra.mxu0 %v521
  %v834 = vpop.f32.mrf.mxu0
  %v835 = vadd.f32 %v576, %v834
  %v836 = vpop.f32.mrf.mxu0
  %v837 = vadd.f32 %v580, %v836
  %838 = vmatprep.mubr.f32.mxu0 0.0
  %839 = vmatmul.mubr.f32.gmra.mxu0 %v522
  %v840 = vpop.f32.mrf.mxu0
  %v841 = vadd.f32 %v576, %v840
  %v842 = vpop.f32.mrf.mxu0
  %v843 = vadd.f32 %v580, %v842
  %844 = vdwg.mxu0
  %845 = vmatprep.subr.mxu0 0.0
  %846 = vmatpush1.msra.mxu0 %v570
  %847 = vmatprep.subr.mxu0 0.0
  %848 = vmatpush1.msra.mxu0 %v567
  %849 = vmatprep.subr.mxu0 0.0
  %850 = vmatpush1.msra.mxu0 %v564
  %851 = vmatprep.subr.mxu0 0.0
  %852 = vmatpush1.msra.mxu0 %v561
  %853 = vmatprep.subr.mxu0 0.0
  %854 = vmatpush1.msra.mxu0 %v558
  %855 = vmatprep.subr.mxu0 0.0
  %856 = vmatpush1.msra.mxu0 %v555
  %857 = vmatprep.subr.mxu0 0.0
  %858 = vmatpush1.msra.mxu0 %v552
  %859 = vmatprep.subr.mxu0 0.0
  %860 = vmatpush1.msra.mxu0 %v549
  %861 = vmatprep.subr.mxu0 0.0
  %862 = vmatpush1.msra.mxu0 %v546
  %863 = vmatprep.subr.mxu0 0.0
  %864 = vmatpush1.msra.mxu0 %v543
  %865 = vmatprep.subr.mxu0 0.0
  %866 = vmatpush1.msra.mxu0 %v540
  %867 = vmatprep.subr.mxu0 0.0
  %868 = vmatpush1.msra.mxu0 %v537
  %869 = vmatprep.subr.mxu0 0.0
  %870 = vmatpush1.msra.mxu0 %v534
  %871 = vmatprep.subr.mxu0 0.0
  %872 = vmatpush1.msra.mxu0 %v531
  %873 = vmatprep.subr.mxu0 0.0
  %874 = vmatpush1.msra.mxu0 %v528
  %875 = vmatprep.subr.mxu0 0.0
  %876 = vmatpush1.msra.mxu0 %v525
  %877 = vmatprep.subr.mxu0 0.0
  %878 = vmatpush2.msra.mxu0 0.0
  %879 = vmatprep.subr.mxu0 0.0
  %880 = vmatpush2.msra.mxu0 0.0
  %881 = vmatprep.subr.mxu0 0.0
  %882 = vmatpush2.msra.mxu0 0.0
  %883 = vmatprep.subr.mxu0 0.0
  %884 = vmatpush2.msra.mxu0 0.0
  %885 = vmatprep.subr.mxu0 0.0
  %886 = vmatpush2.msra.mxu0 0.0
  %887 = vmatprep.subr.mxu0 0.0
  %888 = vmatpush2.msra.mxu0 0.0
  %889 = vmatprep.subr.mxu0 0.0
  %890 = vmatpush2.msra.mxu0 0.0
  %891 = vmatprep.subr.mxu0 0.0
  %892 = vmatpush2.msra.mxu0 0.0
  %893 = vmatprep.subr.mxu0 0.0
  %894 = vmatpush2.msra.mxu0 0.0
  %895 = vmatprep.subr.mxu0 0.0
  %896 = vmatpush2.msra.mxu0 0.0
  %897 = vmatprep.subr.mxu0 0.0
  %898 = vmatpush2.msra.mxu0 0.0
  %899 = vmatprep.subr.mxu0 0.0
  %900 = vmatpush2.msra.mxu0 0.0
  %901 = vmatprep.subr.mxu0 0.0
  %902 = vmatpush2.msra.mxu0 0.0
  %903 = vmatprep.subr.mxu0 0.0
  %904 = vmatpush2.msra.mxu0 0.0
  %905 = vmatprep.subr.mxu0 0.0
  %906 = vmatpush2.msra.mxu0 0.0
  %907 = vmatprep.subr.mxu0 0.0
  %908 = vmatpush2.msra.mxu0 0.0
  %909 = vmatprep.mubr.f32.mxu0 0.0
  %910 = vmatmul.mubr.f32.gmra.mxu0 %v491
  %v911 = vpop.f32.mrf.mxu0
  %v912 = vadd.f32 %v584, %v911
  %v913 = vpop.f32.mrf.mxu0
  %914 = vmatprep.mubr.f32.mxu0 0.0
  %915 = vmatmul.mubr.f32.gmra.mxu0 %v492
  %v916 = vpop.f32.mrf.mxu0
  %v917 = vadd.f32 %v584, %v916
  %v918 = vpop.f32.mrf.mxu0
  %919 = vmatprep.mubr.f32.mxu0 0.0
  %920 = vmatmul.mubr.f32.gmra.mxu0 %v493
  %v921 = vpop.f32.mrf.mxu0
  %v922 = vadd.f32 %v584, %v921
  %v923 = vpop.f32.mrf.mxu0
  %924 = vmatprep.mubr.f32.mxu0 0.0
  %925 = vmatmul.mubr.f32.gmra.mxu0 %v494
  %v926 = vpop.f32.mrf.mxu0
  %v927 = vadd.f32 %v584, %v926
  %v928 = vpop.f32.mrf.mxu0
  %929 = vmatprep.mubr.f32.mxu0 0.0
  %930 = vmatmul.mubr.f32.gmra.mxu0 %v495
  %v931 = vpop.f32.mrf.mxu0
  %v932 = vadd.f32 %v584, %v931
  %v933 = vpop.f32.mrf.mxu0
  %934 = vmatprep.mubr.f32.mxu0 0.0
  %935 = vmatmul.mubr.f32.gmra.mxu0 %v496
  %v936 = vpop.f32.mrf.mxu0
  %v937 = vadd.f32 %v584, %v936
  %v938 = vpop.f32.mrf.mxu0
  %939 = vmatprep.mubr.f32.mxu0 0.0
  %940 = vmatmul.mubr.f32.gmra.mxu0 %v497
  %v941 = vpop.f32.mrf.mxu0
  %v942 = vadd.f32 %v584, %v941
  %v943 = vpop.f32.mrf.mxu0
  %944 = vmatprep.mubr.f32.mxu0 0.0
  %945 = vmatmul.mubr.f32.gmra.mxu0 %v498
  %v946 = vpop.f32.mrf.mxu0
  %v947 = vadd.f32 %v584, %v946
  %v948 = vpop.f32.mrf.mxu0
  %949 = vmatprep.mubr.f32.mxu0 0.0
  %950 = vmatmul.mubr.f32.gmra.mxu0 %v499
  %v951 = vpop.f32.mrf.mxu0
  %v952 = vadd.f32 %v584, %v951
  %v953 = vpop.f32.mrf.mxu0
  %954 = vmatprep.mubr.f32.mxu0 0.0
  %955 = vmatmul.mubr.f32.gmra.mxu0 %v500
  %v956 = vpop.f32.mrf.mxu0
  %v957 = vadd.f32 %v584, %v956
  %v958 = vpop.f32.mrf.mxu0
  %959 = vmatprep.mubr.f32.mxu0 0.0
  %960 = vmatmul.mubr.f32.gmra.mxu0 %v501
  %v961 = vpop.f32.mrf.mxu0
  %v962 = vadd.f32 %v584, %v961
  %v963 = vpop.f32.mrf.mxu0
  %964 = vmatprep.mubr.f32.mxu0 0.0
  %965 = vmatmul.mubr.f32.gmra.mxu0 %v502
  %v966 = vpop.f32.mrf.mxu0
  %v967 = vadd.f32 %v584, %v966
  %v968 = vpop.f32.mrf.mxu0
  %969 = vmatprep.mubr.f32.mxu0 0.0
  %970 = vmatmul.mubr.f32.gmra.mxu0 %v503
  %v971 = vpop.f32.mrf.mxu0
  %v972 = vadd.f32 %v584, %v971
  %v973 = vpop.f32.mrf.mxu0
  %974 = vmatprep.mubr.f32.mxu0 0.0
  %975 = vmatmul.mubr.f32.gmra.mxu0 %v504
  %v976 = vpop.f32.mrf.mxu0
  %v977 = vadd.f32 %v584, %v976
  %v978 = vpop.f32.mrf.mxu0
  %979 = vmatprep.mubr.f32.mxu0 0.0
  %980 = vmatmul.mubr.f32.gmra.mxu0 %v505
  %v981 = vpop.f32.mrf.mxu0
  %v982 = vadd.f32 %v584, %v981
  %v983 = vpop.f32.mrf.mxu0
  %984 = vmatprep.mubr.f32.mxu0 0.0
  %985 = vmatmul.mubr.f32.gmra.mxu0 %v506
  %v986 = vpop.f32.mrf.mxu0
  %v987 = vadd.f32 %v584, %v986
  %v988 = vpop.f32.mrf.mxu0
  %989 = vmatprep.mubr.f32.mxu0 0.0
  %990 = vmatmul.mubr.f32.gmra.mxu0 %v507
  %v991 = vpop.f32.mrf.mxu0
  %v992 = vadd.f32 %v584, %v991
  %v993 = vpop.f32.mrf.mxu0
  %994 = vmatprep.mubr.f32.mxu0 0.0
  %995 = vmatmul.mubr.f32.gmra.mxu0 %v508
  %v996 = vpop.f32.mrf.mxu0
  %v997 = vadd.f32 %v584, %v996
  %v998 = vpop.f32.mrf.mxu0
  %999 = vmatprep.mubr.f32.mxu0 0.0
  %1000 = vmatmul.mubr.f32.gmra.mxu0 %v509
  %v1001 = vpop.f32.mrf.mxu0
  %v1002 = vadd.f32 %v584, %v1001
  %v1003 = vpop.f32.mrf.mxu0
  %1004 = vmatprep.mubr.f32.mxu0 0.0
  %1005 = vmatmul.mubr.f32.gmra.mxu0 %v510
  %v1006 = vpop.f32.mrf.mxu0
  %v1007 = vadd.f32 %v584, %v1006
  %v1008 = vpop.f32.mrf.mxu0
  %1009 = vmatprep.mubr.f32.mxu0 0.0
  %1010 = vmatmul.mubr.f32.gmra.mxu0 %v511
  %v1011 = vpop.f32.mrf.mxu0
  %v1012 = vadd.f32 %v584, %v1011
  %v1013 = vpop.f32.mrf.mxu0
  %1014 = vmatprep.mubr.f32.mxu0 0.0
  %1015 = vmatmul.mubr.f32.gmra.mxu0 %v512
  %v1016 = vpop.f32.mrf.mxu0
  %v1017 = vadd.f32 %v584, %v1016
  %v1018 = vpop.f32.mrf.mxu0
  %1019 = vmatprep.mubr.f32.mxu0 0.0
  %1020 = vmatmul.mubr.f32.gmra.mxu0 %v513
  %v1021 = vpop.f32.mrf.mxu0
  %v1022 = vadd.f32 %v584, %v1021
  %v1023 = vpop.f32.mrf.mxu0
  %1024 = vmatprep.mubr.f32.mxu0 0.0
  %1025 = vmatmul.mubr.f32.gmra.mxu0 %v514
  %v1026 = vpop.f32.mrf.mxu0
  %v1027 = vadd.f32 %v584, %v1026
  %v1028 = vpop.f32.mrf.mxu0
  %1029 = vmatprep.mubr.f32.mxu0 0.0
  %1030 = vmatmul.mubr.f32.gmra.mxu0 %v515
  %v1031 = vpop.f32.mrf.mxu0
  %v1032 = vadd.f32 %v584, %v1031
  %v1033 = vpop.f32.mrf.mxu0
  %1034 = vmatprep.mubr.f32.mxu0 0.0
  %1035 = vmatmul.mubr.f32.gmra.mxu0 %v516
  %v1036 = vpop.f32.mrf.mxu0
  %v1037 = vadd.f32 %v584, %v1036
  %v1038 = vpop.f32.mrf.mxu0
  %1039 = vmatprep.mubr.f32.mxu0 0.0
  %1040 = vmatmul.mubr.f32.gmra.mxu0 %v517
  %v1041 = vpop.f32.mrf.mxu0
  %v1042 = vadd.f32 %v584, %v1041
  %v1043 = vpop.f32.mrf.mxu0
  %1044 = vmatprep.mubr.f32.mxu0 0.0
  %1045 = vmatmul.mubr.f32.gmra.mxu0 %v518
  %v1046 = vpop.f32.mrf.mxu0
  %v1047 = vadd.f32 %v584, %v1046
  %v1048 = vpop.f32.mrf.mxu0
  %1049 = vmatprep.mubr.f32.mxu0 0.0
  %1050 = vmatmul.mubr.f32.gmra.mxu0 %v519
  %v1051 = vpop.f32.mrf.mxu0
  %v1052 = vadd.f32 %v584, %v1051
  %v1053 = vpop.f32.mrf.mxu0
  %1054 = vmatprep.mubr.f32.mxu0 0.0
  %1055 = vmatmul.mubr.f32.gmra.mxu0 %v520
  %v1056 = vpop.f32.mrf.mxu0
  %v1057 = vadd.f32 %v584, %v1056
  %v1058 = vpop.f32.mrf.mxu0
  %1059 = vmatprep.mubr.f32.mxu0 0.0
  %1060 = vmatmul.mubr.f32.gmra.mxu0 %v521
  %v1061 = vpop.f32.mrf.mxu0
  %v1062 = vadd.f32 %v584, %v1061
  %v1063 = vpop.f32.mrf.mxu0
  %1064 = vmatprep.mubr.f32.mxu0 0.0
  %1065 = vmatmul.mubr.f32.gmra.mxu0 %v522
  %v1066 = vpop.f32.mrf.mxu0
  %v1067 = vadd.f32 %v584, %v1066
  %v1068 = vpop.f32.mrf.mxu0
  %1069 = vdwg.mxu0
  %v1070 = vlaneseq
  %v1071 = vand.u32 %v1070, 127
  %v1072 = vlaneseq
  %v1073 = vshrl.u32 %v1072, 7
  %v1074 = vsub.s32 0, %v1073
  %v1075 = vrot.slane %v657, %v1074
  %v1076 = vlaneseq
  %v1077 = vshrl.u32 %v1076, 7
  %v1078 = vsub.s32 0, %v1077
  %v1079 = vrot.slane %v663, %v1078
  %v1080 = vlaneseq
  %v1081 = vshrl.u32 %v1080, 7
  %v1082 = vsub.s32 0, %v1081
  %v1083 = vrot.slane %v669, %v1082
  %v1084 = vlaneseq
  %v1085 = vshrl.u32 %v1084, 7
  %v1086 = vsub.s32 0, %v1085
  %v1087 = vrot.slane %v675, %v1086
  %v1088 = vlaneseq
  %v1089 = vshrl.u32 %v1088, 7
  %v1090 = vsub.s32 0, %v1089
  %v1091 = vrot.slane %v681, %v1090
  %v1092 = vlaneseq
  %v1093 = vshrl.u32 %v1092, 7
  %v1094 = vsub.s32 0, %v1093
  %v1095 = vrot.slane %v687, %v1094
  %v1096 = vlaneseq
  %v1097 = vshrl.u32 %v1096, 7
  %v1098 = vsub.s32 0, %v1097
  %v1099 = vrot.slane %v693, %v1098
  %v1100 = vlaneseq
  %v1101 = vshrl.u32 %v1100, 7
  %v1102 = vsub.s32 0, %v1101
  %v1103 = vrot.slane %v699, %v1102
  %v1104 = vlaneseq
  %v1105 = vshrl.u32 %v1104, 7
  %v1106 = vsub.s32 0, %v1105
  %v1107 = vrot.slane %v705, %v1106
  %v1108 = vlaneseq
  %v1109 = vshrl.u32 %v1108, 7
  %v1110 = vsub.s32 0, %v1109
  %v1111 = vrot.slane %v711, %v1110
  %v1112 = vlaneseq
  %v1113 = vshrl.u32 %v1112, 7
  %v1114 = vsub.s32 0, %v1113
  %v1115 = vrot.slane %v717, %v1114
  %v1116 = vlaneseq
  %v1117 = vshrl.u32 %v1116, 7
  %v1118 = vsub.s32 0, %v1117
  %v1119 = vrot.slane %v723, %v1118
  %v1120 = vlaneseq
  %v1121 = vshrl.u32 %v1120, 7
  %v1122 = vsub.s32 0, %v1121
  %v1123 = vrot.slane %v729, %v1122
  %v1124 = vlaneseq
  %v1125 = vshrl.u32 %v1124, 7
  %v1126 = vsub.s32 0, %v1125
  %v1127 = vrot.slane %v735, %v1126
  %v1128 = vlaneseq
  %v1129 = vshrl.u32 %v1128, 7
  %v1130 = vsub.s32 0, %v1129
  %v1131 = vrot.slane %v741, %v1130
  %v1132 = vlaneseq
  %v1133 = vshrl.u32 %v1132, 7
  %v1134 = vsub.s32 0, %v1133
  %v1135 = vrot.slane %v747, %v1134
  %v1136 = vlaneseq
  %v1137 = vshrl.u32 %v1136, 7
  %v1138 = vsub.s32 0, %v1137
  %v1139 = vrot.slane %v753, %v1138
  %v1140 = vlaneseq
  %v1141 = vshrl.u32 %v1140, 7
  %v1142 = vsub.s32 0, %v1141
  %v1143 = vrot.slane %v759, %v1142
  %v1144 = vlaneseq
  %v1145 = vshrl.u32 %v1144, 7
  %v1146 = vsub.s32 0, %v1145
  %v1147 = vrot.slane %v765, %v1146
  %v1148 = vlaneseq
  %v1149 = vshrl.u32 %v1148, 7
  %v1150 = vsub.s32 0, %v1149
  %v1151 = vrot.slane %v771, %v1150
  %v1152 = vlaneseq
  %v1153 = vshrl.u32 %v1152, 7
  %v1154 = vsub.s32 0, %v1153
  %v1155 = vrot.slane %v777, %v1154
  %v1156 = vlaneseq
  %v1157 = vshrl.u32 %v1156, 7
  %v1158 = vsub.s32 0, %v1157
  %v1159 = vrot.slane %v783, %v1158
  %v1160 = vlaneseq
  %v1161 = vshrl.u32 %v1160, 7
  %v1162 = vsub.s32 0, %v1161
  %v1163 = vrot.slane %v789, %v1162
  %v1164 = vlaneseq
  %v1165 = vshrl.u32 %v1164, 7
  %v1166 = vsub.s32 0, %v1165
  %v1167 = vrot.slane %v795, %v1166
  %v1168 = vlaneseq
  %v1169 = vshrl.u32 %v1168, 7
  %v1170 = vsub.s32 0, %v1169
  %v1171 = vrot.slane %v801, %v1170
  %v1172 = vlaneseq
  %v1173 = vshrl.u32 %v1172, 7
  %v1174 = vsub.s32 0, %v1173
  %v1175 = vrot.slane %v807, %v1174
  %v1176 = vlaneseq
  %v1177 = vshrl.u32 %v1176, 7
  %v1178 = vsub.s32 0, %v1177
  %v1179 = vrot.slane %v813, %v1178
  %v1180 = vlaneseq
  %v1181 = vshrl.u32 %v1180, 7
  %v1182 = vsub.s32 0, %v1181
  %v1183 = vrot.slane %v819, %v1182
  %v1184 = vlaneseq
  %v1185 = vshrl.u32 %v1184, 7
  %v1186 = vsub.s32 0, %v1185
  %v1187 = vrot.slane %v825, %v1186
  %v1188 = vlaneseq
  %v1189 = vshrl.u32 %v1188, 7
  %v1190 = vsub.s32 0, %v1189
  %v1191 = vrot.slane %v831, %v1190
  %v1192 = vlaneseq
  %v1193 = vshrl.u32 %v1192, 7
  %v1194 = vsub.s32 0, %v1193
  %v1195 = vrot.slane %v837, %v1194
  %v1196 = vlaneseq
  %v1197 = vshrl.u32 %v1196, 7
  %v1198 = vsub.s32 0, %v1197
  %v1199 = vrot.slane %v843, %v1198
  %v1200 = vmul.f32 %v655, %v1075
  %v1201 = vmul.f32 %v661, %v1079
  %v1202 = vmul.f32 %v667, %v1083
  %v1203 = vmul.f32 %v673, %v1087
  %v1204 = vmul.f32 %v679, %v1091
  %v1205 = vmul.f32 %v685, %v1095
  %v1206 = vmul.f32 %v691, %v1099
  %v1207 = vmul.f32 %v697, %v1103
  %v1208 = vmul.f32 %v703, %v1107
  %v1209 = vmul.f32 %v709, %v1111
  %v1210 = vmul.f32 %v715, %v1115
  %v1211 = vmul.f32 %v721, %v1119
  %v1212 = vmul.f32 %v727, %v1123
  %v1213 = vmul.f32 %v733, %v1127
  %v1214 = vmul.f32 %v739, %v1131
  %v1215 = vmul.f32 %v745, %v1135
  %v1216 = vmul.f32 %v751, %v1139
  %v1217 = vmul.f32 %v757, %v1143
  %v1218 = vmul.f32 %v763, %v1147
  %v1219 = vmul.f32 %v769, %v1151
  %v1220 = vmul.f32 %v775, %v1155
  %v1221 = vmul.f32 %v781, %v1159
  %v1222 = vmul.f32 %v787, %v1163
  %v1223 = vmul.f32 %v793, %v1167
  %v1224 = vmul.f32 %v799, %v1171
  %v1225 = vmul.f32 %v805, %v1175
  %v1226 = vmul.f32 %v811, %v1179
  %v1227 = vmul.f32 %v817, %v1183
  %v1228 = vmul.f32 %v823, %v1187
  %v1229 = vmul.f32 %v829, %v1191
  %v1230 = vmul.f32 %v835, %v1195
  %v1231 = vmul.f32 %v841, %v1199
  %1232 = vadd.xlane.f32.xlu0 %v1200
  %v1233 = vpop.xlane.xlu0 %1232
  %1234 = vadd.xlane.f32.xlu0 %v1201
  %v1235 = vpop.xlane.xlu0 %1234
  %1236 = vadd.xlane.f32.xlu0 %v1202
  %v1237 = vpop.xlane.xlu0 %1236
  %1238 = vadd.xlane.f32.xlu0 %v1203
  %v1239 = vpop.xlane.xlu0 %1238
  %1240 = vadd.xlane.f32.xlu0 %v1204
  %v1241 = vpop.xlane.xlu0 %1240
  %1242 = vadd.xlane.f32.xlu0 %v1205
  %v1243 = vpop.xlane.xlu0 %1242
  %1244 = vadd.xlane.f32.xlu0 %v1206
  %v1245 = vpop.xlane.xlu0 %1244
  %1246 = vadd.xlane.f32.xlu0 %v1207
  %v1247 = vpop.xlane.xlu0 %1246
  %1248 = vadd.xlane.f32.xlu0 %v1208
  %v1249 = vpop.xlane.xlu0 %1248
  %1250 = vadd.xlane.f32.xlu0 %v1209
  %v1251 = vpop.xlane.xlu0 %1250
  %1252 = vadd.xlane.f32.xlu0 %v1210
  %v1253 = vpop.xlane.xlu0 %1252
  %1254 = vadd.xlane.f32.xlu0 %v1211
  %v1255 = vpop.xlane.xlu0 %1254
  %1256 = vadd.xlane.f32.xlu0 %v1212
  %v1257 = vpop.xlane.xlu0 %1256
  %1258 = vadd.xlane.f32.xlu0 %v1213
  %v1259 = vpop.xlane.xlu0 %1258
  %1260 = vadd.xlane.f32.xlu0 %v1214
  %v1261 = vpop.xlane.xlu0 %1260
  %1262 = vadd.xlane.f32.xlu0 %v1215
  %v1263 = vpop.xlane.xlu0 %1262
  %1264 = vadd.xlane.f32.xlu0 %v1216
  %v1265 = vpop.xlane.xlu0 %1264
  %1266 = vadd.xlane.f32.xlu0 %v1217
  %v1267 = vpop.xlane.xlu0 %1266
  %1268 = vadd.xlane.f32.xlu0 %v1218
  %v1269 = vpop.xlane.xlu0 %1268
  %1270 = vadd.xlane.f32.xlu0 %v1219
  %v1271 = vpop.xlane.xlu0 %1270
  %1272 = vadd.xlane.f32.xlu0 %v1220
  %v1273 = vpop.xlane.xlu0 %1272
  %1274 = vadd.xlane.f32.xlu0 %v1221
  %v1275 = vpop.xlane.xlu0 %1274
  %1276 = vadd.xlane.f32.xlu0 %v1222
  %v1277 = vpop.xlane.xlu0 %1276
  %1278 = vadd.xlane.f32.xlu0 %v1223
  %v1279 = vpop.xlane.xlu0 %1278
  %1280 = vadd.xlane.f32.xlu0 %v1224
  %v1281 = vpop.xlane.xlu0 %1280
  %1282 = vadd.xlane.f32.xlu0 %v1225
  %v1283 = vpop.xlane.xlu0 %1282
  %1284 = vadd.xlane.f32.xlu0 %v1226
  %v1285 = vpop.xlane.xlu0 %1284
  %1286 = vadd.xlane.f32.xlu0 %v1227
  %v1287 = vpop.xlane.xlu0 %1286
  %1288 = vadd.xlane.f32.xlu0 %v1228
  %v1289 = vpop.xlane.xlu0 %1288
  %1290 = vadd.xlane.f32.xlu0 %v1229
  %v1291 = vpop.xlane.xlu0 %1290
  %1292 = vadd.xlane.f32.xlu0 %v1230
  %v1293 = vpop.xlane.xlu0 %1292
  %1294 = vadd.xlane.f32.xlu0 %v1231
  %v1295 = vpop.xlane.xlu0 %1294
  %v1296 = vmul.f32 %v1233, 0.088388346
  %v1297 = vmul.f32 %v1235, 0.088388346
  %v1298 = vmul.f32 %v1237, 0.088388346
  %v1299 = vmul.f32 %v1239, 0.088388346
  %v1300 = vmul.f32 %v1241, 0.088388346
  %v1301 = vmul.f32 %v1243, 0.088388346
  %v1302 = vmul.f32 %v1245, 0.088388346
  %v1303 = vmul.f32 %v1247, 0.088388346
  %v1304 = vmul.f32 %v1249, 0.088388346
  %v1305 = vmul.f32 %v1251, 0.088388346
  %v1306 = vmul.f32 %v1253, 0.088388346
  %v1307 = vmul.f32 %v1255, 0.088388346
  %v1308 = vmul.f32 %v1257, 0.088388346
  %v1309 = vmul.f32 %v1259, 0.088388346
  %v1310 = vmul.f32 %v1261, 0.088388346
  %v1311 = vmul.f32 %v1263, 0.088388346
  %v1312 = vmul.f32 %v1265, 0.088388346
  %v1313 = vmul.f32 %v1267, 0.088388346
  %v1314 = vmul.f32 %v1269, 0.088388346
  %v1315 = vmul.f32 %v1271, 0.088388346
  %v1316 = vmul.f32 %v1273, 0.088388346
  %v1317 = vmul.f32 %v1275, 0.088388346
  %v1318 = vmul.f32 %v1277, 0.088388346
  %v1319 = vmul.f32 %v1279, 0.088388346
  %v1320 = vmul.f32 %v1281, 0.088388346
  %v1321 = vmul.f32 %v1283, 0.088388346
  %v1322 = vmul.f32 %v1285, 0.088388346
  %v1323 = vmul.f32 %v1287, 0.088388346
  %v1324 = vmul.f32 %v1289, 0.088388346
  %v1325 = vmul.f32 %v1291, 0.088388346
  %v1326 = vmul.f32 %v1293, 0.088388346
  %v1327 = vmul.f32 %v1295, 0.088388346
  %vm1328 = vcmp.ge.s32.totalorder %v1071, 0
  %v1361 = vlaneseq
  %v1362 = vshrl.u32 %v1361, 7
  %v1363 = vsub.s32 %v1071, %v1362
  %v1364 = vrot.slane %v1296, %v1363
  %v1365 = vlaneseq
  %v1366 = vshrl.u32 %v1365, 7
  %v1367 = vsub.s32 %v1071, %v1366
  %v1368 = vrot.slane %v1297, %v1367
  %v1369 = vlaneseq
  %v1370 = vshrl.u32 %v1369, 7
  %v1371 = vsub.s32 %v1071, %v1370
  %v1372 = vrot.slane %v1298, %v1371
  %v1373 = vlaneseq
  %v1374 = vshrl.u32 %v1373, 7
  %v1375 = vsub.s32 %v1071, %v1374
  %v1376 = vrot.slane %v1299, %v1375
  %v1377 = vlaneseq
  %v1378 = vshrl.u32 %v1377, 7
  %v1379 = vsub.s32 %v1071, %v1378
  %v1380 = vrot.slane %v1300, %v1379
  %v1381 = vlaneseq
  %v1382 = vshrl.u32 %v1381, 7
  %v1383 = vsub.s32 %v1071, %v1382
  %v1384 = vrot.slane %v1301, %v1383
  %v1385 = vlaneseq
  %v1386 = vshrl.u32 %v1385, 7
  %v1387 = vsub.s32 %v1071, %v1386
  %v1388 = vrot.slane %v1302, %v1387
  %v1389 = vlaneseq
  %v1390 = vshrl.u32 %v1389, 7
  %v1391 = vsub.s32 %v1071, %v1390
  %v1392 = vrot.slane %v1303, %v1391
  %v1393 = vlaneseq
  %v1394 = vshrl.u32 %v1393, 7
  %v1395 = vsub.s32 %v1071, %v1394
  %v1396 = vrot.slane %v1304, %v1395
  %v1397 = vlaneseq
  %v1398 = vshrl.u32 %v1397, 7
  %v1399 = vsub.s32 %v1071, %v1398
  %v1400 = vrot.slane %v1305, %v1399
  %v1401 = vlaneseq
  %v1402 = vshrl.u32 %v1401, 7
  %v1403 = vsub.s32 %v1071, %v1402
  %v1404 = vrot.slane %v1306, %v1403
  %v1405 = vlaneseq
  %v1406 = vshrl.u32 %v1405, 7
  %v1407 = vsub.s32 %v1071, %v1406
  %v1408 = vrot.slane %v1307, %v1407
  %v1409 = vlaneseq
  %v1410 = vshrl.u32 %v1409, 7
  %v1411 = vsub.s32 %v1071, %v1410
  %v1412 = vrot.slane %v1308, %v1411
  %v1413 = vlaneseq
  %v1414 = vshrl.u32 %v1413, 7
  %v1415 = vsub.s32 %v1071, %v1414
  %v1416 = vrot.slane %v1309, %v1415
  %v1417 = vlaneseq
  %v1418 = vshrl.u32 %v1417, 7
  %v1419 = vsub.s32 %v1071, %v1418
  %v1420 = vrot.slane %v1310, %v1419
  %v1421 = vlaneseq
  %v1422 = vshrl.u32 %v1421, 7
  %v1423 = vsub.s32 %v1071, %v1422
  %v1424 = vrot.slane %v1311, %v1423
  %v1425 = vlaneseq
  %v1426 = vshrl.u32 %v1425, 7
  %v1427 = vsub.s32 %v1071, %v1426
  %v1428 = vrot.slane %v1312, %v1427
  %v1429 = vlaneseq
  %v1430 = vshrl.u32 %v1429, 7
  %v1431 = vsub.s32 %v1071, %v1430
  %v1432 = vrot.slane %v1313, %v1431
  %v1433 = vlaneseq
  %v1434 = vshrl.u32 %v1433, 7
  %v1435 = vsub.s32 %v1071, %v1434
  %v1436 = vrot.slane %v1314, %v1435
  %v1437 = vlaneseq
  %v1438 = vshrl.u32 %v1437, 7
  %v1439 = vsub.s32 %v1071, %v1438
  %v1440 = vrot.slane %v1315, %v1439
  %v1441 = vlaneseq
  %v1442 = vshrl.u32 %v1441, 7
  %v1443 = vsub.s32 %v1071, %v1442
  %v1444 = vrot.slane %v1316, %v1443
  %v1445 = vlaneseq
  %v1446 = vshrl.u32 %v1445, 7
  %v1447 = vsub.s32 %v1071, %v1446
  %v1448 = vrot.slane %v1317, %v1447
  %v1449 = vlaneseq
  %v1450 = vshrl.u32 %v1449, 7
  %v1451 = vsub.s32 %v1071, %v1450
  %v1452 = vrot.slane %v1318, %v1451
  %v1453 = vlaneseq
  %v1454 = vshrl.u32 %v1453, 7
  %v1455 = vsub.s32 %v1071, %v1454
  %v1456 = vrot.slane %v1319, %v1455
  %v1457 = vlaneseq
  %v1458 = vshrl.u32 %v1457, 7
  %v1459 = vsub.s32 %v1071, %v1458
  %v1460 = vrot.slane %v1320, %v1459
  %v1461 = vlaneseq
  %v1462 = vshrl.u32 %v1461, 7
  %v1463 = vsub.s32 %v1071, %v1462
  %v1464 = vrot.slane %v1321, %v1463
  %v1465 = vlaneseq
  %v1466 = vshrl.u32 %v1465, 7
  %v1467 = vsub.s32 %v1071, %v1466
  %v1468 = vrot.slane %v1322, %v1467
  %v1469 = vlaneseq
  %v1470 = vshrl.u32 %v1469, 7
  %v1471 = vsub.s32 %v1071, %v1470
  %v1472 = vrot.slane %v1323, %v1471
  %v1473 = vlaneseq
  %v1474 = vshrl.u32 %v1473, 7
  %v1475 = vsub.s32 %v1071, %v1474
  %v1476 = vrot.slane %v1324, %v1475
  %v1477 = vlaneseq
  %v1478 = vshrl.u32 %v1477, 7
  %v1479 = vsub.s32 %v1071, %v1478
  %v1480 = vrot.slane %v1325, %v1479
  %v1481 = vlaneseq
  %v1482 = vshrl.u32 %v1481, 7
  %v1483 = vsub.s32 %v1071, %v1482
  %v1484 = vrot.slane %v1326, %v1483
  %v1485 = vlaneseq
  %v1486 = vshrl.u32 %v1485, 7
  %v1487 = vsub.s32 %v1071, %v1486
  %v1488 = vrot.slane %v1327, %v1487
  %vm1489 = vcmask 1041409
  %v1490 = vsel %vm1489, %v1368, %v1364
  %vm1491 = vcmask 1042434
  %v1492 = vsel %vm1491, %v1372, %v1490
  %vm1493 = vcmask 1043459
  %v1494 = vsel %vm1493, %v1376, %v1492
  %vm1495 = vcmask 1044484
  %v1496 = vsel %vm1495, %v1380, %v1494
  %vm1497 = vcmask 1045509
  %v1498 = vsel %vm1497, %v1384, %v1496
  %vm1499 = vcmask 1046534
  %v1500 = vsel %vm1499, %v1388, %v1498
  %vm1501 = vcmask 1047559
  %v1502 = vsel %vm1501, %v1392, %v1500
  %v1503 = vsel %vm1489, %v1400, %v1396
  %v1504 = vsel %vm1491, %v1404, %v1503
  %v1505 = vsel %vm1493, %v1408, %v1504
  %v1506 = vsel %vm1495, %v1412, %v1505
  %v1507 = vsel %vm1497, %v1416, %v1506
  %v1508 = vsel %vm1499, %v1420, %v1507
  %v1509 = vsel %vm1501, %v1424, %v1508
  %v1510 = vsel %vm1489, %v1432, %v1428
  %v1511 = vsel %vm1491, %v1436, %v1510
  %v1512 = vsel %vm1493, %v1440, %v1511
  %v1513 = vsel %vm1495, %v1444, %v1512
  %v1514 = vsel %vm1497, %v1448, %v1513
  %v1515 = vsel %vm1499, %v1452, %v1514
  %v1516 = vsel %vm1501, %v1456, %v1515
  %v1517 = vsel %vm1489, %v1464, %v1460
  %v1518 = vsel %vm1491, %v1468, %v1517
  %v1519 = vsel %vm1493, %v1472, %v1518
  %v1520 = vsel %vm1495, %v1476, %v1519
  %v1521 = vsel %vm1497, %v1480, %v1520
  %v1522 = vsel %vm1499, %v1484, %v1521
  %v1523 = vsel %vm1501, %v1488, %v1522
  %v1528 = vsel %vm1328, %v1502, -1e+30
  %v1529 = vsel %vm1328, %v1509, -1e+30
  %v1530 = vsel %vm1328, %v1516, -1e+30
  %v1531 = vsel %vm1328, %v1523, -1e+30
  %v1532 = vlaneseq
  %v1533 = vshrl.u32 %v1532, 7
  %v1534 = vsub.s32 1, %v1533
  %v1535 = vrot.slane %v657, %v1534
  %v1536 = vlaneseq
  %v1537 = vshrl.u32 %v1536, 7
  %v1538 = vsub.s32 1, %v1537
  %v1539 = vrot.slane %v663, %v1538
  %v1540 = vlaneseq
  %v1541 = vshrl.u32 %v1540, 7
  %v1542 = vsub.s32 1, %v1541
  %v1543 = vrot.slane %v669, %v1542
  %v1544 = vlaneseq
  %v1545 = vshrl.u32 %v1544, 7
  %v1546 = vsub.s32 1, %v1545
  %v1547 = vrot.slane %v675, %v1546
  %v1548 = vlaneseq
  %v1549 = vshrl.u32 %v1548, 7
  %v1550 = vsub.s32 1, %v1549
  %v1551 = vrot.slane %v681, %v1550
  %v1552 = vlaneseq
  %v1553 = vshrl.u32 %v1552, 7
  %v1554 = vsub.s32 1, %v1553
  %v1555 = vrot.slane %v687, %v1554
  %v1556 = vlaneseq
  %v1557 = vshrl.u32 %v1556, 7
  %v1558 = vsub.s32 1, %v1557
  %v1559 = vrot.slane %v693, %v1558
  %v1560 = vlaneseq
  %v1561 = vshrl.u32 %v1560, 7
  %v1562 = vsub.s32 1, %v1561
  %v1563 = vrot.slane %v699, %v1562
  %v1564 = vlaneseq
  %v1565 = vshrl.u32 %v1564, 7
  %v1566 = vsub.s32 1, %v1565
  %v1567 = vrot.slane %v705, %v1566
  %v1568 = vlaneseq
  %v1569 = vshrl.u32 %v1568, 7
  %v1570 = vsub.s32 1, %v1569
  %v1571 = vrot.slane %v711, %v1570
  %v1572 = vlaneseq
  %v1573 = vshrl.u32 %v1572, 7
  %v1574 = vsub.s32 1, %v1573
  %v1575 = vrot.slane %v717, %v1574
  %v1576 = vlaneseq
  %v1577 = vshrl.u32 %v1576, 7
  %v1578 = vsub.s32 1, %v1577
  %v1579 = vrot.slane %v723, %v1578
  %v1580 = vlaneseq
  %v1581 = vshrl.u32 %v1580, 7
  %v1582 = vsub.s32 1, %v1581
  %v1583 = vrot.slane %v729, %v1582
  %v1584 = vlaneseq
  %v1585 = vshrl.u32 %v1584, 7
  %v1586 = vsub.s32 1, %v1585
  %v1587 = vrot.slane %v735, %v1586
  %v1588 = vlaneseq
  %v1589 = vshrl.u32 %v1588, 7
  %v1590 = vsub.s32 1, %v1589
  %v1591 = vrot.slane %v741, %v1590
  %v1592 = vlaneseq
  %v1593 = vshrl.u32 %v1592, 7
  %v1594 = vsub.s32 1, %v1593
  %v1595 = vrot.slane %v747, %v1594
  %v1596 = vlaneseq
  %v1597 = vshrl.u32 %v1596, 7
  %v1598 = vsub.s32 1, %v1597
  %v1599 = vrot.slane %v753, %v1598
  %v1600 = vlaneseq
  %v1601 = vshrl.u32 %v1600, 7
  %v1602 = vsub.s32 1, %v1601
  %v1603 = vrot.slane %v759, %v1602
  %v1604 = vlaneseq
  %v1605 = vshrl.u32 %v1604, 7
  %v1606 = vsub.s32 1, %v1605
  %v1607 = vrot.slane %v765, %v1606
  %v1608 = vlaneseq
  %v1609 = vshrl.u32 %v1608, 7
  %v1610 = vsub.s32 1, %v1609
  %v1611 = vrot.slane %v771, %v1610
  %v1612 = vlaneseq
  %v1613 = vshrl.u32 %v1612, 7
  %v1614 = vsub.s32 1, %v1613
  %v1615 = vrot.slane %v777, %v1614
  %v1616 = vlaneseq
  %v1617 = vshrl.u32 %v1616, 7
  %v1618 = vsub.s32 1, %v1617
  %v1619 = vrot.slane %v783, %v1618
  %v1620 = vlaneseq
  %v1621 = vshrl.u32 %v1620, 7
  %v1622 = vsub.s32 1, %v1621
  %v1623 = vrot.slane %v789, %v1622
  %v1624 = vlaneseq
  %v1625 = vshrl.u32 %v1624, 7
  %v1626 = vsub.s32 1, %v1625
  %v1627 = vrot.slane %v795, %v1626
  %v1628 = vlaneseq
  %v1629 = vshrl.u32 %v1628, 7
  %v1630 = vsub.s32 1, %v1629
  %v1631 = vrot.slane %v801, %v1630
  %v1632 = vlaneseq
  %v1633 = vshrl.u32 %v1632, 7
  %v1634 = vsub.s32 1, %v1633
  %v1635 = vrot.slane %v807, %v1634
  %v1636 = vlaneseq
  %v1637 = vshrl.u32 %v1636, 7
  %v1638 = vsub.s32 1, %v1637
  %v1639 = vrot.slane %v813, %v1638
  %v1640 = vlaneseq
  %v1641 = vshrl.u32 %v1640, 7
  %v1642 = vsub.s32 1, %v1641
  %v1643 = vrot.slane %v819, %v1642
  %v1644 = vlaneseq
  %v1645 = vshrl.u32 %v1644, 7
  %v1646 = vsub.s32 1, %v1645
  %v1647 = vrot.slane %v825, %v1646
  %v1648 = vlaneseq
  %v1649 = vshrl.u32 %v1648, 7
  %v1650 = vsub.s32 1, %v1649
  %v1651 = vrot.slane %v831, %v1650
  %v1652 = vlaneseq
  %v1653 = vshrl.u32 %v1652, 7
  %v1654 = vsub.s32 1, %v1653
  %v1655 = vrot.slane %v837, %v1654
  %v1656 = vlaneseq
  %v1657 = vshrl.u32 %v1656, 7
  %v1658 = vsub.s32 1, %v1657
  %v1659 = vrot.slane %v843, %v1658
  %v1660 = vmul.f32 %v655, %v1535
  %v1661 = vmul.f32 %v661, %v1539
  %v1662 = vmul.f32 %v667, %v1543
  %v1663 = vmul.f32 %v673, %v1547
  %v1664 = vmul.f32 %v679, %v1551
  %v1665 = vmul.f32 %v685, %v1555
  %v1666 = vmul.f32 %v691, %v1559
  %v1667 = vmul.f32 %v697, %v1563
  %v1668 = vmul.f32 %v703, %v1567
  %v1669 = vmul.f32 %v709, %v1571
  %v1670 = vmul.f32 %v715, %v1575
  %v1671 = vmul.f32 %v721, %v1579
  %v1672 = vmul.f32 %v727, %v1583
  %v1673 = vmul.f32 %v733, %v1587
  %v1674 = vmul.f32 %v739, %v1591
  %v1675 = vmul.f32 %v745, %v1595
  %v1676 = vmul.f32 %v751, %v1599
  %v1677 = vmul.f32 %v757, %v1603
  %v1678 = vmul.f32 %v763, %v1607
  %v1679 = vmul.f32 %v769, %v1611
  %v1680 = vmul.f32 %v775, %v1615
  %v1681 = vmul.f32 %v781, %v1619
  %v1682 = vmul.f32 %v787, %v1623
  %v1683 = vmul.f32 %v793, %v1627
  %v1684 = vmul.f32 %v799, %v1631
  %v1685 = vmul.f32 %v805, %v1635
  %v1686 = vmul.f32 %v811, %v1639
  %v1687 = vmul.f32 %v817, %v1643
  %v1688 = vmul.f32 %v823, %v1647
  %v1689 = vmul.f32 %v829, %v1651
  %v1690 = vmul.f32 %v835, %v1655
  %v1691 = vmul.f32 %v841, %v1659
  %1692 = vadd.xlane.f32.xlu0 %v1660
  %v1693 = vpop.xlane.xlu0 %1692
  %1694 = vadd.xlane.f32.xlu0 %v1661
  %v1695 = vpop.xlane.xlu0 %1694
  %1696 = vadd.xlane.f32.xlu0 %v1662
  %v1697 = vpop.xlane.xlu0 %1696
  %1698 = vadd.xlane.f32.xlu0 %v1663
  %v1699 = vpop.xlane.xlu0 %1698
  %1700 = vadd.xlane.f32.xlu0 %v1664
  %v1701 = vpop.xlane.xlu0 %1700
  %1702 = vadd.xlane.f32.xlu0 %v1665
  %v1703 = vpop.xlane.xlu0 %1702
  %1704 = vadd.xlane.f32.xlu0 %v1666
  %v1705 = vpop.xlane.xlu0 %1704
  %1706 = vadd.xlane.f32.xlu0 %v1667
  %v1707 = vpop.xlane.xlu0 %1706
  %1708 = vadd.xlane.f32.xlu0 %v1668
  %v1709 = vpop.xlane.xlu0 %1708
  %1710 = vadd.xlane.f32.xlu0 %v1669
  %v1711 = vpop.xlane.xlu0 %1710
  %1712 = vadd.xlane.f32.xlu0 %v1670
  %v1713 = vpop.xlane.xlu0 %1712
  %1714 = vadd.xlane.f32.xlu0 %v1671
  %v1715 = vpop.xlane.xlu0 %1714
  %1716 = vadd.xlane.f32.xlu0 %v1672
  %v1717 = vpop.xlane.xlu0 %1716
  %1718 = vadd.xlane.f32.xlu0 %v1673
  %v1719 = vpop.xlane.xlu0 %1718
  %1720 = vadd.xlane.f32.xlu0 %v1674
  %v1721 = vpop.xlane.xlu0 %1720
  %1722 = vadd.xlane.f32.xlu0 %v1675
  %v1723 = vpop.xlane.xlu0 %1722
  %1724 = vadd.xlane.f32.xlu0 %v1676
  %v1725 = vpop.xlane.xlu0 %1724
  %1726 = vadd.xlane.f32.xlu0 %v1677
  %v1727 = vpop.xlane.xlu0 %1726
  %1728 = vadd.xlane.f32.xlu0 %v1678
  %v1729 = vpop.xlane.xlu0 %1728
  %1730 = vadd.xlane.f32.xlu0 %v1679
  %v1731 = vpop.xlane.xlu0 %1730
  %1732 = vadd.xlane.f32.xlu0 %v1680
  %v1733 = vpop.xlane.xlu0 %1732
  %1734 = vadd.xlane.f32.xlu0 %v1681
  %v1735 = vpop.xlane.xlu0 %1734
  %1736 = vadd.xlane.f32.xlu0 %v1682
  %v1737 = vpop.xlane.xlu0 %1736
  %1738 = vadd.xlane.f32.xlu0 %v1683
  %v1739 = vpop.xlane.xlu0 %1738
  %1740 = vadd.xlane.f32.xlu0 %v1684
  %v1741 = vpop.xlane.xlu0 %1740
  %1742 = vadd.xlane.f32.xlu0 %v1685
  %v1743 = vpop.xlane.xlu0 %1742
  %1744 = vadd.xlane.f32.xlu0 %v1686
  %v1745 = vpop.xlane.xlu0 %1744
  %1746 = vadd.xlane.f32.xlu0 %v1687
  %v1747 = vpop.xlane.xlu0 %1746
  %1748 = vadd.xlane.f32.xlu0 %v1688
  %v1749 = vpop.xlane.xlu0 %1748
  %1750 = vadd.xlane.f32.xlu0 %v1689
  %v1751 = vpop.xlane.xlu0 %1750
  %1752 = vadd.xlane.f32.xlu0 %v1690
  %v1753 = vpop.xlane.xlu0 %1752
  %1754 = vadd.xlane.f32.xlu0 %v1691
  %v1755 = vpop.xlane.xlu0 %1754
  %v1756 = vmul.f32 %v1693, 0.088388346
  %v1757 = vmul.f32 %v1695, 0.088388346
  %v1758 = vmul.f32 %v1697, 0.088388346
  %v1759 = vmul.f32 %v1699, 0.088388346
  %v1760 = vmul.f32 %v1701, 0.088388346
  %v1761 = vmul.f32 %v1703, 0.088388346
  %v1762 = vmul.f32 %v1705, 0.088388346
  %v1763 = vmul.f32 %v1707, 0.088388346
  %v1764 = vmul.f32 %v1709, 0.088388346
  %v1765 = vmul.f32 %v1711, 0.088388346
  %v1766 = vmul.f32 %v1713, 0.088388346
  %v1767 = vmul.f32 %v1715, 0.088388346
  %v1768 = vmul.f32 %v1717, 0.088388346
  %v1769 = vmul.f32 %v1719, 0.088388346
  %v1770 = vmul.f32 %v1721, 0.088388346
  %v1771 = vmul.f32 %v1723, 0.088388346
  %v1772 = vmul.f32 %v1725, 0.088388346
  %v1773 = vmul.f32 %v1727, 0.088388346
  %v1774 = vmul.f32 %v1729, 0.088388346
  %v1775 = vmul.f32 %v1731, 0.088388346
  %v1776 = vmul.f32 %v1733, 0.088388346
  %v1777 = vmul.f32 %v1735, 0.088388346
  %v1778 = vmul.f32 %v1737, 0.088388346
  %v1779 = vmul.f32 %v1739, 0.088388346
  %v1780 = vmul.f32 %v1741, 0.088388346
  %v1781 = vmul.f32 %v1743, 0.088388346
  %v1782 = vmul.f32 %v1745, 0.088388346
  %v1783 = vmul.f32 %v1747, 0.088388346
  %v1784 = vmul.f32 %v1749, 0.088388346
  %v1785 = vmul.f32 %v1751, 0.088388346
  %v1786 = vmul.f32 %v1753, 0.088388346
  %v1787 = vmul.f32 %v1755, 0.088388346
  %vm1788 = vcmp.ge.s32.totalorder %v1071, 1
  %v1821 = vlaneseq
  %v1822 = vshrl.u32 %v1821, 7
  %v1823 = vsub.s32 %v1071, %v1822
  %v1824 = vrot.slane %v1756, %v1823
  %v1825 = vlaneseq
  %v1826 = vshrl.u32 %v1825, 7
  %v1827 = vsub.s32 %v1071, %v1826
  %v1828 = vrot.slane %v1757, %v1827
  %v1829 = vlaneseq
  %v1830 = vshrl.u32 %v1829, 7
  %v1831 = vsub.s32 %v1071, %v1830
  %v1832 = vrot.slane %v1758, %v1831
  %v1833 = vlaneseq
  %v1834 = vshrl.u32 %v1833, 7
  %v1835 = vsub.s32 %v1071, %v1834
  %v1836 = vrot.slane %v1759, %v1835
  %v1837 = vlaneseq
  %v1838 = vshrl.u32 %v1837, 7
  %v1839 = vsub.s32 %v1071, %v1838
  %v1840 = vrot.slane %v1760, %v1839
  %v1841 = vlaneseq
  %v1842 = vshrl.u32 %v1841, 7
  %v1843 = vsub.s32 %v1071, %v1842
  %v1844 = vrot.slane %v1761, %v1843
  %v1845 = vlaneseq
  %v1846 = vshrl.u32 %v1845, 7
  %v1847 = vsub.s32 %v1071, %v1846
  %v1848 = vrot.slane %v1762, %v1847
  %v1849 = vlaneseq
  %v1850 = vshrl.u32 %v1849, 7
  %v1851 = vsub.s32 %v1071, %v1850
  %v1852 = vrot.slane %v1763, %v1851
  %v1853 = vlaneseq
  %v1854 = vshrl.u32 %v1853, 7
  %v1855 = vsub.s32 %v1071, %v1854
  %v1856 = vrot.slane %v1764, %v1855
  %v1857 = vlaneseq
  %v1858 = vshrl.u32 %v1857, 7
  %v1859 = vsub.s32 %v1071, %v1858
  %v1860 = vrot.slane %v1765, %v1859
  %v1861 = vlaneseq
  %v1862 = vshrl.u32 %v1861, 7
  %v1863 = vsub.s32 %v1071, %v1862
  %v1864 = vrot.slane %v1766, %v1863
  %v1865 = vlaneseq
  %v1866 = vshrl.u32 %v1865, 7
  %v1867 = vsub.s32 %v1071, %v1866
  %v1868 = vrot.slane %v1767, %v1867
  %v1869 = vlaneseq
  %v1870 = vshrl.u32 %v1869, 7
  %v1871 = vsub.s32 %v1071, %v1870
  %v1872 = vrot.slane %v1768, %v1871
  %v1873 = vlaneseq
  %v1874 = vshrl.u32 %v1873, 7
  %v1875 = vsub.s32 %v1071, %v1874
  %v1876 = vrot.slane %v1769, %v1875
  %v1877 = vlaneseq
  %v1878 = vshrl.u32 %v1877, 7
  %v1879 = vsub.s32 %v1071, %v1878
  %v1880 = vrot.slane %v1770, %v1879
  %v1881 = vlaneseq
  %v1882 = vshrl.u32 %v1881, 7
  %v1883 = vsub.s32 %v1071, %v1882
  %v1884 = vrot.slane %v1771, %v1883
  %v1885 = vlaneseq
  %v1886 = vshrl.u32 %v1885, 7
  %v1887 = vsub.s32 %v1071, %v1886
  %v1888 = vrot.slane %v1772, %v1887
  %v1889 = vlaneseq
  %v1890 = vshrl.u32 %v1889, 7
  %v1891 = vsub.s32 %v1071, %v1890
  %v1892 = vrot.slane %v1773, %v1891
  %v1893 = vlaneseq
  %v1894 = vshrl.u32 %v1893, 7
  %v1895 = vsub.s32 %v1071, %v1894
  %v1896 = vrot.slane %v1774, %v1895
  %v1897 = vlaneseq
  %v1898 = vshrl.u32 %v1897, 7
  %v1899 = vsub.s32 %v1071, %v1898
  %v1900 = vrot.slane %v1775, %v1899
  %v1901 = vlaneseq
  %v1902 = vshrl.u32 %v1901, 7
  %v1903 = vsub.s32 %v1071, %v1902
  %v1904 = vrot.slane %v1776, %v1903
  %v1905 = vlaneseq
  %v1906 = vshrl.u32 %v1905, 7
  %v1907 = vsub.s32 %v1071, %v1906
  %v1908 = vrot.slane %v1777, %v1907
  %v1909 = vlaneseq
  %v1910 = vshrl.u32 %v1909, 7
  %v1911 = vsub.s32 %v1071, %v1910
  %v1912 = vrot.slane %v1778, %v1911
  %v1913 = vlaneseq
  %v1914 = vshrl.u32 %v1913, 7
  %v1915 = vsub.s32 %v1071, %v1914
  %v1916 = vrot.slane %v1779, %v1915
  %v1917 = vlaneseq
  %v1918 = vshrl.u32 %v1917, 7
  %v1919 = vsub.s32 %v1071, %v1918
  %v1920 = vrot.slane %v1780, %v1919
  %v1921 = vlaneseq
  %v1922 = vshrl.u32 %v1921, 7
  %v1923 = vsub.s32 %v1071, %v1922
  %v1924 = vrot.slane %v1781, %v1923
  %v1925 = vlaneseq
  %v1926 = vshrl.u32 %v1925, 7
  %v1927 = vsub.s32 %v1071, %v1926
  %v1928 = vrot.slane %v1782, %v1927
  %v1929 = vlaneseq
  %v1930 = vshrl.u32 %v1929, 7
  %v1931 = vsub.s32 %v1071, %v1930
  %v1932 = vrot.slane %v1783, %v1931
  %v1933 = vlaneseq
  %v1934 = vshrl.u32 %v1933, 7
  %v1935 = vsub.s32 %v1071, %v1934
  %v1936 = vrot.slane %v1784, %v1935
  %v1937 = vlaneseq
  %v1938 = vshrl.u32 %v1937, 7
  %v1939 = vsub.s32 %v1071, %v1938
  %v1940 = vrot.slane %v1785, %v1939
  %v1941 = vlaneseq
  %v1942 = vshrl.u32 %v1941, 7
  %v1943 = vsub.s32 %v1071, %v1942
  %v1944 = vrot.slane %v1786, %v1943
  %v1945 = vlaneseq
  %v1946 = vshrl.u32 %v1945, 7
  %v1947 = vsub.s32 %v1071, %v1946
  %v1948 = vrot.slane %v1787, %v1947
  %v1949 = vsel %vm1489, %v1828, %v1824
  %v1950 = vsel %vm1491, %v1832, %v1949
  %v1951 = vsel %vm1493, %v1836, %v1950
  %v1952 = vsel %vm1495, %v1840, %v1951
  %v1953 = vsel %vm1497, %v1844, %v1952
  %v1954 = vsel %vm1499, %v1848, %v1953
  %v1955 = vsel %vm1501, %v1852, %v1954
  %v1956 = vsel %vm1489, %v1860, %v1856
  %v1957 = vsel %vm1491, %v1864, %v1956
  %v1958 = vsel %vm1493, %v1868, %v1957
  %v1959 = vsel %vm1495, %v1872, %v1958
  %v1960 = vsel %vm1497, %v1876, %v1959
  %v1961 = vsel %vm1499, %v1880, %v1960
  %v1962 = vsel %vm1501, %v1884, %v1961
  %v1963 = vsel %vm1489, %v1892, %v1888
  %v1964 = vsel %vm1491, %v1896, %v1963
  %v1965 = vsel %vm1493, %v1900, %v1964
  %v1966 = vsel %vm1495, %v1904, %v1965
  %v1967 = vsel %vm1497, %v1908, %v1966
  %v1968 = vsel %vm1499, %v1912, %v1967
  %v1969 = vsel %vm1501, %v1916, %v1968
  %v1970 = vsel %vm1489, %v1924, %v1920
  %v1971 = vsel %vm1491, %v1928, %v1970
  %v1972 = vsel %vm1493, %v1932, %v1971
  %v1973 = vsel %vm1495, %v1936, %v1972
  %v1974 = vsel %vm1497, %v1940, %v1973
  %v1975 = vsel %vm1499, %v1944, %v1974
  %v1976 = vsel %vm1501, %v1948, %v1975
  %v1981 = vsel %vm1788, %v1955, -1e+30
  %v1982 = vsel %vm1788, %v1962, -1e+30
  %v1983 = vsel %vm1788, %v1969, -1e+30
  %v1984 = vsel %vm1788, %v1976, -1e+30
  %v1985 = vlaneseq
  %v1986 = vshrl.u32 %v1985, 7
  %v1987 = vsub.s32 2, %v1986
  %v1988 = vrot.slane %v657, %v1987
  %v1989 = vlaneseq
  %v1990 = vshrl.u32 %v1989, 7
  %v1991 = vsub.s32 2, %v1990
  %v1992 = vrot.slane %v663, %v1991
  %v1993 = vlaneseq
  %v1994 = vshrl.u32 %v1993, 7
  %v1995 = vsub.s32 2, %v1994
  %v1996 = vrot.slane %v669, %v1995
  %v1997 = vlaneseq
  %v1998 = vshrl.u32 %v1997, 7
  %v1999 = vsub.s32 2, %v1998
  %v2000 = vrot.slane %v675, %v1999
  %v2001 = vlaneseq
  %v2002 = vshrl.u32 %v2001, 7
  %v2003 = vsub.s32 2, %v2002
  %v2004 = vrot.slane %v681, %v2003
  %v2005 = vlaneseq
  %v2006 = vshrl.u32 %v2005, 7
  %v2007 = vsub.s32 2, %v2006
  %v2008 = vrot.slane %v687, %v2007
  %v2009 = vlaneseq
  %v2010 = vshrl.u32 %v2009, 7
  %v2011 = vsub.s32 2, %v2010
  %v2012 = vrot.slane %v693, %v2011
  %v2013 = vlaneseq
  %v2014 = vshrl.u32 %v2013, 7
  %v2015 = vsub.s32 2, %v2014
  %v2016 = vrot.slane %v699, %v2015
  %v2017 = vlaneseq
  %v2018 = vshrl.u32 %v2017, 7
  %v2019 = vsub.s32 2, %v2018
  %v2020 = vrot.slane %v705, %v2019
  %v2021 = vlaneseq
  %v2022 = vshrl.u32 %v2021, 7
  %v2023 = vsub.s32 2, %v2022
  %v2024 = vrot.slane %v711, %v2023
  %v2025 = vlaneseq
  %v2026 = vshrl.u32 %v2025, 7
  %v2027 = vsub.s32 2, %v2026
  %v2028 = vrot.slane %v717, %v2027
  %v2029 = vlaneseq
  %v2030 = vshrl.u32 %v2029, 7
  %v2031 = vsub.s32 2, %v2030
  %v2032 = vrot.slane %v723, %v2031
  %v2033 = vlaneseq
  %v2034 = vshrl.u32 %v2033, 7
  %v2035 = vsub.s32 2, %v2034
  %v2036 = vrot.slane %v729, %v2035
  %v2037 = vlaneseq
  %v2038 = vshrl.u32 %v2037, 7
  %v2039 = vsub.s32 2, %v2038
  %v2040 = vrot.slane %v735, %v2039
  %v2041 = vlaneseq
  %v2042 = vshrl.u32 %v2041, 7
  %v2043 = vsub.s32 2, %v2042
  %v2044 = vrot.slane %v741, %v2043
  %v2045 = vlaneseq
  %v2046 = vshrl.u32 %v2045, 7
  %v2047 = vsub.s32 2, %v2046
  %v2048 = vrot.slane %v747, %v2047
  %v2049 = vlaneseq
  %v2050 = vshrl.u32 %v2049, 7
  %v2051 = vsub.s32 2, %v2050
  %v2052 = vrot.slane %v753, %v2051
  %v2053 = vlaneseq
  %v2054 = vshrl.u32 %v2053, 7
  %v2055 = vsub.s32 2, %v2054
  %v2056 = vrot.slane %v759, %v2055
  %v2057 = vlaneseq
  %v2058 = vshrl.u32 %v2057, 7
  %v2059 = vsub.s32 2, %v2058
  %v2060 = vrot.slane %v765, %v2059
  %v2061 = vlaneseq
  %v2062 = vshrl.u32 %v2061, 7
  %v2063 = vsub.s32 2, %v2062
  %v2064 = vrot.slane %v771, %v2063
  %v2065 = vlaneseq
  %v2066 = vshrl.u32 %v2065, 7
  %v2067 = vsub.s32 2, %v2066
  %v2068 = vrot.slane %v777, %v2067
  %v2069 = vlaneseq
  %v2070 = vshrl.u32 %v2069, 7
  %v2071 = vsub.s32 2, %v2070
  %v2072 = vrot.slane %v783, %v2071
  %v2073 = vlaneseq
  %v2074 = vshrl.u32 %v2073, 7
  %v2075 = vsub.s32 2, %v2074
  %v2076 = vrot.slane %v789, %v2075
  %v2077 = vlaneseq
  %v2078 = vshrl.u32 %v2077, 7
  %v2079 = vsub.s32 2, %v2078
  %v2080 = vrot.slane %v795, %v2079
  %v2081 = vlaneseq
  %v2082 = vshrl.u32 %v2081, 7
  %v2083 = vsub.s32 2, %v2082
  %v2084 = vrot.slane %v801, %v2083
  %v2085 = vlaneseq
  %v2086 = vshrl.u32 %v2085, 7
  %v2087 = vsub.s32 2, %v2086
  %v2088 = vrot.slane %v807, %v2087
  %v2089 = vlaneseq
  %v2090 = vshrl.u32 %v2089, 7
  %v2091 = vsub.s32 2, %v2090
  %v2092 = vrot.slane %v813, %v2091
  %v2093 = vlaneseq
  %v2094 = vshrl.u32 %v2093, 7
  %v2095 = vsub.s32 2, %v2094
  %v2096 = vrot.slane %v819, %v2095
  %v2097 = vlaneseq
  %v2098 = vshrl.u32 %v2097, 7
  %v2099 = vsub.s32 2, %v2098
  %v2100 = vrot.slane %v825, %v2099
  %v2101 = vlaneseq
  %v2102 = vshrl.u32 %v2101, 7
  %v2103 = vsub.s32 2, %v2102
  %v2104 = vrot.slane %v831, %v2103
  %v2105 = vlaneseq
  %v2106 = vshrl.u32 %v2105, 7
  %v2107 = vsub.s32 2, %v2106
  %v2108 = vrot.slane %v837, %v2107
  %v2109 = vlaneseq
  %v2110 = vshrl.u32 %v2109, 7
  %v2111 = vsub.s32 2, %v2110
  %v2112 = vrot.slane %v843, %v2111
  %v2113 = vmul.f32 %v655, %v1988
  %v2114 = vmul.f32 %v661, %v1992
  %v2115 = vmul.f32 %v667, %v1996
  %v2116 = vmul.f32 %v673, %v2000
  %v2117 = vmul.f32 %v679, %v2004
  %v2118 = vmul.f32 %v685, %v2008
  %v2119 = vmul.f32 %v691, %v2012
  %v2120 = vmul.f32 %v697, %v2016
  %v2121 = vmul.f32 %v703, %v2020
  %v2122 = vmul.f32 %v709, %v2024
  %v2123 = vmul.f32 %v715, %v2028
  %v2124 = vmul.f32 %v721, %v2032
  %v2125 = vmul.f32 %v727, %v2036
  %v2126 = vmul.f32 %v733, %v2040
  %v2127 = vmul.f32 %v739, %v2044
  %v2128 = vmul.f32 %v745, %v2048
  %v2129 = vmul.f32 %v751, %v2052
  %v2130 = vmul.f32 %v757, %v2056
  %v2131 = vmul.f32 %v763, %v2060
  %v2132 = vmul.f32 %v769, %v2064
  %v2133 = vmul.f32 %v775, %v2068
  %v2134 = vmul.f32 %v781, %v2072
  %v2135 = vmul.f32 %v787, %v2076
  %v2136 = vmul.f32 %v793, %v2080
  %v2137 = vmul.f32 %v799, %v2084
  %v2138 = vmul.f32 %v805, %v2088
  %v2139 = vmul.f32 %v811, %v2092
  %v2140 = vmul.f32 %v817, %v2096
  %v2141 = vmul.f32 %v823, %v2100
  %v2142 = vmul.f32 %v829, %v2104
  %v2143 = vmul.f32 %v835, %v2108
  %v2144 = vmul.f32 %v841, %v2112
  %2145 = vadd.xlane.f32.xlu0 %v2113
  %v2146 = vpop.xlane.xlu0 %2145
  %2147 = vadd.xlane.f32.xlu0 %v2114
  %v2148 = vpop.xlane.xlu0 %2147
  %2149 = vadd.xlane.f32.xlu0 %v2115
  %v2150 = vpop.xlane.xlu0 %2149
  %2151 = vadd.xlane.f32.xlu0 %v2116
  %v2152 = vpop.xlane.xlu0 %2151
  %2153 = vadd.xlane.f32.xlu0 %v2117
  %v2154 = vpop.xlane.xlu0 %2153
  %2155 = vadd.xlane.f32.xlu0 %v2118
  %v2156 = vpop.xlane.xlu0 %2155
  %2157 = vadd.xlane.f32.xlu0 %v2119
  %v2158 = vpop.xlane.xlu0 %2157
  %2159 = vadd.xlane.f32.xlu0 %v2120
  %v2160 = vpop.xlane.xlu0 %2159
  %2161 = vadd.xlane.f32.xlu0 %v2121
  %v2162 = vpop.xlane.xlu0 %2161
  %2163 = vadd.xlane.f32.xlu0 %v2122
  %v2164 = vpop.xlane.xlu0 %2163
  %2165 = vadd.xlane.f32.xlu0 %v2123
  %v2166 = vpop.xlane.xlu0 %2165
  %2167 = vadd.xlane.f32.xlu0 %v2124
  %v2168 = vpop.xlane.xlu0 %2167
  %2169 = vadd.xlane.f32.xlu0 %v2125
  %v2170 = vpop.xlane.xlu0 %2169
  %2171 = vadd.xlane.f32.xlu0 %v2126
  %v2172 = vpop.xlane.xlu0 %2171
  %2173 = vadd.xlane.f32.xlu0 %v2127
  %v2174 = vpop.xlane.xlu0 %2173
  %2175 = vadd.xlane.f32.xlu0 %v2128
  %v2176 = vpop.xlane.xlu0 %2175
  %2177 = vadd.xlane.f32.xlu0 %v2129
  %v2178 = vpop.xlane.xlu0 %2177
  %2179 = vadd.xlane.f32.xlu0 %v2130
  %v2180 = vpop.xlane.xlu0 %2179
  %2181 = vadd.xlane.f32.xlu0 %v2131
  %v2182 = vpop.xlane.xlu0 %2181
  %2183 = vadd.xlane.f32.xlu0 %v2132
  %v2184 = vpop.xlane.xlu0 %2183
  %2185 = vadd.xlane.f32.xlu0 %v2133
  %v2186 = vpop.xlane.xlu0 %2185
  %2187 = vadd.xlane.f32.xlu0 %v2134
  %v2188 = vpop.xlane.xlu0 %2187
  %2189 = vadd.xlane.f32.xlu0 %v2135
  %v2190 = vpop.xlane.xlu0 %2189
  %2191 = vadd.xlane.f32.xlu0 %v2136
  %v2192 = vpop.xlane.xlu0 %2191
  %2193 = vadd.xlane.f32.xlu0 %v2137
  %v2194 = vpop.xlane.xlu0 %2193
  %2195 = vadd.xlane.f32.xlu0 %v2138
  %v2196 = vpop.xlane.xlu0 %2195
  %2197 = vadd.xlane.f32.xlu0 %v2139
  %v2198 = vpop.xlane.xlu0 %2197
  %2199 = vadd.xlane.f32.xlu0 %v2140
  %v2200 = vpop.xlane.xlu0 %2199
  %2201 = vadd.xlane.f32.xlu0 %v2141
  %v2202 = vpop.xlane.xlu0 %2201
  %2203 = vadd.xlane.f32.xlu0 %v2142
  %v2204 = vpop.xlane.xlu0 %2203
  %2205 = vadd.xlane.f32.xlu0 %v2143
  %v2206 = vpop.xlane.xlu0 %2205
  %2207 = vadd.xlane.f32.xlu0 %v2144
  %v2208 = vpop.xlane.xlu0 %2207
  %v2209 = vmul.f32 %v2146, 0.088388346
  %v2210 = vmul.f32 %v2148, 0.088388346
  %v2211 = vmul.f32 %v2150, 0.088388346
  %v2212 = vmul.f32 %v2152, 0.088388346
  %v2213 = vmul.f32 %v2154, 0.088388346
  %v2214 = vmul.f32 %v2156, 0.088388346
  %v2215 = vmul.f32 %v2158, 0.088388346
  %v2216 = vmul.f32 %v2160, 0.088388346
  %v2217 = vmul.f32 %v2162, 0.088388346
  %v2218 = vmul.f32 %v2164, 0.088388346
  %v2219 = vmul.f32 %v2166, 0.088388346
  %v2220 = vmul.f32 %v2168, 0.088388346
  %v2221 = vmul.f32 %v2170, 0.088388346
  %v2222 = vmul.f32 %v2172, 0.088388346
  %v2223 = vmul.f32 %v2174, 0.088388346
  %v2224 = vmul.f32 %v2176, 0.088388346
  %v2225 = vmul.f32 %v2178, 0.088388346
  %v2226 = vmul.f32 %v2180, 0.088388346
  %v2227 = vmul.f32 %v2182, 0.088388346
  %v2228 = vmul.f32 %v2184, 0.088388346
  %v2229 = vmul.f32 %v2186, 0.088388346
  %v2230 = vmul.f32 %v2188, 0.088388346
  %v2231 = vmul.f32 %v2190, 0.088388346
  %v2232 = vmul.f32 %v2192, 0.088388346
  %v2233 = vmul.f32 %v2194, 0.088388346
  %v2234 = vmul.f32 %v2196, 0.088388346
  %v2235 = vmul.f32 %v2198, 0.088388346
  %v2236 = vmul.f32 %v2200, 0.088388346
  %v2237 = vmul.f32 %v2202, 0.088388346
  %v2238 = vmul.f32 %v2204, 0.088388346
  %v2239 = vmul.f32 %v2206, 0.088388346
  %v2240 = vmul.f32 %v2208, 0.088388346
  %vm2241 = vcmp.ge.s32.totalorder %v1071, 2
  %v2274 = vlaneseq
  %v2275 = vshrl.u32 %v2274, 7
  %v2276 = vsub.s32 %v1071, %v2275
  %v2277 = vrot.slane %v2209, %v2276
  %v2278 = vlaneseq
  %v2279 = vshrl.u32 %v2278, 7
  %v2280 = vsub.s32 %v1071, %v2279
  %v2281 = vrot.slane %v2210, %v2280
  %v2282 = vlaneseq
  %v2283 = vshrl.u32 %v2282, 7
  %v2284 = vsub.s32 %v1071, %v2283
  %v2285 = vrot.slane %v2211, %v2284
  %v2286 = vlaneseq
  %v2287 = vshrl.u32 %v2286, 7
  %v2288 = vsub.s32 %v1071, %v2287
  %v2289 = vrot.slane %v2212, %v2288
  %v2290 = vlaneseq
  %v2291 = vshrl.u32 %v2290, 7
  %v2292 = vsub.s32 %v1071, %v2291
  %v2293 = vrot.slane %v2213, %v2292
  %v2294 = vlaneseq
  %v2295 = vshrl.u32 %v2294, 7
  %v2296 = vsub.s32 %v1071, %v2295
  %v2297 = vrot.slane %v2214, %v2296
  %v2298 = vlaneseq
  %v2299 = vshrl.u32 %v2298, 7
  %v2300 = vsub.s32 %v1071, %v2299
  %v2301 = vrot.slane %v2215, %v2300
  %v2302 = vlaneseq
  %v2303 = vshrl.u32 %v2302, 7
  %v2304 = vsub.s32 %v1071, %v2303
  %v2305 = vrot.slane %v2216, %v2304
  %v2306 = vlaneseq
  %v2307 = vshrl.u32 %v2306, 7
  %v2308 = vsub.s32 %v1071, %v2307
  %v2309 = vrot.slane %v2217, %v2308
  %v2310 = vlaneseq
  %v2311 = vshrl.u32 %v2310, 7
  %v2312 = vsub.s32 %v1071, %v2311
  %v2313 = vrot.slane %v2218, %v2312
  %v2314 = vlaneseq
  %v2315 = vshrl.u32 %v2314, 7
  %v2316 = vsub.s32 %v1071, %v2315
  %v2317 = vrot.slane %v2219, %v2316
  %v2318 = vlaneseq
  %v2319 = vshrl.u32 %v2318, 7
  %v2320 = vsub.s32 %v1071, %v2319
  %v2321 = vrot.slane %v2220, %v2320
  %v2322 = vlaneseq
  %v2323 = vshrl.u32 %v2322, 7
  %v2324 = vsub.s32 %v1071, %v2323
  %v2325 = vrot.slane %v2221, %v2324
  %v2326 = vlaneseq
  %v2327 = vshrl.u32 %v2326, 7
  %v2328 = vsub.s32 %v1071, %v2327
  %v2329 = vrot.slane %v2222, %v2328
  %v2330 = vlaneseq
  %v2331 = vshrl.u32 %v2330, 7
  %v2332 = vsub.s32 %v1071, %v2331
  %v2333 = vrot.slane %v2223, %v2332
  %v2334 = vlaneseq
  %v2335 = vshrl.u32 %v2334, 7
  %v2336 = vsub.s32 %v1071, %v2335
  %v2337 = vrot.slane %v2224, %v2336
  %v2338 = vlaneseq
  %v2339 = vshrl.u32 %v2338, 7
  %v2340 = vsub.s32 %v1071, %v2339
  %v2341 = vrot.slane %v2225, %v2340
  %v2342 = vlaneseq
  %v2343 = vshrl.u32 %v2342, 7
  %v2344 = vsub.s32 %v1071, %v2343
  %v2345 = vrot.slane %v2226, %v2344
  %v2346 = vlaneseq
  %v2347 = vshrl.u32 %v2346, 7
  %v2348 = vsub.s32 %v1071, %v2347
  %v2349 = vrot.slane %v2227, %v2348
  %v2350 = vlaneseq
  %v2351 = vshrl.u32 %v2350, 7
  %v2352 = vsub.s32 %v1071, %v2351
  %v2353 = vrot.slane %v2228, %v2352
  %v2354 = vlaneseq
  %v2355 = vshrl.u32 %v2354, 7
  %v2356 = vsub.s32 %v1071, %v2355
  %v2357 = vrot.slane %v2229, %v2356
  %v2358 = vlaneseq
  %v2359 = vshrl.u32 %v2358, 7
  %v2360 = vsub.s32 %v1071, %v2359
  %v2361 = vrot.slane %v2230, %v2360
  %v2362 = vlaneseq
  %v2363 = vshrl.u32 %v2362, 7
  %v2364 = vsub.s32 %v1071, %v2363
  %v2365 = vrot.slane %v2231, %v2364
  %v2366 = vlaneseq
  %v2367 = vshrl.u32 %v2366, 7
  %v2368 = vsub.s32 %v1071, %v2367
  %v2369 = vrot.slane %v2232, %v2368
  %v2370 = vlaneseq
  %v2371 = vshrl.u32 %v2370, 7
  %v2372 = vsub.s32 %v1071, %v2371
  %v2373 = vrot.slane %v2233, %v2372
  %v2374 = vlaneseq
  %v2375 = vshrl.u32 %v2374, 7
  %v2376 = vsub.s32 %v1071, %v2375
  %v2377 = vrot.slane %v2234, %v2376
  %v2378 = vlaneseq
  %v2379 = vshrl.u32 %v2378, 7
  %v2380 = vsub.s32 %v1071, %v2379
  %v2381 = vrot.slane %v2235, %v2380
  %v2382 = vlaneseq
  %v2383 = vshrl.u32 %v2382, 7
  %v2384 = vsub.s32 %v1071, %v2383
  %v2385 = vrot.slane %v2236, %v2384
  %v2386 = vlaneseq
  %v2387 = vshrl.u32 %v2386, 7
  %v2388 = vsub.s32 %v1071, %v2387
  %v2389 = vrot.slane %v2237, %v2388
  %v2390 = vlaneseq
  %v2391 = vshrl.u32 %v2390, 7
  %v2392 = vsub.s32 %v1071, %v2391
  %v2393 = vrot.slane %v2238, %v2392
  %v2394 = vlaneseq
  %v2395 = vshrl.u32 %v2394, 7
  %v2396 = vsub.s32 %v1071, %v2395
  %v2397 = vrot.slane %v2239, %v2396
  %v2398 = vlaneseq
  %v2399 = vshrl.u32 %v2398, 7
  %v2400 = vsub.s32 %v1071, %v2399
  %v2401 = vrot.slane %v2240, %v2400
  %v2402 = vsel %vm1489, %v2281, %v2277
  %v2403 = vsel %vm1491, %v2285, %v2402
  %v2404 = vsel %vm1493, %v2289, %v2403
  %v2405 = vsel %vm1495, %v2293, %v2404
  %v2406 = vsel %vm1497, %v2297, %v2405
  %v2407 = vsel %vm1499, %v2301, %v2406
  %v2408 = vsel %vm1501, %v2305, %v2407
  %v2409 = vsel %vm1489, %v2313, %v2309
  %v2410 = vsel %vm1491, %v2317, %v2409
  %v2411 = vsel %vm1493, %v2321, %v2410
  %v2412 = vsel %vm1495, %v2325, %v2411
  %v2413 = vsel %vm1497, %v2329, %v2412
  %v2414 = vsel %vm1499, %v2333, %v2413
  %v2415 = vsel %vm1501, %v2337, %v2414
  %v2416 = vsel %vm1489, %v2345, %v2341
  %v2417 = vsel %vm1491, %v2349, %v2416
  %v2418 = vsel %vm1493, %v2353, %v2417
  %v2419 = vsel %vm1495, %v2357, %v2418
  %v2420 = vsel %vm1497, %v2361, %v2419
  %v2421 = vsel %vm1499, %v2365, %v2420
  %v2422 = vsel %vm1501, %v2369, %v2421
  %v2423 = vsel %vm1489, %v2377, %v2373
  %v2424 = vsel %vm1491, %v2381, %v2423
  %v2425 = vsel %vm1493, %v2385, %v2424
  %v2426 = vsel %vm1495, %v2389, %v2425
  %v2427 = vsel %vm1497, %v2393, %v2426
  %v2428 = vsel %vm1499, %v2397, %v2427
  %v2429 = vsel %vm1501, %v2401, %v2428
  %v2434 = vsel %vm2241, %v2408, -1e+30
  %v2435 = vsel %vm2241, %v2415, -1e+30
  %v2436 = vsel %vm2241, %v2422, -1e+30
  %v2437 = vsel %vm2241, %v2429, -1e+30
  %v2438 = vlaneseq
  %v2439 = vshrl.u32 %v2438, 7
  %v2440 = vsub.s32 3, %v2439
  %v2441 = vrot.slane %v657, %v2440
  %v2442 = vlaneseq
  %v2443 = vshrl.u32 %v2442, 7
  %v2444 = vsub.s32 3, %v2443
  %v2445 = vrot.slane %v663, %v2444
  %v2446 = vlaneseq
  %v2447 = vshrl.u32 %v2446, 7
  %v2448 = vsub.s32 3, %v2447
  %v2449 = vrot.slane %v669, %v2448
  %v2450 = vlaneseq
  %v2451 = vshrl.u32 %v2450, 7
  %v2452 = vsub.s32 3, %v2451
  %v2453 = vrot.slane %v675, %v2452
  %v2454 = vlaneseq
  %v2455 = vshrl.u32 %v2454, 7
  %v2456 = vsub.s32 3, %v2455
  %v2457 = vrot.slane %v681, %v2456
  %v2458 = vlaneseq
  %v2459 = vshrl.u32 %v2458, 7
  %v2460 = vsub.s32 3, %v2459
  %v2461 = vrot.slane %v687, %v2460
  %v2462 = vlaneseq
  %v2463 = vshrl.u32 %v2462, 7
  %v2464 = vsub.s32 3, %v2463
  %v2465 = vrot.slane %v693, %v2464
  %v2466 = vlaneseq
  %v2467 = vshrl.u32 %v2466, 7
  %v2468 = vsub.s32 3, %v2467
  %v2469 = vrot.slane %v699, %v2468
  %v2470 = vlaneseq
  %v2471 = vshrl.u32 %v2470, 7
  %v2472 = vsub.s32 3, %v2471
  %v2473 = vrot.slane %v705, %v2472
  %v2474 = vlaneseq
  %v2475 = vshrl.u32 %v2474, 7
  %v2476 = vsub.s32 3, %v2475
  %v2477 = vrot.slane %v711, %v2476
  %v2478 = vlaneseq
  %v2479 = vshrl.u32 %v2478, 7
  %v2480 = vsub.s32 3, %v2479
  %v2481 = vrot.slane %v717, %v2480
  %v2482 = vlaneseq
  %v2483 = vshrl.u32 %v2482, 7
  %v2484 = vsub.s32 3, %v2483
  %v2485 = vrot.slane %v723, %v2484
  %v2486 = vlaneseq
  %v2487 = vshrl.u32 %v2486, 7
  %v2488 = vsub.s32 3, %v2487
  %v2489 = vrot.slane %v729, %v2488
  %v2490 = vlaneseq
  %v2491 = vshrl.u32 %v2490, 7
  %v2492 = vsub.s32 3, %v2491
  %v2493 = vrot.slane %v735, %v2492
  %v2494 = vlaneseq
  %v2495 = vshrl.u32 %v2494, 7
  %v2496 = vsub.s32 3, %v2495
  %v2497 = vrot.slane %v741, %v2496
  %v2498 = vlaneseq
  %v2499 = vshrl.u32 %v2498, 7
  %v2500 = vsub.s32 3, %v2499
  %v2501 = vrot.slane %v747, %v2500
  %v2502 = vlaneseq
  %v2503 = vshrl.u32 %v2502, 7
  %v2504 = vsub.s32 3, %v2503
  %v2505 = vrot.slane %v753, %v2504
  %v2506 = vlaneseq
  %v2507 = vshrl.u32 %v2506, 7
  %v2508 = vsub.s32 3, %v2507
  %v2509 = vrot.slane %v759, %v2508
  %v2510 = vlaneseq
  %v2511 = vshrl.u32 %v2510, 7
  %v2512 = vsub.s32 3, %v2511
  %v2513 = vrot.slane %v765, %v2512
  %v2514 = vlaneseq
  %v2515 = vshrl.u32 %v2514, 7
  %v2516 = vsub.s32 3, %v2515
  %v2517 = vrot.slane %v771, %v2516
  %v2518 = vlaneseq
  %v2519 = vshrl.u32 %v2518, 7
  %v2520 = vsub.s32 3, %v2519
  %v2521 = vrot.slane %v777, %v2520
  %v2522 = vlaneseq
  %v2523 = vshrl.u32 %v2522, 7
  %v2524 = vsub.s32 3, %v2523
  %v2525 = vrot.slane %v783, %v2524
  %v2526 = vlaneseq
  %v2527 = vshrl.u32 %v2526, 7
  %v2528 = vsub.s32 3, %v2527
  %v2529 = vrot.slane %v789, %v2528
  %v2530 = vlaneseq
  %v2531 = vshrl.u32 %v2530, 7
  %v2532 = vsub.s32 3, %v2531
  %v2533 = vrot.slane %v795, %v2532
  %v2534 = vlaneseq
  %v2535 = vshrl.u32 %v2534, 7
  %v2536 = vsub.s32 3, %v2535
  %v2537 = vrot.slane %v801, %v2536
  %v2538 = vlaneseq
  %v2539 = vshrl.u32 %v2538, 7
  %v2540 = vsub.s32 3, %v2539
  %v2541 = vrot.slane %v807, %v2540
  %v2542 = vlaneseq
  %v2543 = vshrl.u32 %v2542, 7
  %v2544 = vsub.s32 3, %v2543
  %v2545 = vrot.slane %v813, %v2544
  %v2546 = vlaneseq
  %v2547 = vshrl.u32 %v2546, 7
  %v2548 = vsub.s32 3, %v2547
  %v2549 = vrot.slane %v819, %v2548
  %v2550 = vlaneseq
  %v2551 = vshrl.u32 %v2550, 7
  %v2552 = vsub.s32 3, %v2551
  %v2553 = vrot.slane %v825, %v2552
  %v2554 = vlaneseq
  %v2555 = vshrl.u32 %v2554, 7
  %v2556 = vsub.s32 3, %v2555
  %v2557 = vrot.slane %v831, %v2556
  %v2558 = vlaneseq
  %v2559 = vshrl.u32 %v2558, 7
  %v2560 = vsub.s32 3, %v2559
  %v2561 = vrot.slane %v837, %v2560
  %v2562 = vlaneseq
  %v2563 = vshrl.u32 %v2562, 7
  %v2564 = vsub.s32 3, %v2563
  %v2565 = vrot.slane %v843, %v2564
  %v2566 = vmul.f32 %v655, %v2441
  %v2567 = vmul.f32 %v661, %v2445
  %v2568 = vmul.f32 %v667, %v2449
  %v2569 = vmul.f32 %v673, %v2453
  %v2570 = vmul.f32 %v679, %v2457
  %v2571 = vmul.f32 %v685, %v2461
  %v2572 = vmul.f32 %v691, %v2465
  %v2573 = vmul.f32 %v697, %v2469
  %v2574 = vmul.f32 %v703, %v2473
  %v2575 = vmul.f32 %v709, %v2477
  %v2576 = vmul.f32 %v715, %v2481
  %v2577 = vmul.f32 %v721, %v2485
  %v2578 = vmul.f32 %v727, %v2489
  %v2579 = vmul.f32 %v733, %v2493
  %v2580 = vmul.f32 %v739, %v2497
  %v2581 = vmul.f32 %v745, %v2501
  %v2582 = vmul.f32 %v751, %v2505
  %v2583 = vmul.f32 %v757, %v2509
  %v2584 = vmul.f32 %v763, %v2513
  %v2585 = vmul.f32 %v769, %v2517
  %v2586 = vmul.f32 %v775, %v2521
  %v2587 = vmul.f32 %v781, %v2525
  %v2588 = vmul.f32 %v787, %v2529
  %v2589 = vmul.f32 %v793, %v2533
  %v2590 = vmul.f32 %v799, %v2537
  %v2591 = vmul.f32 %v805, %v2541
  %v2592 = vmul.f32 %v811, %v2545
  %v2593 = vmul.f32 %v817, %v2549
  %v2594 = vmul.f32 %v823, %v2553
  %v2595 = vmul.f32 %v829, %v2557
  %v2596 = vmul.f32 %v835, %v2561
  %v2597 = vmul.f32 %v841, %v2565
  %2598 = vadd.xlane.f32.xlu0 %v2566
  %v2599 = vpop.xlane.xlu0 %2598
  %2600 = vadd.xlane.f32.xlu0 %v2567
  %v2601 = vpop.xlane.xlu0 %2600
  %2602 = vadd.xlane.f32.xlu0 %v2568
  %v2603 = vpop.xlane.xlu0 %2602
  %2604 = vadd.xlane.f32.xlu0 %v2569
  %v2605 = vpop.xlane.xlu0 %2604
  %2606 = vadd.xlane.f32.xlu0 %v2570
  %v2607 = vpop.xlane.xlu0 %2606
  %2608 = vadd.xlane.f32.xlu0 %v2571
  %v2609 = vpop.xlane.xlu0 %2608
  %2610 = vadd.xlane.f32.xlu0 %v2572
  %v2611 = vpop.xlane.xlu0 %2610
  %2612 = vadd.xlane.f32.xlu0 %v2573
  %v2613 = vpop.xlane.xlu0 %2612
  %2614 = vadd.xlane.f32.xlu0 %v2574
  %v2615 = vpop.xlane.xlu0 %2614
  %2616 = vadd.xlane.f32.xlu0 %v2575
  %v2617 = vpop.xlane.xlu0 %2616
  %2618 = vadd.xlane.f32.xlu0 %v2576
  %v2619 = vpop.xlane.xlu0 %2618
  %2620 = vadd.xlane.f32.xlu0 %v2577
  %v2621 = vpop.xlane.xlu0 %2620
  %2622 = vadd.xlane.f32.xlu0 %v2578
  %v2623 = vpop.xlane.xlu0 %2622
  %2624 = vadd.xlane.f32.xlu0 %v2579
  %v2625 = vpop.xlane.xlu0 %2624
  %2626 = vadd.xlane.f32.xlu0 %v2580
  %v2627 = vpop.xlane.xlu0 %2626
  %2628 = vadd.xlane.f32.xlu0 %v2581
  %v2629 = vpop.xlane.xlu0 %2628
  %2630 = vadd.xlane.f32.xlu0 %v2582
  %v2631 = vpop.xlane.xlu0 %2630
  %2632 = vadd.xlane.f32.xlu0 %v2583
  %v2633 = vpop.xlane.xlu0 %2632
  %2634 = vadd.xlane.f32.xlu0 %v2584
  %v2635 = vpop.xlane.xlu0 %2634
  %2636 = vadd.xlane.f32.xlu0 %v2585
  %v2637 = vpop.xlane.xlu0 %2636
  %2638 = vadd.xlane.f32.xlu0 %v2586
  %v2639 = vpop.xlane.xlu0 %2638
  %2640 = vadd.xlane.f32.xlu0 %v2587
  %v2641 = vpop.xlane.xlu0 %2640
  %2642 = vadd.xlane.f32.xlu0 %v2588
  %v2643 = vpop.xlane.xlu0 %2642
  %2644 = vadd.xlane.f32.xlu0 %v2589
  %v2645 = vpop.xlane.xlu0 %2644
  %2646 = vadd.xlane.f32.xlu0 %v2590
  %v2647 = vpop.xlane.xlu0 %2646
  %2648 = vadd.xlane.f32.xlu0 %v2591
  %v2649 = vpop.xlane.xlu0 %2648
  %2650 = vadd.xlane.f32.xlu0 %v2592
  %v2651 = vpop.xlane.xlu0 %2650
  %2652 = vadd.xlane.f32.xlu0 %v2593
  %v2653 = vpop.xlane.xlu0 %2652
  %2654 = vadd.xlane.f32.xlu0 %v2594
  %v2655 = vpop.xlane.xlu0 %2654
  %2656 = vadd.xlane.f32.xlu0 %v2595
  %v2657 = vpop.xlane.xlu0 %2656
  %2658 = vadd.xlane.f32.xlu0 %v2596
  %v2659 = vpop.xlane.xlu0 %2658
  %2660 = vadd.xlane.f32.xlu0 %v2597
  %v2661 = vpop.xlane.xlu0 %2660
  %v2662 = vmul.f32 %v2599, 0.088388346
  %v2663 = vmul.f32 %v2601, 0.088388346
  %v2664 = vmul.f32 %v2603, 0.088388346
  %v2665 = vmul.f32 %v2605, 0.088388346
  %v2666 = vmul.f32 %v2607, 0.088388346
  %v2667 = vmul.f32 %v2609, 0.088388346
  %v2668 = vmul.f32 %v2611, 0.088388346
  %v2669 = vmul.f32 %v2613, 0.088388346
  %v2670 = vmul.f32 %v2615, 0.088388346
  %v2671 = vmul.f32 %v2617, 0.088388346
  %v2672 = vmul.f32 %v2619, 0.088388346
  %v2673 = vmul.f32 %v2621, 0.088388346
  %v2674 = vmul.f32 %v2623, 0.088388346
  %v2675 = vmul.f32 %v2625, 0.088388346
  %v2676 = vmul.f32 %v2627, 0.088388346
  %v2677 = vmul.f32 %v2629, 0.088388346
  %v2678 = vmul.f32 %v2631, 0.088388346
  %v2679 = vmul.f32 %v2633, 0.088388346
  %v2680 = vmul.f32 %v2635, 0.088388346
  %v2681 = vmul.f32 %v2637, 0.088388346
  %v2682 = vmul.f32 %v2639, 0.088388346
  %v2683 = vmul.f32 %v2641, 0.088388346
  %v2684 = vmul.f32 %v2643, 0.088388346
  %v2685 = vmul.f32 %v2645, 0.088388346
  %v2686 = vmul.f32 %v2647, 0.088388346
  %v2687 = vmul.f32 %v2649, 0.088388346
  %v2688 = vmul.f32 %v2651, 0.088388346
  %v2689 = vmul.f32 %v2653, 0.088388346
  %v2690 = vmul.f32 %v2655, 0.088388346
  %v2691 = vmul.f32 %v2657, 0.088388346
  %v2692 = vmul.f32 %v2659, 0.088388346
  %v2693 = vmul.f32 %v2661, 0.088388346
  %vm2694 = vcmp.ge.s32.totalorder %v1071, 3
  %v2727 = vlaneseq
  %v2728 = vshrl.u32 %v2727, 7
  %v2729 = vsub.s32 %v1071, %v2728
  %v2730 = vrot.slane %v2662, %v2729
  %v2731 = vlaneseq
  %v2732 = vshrl.u32 %v2731, 7
  %v2733 = vsub.s32 %v1071, %v2732
  %v2734 = vrot.slane %v2663, %v2733
  %v2735 = vlaneseq
  %v2736 = vshrl.u32 %v2735, 7
  %v2737 = vsub.s32 %v1071, %v2736
  %v2738 = vrot.slane %v2664, %v2737
  %v2739 = vlaneseq
  %v2740 = vshrl.u32 %v2739, 7
  %v2741 = vsub.s32 %v1071, %v2740
  %v2742 = vrot.slane %v2665, %v2741
  %v2743 = vlaneseq
  %v2744 = vshrl.u32 %v2743, 7
  %v2745 = vsub.s32 %v1071, %v2744
  %v2746 = vrot.slane %v2666, %v2745
  %v2747 = vlaneseq
  %v2748 = vshrl.u32 %v2747, 7
  %v2749 = vsub.s32 %v1071, %v2748
  %v2750 = vrot.slane %v2667, %v2749
  %v2751 = vlaneseq
  %v2752 = vshrl.u32 %v2751, 7
  %v2753 = vsub.s32 %v1071, %v2752
  %v2754 = vrot.slane %v2668, %v2753
  %v2755 = vlaneseq
  %v2756 = vshrl.u32 %v2755, 7
  %v2757 = vsub.s32 %v1071, %v2756
  %v2758 = vrot.slane %v2669, %v2757
  %v2759 = vlaneseq
  %v2760 = vshrl.u32 %v2759, 7
  %v2761 = vsub.s32 %v1071, %v2760
  %v2762 = vrot.slane %v2670, %v2761
  %v2763 = vlaneseq
  %v2764 = vshrl.u32 %v2763, 7
  %v2765 = vsub.s32 %v1071, %v2764
  %v2766 = vrot.slane %v2671, %v2765
  %v2767 = vlaneseq
  %v2768 = vshrl.u32 %v2767, 7
  %v2769 = vsub.s32 %v1071, %v2768
  %v2770 = vrot.slane %v2672, %v2769
  %v2771 = vlaneseq
  %v2772 = vshrl.u32 %v2771, 7
  %v2773 = vsub.s32 %v1071, %v2772
  %v2774 = vrot.slane %v2673, %v2773
  %v2775 = vlaneseq
  %v2776 = vshrl.u32 %v2775, 7
  %v2777 = vsub.s32 %v1071, %v2776
  %v2778 = vrot.slane %v2674, %v2777
  %v2779 = vlaneseq
  %v2780 = vshrl.u32 %v2779, 7
  %v2781 = vsub.s32 %v1071, %v2780
  %v2782 = vrot.slane %v2675, %v2781
  %v2783 = vlaneseq
  %v2784 = vshrl.u32 %v2783, 7
  %v2785 = vsub.s32 %v1071, %v2784
  %v2786 = vrot.slane %v2676, %v2785
  %v2787 = vlaneseq
  %v2788 = vshrl.u32 %v2787, 7
  %v2789 = vsub.s32 %v1071, %v2788
  %v2790 = vrot.slane %v2677, %v2789
  %v2791 = vlaneseq
  %v2792 = vshrl.u32 %v2791, 7
  %v2793 = vsub.s32 %v1071, %v2792
  %v2794 = vrot.slane %v2678, %v2793
  %v2795 = vlaneseq
  %v2796 = vshrl.u32 %v2795, 7
  %v2797 = vsub.s32 %v1071, %v2796
  %v2798 = vrot.slane %v2679, %v2797
  %v2799 = vlaneseq
  %v2800 = vshrl.u32 %v2799, 7
  %v2801 = vsub.s32 %v1071, %v2800
  %v2802 = vrot.slane %v2680, %v2801
  %v2803 = vlaneseq
  %v2804 = vshrl.u32 %v2803, 7
  %v2805 = vsub.s32 %v1071, %v2804
  %v2806 = vrot.slane %v2681, %v2805
  %v2807 = vlaneseq
  %v2808 = vshrl.u32 %v2807, 7
  %v2809 = vsub.s32 %v1071, %v2808
  %v2810 = vrot.slane %v2682, %v2809
  %v2811 = vlaneseq
  %v2812 = vshrl.u32 %v2811, 7
  %v2813 = vsub.s32 %v1071, %v2812
  %v2814 = vrot.slane %v2683, %v2813
  %v2815 = vlaneseq
  %v2816 = vshrl.u32 %v2815, 7
  %v2817 = vsub.s32 %v1071, %v2816
  %v2818 = vrot.slane %v2684, %v2817
  %v2819 = vlaneseq
  %v2820 = vshrl.u32 %v2819, 7
  %v2821 = vsub.s32 %v1071, %v2820
  %v2822 = vrot.slane %v2685, %v2821
  %v2823 = vlaneseq
  %v2824 = vshrl.u32 %v2823, 7
  %v2825 = vsub.s32 %v1071, %v2824
  %v2826 = vrot.slane %v2686, %v2825
  %v2827 = vlaneseq
  %v2828 = vshrl.u32 %v2827, 7
  %v2829 = vsub.s32 %v1071, %v2828
  %v2830 = vrot.slane %v2687, %v2829
  %v2831 = vlaneseq
  %v2832 = vshrl.u32 %v2831, 7
  %v2833 = vsub.s32 %v1071, %v2832
  %v2834 = vrot.slane %v2688, %v2833
  %v2835 = vlaneseq
  %v2836 = vshrl.u32 %v2835, 7
  %v2837 = vsub.s32 %v1071, %v2836
  %v2838 = vrot.slane %v2689, %v2837
  %v2839 = vlaneseq
  %v2840 = vshrl.u32 %v2839, 7
  %v2841 = vsub.s32 %v1071, %v2840
  %v2842 = vrot.slane %v2690, %v2841
  %v2843 = vlaneseq
  %v2844 = vshrl.u32 %v2843, 7
  %v2845 = vsub.s32 %v1071, %v2844
  %v2846 = vrot.slane %v2691, %v2845
  %v2847 = vlaneseq
  %v2848 = vshrl.u32 %v2847, 7
  %v2849 = vsub.s32 %v1071, %v2848
  %v2850 = vrot.slane %v2692, %v2849
  %v2851 = vlaneseq
  %v2852 = vshrl.u32 %v2851, 7
  %v2853 = vsub.s32 %v1071, %v2852
  %v2854 = vrot.slane %v2693, %v2853
  %v2855 = vsel %vm1489, %v2734, %v2730
  %v2856 = vsel %vm1491, %v2738, %v2855
  %v2857 = vsel %vm1493, %v2742, %v2856
  %v2858 = vsel %vm1495, %v2746, %v2857
  %v2859 = vsel %vm1497, %v2750, %v2858
  %v2860 = vsel %vm1499, %v2754, %v2859
  %v2861 = vsel %vm1501, %v2758, %v2860
  %v2862 = vsel %vm1489, %v2766, %v2762
  %v2863 = vsel %vm1491, %v2770, %v2862
  %v2864 = vsel %vm1493, %v2774, %v2863
  %v2865 = vsel %vm1495, %v2778, %v2864
  %v2866 = vsel %vm1497, %v2782, %v2865
  %v2867 = vsel %vm1499, %v2786, %v2866
  %v2868 = vsel %vm1501, %v2790, %v2867
  %v2869 = vsel %vm1489, %v2798, %v2794
  %v2870 = vsel %vm1491, %v2802, %v2869
  %v2871 = vsel %vm1493, %v2806, %v2870
  %v2872 = vsel %vm1495, %v2810, %v2871
  %v2873 = vsel %vm1497, %v2814, %v2872
  %v2874 = vsel %vm1499, %v2818, %v2873
  %v2875 = vsel %vm1501, %v2822, %v2874
  %v2876 = vsel %vm1489, %v2830, %v2826
  %v2877 = vsel %vm1491, %v2834, %v2876
  %v2878 = vsel %vm1493, %v2838, %v2877
  %v2879 = vsel %vm1495, %v2842, %v2878
  %v2880 = vsel %vm1497, %v2846, %v2879
  %v2881 = vsel %vm1499, %v2850, %v2880
  %v2882 = vsel %vm1501, %v2854, %v2881
  %v2887 = vsel %vm2694, %v2861, -1e+30
  %v2888 = vsel %vm2694, %v2868, -1e+30
  %v2889 = vsel %vm2694, %v2875, -1e+30
  %v2890 = vsel %vm2694, %v2882, -1e+30
  %v2891 = vlaneseq
  %v2892 = vshrl.u32 %v2891, 7
  %v2893 = vsub.s32 4, %v2892
  %v2894 = vrot.slane %v657, %v2893
  %v2895 = vlaneseq
  %v2896 = vshrl.u32 %v2895, 7
  %v2897 = vsub.s32 4, %v2896
  %v2898 = vrot.slane %v663, %v2897
  %v2899 = vlaneseq
  %v2900 = vshrl.u32 %v2899, 7
  %v2901 = vsub.s32 4, %v2900
  %v2902 = vrot.slane %v669, %v2901
  %v2903 = vlaneseq
  %v2904 = vshrl.u32 %v2903, 7
  %v2905 = vsub.s32 4, %v2904
  %v2906 = vrot.slane %v675, %v2905
  %v2907 = vlaneseq
  %v2908 = vshrl.u32 %v2907, 7
  %v2909 = vsub.s32 4, %v2908
  %v2910 = vrot.slane %v681, %v2909
  %v2911 = vlaneseq
  %v2912 = vshrl.u32 %v2911, 7
  %v2913 = vsub.s32 4, %v2912
  %v2914 = vrot.slane %v687, %v2913
  %v2915 = vlaneseq
  %v2916 = vshrl.u32 %v2915, 7
  %v2917 = vsub.s32 4, %v2916
  %v2918 = vrot.slane %v693, %v2917
  %v2919 = vlaneseq
  %v2920 = vshrl.u32 %v2919, 7
  %v2921 = vsub.s32 4, %v2920
  %v2922 = vrot.slane %v699, %v2921
  %v2923 = vlaneseq
  %v2924 = vshrl.u32 %v2923, 7
  %v2925 = vsub.s32 4, %v2924
  %v2926 = vrot.slane %v705, %v2925
  %v2927 = vlaneseq
  %v2928 = vshrl.u32 %v2927, 7
  %v2929 = vsub.s32 4, %v2928
  %v2930 = vrot.slane %v711, %v2929
  %v2931 = vlaneseq
  %v2932 = vshrl.u32 %v2931, 7
  %v2933 = vsub.s32 4, %v2932
  %v2934 = vrot.slane %v717, %v2933
  %v2935 = vlaneseq
  %v2936 = vshrl.u32 %v2935, 7
  %v2937 = vsub.s32 4, %v2936
  %v2938 = vrot.slane %v723, %v2937
  %v2939 = vlaneseq
  %v2940 = vshrl.u32 %v2939, 7
  %v2941 = vsub.s32 4, %v2940
  %v2942 = vrot.slane %v729, %v2941
  %v2943 = vlaneseq
  %v2944 = vshrl.u32 %v2943, 7
  %v2945 = vsub.s32 4, %v2944
  %v2946 = vrot.slane %v735, %v2945
  %v2947 = vlaneseq
  %v2948 = vshrl.u32 %v2947, 7
  %v2949 = vsub.s32 4, %v2948
  %v2950 = vrot.slane %v741, %v2949
  %v2951 = vlaneseq
  %v2952 = vshrl.u32 %v2951, 7
  %v2953 = vsub.s32 4, %v2952
  %v2954 = vrot.slane %v747, %v2953
  %v2955 = vlaneseq
  %v2956 = vshrl.u32 %v2955, 7
  %v2957 = vsub.s32 4, %v2956
  %v2958 = vrot.slane %v753, %v2957
  %v2959 = vlaneseq
  %v2960 = vshrl.u32 %v2959, 7
  %v2961 = vsub.s32 4, %v2960
  %v2962 = vrot.slane %v759, %v2961
  %v2963 = vlaneseq
  %v2964 = vshrl.u32 %v2963, 7
  %v2965 = vsub.s32 4, %v2964
  %v2966 = vrot.slane %v765, %v2965
  %v2967 = vlaneseq
  %v2968 = vshrl.u32 %v2967, 7
  %v2969 = vsub.s32 4, %v2968
  %v2970 = vrot.slane %v771, %v2969
  %v2971 = vlaneseq
  %v2972 = vshrl.u32 %v2971, 7
  %v2973 = vsub.s32 4, %v2972
  %v2974 = vrot.slane %v777, %v2973
  %v2975 = vlaneseq
  %v2976 = vshrl.u32 %v2975, 7
  %v2977 = vsub.s32 4, %v2976
  %v2978 = vrot.slane %v783, %v2977
  %v2979 = vlaneseq
  %v2980 = vshrl.u32 %v2979, 7
  %v2981 = vsub.s32 4, %v2980
  %v2982 = vrot.slane %v789, %v2981
  %v2983 = vlaneseq
  %v2984 = vshrl.u32 %v2983, 7
  %v2985 = vsub.s32 4, %v2984
  %v2986 = vrot.slane %v795, %v2985
  %v2987 = vlaneseq
  %v2988 = vshrl.u32 %v2987, 7
  %v2989 = vsub.s32 4, %v2988
  %v2990 = vrot.slane %v801, %v2989
  %v2991 = vlaneseq
  %v2992 = vshrl.u32 %v2991, 7
  %v2993 = vsub.s32 4, %v2992
  %v2994 = vrot.slane %v807, %v2993
  %v2995 = vlaneseq
  %v2996 = vshrl.u32 %v2995, 7
  %v2997 = vsub.s32 4, %v2996
  %v2998 = vrot.slane %v813, %v2997
  %v2999 = vlaneseq
  %v3000 = vshrl.u32 %v2999, 7
  %v3001 = vsub.s32 4, %v3000
  %v3002 = vrot.slane %v819, %v3001
  %v3003 = vlaneseq
  %v3004 = vshrl.u32 %v3003, 7
  %v3005 = vsub.s32 4, %v3004
  %v3006 = vrot.slane %v825, %v3005
  %v3007 = vlaneseq
  %v3008 = vshrl.u32 %v3007, 7
  %v3009 = vsub.s32 4, %v3008
  %v3010 = vrot.slane %v831, %v3009
  %v3011 = vlaneseq
  %v3012 = vshrl.u32 %v3011, 7
  %v3013 = vsub.s32 4, %v3012
  %v3014 = vrot.slane %v837, %v3013
  %v3015 = vlaneseq
  %v3016 = vshrl.u32 %v3015, 7
  %v3017 = vsub.s32 4, %v3016
  %v3018 = vrot.slane %v843, %v3017
  %v3019 = vmul.f32 %v655, %v2894
  %v3020 = vmul.f32 %v661, %v2898
  %v3021 = vmul.f32 %v667, %v2902
  %v3022 = vmul.f32 %v673, %v2906
  %v3023 = vmul.f32 %v679, %v2910
  %v3024 = vmul.f32 %v685, %v2914
  %v3025 = vmul.f32 %v691, %v2918
  %v3026 = vmul.f32 %v697, %v2922
  %v3027 = vmul.f32 %v703, %v2926
  %v3028 = vmul.f32 %v709, %v2930
  %v3029 = vmul.f32 %v715, %v2934
  %v3030 = vmul.f32 %v721, %v2938
  %v3031 = vmul.f32 %v727, %v2942
  %v3032 = vmul.f32 %v733, %v2946
  %v3033 = vmul.f32 %v739, %v2950
  %v3034 = vmul.f32 %v745, %v2954
  %v3035 = vmul.f32 %v751, %v2958
  %v3036 = vmul.f32 %v757, %v2962
  %v3037 = vmul.f32 %v763, %v2966
  %v3038 = vmul.f32 %v769, %v2970
  %v3039 = vmul.f32 %v775, %v2974
  %v3040 = vmul.f32 %v781, %v2978
  %v3041 = vmul.f32 %v787, %v2982
  %v3042 = vmul.f32 %v793, %v2986
  %v3043 = vmul.f32 %v799, %v2990
  %v3044 = vmul.f32 %v805, %v2994
  %v3045 = vmul.f32 %v811, %v2998
  %v3046 = vmul.f32 %v817, %v3002
  %v3047 = vmul.f32 %v823, %v3006
  %v3048 = vmul.f32 %v829, %v3010
  %v3049 = vmul.f32 %v835, %v3014
  %v3050 = vmul.f32 %v841, %v3018
  %3051 = vadd.xlane.f32.xlu0 %v3019
  %v3052 = vpop.xlane.xlu0 %3051
  %3053 = vadd.xlane.f32.xlu0 %v3020
  %v3054 = vpop.xlane.xlu0 %3053
  %3055 = vadd.xlane.f32.xlu0 %v3021
  %v3056 = vpop.xlane.xlu0 %3055
  %3057 = vadd.xlane.f32.xlu0 %v3022
  %v3058 = vpop.xlane.xlu0 %3057
  %3059 = vadd.xlane.f32.xlu0 %v3023
  %v3060 = vpop.xlane.xlu0 %3059
  %3061 = vadd.xlane.f32.xlu0 %v3024
  %v3062 = vpop.xlane.xlu0 %3061
  %3063 = vadd.xlane.f32.xlu0 %v3025
  %v3064 = vpop.xlane.xlu0 %3063
  %3065 = vadd.xlane.f32.xlu0 %v3026
  %v3066 = vpop.xlane.xlu0 %3065
  %3067 = vadd.xlane.f32.xlu0 %v3027
  %v3068 = vpop.xlane.xlu0 %3067
  %3069 = vadd.xlane.f32.xlu0 %v3028
  %v3070 = vpop.xlane.xlu0 %3069
  %3071 = vadd.xlane.f32.xlu0 %v3029
  %v3072 = vpop.xlane.xlu0 %3071
  %3073 = vadd.xlane.f32.xlu0 %v3030
  %v3074 = vpop.xlane.xlu0 %3073
  %3075 = vadd.xlane.f32.xlu0 %v3031
  %v3076 = vpop.xlane.xlu0 %3075
  %3077 = vadd.xlane.f32.xlu0 %v3032
  %v3078 = vpop.xlane.xlu0 %3077
  %3079 = vadd.xlane.f32.xlu0 %v3033
  %v3080 = vpop.xlane.xlu0 %3079
  %3081 = vadd.xlane.f32.xlu0 %v3034
  %v3082 = vpop.xlane.xlu0 %3081
  %3083 = vadd.xlane.f32.xlu0 %v3035
  %v3084 = vpop.xlane.xlu0 %3083
  %3085 = vadd.xlane.f32.xlu0 %v3036
  %v3086 = vpop.xlane.xlu0 %3085
  %3087 = vadd.xlane.f32.xlu0 %v3037
  %v3088 = vpop.xlane.xlu0 %3087
  %3089 = vadd.xlane.f32.xlu0 %v3038
  %v3090 = vpop.xlane.xlu0 %3089
  %3091 = vadd.xlane.f32.xlu0 %v3039
  %v3092 = vpop.xlane.xlu0 %3091
  %3093 = vadd.xlane.f32.xlu0 %v3040
  %v3094 = vpop.xlane.xlu0 %3093
  %3095 = vadd.xlane.f32.xlu0 %v3041
  %v3096 = vpop.xlane.xlu0 %3095
  %3097 = vadd.xlane.f32.xlu0 %v3042
  %v3098 = vpop.xlane.xlu0 %3097
  %3099 = vadd.xlane.f32.xlu0 %v3043
  %v3100 = vpop.xlane.xlu0 %3099
  %3101 = vadd.xlane.f32.xlu0 %v3044
  %v3102 = vpop.xlane.xlu0 %3101
  %3103 = vadd.xlane.f32.xlu0 %v3045
  %v3104 = vpop.xlane.xlu0 %3103
  %3105 = vadd.xlane.f32.xlu0 %v3046
  %v3106 = vpop.xlane.xlu0 %3105
  %3107 = vadd.xlane.f32.xlu0 %v3047
  %v3108 = vpop.xlane.xlu0 %3107
  %3109 = vadd.xlane.f32.xlu0 %v3048
  %v3110 = vpop.xlane.xlu0 %3109
  %3111 = vadd.xlane.f32.xlu0 %v3049
  %v3112 = vpop.xlane.xlu0 %3111
  %3113 = vadd.xlane.f32.xlu0 %v3050
  %v3114 = vpop.xlane.xlu0 %3113
  %v3115 = vmul.f32 %v3052, 0.088388346
  %v3116 = vmul.f32 %v3054, 0.088388346
  %v3117 = vmul.f32 %v3056, 0.088388346
  %v3118 = vmul.f32 %v3058, 0.088388346
  %v3119 = vmul.f32 %v3060, 0.088388346
  %v3120 = vmul.f32 %v3062, 0.088388346
  %v3121 = vmul.f32 %v3064, 0.088388346
  %v3122 = vmul.f32 %v3066, 0.088388346
  %v3123 = vmul.f32 %v3068, 0.088388346
  %v3124 = vmul.f32 %v3070, 0.088388346
  %v3125 = vmul.f32 %v3072, 0.088388346
  %v3126 = vmul.f32 %v3074, 0.088388346
  %v3127 = vmul.f32 %v3076, 0.088388346
  %v3128 = vmul.f32 %v3078, 0.088388346
  %v3129 = vmul.f32 %v3080, 0.088388346
  %v3130 = vmul.f32 %v3082, 0.088388346
  %v3131 = vmul.f32 %v3084, 0.088388346
  %v3132 = vmul.f32 %v3086, 0.088388346
  %v3133 = vmul.f32 %v3088, 0.088388346
  %v3134 = vmul.f32 %v3090, 0.088388346
  %v3135 = vmul.f32 %v3092, 0.088388346
  %v3136 = vmul.f32 %v3094, 0.088388346
  %v3137 = vmul.f32 %v3096, 0.088388346
  %v3138 = vmul.f32 %v3098, 0.088388346
  %v3139 = vmul.f32 %v3100, 0.088388346
  %v3140 = vmul.f32 %v3102, 0.088388346
  %v3141 = vmul.f32 %v3104, 0.088388346
  %v3142 = vmul.f32 %v3106, 0.088388346
  %v3143 = vmul.f32 %v3108, 0.088388346
  %v3144 = vmul.f32 %v3110, 0.088388346
  %v3145 = vmul.f32 %v3112, 0.088388346
  %v3146 = vmul.f32 %v3114, 0.088388346
  %vm3147 = vcmp.ge.s32.totalorder %v1071, 4
  %v3180 = vlaneseq
  %v3181 = vshrl.u32 %v3180, 7
  %v3182 = vsub.s32 %v1071, %v3181
  %v3183 = vrot.slane %v3115, %v3182
  %v3184 = vlaneseq
  %v3185 = vshrl.u32 %v3184, 7
  %v3186 = vsub.s32 %v1071, %v3185
  %v3187 = vrot.slane %v3116, %v3186
  %v3188 = vlaneseq
  %v3189 = vshrl.u32 %v3188, 7
  %v3190 = vsub.s32 %v1071, %v3189
  %v3191 = vrot.slane %v3117, %v3190
  %v3192 = vlaneseq
  %v3193 = vshrl.u32 %v3192, 7
  %v3194 = vsub.s32 %v1071, %v3193
  %v3195 = vrot.slane %v3118, %v3194
  %v3196 = vlaneseq
  %v3197 = vshrl.u32 %v3196, 7
  %v3198 = vsub.s32 %v1071, %v3197
  %v3199 = vrot.slane %v3119, %v3198
  %v3200 = vlaneseq
  %v3201 = vshrl.u32 %v3200, 7
  %v3202 = vsub.s32 %v1071, %v3201
  %v3203 = vrot.slane %v3120, %v3202
  %v3204 = vlaneseq
  %v3205 = vshrl.u32 %v3204, 7
  %v3206 = vsub.s32 %v1071, %v3205
  %v3207 = vrot.slane %v3121, %v3206
  %v3208 = vlaneseq
  %v3209 = vshrl.u32 %v3208, 7
  %v3210 = vsub.s32 %v1071, %v3209
  %v3211 = vrot.slane %v3122, %v3210
  %v3212 = vlaneseq
  %v3213 = vshrl.u32 %v3212, 7
  %v3214 = vsub.s32 %v1071, %v3213
  %v3215 = vrot.slane %v3123, %v3214
  %v3216 = vlaneseq
  %v3217 = vshrl.u32 %v3216, 7
  %v3218 = vsub.s32 %v1071, %v3217
  %v3219 = vrot.slane %v3124, %v3218
  %v3220 = vlaneseq
  %v3221 = vshrl.u32 %v3220, 7
  %v3222 = vsub.s32 %v1071, %v3221
  %v3223 = vrot.slane %v3125, %v3222
  %v3224 = vlaneseq
  %v3225 = vshrl.u32 %v3224, 7
  %v3226 = vsub.s32 %v1071, %v3225
  %v3227 = vrot.slane %v3126, %v3226
  %v3228 = vlaneseq
  %v3229 = vshrl.u32 %v3228, 7
  %v3230 = vsub.s32 %v1071, %v3229
  %v3231 = vrot.slane %v3127, %v3230
  %v3232 = vlaneseq
  %v3233 = vshrl.u32 %v3232, 7
  %v3234 = vsub.s32 %v1071, %v3233
  %v3235 = vrot.slane %v3128, %v3234
  %v3236 = vlaneseq
  %v3237 = vshrl.u32 %v3236, 7
  %v3238 = vsub.s32 %v1071, %v3237
  %v3239 = vrot.slane %v3129, %v3238
  %v3240 = vlaneseq
  %v3241 = vshrl.u32 %v3240, 7
  %v3242 = vsub.s32 %v1071, %v3241
  %v3243 = vrot.slane %v3130, %v3242
  %v3244 = vlaneseq
  %v3245 = vshrl.u32 %v3244, 7
  %v3246 = vsub.s32 %v1071, %v3245
  %v3247 = vrot.slane %v3131, %v3246
  %v3248 = vlaneseq
  %v3249 = vshrl.u32 %v3248, 7
  %v3250 = vsub.s32 %v1071, %v3249
  %v3251 = vrot.slane %v3132, %v3250
  %v3252 = vlaneseq
  %v3253 = vshrl.u32 %v3252, 7
  %v3254 = vsub.s32 %v1071, %v3253
  %v3255 = vrot.slane %v3133, %v3254
  %v3256 = vlaneseq
  %v3257 = vshrl.u32 %v3256, 7
  %v3258 = vsub.s32 %v1071, %v3257
  %v3259 = vrot.slane %v3134, %v3258
  %v3260 = vlaneseq
  %v3261 = vshrl.u32 %v3260, 7
  %v3262 = vsub.s32 %v1071, %v3261
  %v3263 = vrot.slane %v3135, %v3262
  %v3264 = vlaneseq
  %v3265 = vshrl.u32 %v3264, 7
  %v3266 = vsub.s32 %v1071, %v3265
  %v3267 = vrot.slane %v3136, %v3266
  %v3268 = vlaneseq
  %v3269 = vshrl.u32 %v3268, 7
  %v3270 = vsub.s32 %v1071, %v3269
  %v3271 = vrot.slane %v3137, %v3270
  %v3272 = vlaneseq
  %v3273 = vshrl.u32 %v3272, 7
  %v3274 = vsub.s32 %v1071, %v3273
  %v3275 = vrot.slane %v3138, %v3274
  %v3276 = vlaneseq
  %v3277 = vshrl.u32 %v3276, 7
  %v3278 = vsub.s32 %v1071, %v3277
  %v3279 = vrot.slane %v3139, %v3278
  %v3280 = vlaneseq
  %v3281 = vshrl.u32 %v3280, 7
  %v3282 = vsub.s32 %v1071, %v3281
  %v3283 = vrot.slane %v3140, %v3282
  %v3284 = vlaneseq
  %v3285 = vshrl.u32 %v3284, 7
  %v3286 = vsub.s32 %v1071, %v3285
  %v3287 = vrot.slane %v3141, %v3286
  %v3288 = vlaneseq
  %v3289 = vshrl.u32 %v3288, 7
  %v3290 = vsub.s32 %v1071, %v3289
  %v3291 = vrot.slane %v3142, %v3290
  %v3292 = vlaneseq
  %v3293 = vshrl.u32 %v3292, 7
  %v3294 = vsub.s32 %v1071, %v3293
  %v3295 = vrot.slane %v3143, %v3294
  %v3296 = vlaneseq
  %v3297 = vshrl.u32 %v3296, 7
  %v3298 = vsub.s32 %v1071, %v3297
  %v3299 = vrot.slane %v3144, %v3298
  %v3300 = vlaneseq
  %v3301 = vshrl.u32 %v3300, 7
  %v3302 = vsub.s32 %v1071, %v3301
  %v3303 = vrot.slane %v3145, %v3302
  %v3304 = vlaneseq
  %v3305 = vshrl.u32 %v3304, 7
  %v3306 = vsub.s32 %v1071, %v3305
  %v3307 = vrot.slane %v3146, %v3306
  %v3308 = vsel %vm1489, %v3187, %v3183
  %v3309 = vsel %vm1491, %v3191, %v3308
  %v3310 = vsel %vm1493, %v3195, %v3309
  %v3311 = vsel %vm1495, %v3199, %v3310
  %v3312 = vsel %vm1497, %v3203, %v3311
  %v3313 = vsel %vm1499, %v3207, %v3312
  %v3314 = vsel %vm1501, %v3211, %v3313
  %v3315 = vsel %vm1489, %v3219, %v3215
  %v3316 = vsel %vm1491, %v3223, %v3315
  %v3317 = vsel %vm1493, %v3227, %v3316
  %v3318 = vsel %vm1495, %v3231, %v3317
  %v3319 = vsel %vm1497, %v3235, %v3318
  %v3320 = vsel %vm1499, %v3239, %v3319
  %v3321 = vsel %vm1501, %v3243, %v3320
  %v3322 = vsel %vm1489, %v3251, %v3247
  %v3323 = vsel %vm1491, %v3255, %v3322
  %v3324 = vsel %vm1493, %v3259, %v3323
  %v3325 = vsel %vm1495, %v3263, %v3324
  %v3326 = vsel %vm1497, %v3267, %v3325
  %v3327 = vsel %vm1499, %v3271, %v3326
  %v3328 = vsel %vm1501, %v3275, %v3327
  %v3329 = vsel %vm1489, %v3283, %v3279
  %v3330 = vsel %vm1491, %v3287, %v3329
  %v3331 = vsel %vm1493, %v3291, %v3330
  %v3332 = vsel %vm1495, %v3295, %v3331
  %v3333 = vsel %vm1497, %v3299, %v3332
  %v3334 = vsel %vm1499, %v3303, %v3333
  %v3335 = vsel %vm1501, %v3307, %v3334
  %v3340 = vsel %vm3147, %v3314, -1e+30
  %v3341 = vsel %vm3147, %v3321, -1e+30
  %v3342 = vsel %vm3147, %v3328, -1e+30
  %v3343 = vsel %vm3147, %v3335, -1e+30
  %v3344 = vlaneseq
  %v3345 = vshrl.u32 %v3344, 7
  %v3346 = vsub.s32 5, %v3345
  %v3347 = vrot.slane %v657, %v3346
  %v3348 = vlaneseq
  %v3349 = vshrl.u32 %v3348, 7
  %v3350 = vsub.s32 5, %v3349
  %v3351 = vrot.slane %v663, %v3350
  %v3352 = vlaneseq
  %v3353 = vshrl.u32 %v3352, 7
  %v3354 = vsub.s32 5, %v3353
  %v3355 = vrot.slane %v669, %v3354
  %v3356 = vlaneseq
  %v3357 = vshrl.u32 %v3356, 7
  %v3358 = vsub.s32 5, %v3357
  %v3359 = vrot.slane %v675, %v3358
  %v3360 = vlaneseq
  %v3361 = vshrl.u32 %v3360, 7
  %v3362 = vsub.s32 5, %v3361
  %v3363 = vrot.slane %v681, %v3362
  %v3364 = vlaneseq
  %v3365 = vshrl.u32 %v3364, 7
  %v3366 = vsub.s32 5, %v3365
  %v3367 = vrot.slane %v687, %v3366
  %v3368 = vlaneseq
  %v3369 = vshrl.u32 %v3368, 7
  %v3370 = vsub.s32 5, %v3369
  %v3371 = vrot.slane %v693, %v3370
  %v3372 = vlaneseq
  %v3373 = vshrl.u32 %v3372, 7
  %v3374 = vsub.s32 5, %v3373
  %v3375 = vrot.slane %v699, %v3374
  %v3376 = vlaneseq
  %v3377 = vshrl.u32 %v3376, 7
  %v3378 = vsub.s32 5, %v3377
  %v3379 = vrot.slane %v705, %v3378
  %v3380 = vlaneseq
  %v3381 = vshrl.u32 %v3380, 7
  %v3382 = vsub.s32 5, %v3381
  %v3383 = vrot.slane %v711, %v3382
  %v3384 = vlaneseq
  %v3385 = vshrl.u32 %v3384, 7
  %v3386 = vsub.s32 5, %v3385
  %v3387 = vrot.slane %v717, %v3386
  %v3388 = vlaneseq
  %v3389 = vshrl.u32 %v3388, 7
  %v3390 = vsub.s32 5, %v3389
  %v3391 = vrot.slane %v723, %v3390
  %v3392 = vlaneseq
  %v3393 = vshrl.u32 %v3392, 7
  %v3394 = vsub.s32 5, %v3393
  %v3395 = vrot.slane %v729, %v3394
  %v3396 = vlaneseq
  %v3397 = vshrl.u32 %v3396, 7
  %v3398 = vsub.s32 5, %v3397
  %v3399 = vrot.slane %v735, %v3398
  %v3400 = vlaneseq
  %v3401 = vshrl.u32 %v3400, 7
  %v3402 = vsub.s32 5, %v3401
  %v3403 = vrot.slane %v741, %v3402
  %v3404 = vlaneseq
  %v3405 = vshrl.u32 %v3404, 7
  %v3406 = vsub.s32 5, %v3405
  %v3407 = vrot.slane %v747, %v3406
  %v3408 = vlaneseq
  %v3409 = vshrl.u32 %v3408, 7
  %v3410 = vsub.s32 5, %v3409
  %v3411 = vrot.slane %v753, %v3410
  %v3412 = vlaneseq
  %v3413 = vshrl.u32 %v3412, 7
  %v3414 = vsub.s32 5, %v3413
  %v3415 = vrot.slane %v759, %v3414
  %v3416 = vlaneseq
  %v3417 = vshrl.u32 %v3416, 7
  %v3418 = vsub.s32 5, %v3417
  %v3419 = vrot.slane %v765, %v3418
  %v3420 = vlaneseq
  %v3421 = vshrl.u32 %v3420, 7
  %v3422 = vsub.s32 5, %v3421
  %v3423 = vrot.slane %v771, %v3422
  %v3424 = vlaneseq
  %v3425 = vshrl.u32 %v3424, 7
  %v3426 = vsub.s32 5, %v3425
  %v3427 = vrot.slane %v777, %v3426
  %v3428 = vlaneseq
  %v3429 = vshrl.u32 %v3428, 7
  %v3430 = vsub.s32 5, %v3429
  %v3431 = vrot.slane %v783, %v3430
  %v3432 = vlaneseq
  %v3433 = vshrl.u32 %v3432, 7
  %v3434 = vsub.s32 5, %v3433
  %v3435 = vrot.slane %v789, %v3434
  %v3436 = vlaneseq
  %v3437 = vshrl.u32 %v3436, 7
  %v3438 = vsub.s32 5, %v3437
  %v3439 = vrot.slane %v795, %v3438
  %v3440 = vlaneseq
  %v3441 = vshrl.u32 %v3440, 7
  %v3442 = vsub.s32 5, %v3441
  %v3443 = vrot.slane %v801, %v3442
  %v3444 = vlaneseq
  %v3445 = vshrl.u32 %v3444, 7
  %v3446 = vsub.s32 5, %v3445
  %v3447 = vrot.slane %v807, %v3446
  %v3448 = vlaneseq
  %v3449 = vshrl.u32 %v3448, 7
  %v3450 = vsub.s32 5, %v3449
  %v3451 = vrot.slane %v813, %v3450
  %v3452 = vlaneseq
  %v3453 = vshrl.u32 %v3452, 7
  %v3454 = vsub.s32 5, %v3453
  %v3455 = vrot.slane %v819, %v3454
  %v3456 = vlaneseq
  %v3457 = vshrl.u32 %v3456, 7
  %v3458 = vsub.s32 5, %v3457
  %v3459 = vrot.slane %v825, %v3458
  %v3460 = vlaneseq
  %v3461 = vshrl.u32 %v3460, 7
  %v3462 = vsub.s32 5, %v3461
  %v3463 = vrot.slane %v831, %v3462
  %v3464 = vlaneseq
  %v3465 = vshrl.u32 %v3464, 7
  %v3466 = vsub.s32 5, %v3465
  %v3467 = vrot.slane %v837, %v3466
  %v3468 = vlaneseq
  %v3469 = vshrl.u32 %v3468, 7
  %v3470 = vsub.s32 5, %v3469
  %v3471 = vrot.slane %v843, %v3470
  %v3472 = vmul.f32 %v655, %v3347
  %v3473 = vmul.f32 %v661, %v3351
  %v3474 = vmul.f32 %v667, %v3355
  %v3475 = vmul.f32 %v673, %v3359
  %v3476 = vmul.f32 %v679, %v3363
  %v3477 = vmul.f32 %v685, %v3367
  %v3478 = vmul.f32 %v691, %v3371
  %v3479 = vmul.f32 %v697, %v3375
  %v3480 = vmul.f32 %v703, %v3379
  %v3481 = vmul.f32 %v709, %v3383
  %v3482 = vmul.f32 %v715, %v3387
  %v3483 = vmul.f32 %v721, %v3391
  %v3484 = vmul.f32 %v727, %v3395
  %v3485 = vmul.f32 %v733, %v3399
  %v3486 = vmul.f32 %v739, %v3403
  %v3487 = vmul.f32 %v745, %v3407
  %v3488 = vmul.f32 %v751, %v3411
  %v3489 = vmul.f32 %v757, %v3415
  %v3490 = vmul.f32 %v763, %v3419
  %v3491 = vmul.f32 %v769, %v3423
  %v3492 = vmul.f32 %v775, %v3427
  %v3493 = vmul.f32 %v781, %v3431
  %v3494 = vmul.f32 %v787, %v3435
  %v3495 = vmul.f32 %v793, %v3439
  %v3496 = vmul.f32 %v799, %v3443
  %v3497 = vmul.f32 %v805, %v3447
  %v3498 = vmul.f32 %v811, %v3451
  %v3499 = vmul.f32 %v817, %v3455
  %v3500 = vmul.f32 %v823, %v3459
  %v3501 = vmul.f32 %v829, %v3463
  %v3502 = vmul.f32 %v835, %v3467
  %v3503 = vmul.f32 %v841, %v3471
  %3504 = vadd.xlane.f32.xlu0 %v3472
  %v3505 = vpop.xlane.xlu0 %3504
  %3506 = vadd.xlane.f32.xlu0 %v3473
  %v3507 = vpop.xlane.xlu0 %3506
  %3508 = vadd.xlane.f32.xlu0 %v3474
  %v3509 = vpop.xlane.xlu0 %3508
  %3510 = vadd.xlane.f32.xlu0 %v3475
  %v3511 = vpop.xlane.xlu0 %3510
  %3512 = vadd.xlane.f32.xlu0 %v3476
  %v3513 = vpop.xlane.xlu0 %3512
  %3514 = vadd.xlane.f32.xlu0 %v3477
  %v3515 = vpop.xlane.xlu0 %3514
  %3516 = vadd.xlane.f32.xlu0 %v3478
  %v3517 = vpop.xlane.xlu0 %3516
  %3518 = vadd.xlane.f32.xlu0 %v3479
  %v3519 = vpop.xlane.xlu0 %3518
  %3520 = vadd.xlane.f32.xlu0 %v3480
  %v3521 = vpop.xlane.xlu0 %3520
  %3522 = vadd.xlane.f32.xlu0 %v3481
  %v3523 = vpop.xlane.xlu0 %3522
  %3524 = vadd.xlane.f32.xlu0 %v3482
  %v3525 = vpop.xlane.xlu0 %3524
  %3526 = vadd.xlane.f32.xlu0 %v3483
  %v3527 = vpop.xlane.xlu0 %3526
  %3528 = vadd.xlane.f32.xlu0 %v3484
  %v3529 = vpop.xlane.xlu0 %3528
  %3530 = vadd.xlane.f32.xlu0 %v3485
  %v3531 = vpop.xlane.xlu0 %3530
  %3532 = vadd.xlane.f32.xlu0 %v3486
  %v3533 = vpop.xlane.xlu0 %3532
  %3534 = vadd.xlane.f32.xlu0 %v3487
  %v3535 = vpop.xlane.xlu0 %3534
  %3536 = vadd.xlane.f32.xlu0 %v3488
  %v3537 = vpop.xlane.xlu0 %3536
  %3538 = vadd.xlane.f32.xlu0 %v3489
  %v3539 = vpop.xlane.xlu0 %3538
  %3540 = vadd.xlane.f32.xlu0 %v3490
  %v3541 = vpop.xlane.xlu0 %3540
  %3542 = vadd.xlane.f32.xlu0 %v3491
  %v3543 = vpop.xlane.xlu0 %3542
  %3544 = vadd.xlane.f32.xlu0 %v3492
  %v3545 = vpop.xlane.xlu0 %3544
  %3546 = vadd.xlane.f32.xlu0 %v3493
  %v3547 = vpop.xlane.xlu0 %3546
  %3548 = vadd.xlane.f32.xlu0 %v3494
  %v3549 = vpop.xlane.xlu0 %3548
  %3550 = vadd.xlane.f32.xlu0 %v3495
  %v3551 = vpop.xlane.xlu0 %3550
  %3552 = vadd.xlane.f32.xlu0 %v3496
  %v3553 = vpop.xlane.xlu0 %3552
  %3554 = vadd.xlane.f32.xlu0 %v3497
  %v3555 = vpop.xlane.xlu0 %3554
  %3556 = vadd.xlane.f32.xlu0 %v3498
  %v3557 = vpop.xlane.xlu0 %3556
  %3558 = vadd.xlane.f32.xlu0 %v3499
  %v3559 = vpop.xlane.xlu0 %3558
  %3560 = vadd.xlane.f32.xlu0 %v3500
  %v3561 = vpop.xlane.xlu0 %3560
  %3562 = vadd.xlane.f32.xlu0 %v3501
  %v3563 = vpop.xlane.xlu0 %3562
  %3564 = vadd.xlane.f32.xlu0 %v3502
  %v3565 = vpop.xlane.xlu0 %3564
  %3566 = vadd.xlane.f32.xlu0 %v3503
  %v3567 = vpop.xlane.xlu0 %3566
  %v3568 = vmul.f32 %v3505, 0.088388346
  %v3569 = vmul.f32 %v3507, 0.088388346
  %v3570 = vmul.f32 %v3509, 0.088388346
  %v3571 = vmul.f32 %v3511, 0.088388346
  %v3572 = vmul.f32 %v3513, 0.088388346
  %v3573 = vmul.f32 %v3515, 0.088388346
  %v3574 = vmul.f32 %v3517, 0.088388346
  %v3575 = vmul.f32 %v3519, 0.088388346
  %v3576 = vmul.f32 %v3521, 0.088388346
  %v3577 = vmul.f32 %v3523, 0.088388346
  %v3578 = vmul.f32 %v3525, 0.088388346
  %v3579 = vmul.f32 %v3527, 0.088388346
  %v3580 = vmul.f32 %v3529, 0.088388346
  %v3581 = vmul.f32 %v3531, 0.088388346
  %v3582 = vmul.f32 %v3533, 0.088388346
  %v3583 = vmul.f32 %v3535, 0.088388346
  %v3584 = vmul.f32 %v3537, 0.088388346
  %v3585 = vmul.f32 %v3539, 0.088388346
  %v3586 = vmul.f32 %v3541, 0.088388346
  %v3587 = vmul.f32 %v3543, 0.088388346
  %v3588 = vmul.f32 %v3545, 0.088388346
  %v3589 = vmul.f32 %v3547, 0.088388346
  %v3590 = vmul.f32 %v3549, 0.088388346
  %v3591 = vmul.f32 %v3551, 0.088388346
  %v3592 = vmul.f32 %v3553, 0.088388346
  %v3593 = vmul.f32 %v3555, 0.088388346
  %v3594 = vmul.f32 %v3557, 0.088388346
  %v3595 = vmul.f32 %v3559, 0.088388346
  %v3596 = vmul.f32 %v3561, 0.088388346
  %v3597 = vmul.f32 %v3563, 0.088388346
  %v3598 = vmul.f32 %v3565, 0.088388346
  %v3599 = vmul.f32 %v3567, 0.088388346
  %vm3600 = vcmp.ge.s32.totalorder %v1071, 5
  %v3633 = vlaneseq
  %v3634 = vshrl.u32 %v3633, 7
  %v3635 = vsub.s32 %v1071, %v3634
  %v3636 = vrot.slane %v3568, %v3635
  %v3637 = vlaneseq
  %v3638 = vshrl.u32 %v3637, 7
  %v3639 = vsub.s32 %v1071, %v3638
  %v3640 = vrot.slane %v3569, %v3639
  %v3641 = vlaneseq
  %v3642 = vshrl.u32 %v3641, 7
  %v3643 = vsub.s32 %v1071, %v3642
  %v3644 = vrot.slane %v3570, %v3643
  %v3645 = vlaneseq
  %v3646 = vshrl.u32 %v3645, 7
  %v3647 = vsub.s32 %v1071, %v3646
  %v3648 = vrot.slane %v3571, %v3647
  %v3649 = vlaneseq
  %v3650 = vshrl.u32 %v3649, 7
  %v3651 = vsub.s32 %v1071, %v3650
  %v3652 = vrot.slane %v3572, %v3651
  %v3653 = vlaneseq
  %v3654 = vshrl.u32 %v3653, 7
  %v3655 = vsub.s32 %v1071, %v3654
  %v3656 = vrot.slane %v3573, %v3655
  %v3657 = vlaneseq
  %v3658 = vshrl.u32 %v3657, 7
  %v3659 = vsub.s32 %v1071, %v3658
  %v3660 = vrot.slane %v3574, %v3659
  %v3661 = vlaneseq
  %v3662 = vshrl.u32 %v3661, 7
  %v3663 = vsub.s32 %v1071, %v3662
  %v3664 = vrot.slane %v3575, %v3663
  %v3665 = vlaneseq
  %v3666 = vshrl.u32 %v3665, 7
  %v3667 = vsub.s32 %v1071, %v3666
  %v3668 = vrot.slane %v3576, %v3667
  %v3669 = vlaneseq
  %v3670 = vshrl.u32 %v3669, 7
  %v3671 = vsub.s32 %v1071, %v3670
  %v3672 = vrot.slane %v3577, %v3671
  %v3673 = vlaneseq
  %v3674 = vshrl.u32 %v3673, 7
  %v3675 = vsub.s32 %v1071, %v3674
  %v3676 = vrot.slane %v3578, %v3675
  %v3677 = vlaneseq
  %v3678 = vshrl.u32 %v3677, 7
  %v3679 = vsub.s32 %v1071, %v3678
  %v3680 = vrot.slane %v3579, %v3679
  %v3681 = vlaneseq
  %v3682 = vshrl.u32 %v3681, 7
  %v3683 = vsub.s32 %v1071, %v3682
  %v3684 = vrot.slane %v3580, %v3683
  %v3685 = vlaneseq
  %v3686 = vshrl.u32 %v3685, 7
  %v3687 = vsub.s32 %v1071, %v3686
  %v3688 = vrot.slane %v3581, %v3687
  %v3689 = vlaneseq
  %v3690 = vshrl.u32 %v3689, 7
  %v3691 = vsub.s32 %v1071, %v3690
  %v3692 = vrot.slane %v3582, %v3691
  %v3693 = vlaneseq
  %v3694 = vshrl.u32 %v3693, 7
  %v3695 = vsub.s32 %v1071, %v3694
  %v3696 = vrot.slane %v3583, %v3695
  %v3697 = vlaneseq
  %v3698 = vshrl.u32 %v3697, 7
  %v3699 = vsub.s32 %v1071, %v3698
  %v3700 = vrot.slane %v3584, %v3699
  %v3701 = vlaneseq
  %v3702 = vshrl.u32 %v3701, 7
  %v3703 = vsub.s32 %v1071, %v3702
  %v3704 = vrot.slane %v3585, %v3703
  %v3705 = vlaneseq
  %v3706 = vshrl.u32 %v3705, 7
  %v3707 = vsub.s32 %v1071, %v3706
  %v3708 = vrot.slane %v3586, %v3707
  %v3709 = vlaneseq
  %v3710 = vshrl.u32 %v3709, 7
  %v3711 = vsub.s32 %v1071, %v3710
  %v3712 = vrot.slane %v3587, %v3711
  %v3713 = vlaneseq
  %v3714 = vshrl.u32 %v3713, 7
  %v3715 = vsub.s32 %v1071, %v3714
  %v3716 = vrot.slane %v3588, %v3715
  %v3717 = vlaneseq
  %v3718 = vshrl.u32 %v3717, 7
  %v3719 = vsub.s32 %v1071, %v3718
  %v3720 = vrot.slane %v3589, %v3719
  %v3721 = vlaneseq
  %v3722 = vshrl.u32 %v3721, 7
  %v3723 = vsub.s32 %v1071, %v3722
  %v3724 = vrot.slane %v3590, %v3723
  %v3725 = vlaneseq
  %v3726 = vshrl.u32 %v3725, 7
  %v3727 = vsub.s32 %v1071, %v3726
  %v3728 = vrot.slane %v3591, %v3727
  %v3729 = vlaneseq
  %v3730 = vshrl.u32 %v3729, 7
  %v3731 = vsub.s32 %v1071, %v3730
  %v3732 = vrot.slane %v3592, %v3731
  %v3733 = vlaneseq
  %v3734 = vshrl.u32 %v3733, 7
  %v3735 = vsub.s32 %v1071, %v3734
  %v3736 = vrot.slane %v3593, %v3735
  %v3737 = vlaneseq
  %v3738 = vshrl.u32 %v3737, 7
  %v3739 = vsub.s32 %v1071, %v3738
  %v3740 = vrot.slane %v3594, %v3739
  %v3741 = vlaneseq
  %v3742 = vshrl.u32 %v3741, 7
  %v3743 = vsub.s32 %v1071, %v3742
  %v3744 = vrot.slane %v3595, %v3743
  %v3745 = vlaneseq
  %v3746 = vshrl.u32 %v3745, 7
  %v3747 = vsub.s32 %v1071, %v3746
  %v3748 = vrot.slane %v3596, %v3747
  %v3749 = vlaneseq
  %v3750 = vshrl.u32 %v3749, 7
  %v3751 = vsub.s32 %v1071, %v3750
  %v3752 = vrot.slane %v3597, %v3751
  %v3753 = vlaneseq
  %v3754 = vshrl.u32 %v3753, 7
  %v3755 = vsub.s32 %v1071, %v3754
  %v3756 = vrot.slane %v3598, %v3755
  %v3757 = vlaneseq
  %v3758 = vshrl.u32 %v3757, 7
  %v3759 = vsub.s32 %v1071, %v3758
  %v3760 = vrot.slane %v3599, %v3759
  %v3761 = vsel %vm1489, %v3640, %v3636
  %v3762 = vsel %vm1491, %v3644, %v3761
  %v3763 = vsel %vm1493, %v3648, %v3762
  %v3764 = vsel %vm1495, %v3652, %v3763
  %v3765 = vsel %vm1497, %v3656, %v3764
  %v3766 = vsel %vm1499, %v3660, %v3765
  %v3767 = vsel %vm1501, %v3664, %v3766
  %v3768 = vsel %vm1489, %v3672, %v3668
  %v3769 = vsel %vm1491, %v3676, %v3768
  %v3770 = vsel %vm1493, %v3680, %v3769
  %v3771 = vsel %vm1495, %v3684, %v3770
  %v3772 = vsel %vm1497, %v3688, %v3771
  %v3773 = vsel %vm1499, %v3692, %v3772
  %v3774 = vsel %vm1501, %v3696, %v3773
  %v3775 = vsel %vm1489, %v3704, %v3700
  %v3776 = vsel %vm1491, %v3708, %v3775
  %v3777 = vsel %vm1493, %v3712, %v3776
  %v3778 = vsel %vm1495, %v3716, %v3777
  %v3779 = vsel %vm1497, %v3720, %v3778
  %v3780 = vsel %vm1499, %v3724, %v3779
  %v3781 = vsel %vm1501, %v3728, %v3780
  %v3782 = vsel %vm1489, %v3736, %v3732
  %v3783 = vsel %vm1491, %v3740, %v3782
  %v3784 = vsel %vm1493, %v3744, %v3783
  %v3785 = vsel %vm1495, %v3748, %v3784
  %v3786 = vsel %vm1497, %v3752, %v3785
  %v3787 = vsel %vm1499, %v3756, %v3786
  %v3788 = vsel %vm1501, %v3760, %v3787
  %v3793 = vsel %vm3600, %v3767, -1e+30
  %v3794 = vsel %vm3600, %v3774, -1e+30
  %v3795 = vsel %vm3600, %v3781, -1e+30
  %v3796 = vsel %vm3600, %v3788, -1e+30
  %v3797 = vlaneseq
  %v3798 = vshrl.u32 %v3797, 7
  %v3799 = vsub.s32 6, %v3798
  %v3800 = vrot.slane %v657, %v3799
  %v3801 = vlaneseq
  %v3802 = vshrl.u32 %v3801, 7
  %v3803 = vsub.s32 6, %v3802
  %v3804 = vrot.slane %v663, %v3803
  %v3805 = vlaneseq
  %v3806 = vshrl.u32 %v3805, 7
  %v3807 = vsub.s32 6, %v3806
  %v3808 = vrot.slane %v669, %v3807
  %v3809 = vlaneseq
  %v3810 = vshrl.u32 %v3809, 7
  %v3811 = vsub.s32 6, %v3810
  %v3812 = vrot.slane %v675, %v3811
  %v3813 = vlaneseq
  %v3814 = vshrl.u32 %v3813, 7
  %v3815 = vsub.s32 6, %v3814
  %v3816 = vrot.slane %v681, %v3815
  %v3817 = vlaneseq
  %v3818 = vshrl.u32 %v3817, 7
  %v3819 = vsub.s32 6, %v3818
  %v3820 = vrot.slane %v687, %v3819
  %v3821 = vlaneseq
  %v3822 = vshrl.u32 %v3821, 7
  %v3823 = vsub.s32 6, %v3822
  %v3824 = vrot.slane %v693, %v3823
  %v3825 = vlaneseq
  %v3826 = vshrl.u32 %v3825, 7
  %v3827 = vsub.s32 6, %v3826
  %v3828 = vrot.slane %v699, %v3827
  %v3829 = vlaneseq
  %v3830 = vshrl.u32 %v3829, 7
  %v3831 = vsub.s32 6, %v3830
  %v3832 = vrot.slane %v705, %v3831
  %v3833 = vlaneseq
  %v3834 = vshrl.u32 %v3833, 7
  %v3835 = vsub.s32 6, %v3834
  %v3836 = vrot.slane %v711, %v3835
  %v3837 = vlaneseq
  %v3838 = vshrl.u32 %v3837, 7
  %v3839 = vsub.s32 6, %v3838
  %v3840 = vrot.slane %v717, %v3839
  %v3841 = vlaneseq
  %v3842 = vshrl.u32 %v3841, 7
  %v3843 = vsub.s32 6, %v3842
  %v3844 = vrot.slane %v723, %v3843
  %v3845 = vlaneseq
  %v3846 = vshrl.u32 %v3845, 7
  %v3847 = vsub.s32 6, %v3846
  %v3848 = vrot.slane %v729, %v3847
  %v3849 = vlaneseq
  %v3850 = vshrl.u32 %v3849, 7
  %v3851 = vsub.s32 6, %v3850
  %v3852 = vrot.slane %v735, %v3851
  %v3853 = vlaneseq
  %v3854 = vshrl.u32 %v3853, 7
  %v3855 = vsub.s32 6, %v3854
  %v3856 = vrot.slane %v741, %v3855
  %v3857 = vlaneseq
  %v3858 = vshrl.u32 %v3857, 7
  %v3859 = vsub.s32 6, %v3858
  %v3860 = vrot.slane %v747, %v3859
  %v3861 = vlaneseq
  %v3862 = vshrl.u32 %v3861, 7
  %v3863 = vsub.s32 6, %v3862
  %v3864 = vrot.slane %v753, %v3863
  %v3865 = vlaneseq
  %v3866 = vshrl.u32 %v3865, 7
  %v3867 = vsub.s32 6, %v3866
  %v3868 = vrot.slane %v759, %v3867
  %v3869 = vlaneseq
  %v3870 = vshrl.u32 %v3869, 7
  %v3871 = vsub.s32 6, %v3870
  %v3872 = vrot.slane %v765, %v3871
  %v3873 = vlaneseq
  %v3874 = vshrl.u32 %v3873, 7
  %v3875 = vsub.s32 6, %v3874
  %v3876 = vrot.slane %v771, %v3875
  %v3877 = vlaneseq
  %v3878 = vshrl.u32 %v3877, 7
  %v3879 = vsub.s32 6, %v3878
  %v3880 = vrot.slane %v777, %v3879
  %v3881 = vlaneseq
  %v3882 = vshrl.u32 %v3881, 7
  %v3883 = vsub.s32 6, %v3882
  %v3884 = vrot.slane %v783, %v3883
  %v3885 = vlaneseq
  %v3886 = vshrl.u32 %v3885, 7
  %v3887 = vsub.s32 6, %v3886
  %v3888 = vrot.slane %v789, %v3887
  %v3889 = vlaneseq
  %v3890 = vshrl.u32 %v3889, 7
  %v3891 = vsub.s32 6, %v3890
  %v3892 = vrot.slane %v795, %v3891
  %v3893 = vlaneseq
  %v3894 = vshrl.u32 %v3893, 7
  %v3895 = vsub.s32 6, %v3894
  %v3896 = vrot.slane %v801, %v3895
  %v3897 = vlaneseq
  %v3898 = vshrl.u32 %v3897, 7
  %v3899 = vsub.s32 6, %v3898
  %v3900 = vrot.slane %v807, %v3899
  %v3901 = vlaneseq
  %v3902 = vshrl.u32 %v3901, 7
  %v3903 = vsub.s32 6, %v3902
  %v3904 = vrot.slane %v813, %v3903
  %v3905 = vlaneseq
  %v3906 = vshrl.u32 %v3905, 7
  %v3907 = vsub.s32 6, %v3906
  %v3908 = vrot.slane %v819, %v3907
  %v3909 = vlaneseq
  %v3910 = vshrl.u32 %v3909, 7
  %v3911 = vsub.s32 6, %v3910
  %v3912 = vrot.slane %v825, %v3911
  %v3913 = vlaneseq
  %v3914 = vshrl.u32 %v3913, 7
  %v3915 = vsub.s32 6, %v3914
  %v3916 = vrot.slane %v831, %v3915
  %v3917 = vlaneseq
  %v3918 = vshrl.u32 %v3917, 7
  %v3919 = vsub.s32 6, %v3918
  %v3920 = vrot.slane %v837, %v3919
  %v3921 = vlaneseq
  %v3922 = vshrl.u32 %v3921, 7
  %v3923 = vsub.s32 6, %v3922
  %v3924 = vrot.slane %v843, %v3923
  %v3925 = vmul.f32 %v655, %v3800
  %v3926 = vmul.f32 %v661, %v3804
  %v3927 = vmul.f32 %v667, %v3808
  %v3928 = vmul.f32 %v673, %v3812
  %v3929 = vmul.f32 %v679, %v3816
  %v3930 = vmul.f32 %v685, %v3820
  %v3931 = vmul.f32 %v691, %v3824
  %v3932 = vmul.f32 %v697, %v3828
  %v3933 = vmul.f32 %v703, %v3832
  %v3934 = vmul.f32 %v709, %v3836
  %v3935 = vmul.f32 %v715, %v3840
  %v3936 = vmul.f32 %v721, %v3844
  %v3937 = vmul.f32 %v727, %v3848
  %v3938 = vmul.f32 %v733, %v3852
  %v3939 = vmul.f32 %v739, %v3856
  %v3940 = vmul.f32 %v745, %v3860
  %v3941 = vmul.f32 %v751, %v3864
  %v3942 = vmul.f32 %v757, %v3868
  %v3943 = vmul.f32 %v763, %v3872
  %v3944 = vmul.f32 %v769, %v3876
  %v3945 = vmul.f32 %v775, %v3880
  %v3946 = vmul.f32 %v781, %v3884
  %v3947 = vmul.f32 %v787, %v3888
  %v3948 = vmul.f32 %v793, %v3892
  %v3949 = vmul.f32 %v799, %v3896
  %v3950 = vmul.f32 %v805, %v3900
  %v3951 = vmul.f32 %v811, %v3904
  %v3952 = vmul.f32 %v817, %v3908
  %v3953 = vmul.f32 %v823, %v3912
  %v3954 = vmul.f32 %v829, %v3916
  %v3955 = vmul.f32 %v835, %v3920
  %v3956 = vmul.f32 %v841, %v3924
  %3957 = vadd.xlane.f32.xlu0 %v3925
  %v3958 = vpop.xlane.xlu0 %3957
  %3959 = vadd.xlane.f32.xlu0 %v3926
  %v3960 = vpop.xlane.xlu0 %3959
  %3961 = vadd.xlane.f32.xlu0 %v3927
  %v3962 = vpop.xlane.xlu0 %3961
  %3963 = vadd.xlane.f32.xlu0 %v3928
  %v3964 = vpop.xlane.xlu0 %3963
  %3965 = vadd.xlane.f32.xlu0 %v3929
  %v3966 = vpop.xlane.xlu0 %3965
  %3967 = vadd.xlane.f32.xlu0 %v3930
  %v3968 = vpop.xlane.xlu0 %3967
  %3969 = vadd.xlane.f32.xlu0 %v3931
  %v3970 = vpop.xlane.xlu0 %3969
  %3971 = vadd.xlane.f32.xlu0 %v3932
  %v3972 = vpop.xlane.xlu0 %3971
  %3973 = vadd.xlane.f32.xlu0 %v3933
  %v3974 = vpop.xlane.xlu0 %3973
  %3975 = vadd.xlane.f32.xlu0 %v3934
  %v3976 = vpop.xlane.xlu0 %3975
  %3977 = vadd.xlane.f32.xlu0 %v3935
  %v3978 = vpop.xlane.xlu0 %3977
  %3979 = vadd.xlane.f32.xlu0 %v3936
  %v3980 = vpop.xlane.xlu0 %3979
  %3981 = vadd.xlane.f32.xlu0 %v3937
  %v3982 = vpop.xlane.xlu0 %3981
  %3983 = vadd.xlane.f32.xlu0 %v3938
  %v3984 = vpop.xlane.xlu0 %3983
  %3985 = vadd.xlane.f32.xlu0 %v3939
  %v3986 = vpop.xlane.xlu0 %3985
  %3987 = vadd.xlane.f32.xlu0 %v3940
  %v3988 = vpop.xlane.xlu0 %3987
  %3989 = vadd.xlane.f32.xlu0 %v3941
  %v3990 = vpop.xlane.xlu0 %3989
  %3991 = vadd.xlane.f32.xlu0 %v3942
  %v3992 = vpop.xlane.xlu0 %3991
  %3993 = vadd.xlane.f32.xlu0 %v3943
  %v3994 = vpop.xlane.xlu0 %3993
  %3995 = vadd.xlane.f32.xlu0 %v3944
  %v3996 = vpop.xlane.xlu0 %3995
  %3997 = vadd.xlane.f32.xlu0 %v3945
  %v3998 = vpop.xlane.xlu0 %3997
  %3999 = vadd.xlane.f32.xlu0 %v3946
  %v4000 = vpop.xlane.xlu0 %3999
  %4001 = vadd.xlane.f32.xlu0 %v3947
  %v4002 = vpop.xlane.xlu0 %4001
  %4003 = vadd.xlane.f32.xlu0 %v3948
  %v4004 = vpop.xlane.xlu0 %4003
  %4005 = vadd.xlane.f32.xlu0 %v3949
  %v4006 = vpop.xlane.xlu0 %4005
  %4007 = vadd.xlane.f32.xlu0 %v3950
  %v4008 = vpop.xlane.xlu0 %4007
  %4009 = vadd.xlane.f32.xlu0 %v3951
  %v4010 = vpop.xlane.xlu0 %4009
  %4011 = vadd.xlane.f32.xlu0 %v3952
  %v4012 = vpop.xlane.xlu0 %4011
  %4013 = vadd.xlane.f32.xlu0 %v3953
  %v4014 = vpop.xlane.xlu0 %4013
  %4015 = vadd.xlane.f32.xlu0 %v3954
  %v4016 = vpop.xlane.xlu0 %4015
  %4017 = vadd.xlane.f32.xlu0 %v3955
  %v4018 = vpop.xlane.xlu0 %4017
  %4019 = vadd.xlane.f32.xlu0 %v3956
  %v4020 = vpop.xlane.xlu0 %4019
  %v4021 = vmul.f32 %v3958, 0.088388346
  %v4022 = vmul.f32 %v3960, 0.088388346
  %v4023 = vmul.f32 %v3962, 0.088388346
  %v4024 = vmul.f32 %v3964, 0.088388346
  %v4025 = vmul.f32 %v3966, 0.088388346
  %v4026 = vmul.f32 %v3968, 0.088388346
  %v4027 = vmul.f32 %v3970, 0.088388346
  %v4028 = vmul.f32 %v3972, 0.088388346
  %v4029 = vmul.f32 %v3974, 0.088388346
  %v4030 = vmul.f32 %v3976, 0.088388346
  %v4031 = vmul.f32 %v3978, 0.088388346
  %v4032 = vmul.f32 %v3980, 0.088388346
  %v4033 = vmul.f32 %v3982, 0.088388346
  %v4034 = vmul.f32 %v3984, 0.088388346
  %v4035 = vmul.f32 %v3986, 0.088388346
  %v4036 = vmul.f32 %v3988, 0.088388346
  %v4037 = vmul.f32 %v3990, 0.088388346
  %v4038 = vmul.f32 %v3992, 0.088388346
  %v4039 = vmul.f32 %v3994, 0.088388346
  %v4040 = vmul.f32 %v3996, 0.088388346
  %v4041 = vmul.f32 %v3998, 0.088388346
  %v4042 = vmul.f32 %v4000, 0.088388346
  %v4043 = vmul.f32 %v4002, 0.088388346
  %v4044 = vmul.f32 %v4004, 0.088388346
  %v4045 = vmul.f32 %v4006, 0.088388346
  %v4046 = vmul.f32 %v4008, 0.088388346
  %v4047 = vmul.f32 %v4010, 0.088388346
  %v4048 = vmul.f32 %v4012, 0.088388346
  %v4049 = vmul.f32 %v4014, 0.088388346
  %v4050 = vmul.f32 %v4016, 0.088388346
  %v4051 = vmul.f32 %v4018, 0.088388346
  %v4052 = vmul.f32 %v4020, 0.088388346
  %vm4053 = vcmp.ge.s32.totalorder %v1071, 6
  %v4086 = vlaneseq
  %v4087 = vshrl.u32 %v4086, 7
  %v4088 = vsub.s32 %v1071, %v4087
  %v4089 = vrot.slane %v4021, %v4088
  %v4090 = vlaneseq
  %v4091 = vshrl.u32 %v4090, 7
  %v4092 = vsub.s32 %v1071, %v4091
  %v4093 = vrot.slane %v4022, %v4092
  %v4094 = vlaneseq
  %v4095 = vshrl.u32 %v4094, 7
  %v4096 = vsub.s32 %v1071, %v4095
  %v4097 = vrot.slane %v4023, %v4096
  %v4098 = vlaneseq
  %v4099 = vshrl.u32 %v4098, 7
  %v4100 = vsub.s32 %v1071, %v4099
  %v4101 = vrot.slane %v4024, %v4100
  %v4102 = vlaneseq
  %v4103 = vshrl.u32 %v4102, 7
  %v4104 = vsub.s32 %v1071, %v4103
  %v4105 = vrot.slane %v4025, %v4104
  %v4106 = vlaneseq
  %v4107 = vshrl.u32 %v4106, 7
  %v4108 = vsub.s32 %v1071, %v4107
  %v4109 = vrot.slane %v4026, %v4108
  %v4110 = vlaneseq
  %v4111 = vshrl.u32 %v4110, 7
  %v4112 = vsub.s32 %v1071, %v4111
  %v4113 = vrot.slane %v4027, %v4112
  %v4114 = vlaneseq
  %v4115 = vshrl.u32 %v4114, 7
  %v4116 = vsub.s32 %v1071, %v4115
  %v4117 = vrot.slane %v4028, %v4116
  %v4118 = vlaneseq
  %v4119 = vshrl.u32 %v4118, 7
  %v4120 = vsub.s32 %v1071, %v4119
  %v4121 = vrot.slane %v4029, %v4120
  %v4122 = vlaneseq
  %v4123 = vshrl.u32 %v4122, 7
  %v4124 = vsub.s32 %v1071, %v4123
  %v4125 = vrot.slane %v4030, %v4124
  %v4126 = vlaneseq
  %v4127 = vshrl.u32 %v4126, 7
  %v4128 = vsub.s32 %v1071, %v4127
  %v4129 = vrot.slane %v4031, %v4128
  %v4130 = vlaneseq
  %v4131 = vshrl.u32 %v4130, 7
  %v4132 = vsub.s32 %v1071, %v4131
  %v4133 = vrot.slane %v4032, %v4132
  %v4134 = vlaneseq
  %v4135 = vshrl.u32 %v4134, 7
  %v4136 = vsub.s32 %v1071, %v4135
  %v4137 = vrot.slane %v4033, %v4136
  %v4138 = vlaneseq
  %v4139 = vshrl.u32 %v4138, 7
  %v4140 = vsub.s32 %v1071, %v4139
  %v4141 = vrot.slane %v4034, %v4140
  %v4142 = vlaneseq
  %v4143 = vshrl.u32 %v4142, 7
  %v4144 = vsub.s32 %v1071, %v4143
  %v4145 = vrot.slane %v4035, %v4144
  %v4146 = vlaneseq
  %v4147 = vshrl.u32 %v4146, 7
  %v4148 = vsub.s32 %v1071, %v4147
  %v4149 = vrot.slane %v4036, %v4148
  %v4150 = vlaneseq
  %v4151 = vshrl.u32 %v4150, 7
  %v4152 = vsub.s32 %v1071, %v4151
  %v4153 = vrot.slane %v4037, %v4152
  %v4154 = vlaneseq
  %v4155 = vshrl.u32 %v4154, 7
  %v4156 = vsub.s32 %v1071, %v4155
  %v4157 = vrot.slane %v4038, %v4156
  %v4158 = vlaneseq
  %v4159 = vshrl.u32 %v4158, 7
  %v4160 = vsub.s32 %v1071, %v4159
  %v4161 = vrot.slane %v4039, %v4160
  %v4162 = vlaneseq
  %v4163 = vshrl.u32 %v4162, 7
  %v4164 = vsub.s32 %v1071, %v4163
  %v4165 = vrot.slane %v4040, %v4164
  %v4166 = vlaneseq
  %v4167 = vshrl.u32 %v4166, 7
  %v4168 = vsub.s32 %v1071, %v4167
  %v4169 = vrot.slane %v4041, %v4168
  %v4170 = vlaneseq
  %v4171 = vshrl.u32 %v4170, 7
  %v4172 = vsub.s32 %v1071, %v4171
  %v4173 = vrot.slane %v4042, %v4172
  %v4174 = vlaneseq
  %v4175 = vshrl.u32 %v4174, 7
  %v4176 = vsub.s32 %v1071, %v4175
  %v4177 = vrot.slane %v4043, %v4176
  %v4178 = vlaneseq
  %v4179 = vshrl.u32 %v4178, 7
  %v4180 = vsub.s32 %v1071, %v4179
  %v4181 = vrot.slane %v4044, %v4180
  %v4182 = vlaneseq
  %v4183 = vshrl.u32 %v4182, 7
  %v4184 = vsub.s32 %v1071, %v4183
  %v4185 = vrot.slane %v4045, %v4184
  %v4186 = vlaneseq
  %v4187 = vshrl.u32 %v4186, 7
  %v4188 = vsub.s32 %v1071, %v4187
  %v4189 = vrot.slane %v4046, %v4188
  %v4190 = vlaneseq
  %v4191 = vshrl.u32 %v4190, 7
  %v4192 = vsub.s32 %v1071, %v4191
  %v4193 = vrot.slane %v4047, %v4192
  %v4194 = vlaneseq
  %v4195 = vshrl.u32 %v4194, 7
  %v4196 = vsub.s32 %v1071, %v4195
  %v4197 = vrot.slane %v4048, %v4196
  %v4198 = vlaneseq
  %v4199 = vshrl.u32 %v4198, 7
  %v4200 = vsub.s32 %v1071, %v4199
  %v4201 = vrot.slane %v4049, %v4200
  %v4202 = vlaneseq
  %v4203 = vshrl.u32 %v4202, 7
  %v4204 = vsub.s32 %v1071, %v4203
  %v4205 = vrot.slane %v4050, %v4204
  %v4206 = vlaneseq
  %v4207 = vshrl.u32 %v4206, 7
  %v4208 = vsub.s32 %v1071, %v4207
  %v4209 = vrot.slane %v4051, %v4208
  %v4210 = vlaneseq
  %v4211 = vshrl.u32 %v4210, 7
  %v4212 = vsub.s32 %v1071, %v4211
  %v4213 = vrot.slane %v4052, %v4212
  %v4214 = vsel %vm1489, %v4093, %v4089
  %v4215 = vsel %vm1491, %v4097, %v4214
  %v4216 = vsel %vm1493, %v4101, %v4215
  %v4217 = vsel %vm1495, %v4105, %v4216
  %v4218 = vsel %vm1497, %v4109, %v4217
  %v4219 = vsel %vm1499, %v4113, %v4218
  %v4220 = vsel %vm1501, %v4117, %v4219
  %v4221 = vsel %vm1489, %v4125, %v4121
  %v4222 = vsel %vm1491, %v4129, %v4221
  %v4223 = vsel %vm1493, %v4133, %v4222
  %v4224 = vsel %vm1495, %v4137, %v4223
  %v4225 = vsel %vm1497, %v4141, %v4224
  %v4226 = vsel %vm1499, %v4145, %v4225
  %v4227 = vsel %vm1501, %v4149, %v4226
  %v4228 = vsel %vm1489, %v4157, %v4153
  %v4229 = vsel %vm1491, %v4161, %v4228
  %v4230 = vsel %vm1493, %v4165, %v4229
  %v4231 = vsel %vm1495, %v4169, %v4230
  %v4232 = vsel %vm1497, %v4173, %v4231
  %v4233 = vsel %vm1499, %v4177, %v4232
  %v4234 = vsel %vm1501, %v4181, %v4233
  %v4235 = vsel %vm1489, %v4189, %v4185
  %v4236 = vsel %vm1491, %v4193, %v4235
  %v4237 = vsel %vm1493, %v4197, %v4236
  %v4238 = vsel %vm1495, %v4201, %v4237
  %v4239 = vsel %vm1497, %v4205, %v4238
  %v4240 = vsel %vm1499, %v4209, %v4239
  %v4241 = vsel %vm1501, %v4213, %v4240
  %v4246 = vsel %vm4053, %v4220, -1e+30
  %v4247 = vsel %vm4053, %v4227, -1e+30
  %v4248 = vsel %vm4053, %v4234, -1e+30
  %v4249 = vsel %vm4053, %v4241, -1e+30
  %v4250 = vlaneseq
  %v4251 = vshrl.u32 %v4250, 7
  %v4252 = vsub.s32 7, %v4251
  %v4253 = vrot.slane %v657, %v4252
  %v4254 = vlaneseq
  %v4255 = vshrl.u32 %v4254, 7
  %v4256 = vsub.s32 7, %v4255
  %v4257 = vrot.slane %v663, %v4256
  %v4258 = vlaneseq
  %v4259 = vshrl.u32 %v4258, 7
  %v4260 = vsub.s32 7, %v4259
  %v4261 = vrot.slane %v669, %v4260
  %v4262 = vlaneseq
  %v4263 = vshrl.u32 %v4262, 7
  %v4264 = vsub.s32 7, %v4263
  %v4265 = vrot.slane %v675, %v4264
  %v4266 = vlaneseq
  %v4267 = vshrl.u32 %v4266, 7
  %v4268 = vsub.s32 7, %v4267
  %v4269 = vrot.slane %v681, %v4268
  %v4270 = vlaneseq
  %v4271 = vshrl.u32 %v4270, 7
  %v4272 = vsub.s32 7, %v4271
  %v4273 = vrot.slane %v687, %v4272
  %v4274 = vlaneseq
  %v4275 = vshrl.u32 %v4274, 7
  %v4276 = vsub.s32 7, %v4275
  %v4277 = vrot.slane %v693, %v4276
  %v4278 = vlaneseq
  %v4279 = vshrl.u32 %v4278, 7
  %v4280 = vsub.s32 7, %v4279
  %v4281 = vrot.slane %v699, %v4280
  %v4282 = vlaneseq
  %v4283 = vshrl.u32 %v4282, 7
  %v4284 = vsub.s32 7, %v4283
  %v4285 = vrot.slane %v705, %v4284
  %v4286 = vlaneseq
  %v4287 = vshrl.u32 %v4286, 7
  %v4288 = vsub.s32 7, %v4287
  %v4289 = vrot.slane %v711, %v4288
  %v4290 = vlaneseq
  %v4291 = vshrl.u32 %v4290, 7
  %v4292 = vsub.s32 7, %v4291
  %v4293 = vrot.slane %v717, %v4292
  %v4294 = vlaneseq
  %v4295 = vshrl.u32 %v4294, 7
  %v4296 = vsub.s32 7, %v4295
  %v4297 = vrot.slane %v723, %v4296
  %v4298 = vlaneseq
  %v4299 = vshrl.u32 %v4298, 7
  %v4300 = vsub.s32 7, %v4299
  %v4301 = vrot.slane %v729, %v4300
  %v4302 = vlaneseq
  %v4303 = vshrl.u32 %v4302, 7
  %v4304 = vsub.s32 7, %v4303
  %v4305 = vrot.slane %v735, %v4304
  %v4306 = vlaneseq
  %v4307 = vshrl.u32 %v4306, 7
  %v4308 = vsub.s32 7, %v4307
  %v4309 = vrot.slane %v741, %v4308
  %v4310 = vlaneseq
  %v4311 = vshrl.u32 %v4310, 7
  %v4312 = vsub.s32 7, %v4311
  %v4313 = vrot.slane %v747, %v4312
  %v4314 = vlaneseq
  %v4315 = vshrl.u32 %v4314, 7
  %v4316 = vsub.s32 7, %v4315
  %v4317 = vrot.slane %v753, %v4316
  %v4318 = vlaneseq
  %v4319 = vshrl.u32 %v4318, 7
  %v4320 = vsub.s32 7, %v4319
  %v4321 = vrot.slane %v759, %v4320
  %v4322 = vlaneseq
  %v4323 = vshrl.u32 %v4322, 7
  %v4324 = vsub.s32 7, %v4323
  %v4325 = vrot.slane %v765, %v4324
  %v4326 = vlaneseq
  %v4327 = vshrl.u32 %v4326, 7
  %v4328 = vsub.s32 7, %v4327
  %v4329 = vrot.slane %v771, %v4328
  %v4330 = vlaneseq
  %v4331 = vshrl.u32 %v4330, 7
  %v4332 = vsub.s32 7, %v4331
  %v4333 = vrot.slane %v777, %v4332
  %v4334 = vlaneseq
  %v4335 = vshrl.u32 %v4334, 7
  %v4336 = vsub.s32 7, %v4335
  %v4337 = vrot.slane %v783, %v4336
  %v4338 = vlaneseq
  %v4339 = vshrl.u32 %v4338, 7
  %v4340 = vsub.s32 7, %v4339
  %v4341 = vrot.slane %v789, %v4340
  %v4342 = vlaneseq
  %v4343 = vshrl.u32 %v4342, 7
  %v4344 = vsub.s32 7, %v4343
  %v4345 = vrot.slane %v795, %v4344
  %v4346 = vlaneseq
  %v4347 = vshrl.u32 %v4346, 7
  %v4348 = vsub.s32 7, %v4347
  %v4349 = vrot.slane %v801, %v4348
  %v4350 = vlaneseq
  %v4351 = vshrl.u32 %v4350, 7
  %v4352 = vsub.s32 7, %v4351
  %v4353 = vrot.slane %v807, %v4352
  %v4354 = vlaneseq
  %v4355 = vshrl.u32 %v4354, 7
  %v4356 = vsub.s32 7, %v4355
  %v4357 = vrot.slane %v813, %v4356
  %v4358 = vlaneseq
  %v4359 = vshrl.u32 %v4358, 7
  %v4360 = vsub.s32 7, %v4359
  %v4361 = vrot.slane %v819, %v4360
  %v4362 = vlaneseq
  %v4363 = vshrl.u32 %v4362, 7
  %v4364 = vsub.s32 7, %v4363
  %v4365 = vrot.slane %v825, %v4364
  %v4366 = vlaneseq
  %v4367 = vshrl.u32 %v4366, 7
  %v4368 = vsub.s32 7, %v4367
  %v4369 = vrot.slane %v831, %v4368
  %v4370 = vlaneseq
  %v4371 = vshrl.u32 %v4370, 7
  %v4372 = vsub.s32 7, %v4371
  %v4373 = vrot.slane %v837, %v4372
  %v4374 = vlaneseq
  %v4375 = vshrl.u32 %v4374, 7
  %v4376 = vsub.s32 7, %v4375
  %v4377 = vrot.slane %v843, %v4376
  %v4378 = vmul.f32 %v655, %v4253
  %v4379 = vmul.f32 %v661, %v4257
  %v4380 = vmul.f32 %v667, %v4261
  %v4381 = vmul.f32 %v673, %v4265
  %v4382 = vmul.f32 %v679, %v4269
  %v4383 = vmul.f32 %v685, %v4273
  %v4384 = vmul.f32 %v691, %v4277
  %v4385 = vmul.f32 %v697, %v4281
  %v4386 = vmul.f32 %v703, %v4285
  %v4387 = vmul.f32 %v709, %v4289
  %v4388 = vmul.f32 %v715, %v4293
  %v4389 = vmul.f32 %v721, %v4297
  %v4390 = vmul.f32 %v727, %v4301
  %v4391 = vmul.f32 %v733, %v4305
  %v4392 = vmul.f32 %v739, %v4309
  %v4393 = vmul.f32 %v745, %v4313
  %v4394 = vmul.f32 %v751, %v4317
  %v4395 = vmul.f32 %v757, %v4321
  %v4396 = vmul.f32 %v763, %v4325
  %v4397 = vmul.f32 %v769, %v4329
  %v4398 = vmul.f32 %v775, %v4333
  %v4399 = vmul.f32 %v781, %v4337
  %v4400 = vmul.f32 %v787, %v4341
  %v4401 = vmul.f32 %v793, %v4345
  %v4402 = vmul.f32 %v799, %v4349
  %v4403 = vmul.f32 %v805, %v4353
  %v4404 = vmul.f32 %v811, %v4357
  %v4405 = vmul.f32 %v817, %v4361
  %v4406 = vmul.f32 %v823, %v4365
  %v4407 = vmul.f32 %v829, %v4369
  %v4408 = vmul.f32 %v835, %v4373
  %v4409 = vmul.f32 %v841, %v4377
  %4410 = vadd.xlane.f32.xlu0 %v4378
  %v4411 = vpop.xlane.xlu0 %4410
  %4412 = vadd.xlane.f32.xlu0 %v4379
  %v4413 = vpop.xlane.xlu0 %4412
  %4414 = vadd.xlane.f32.xlu0 %v4380
  %v4415 = vpop.xlane.xlu0 %4414
  %4416 = vadd.xlane.f32.xlu0 %v4381
  %v4417 = vpop.xlane.xlu0 %4416
  %4418 = vadd.xlane.f32.xlu0 %v4382
  %v4419 = vpop.xlane.xlu0 %4418
  %4420 = vadd.xlane.f32.xlu0 %v4383
  %v4421 = vpop.xlane.xlu0 %4420
  %4422 = vadd.xlane.f32.xlu0 %v4384
  %v4423 = vpop.xlane.xlu0 %4422
  %4424 = vadd.xlane.f32.xlu0 %v4385
  %v4425 = vpop.xlane.xlu0 %4424
  %4426 = vadd.xlane.f32.xlu0 %v4386
  %v4427 = vpop.xlane.xlu0 %4426
  %4428 = vadd.xlane.f32.xlu0 %v4387
  %v4429 = vpop.xlane.xlu0 %4428
  %4430 = vadd.xlane.f32.xlu0 %v4388
  %v4431 = vpop.xlane.xlu0 %4430
  %4432 = vadd.xlane.f32.xlu0 %v4389
  %v4433 = vpop.xlane.xlu0 %4432
  %4434 = vadd.xlane.f32.xlu0 %v4390
  %v4435 = vpop.xlane.xlu0 %4434
  %4436 = vadd.xlane.f32.xlu0 %v4391
  %v4437 = vpop.xlane.xlu0 %4436
  %4438 = vadd.xlane.f32.xlu0 %v4392
  %v4439 = vpop.xlane.xlu0 %4438
  %4440 = vadd.xlane.f32.xlu0 %v4393
  %v4441 = vpop.xlane.xlu0 %4440
  %4442 = vadd.xlane.f32.xlu0 %v4394
  %v4443 = vpop.xlane.xlu0 %4442
  %4444 = vadd.xlane.f32.xlu0 %v4395
  %v4445 = vpop.xlane.xlu0 %4444
  %4446 = vadd.xlane.f32.xlu0 %v4396
  %v4447 = vpop.xlane.xlu0 %4446
  %4448 = vadd.xlane.f32.xlu0 %v4397
  %v4449 = vpop.xlane.xlu0 %4448
  %4450 = vadd.xlane.f32.xlu0 %v4398
  %v4451 = vpop.xlane.xlu0 %4450
  %4452 = vadd.xlane.f32.xlu0 %v4399
  %v4453 = vpop.xlane.xlu0 %4452
  %4454 = vadd.xlane.f32.xlu0 %v4400
  %v4455 = vpop.xlane.xlu0 %4454
  %4456 = vadd.xlane.f32.xlu0 %v4401
  %v4457 = vpop.xlane.xlu0 %4456
  %4458 = vadd.xlane.f32.xlu0 %v4402
  %v4459 = vpop.xlane.xlu0 %4458
  %4460 = vadd.xlane.f32.xlu0 %v4403
  %v4461 = vpop.xlane.xlu0 %4460
  %4462 = vadd.xlane.f32.xlu0 %v4404
  %v4463 = vpop.xlane.xlu0 %4462
  %4464 = vadd.xlane.f32.xlu0 %v4405
  %v4465 = vpop.xlane.xlu0 %4464
  %4466 = vadd.xlane.f32.xlu0 %v4406
  %v4467 = vpop.xlane.xlu0 %4466
  %4468 = vadd.xlane.f32.xlu0 %v4407
  %v4469 = vpop.xlane.xlu0 %4468
  %4470 = vadd.xlane.f32.xlu0 %v4408
  %v4471 = vpop.xlane.xlu0 %4470
  %4472 = vadd.xlane.f32.xlu0 %v4409
  %v4473 = vpop.xlane.xlu0 %4472
  %v4474 = vmul.f32 %v4411, 0.088388346
  %v4475 = vmul.f32 %v4413, 0.088388346
  %v4476 = vmul.f32 %v4415, 0.088388346
  %v4477 = vmul.f32 %v4417, 0.088388346
  %v4478 = vmul.f32 %v4419, 0.088388346
  %v4479 = vmul.f32 %v4421, 0.088388346
  %v4480 = vmul.f32 %v4423, 0.088388346
  %v4481 = vmul.f32 %v4425, 0.088388346
  %v4482 = vmul.f32 %v4427, 0.088388346
  %v4483 = vmul.f32 %v4429, 0.088388346
  %v4484 = vmul.f32 %v4431, 0.088388346
  %v4485 = vmul.f32 %v4433, 0.088388346
  %v4486 = vmul.f32 %v4435, 0.088388346
  %v4487 = vmul.f32 %v4437, 0.088388346
  %v4488 = vmul.f32 %v4439, 0.088388346
  %v4489 = vmul.f32 %v4441, 0.088388346
  %v4490 = vmul.f32 %v4443, 0.088388346
  %v4491 = vmul.f32 %v4445, 0.088388346
  %v4492 = vmul.f32 %v4447, 0.088388346
  %v4493 = vmul.f32 %v4449, 0.088388346
  %v4494 = vmul.f32 %v4451, 0.088388346
  %v4495 = vmul.f32 %v4453, 0.088388346
  %v4496 = vmul.f32 %v4455, 0.088388346
  %v4497 = vmul.f32 %v4457, 0.088388346
  %v4498 = vmul.f32 %v4459, 0.088388346
  %v4499 = vmul.f32 %v4461, 0.088388346
  %v4500 = vmul.f32 %v4463, 0.088388346
  %v4501 = vmul.f32 %v4465, 0.088388346
  %v4502 = vmul.f32 %v4467, 0.088388346
  %v4503 = vmul.f32 %v4469, 0.088388346
  %v4504 = vmul.f32 %v4471, 0.088388346
  %v4505 = vmul.f32 %v4473, 0.088388346
  %vm4506 = vcmp.ge.s32.totalorder %v1071, 7
  %v4539 = vlaneseq
  %v4540 = vshrl.u32 %v4539, 7
  %v4541 = vsub.s32 %v1071, %v4540
  %v4542 = vrot.slane %v4474, %v4541
  %v4543 = vlaneseq
  %v4544 = vshrl.u32 %v4543, 7
  %v4545 = vsub.s32 %v1071, %v4544
  %v4546 = vrot.slane %v4475, %v4545
  %v4547 = vlaneseq
  %v4548 = vshrl.u32 %v4547, 7
  %v4549 = vsub.s32 %v1071, %v4548
  %v4550 = vrot.slane %v4476, %v4549
  %v4551 = vlaneseq
  %v4552 = vshrl.u32 %v4551, 7
  %v4553 = vsub.s32 %v1071, %v4552
  %v4554 = vrot.slane %v4477, %v4553
  %v4555 = vlaneseq
  %v4556 = vshrl.u32 %v4555, 7
  %v4557 = vsub.s32 %v1071, %v4556
  %v4558 = vrot.slane %v4478, %v4557
  %v4559 = vlaneseq
  %v4560 = vshrl.u32 %v4559, 7
  %v4561 = vsub.s32 %v1071, %v4560
  %v4562 = vrot.slane %v4479, %v4561
  %v4563 = vlaneseq
  %v4564 = vshrl.u32 %v4563, 7
  %v4565 = vsub.s32 %v1071, %v4564
  %v4566 = vrot.slane %v4480, %v4565
  %v4567 = vlaneseq
  %v4568 = vshrl.u32 %v4567, 7
  %v4569 = vsub.s32 %v1071, %v4568
  %v4570 = vrot.slane %v4481, %v4569
  %v4571 = vlaneseq
  %v4572 = vshrl.u32 %v4571, 7
  %v4573 = vsub.s32 %v1071, %v4572
  %v4574 = vrot.slane %v4482, %v4573
  %v4575 = vlaneseq
  %v4576 = vshrl.u32 %v4575, 7
  %v4577 = vsub.s32 %v1071, %v4576
  %v4578 = vrot.slane %v4483, %v4577
  %v4579 = vlaneseq
  %v4580 = vshrl.u32 %v4579, 7
  %v4581 = vsub.s32 %v1071, %v4580
  %v4582 = vrot.slane %v4484, %v4581
  %v4583 = vlaneseq
  %v4584 = vshrl.u32 %v4583, 7
  %v4585 = vsub.s32 %v1071, %v4584
  %v4586 = vrot.slane %v4485, %v4585
  %v4587 = vlaneseq
  %v4588 = vshrl.u32 %v4587, 7
  %v4589 = vsub.s32 %v1071, %v4588
  %v4590 = vrot.slane %v4486, %v4589
  %v4591 = vlaneseq
  %v4592 = vshrl.u32 %v4591, 7
  %v4593 = vsub.s32 %v1071, %v4592
  %v4594 = vrot.slane %v4487, %v4593
  %v4595 = vlaneseq
  %v4596 = vshrl.u32 %v4595, 7
  %v4597 = vsub.s32 %v1071, %v4596
  %v4598 = vrot.slane %v4488, %v4597
  %v4599 = vlaneseq
  %v4600 = vshrl.u32 %v4599, 7
  %v4601 = vsub.s32 %v1071, %v4600
  %v4602 = vrot.slane %v4489, %v4601
  %v4603 = vlaneseq
  %v4604 = vshrl.u32 %v4603, 7
  %v4605 = vsub.s32 %v1071, %v4604
  %v4606 = vrot.slane %v4490, %v4605
  %v4607 = vlaneseq
  %v4608 = vshrl.u32 %v4607, 7
  %v4609 = vsub.s32 %v1071, %v4608
  %v4610 = vrot.slane %v4491, %v4609
  %v4611 = vlaneseq
  %v4612 = vshrl.u32 %v4611, 7
  %v4613 = vsub.s32 %v1071, %v4612
  %v4614 = vrot.slane %v4492, %v4613
  %v4615 = vlaneseq
  %v4616 = vshrl.u32 %v4615, 7
  %v4617 = vsub.s32 %v1071, %v4616
  %v4618 = vrot.slane %v4493, %v4617
  %v4619 = vlaneseq
  %v4620 = vshrl.u32 %v4619, 7
  %v4621 = vsub.s32 %v1071, %v4620
  %v4622 = vrot.slane %v4494, %v4621
  %v4623 = vlaneseq
  %v4624 = vshrl.u32 %v4623, 7
  %v4625 = vsub.s32 %v1071, %v4624
  %v4626 = vrot.slane %v4495, %v4625
  %v4627 = vlaneseq
  %v4628 = vshrl.u32 %v4627, 7
  %v4629 = vsub.s32 %v1071, %v4628
  %v4630 = vrot.slane %v4496, %v4629
  %v4631 = vlaneseq
  %v4632 = vshrl.u32 %v4631, 7
  %v4633 = vsub.s32 %v1071, %v4632
  %v4634 = vrot.slane %v4497, %v4633
  %v4635 = vlaneseq
  %v4636 = vshrl.u32 %v4635, 7
  %v4637 = vsub.s32 %v1071, %v4636
  %v4638 = vrot.slane %v4498, %v4637
  %v4639 = vlaneseq
  %v4640 = vshrl.u32 %v4639, 7
  %v4641 = vsub.s32 %v1071, %v4640
  %v4642 = vrot.slane %v4499, %v4641
  %v4643 = vlaneseq
  %v4644 = vshrl.u32 %v4643, 7
  %v4645 = vsub.s32 %v1071, %v4644
  %v4646 = vrot.slane %v4500, %v4645
  %v4647 = vlaneseq
  %v4648 = vshrl.u32 %v4647, 7
  %v4649 = vsub.s32 %v1071, %v4648
  %v4650 = vrot.slane %v4501, %v4649
  %v4651 = vlaneseq
  %v4652 = vshrl.u32 %v4651, 7
  %v4653 = vsub.s32 %v1071, %v4652
  %v4654 = vrot.slane %v4502, %v4653
  %v4655 = vlaneseq
  %v4656 = vshrl.u32 %v4655, 7
  %v4657 = vsub.s32 %v1071, %v4656
  %v4658 = vrot.slane %v4503, %v4657
  %v4659 = vlaneseq
  %v4660 = vshrl.u32 %v4659, 7
  %v4661 = vsub.s32 %v1071, %v4660
  %v4662 = vrot.slane %v4504, %v4661
  %v4663 = vlaneseq
  %v4664 = vshrl.u32 %v4663, 7
  %v4665 = vsub.s32 %v1071, %v4664
  %v4666 = vrot.slane %v4505, %v4665
  %v4667 = vsel %vm1489, %v4546, %v4542
  %v4668 = vsel %vm1491, %v4550, %v4667
  %v4669 = vsel %vm1493, %v4554, %v4668
  %v4670 = vsel %vm1495, %v4558, %v4669
  %v4671 = vsel %vm1497, %v4562, %v4670
  %v4672 = vsel %vm1499, %v4566, %v4671
  %v4673 = vsel %vm1501, %v4570, %v4672
  %v4674 = vsel %vm1489, %v4578, %v4574
  %v4675 = vsel %vm1491, %v4582, %v4674
  %v4676 = vsel %vm1493, %v4586, %v4675
  %v4677 = vsel %vm1495, %v4590, %v4676
  %v4678 = vsel %vm1497, %v4594, %v4677
  %v4679 = vsel %vm1499, %v4598, %v4678
  %v4680 = vsel %vm1501, %v4602, %v4679
  %v4681 = vsel %vm1489, %v4610, %v4606
  %v4682 = vsel %vm1491, %v4614, %v4681
  %v4683 = vsel %vm1493, %v4618, %v4682
  %v4684 = vsel %vm1495, %v4622, %v4683
  %v4685 = vsel %vm1497, %v4626, %v4684
  %v4686 = vsel %vm1499, %v4630, %v4685
  %v4687 = vsel %vm1501, %v4634, %v4686
  %v4688 = vsel %vm1489, %v4642, %v4638
  %v4689 = vsel %vm1491, %v4646, %v4688
  %v4690 = vsel %vm1493, %v4650, %v4689
  %v4691 = vsel %vm1495, %v4654, %v4690
  %v4692 = vsel %vm1497, %v4658, %v4691
  %v4693 = vsel %vm1499, %v4662, %v4692
  %v4694 = vsel %vm1501, %v4666, %v4693
  %v4699 = vsel %vm4506, %v4673, -1e+30
  %v4700 = vsel %vm4506, %v4680, -1e+30
  %v4701 = vsel %vm4506, %v4687, -1e+30
  %v4702 = vsel %vm4506, %v4694, -1e+30
  %v4703 = vmax.f32 %v1528, %v1981
  %v4704 = vmax.f32 %v1529, %v1982
  %v4705 = vmax.f32 %v1530, %v1983
  %v4706 = vmax.f32 %v1531, %v1984
  %v4707 = vmax.f32 %v4703, %v2434
  %v4708 = vmax.f32 %v4704, %v2435
  %v4709 = vmax.f32 %v4705, %v2436
  %v4710 = vmax.f32 %v4706, %v2437
  %v4711 = vmax.f32 %v4707, %v2887
  %v4712 = vmax.f32 %v4708, %v2888
  %v4713 = vmax.f32 %v4709, %v2889
  %v4714 = vmax.f32 %v4710, %v2890
  %v4715 = vmax.f32 %v4711, %v3340
  %v4716 = vmax.f32 %v4712, %v3341
  %v4717 = vmax.f32 %v4713, %v3342
  %v4718 = vmax.f32 %v4714, %v3343
  %v4719 = vmax.f32 %v4715, %v3793
  %v4720 = vmax.f32 %v4716, %v3794
  %v4721 = vmax.f32 %v4717, %v3795
  %v4722 = vmax.f32 %v4718, %v3796
  %v4723 = vmax.f32 %v4719, %v4246
  %v4724 = vmax.f32 %v4720, %v4247
  %v4725 = vmax.f32 %v4721, %v4248
  %v4726 = vmax.f32 %v4722, %v4249
  %v4727 = vmax.f32 %v4723, %v4699
  %v4728 = vmax.f32 %v4724, %v4700
  %v4729 = vmax.f32 %v4725, %v4701
  %v4730 = vmax.f32 %v4726, %v4702
  %v4731 = vsub.f32 %v1528, %v4727
  %v4732 = vsub.f32 %v1529, %v4728
  %v4733 = vsub.f32 %v1530, %v4729
  %v4734 = vsub.f32 %v1531, %v4730
  %v4735 = vmul.f32 %v4731, 1.442695
  %v4736 = vpow.pop %v4735
  %v4737 = vmul.f32 %v4732, 1.442695
  %v4738 = vpow.pop %v4737
  %v4739 = vmul.f32 %v4733, 1.442695
  %v4740 = vpow.pop %v4739
  %v4741 = vmul.f32 %v4734, 1.442695
  %v4742 = vpow.pop %v4741
  %v4743 = vsub.f32 %v1981, %v4727
  %v4744 = vsub.f32 %v1982, %v4728
  %v4745 = vsub.f32 %v1983, %v4729
  %v4746 = vsub.f32 %v1984, %v4730
  %v4747 = vmul.f32 %v4743, 1.442695
  %v4748 = vpow.pop %v4747
  %v4749 = vmul.f32 %v4744, 1.442695
  %v4750 = vpow.pop %v4749
  %v4751 = vmul.f32 %v4745, 1.442695
  %v4752 = vpow.pop %v4751
  %v4753 = vmul.f32 %v4746, 1.442695
  %v4754 = vpow.pop %v4753
  %v4755 = vsub.f32 %v2434, %v4727
  %v4756 = vsub.f32 %v2435, %v4728
  %v4757 = vsub.f32 %v2436, %v4729
  %v4758 = vsub.f32 %v2437, %v4730
  %v4759 = vmul.f32 %v4755, 1.442695
  %v4760 = vpow.pop %v4759
  %v4761 = vmul.f32 %v4756, 1.442695
  %v4762 = vpow.pop %v4761
  %v4763 = vmul.f32 %v4757, 1.442695
  %v4764 = vpow.pop %v4763
  %v4765 = vmul.f32 %v4758, 1.442695
  %v4766 = vpow.pop %v4765
  %v4767 = vsub.f32 %v2887, %v4727
  %v4768 = vsub.f32 %v2888, %v4728
  %v4769 = vsub.f32 %v2889, %v4729
  %v4770 = vsub.f32 %v2890, %v4730
  %v4771 = vmul.f32 %v4767, 1.442695
  %v4772 = vpow.pop %v4771
  %v4773 = vmul.f32 %v4768, 1.442695
  %v4774 = vpow.pop %v4773
  %v4775 = vmul.f32 %v4769, 1.442695
  %v4776 = vpow.pop %v4775
  %v4777 = vmul.f32 %v4770, 1.442695
  %v4778 = vpow.pop %v4777
  %v4779 = vsub.f32 %v3340, %v4727
  %v4780 = vsub.f32 %v3341, %v4728
  %v4781 = vsub.f32 %v3342, %v4729
  %v4782 = vsub.f32 %v3343, %v4730
  %v4783 = vmul.f32 %v4779, 1.442695
  %v4784 = vpow.pop %v4783
  %v4785 = vmul.f32 %v4780, 1.442695
  %v4786 = vpow.pop %v4785
  %v4787 = vmul.f32 %v4781, 1.442695
  %v4788 = vpow.pop %v4787
  %v4789 = vmul.f32 %v4782, 1.442695
  %v4790 = vpow.pop %v4789
  %v4791 = vsub.f32 %v3793, %v4727
  %v4792 = vsub.f32 %v3794, %v4728
  %v4793 = vsub.f32 %v3795, %v4729
  %v4794 = vsub.f32 %v3796, %v4730
  %v4795 = vmul.f32 %v4791, 1.442695
  %v4796 = vpow.pop %v4795
  %v4797 = vmul.f32 %v4792, 1.442695
  %v4798 = vpow.pop %v4797
  %v4799 = vmul.f32 %v4793, 1.442695
  %v4800 = vpow.pop %v4799
  %v4801 = vmul.f32 %v4794, 1.442695
  %v4802 = vpow.pop %v4801
  %v4803 = vsub.f32 %v4246, %v4727
  %v4804 = vsub.f32 %v4247, %v4728
  %v4805 = vsub.f32 %v4248, %v4729
  %v4806 = vsub.f32 %v4249, %v4730
  %v4807 = vmul.f32 %v4803, 1.442695
  %v4808 = vpow.pop %v4807
  %v4809 = vmul.f32 %v4804, 1.442695
  %v4810 = vpow.pop %v4809
  %v4811 = vmul.f32 %v4805, 1.442695
  %v4812 = vpow.pop %v4811
  %v4813 = vmul.f32 %v4806, 1.442695
  %v4814 = vpow.pop %v4813
  %v4815 = vsub.f32 %v4699, %v4727
  %v4816 = vsub.f32 %v4700, %v4728
  %v4817 = vsub.f32 %v4701, %v4729
  %v4818 = vsub.f32 %v4702, %v4730
  %v4819 = vmul.f32 %v4815, 1.442695
  %v4820 = vpow.pop %v4819
  %v4821 = vmul.f32 %v4816, 1.442695
  %v4822 = vpow.pop %v4821
  %v4823 = vmul.f32 %v4817, 1.442695
  %v4824 = vpow.pop %v4823
  %v4825 = vmul.f32 %v4818, 1.442695
  %v4826 = vpow.pop %v4825
  %v4827 = vadd.f32 %v4736, %v4748
  %v4828 = vadd.f32 %v4738, %v4750
  %v4829 = vadd.f32 %v4740, %v4752
  %v4830 = vadd.f32 %v4742, %v4754
  %v4831 = vadd.f32 %v4827, %v4760
  %v4832 = vadd.f32 %v4828, %v4762
  %v4833 = vadd.f32 %v4829, %v4764
  %v4834 = vadd.f32 %v4830, %v4766
  %v4835 = vadd.f32 %v4831, %v4772
  %v4836 = vadd.f32 %v4832, %v4774
  %v4837 = vadd.f32 %v4833, %v4776
  %v4838 = vadd.f32 %v4834, %v4778
  %v4839 = vadd.f32 %v4835, %v4784
  %v4840 = vadd.f32 %v4836, %v4786
  %v4841 = vadd.f32 %v4837, %v4788
  %v4842 = vadd.f32 %v4838, %v4790
  %v4843 = vadd.f32 %v4839, %v4796
  %v4844 = vadd.f32 %v4840, %v4798
  %v4845 = vadd.f32 %v4841, %v4800
  %v4846 = vadd.f32 %v4842, %v4802
  %v4847 = vadd.f32 %v4843, %v4808
  %v4848 = vadd.f32 %v4844, %v4810
  %v4849 = vadd.f32 %v4845, %v4812
  %v4850 = vadd.f32 %v4846, %v4814
  %v4851 = vadd.f32 %v4847, %v4820
  %v4852 = vadd.f32 %v4848, %v4822
  %v4853 = vadd.f32 %v4849, %v4824
  %v4854 = vadd.f32 %v4850, %v4826
  %v4855 = vrcp.pop %v4851
  %v4856 = vrcp.pop %v4852
  %v4857 = vrcp.pop %v4853
  %v4858 = vrcp.pop %v4854
  %v4859 = vmul.f32 %v4851, %v4855
  %v4860 = vmul.f32 %v4852, %v4856
  %v4861 = vmul.f32 %v4853, %v4857
  %v4862 = vmul.f32 %v4854, %v4858
  %v4863 = vsub.f32 2.0, %v4859
  %v4864 = vsub.f32 2.0, %v4860
  %v4865 = vsub.f32 2.0, %v4861
  %v4866 = vsub.f32 2.0, %v4862
  %v4867 = vmul.f32 %v4855, %v4863
  %v4868 = vmul.f32 %v4856, %v4864
  %v4869 = vmul.f32 %v4857, %v4865
  %v4870 = vmul.f32 %v4858, %v4866
  %v4871 = vmul.f32 %v4736, %v4867
  %v4872 = vmul.f32 %v4738, %v4868
  %v4873 = vmul.f32 %v4740, %v4869
  %v4874 = vmul.f32 %v4742, %v4870
  %v4875 = vlaneseq
  %v4876 = vshrl.u32 %v4875, 7
  %v4877 = vsub.s32 0, %v4876
  %v4878 = vrot.slane %v4871, %v4877
  %4880 = vbcast.lane.b32.xlu0 %v4878, 256
  %v4881 = vpop.permute.xlu0 %4880
  %v4882 = vlaneseq
  %v4883 = vshrl.u32 %v4882, 7
  %v4884 = vsub.s32 1, %v4883
  %v4885 = vrot.slane %v4871, %v4884
  %4887 = vbcast.lane.b32.xlu0 %v4885, 256
  %v4888 = vpop.permute.xlu0 %4887
  %v4889 = vlaneseq
  %v4890 = vshrl.u32 %v4889, 7
  %v4891 = vsub.s32 2, %v4890
  %v4892 = vrot.slane %v4871, %v4891
  %4894 = vbcast.lane.b32.xlu0 %v4892, 256
  %v4895 = vpop.permute.xlu0 %4894
  %v4896 = vlaneseq
  %v4897 = vshrl.u32 %v4896, 7
  %v4898 = vsub.s32 3, %v4897
  %v4899 = vrot.slane %v4871, %v4898
  %4901 = vbcast.lane.b32.xlu0 %v4899, 256
  %v4902 = vpop.permute.xlu0 %4901
  %v4903 = vlaneseq
  %v4904 = vshrl.u32 %v4903, 7
  %v4905 = vsub.s32 4, %v4904
  %v4906 = vrot.slane %v4871, %v4905
  %4908 = vbcast.lane.b32.xlu0 %v4906, 256
  %v4909 = vpop.permute.xlu0 %4908
  %v4910 = vlaneseq
  %v4911 = vshrl.u32 %v4910, 7
  %v4912 = vsub.s32 5, %v4911
  %v4913 = vrot.slane %v4871, %v4912
  %4915 = vbcast.lane.b32.xlu0 %v4913, 256
  %v4916 = vpop.permute.xlu0 %4915
  %v4917 = vlaneseq
  %v4918 = vshrl.u32 %v4917, 7
  %v4919 = vsub.s32 6, %v4918
  %v4920 = vrot.slane %v4871, %v4919
  %4922 = vbcast.lane.b32.xlu0 %v4920, 256
  %v4923 = vpop.permute.xlu0 %4922
  %v4924 = vlaneseq
  %v4925 = vshrl.u32 %v4924, 7
  %v4926 = vsub.s32 7, %v4925
  %v4927 = vrot.slane %v4871, %v4926
  %4929 = vbcast.lane.b32.xlu0 %v4927, 256
  %v4930 = vpop.permute.xlu0 %4929
  %v4931 = vlaneseq
  %v4932 = vshrl.u32 %v4931, 7
  %v4933 = vsub.s32 0, %v4932
  %v4934 = vrot.slane %v4872, %v4933
  %4936 = vbcast.lane.b32.xlu0 %v4934, 256
  %v4937 = vpop.permute.xlu0 %4936
  %v4938 = vlaneseq
  %v4939 = vshrl.u32 %v4938, 7
  %v4940 = vsub.s32 1, %v4939
  %v4941 = vrot.slane %v4872, %v4940
  %4943 = vbcast.lane.b32.xlu0 %v4941, 256
  %v4944 = vpop.permute.xlu0 %4943
  %v4945 = vlaneseq
  %v4946 = vshrl.u32 %v4945, 7
  %v4947 = vsub.s32 2, %v4946
  %v4948 = vrot.slane %v4872, %v4947
  %4950 = vbcast.lane.b32.xlu0 %v4948, 256
  %v4951 = vpop.permute.xlu0 %4950
  %v4952 = vlaneseq
  %v4953 = vshrl.u32 %v4952, 7
  %v4954 = vsub.s32 3, %v4953
  %v4955 = vrot.slane %v4872, %v4954
  %4957 = vbcast.lane.b32.xlu0 %v4955, 256
  %v4958 = vpop.permute.xlu0 %4957
  %v4959 = vlaneseq
  %v4960 = vshrl.u32 %v4959, 7
  %v4961 = vsub.s32 4, %v4960
  %v4962 = vrot.slane %v4872, %v4961
  %4964 = vbcast.lane.b32.xlu0 %v4962, 256
  %v4965 = vpop.permute.xlu0 %4964
  %v4966 = vlaneseq
  %v4967 = vshrl.u32 %v4966, 7
  %v4968 = vsub.s32 5, %v4967
  %v4969 = vrot.slane %v4872, %v4968
  %4971 = vbcast.lane.b32.xlu0 %v4969, 256
  %v4972 = vpop.permute.xlu0 %4971
  %v4973 = vlaneseq
  %v4974 = vshrl.u32 %v4973, 7
  %v4975 = vsub.s32 6, %v4974
  %v4976 = vrot.slane %v4872, %v4975
  %4978 = vbcast.lane.b32.xlu0 %v4976, 256
  %v4979 = vpop.permute.xlu0 %4978
  %v4980 = vlaneseq
  %v4981 = vshrl.u32 %v4980, 7
  %v4982 = vsub.s32 7, %v4981
  %v4983 = vrot.slane %v4872, %v4982
  %4985 = vbcast.lane.b32.xlu0 %v4983, 256
  %v4986 = vpop.permute.xlu0 %4985
  %v4987 = vlaneseq
  %v4988 = vshrl.u32 %v4987, 7
  %v4989 = vsub.s32 0, %v4988
  %v4990 = vrot.slane %v4873, %v4989
  %4992 = vbcast.lane.b32.xlu0 %v4990, 256
  %v4993 = vpop.permute.xlu0 %4992
  %v4994 = vlaneseq
  %v4995 = vshrl.u32 %v4994, 7
  %v4996 = vsub.s32 1, %v4995
  %v4997 = vrot.slane %v4873, %v4996
  %4999 = vbcast.lane.b32.xlu0 %v4997, 256
  %v5000 = vpop.permute.xlu0 %4999
  %v5001 = vlaneseq
  %v5002 = vshrl.u32 %v5001, 7
  %v5003 = vsub.s32 2, %v5002
  %v5004 = vrot.slane %v4873, %v5003
  %5006 = vbcast.lane.b32.xlu0 %v5004, 256
  %v5007 = vpop.permute.xlu0 %5006
  %v5008 = vlaneseq
  %v5009 = vshrl.u32 %v5008, 7
  %v5010 = vsub.s32 3, %v5009
  %v5011 = vrot.slane %v4873, %v5010
  %5013 = vbcast.lane.b32.xlu0 %v5011, 256
  %v5014 = vpop.permute.xlu0 %5013
  %v5015 = vlaneseq
  %v5016 = vshrl.u32 %v5015, 7
  %v5017 = vsub.s32 4, %v5016
  %v5018 = vrot.slane %v4873, %v5017
  %5020 = vbcast.lane.b32.xlu0 %v5018, 256
  %v5021 = vpop.permute.xlu0 %5020
  %v5022 = vlaneseq
  %v5023 = vshrl.u32 %v5022, 7
  %v5024 = vsub.s32 5, %v5023
  %v5025 = vrot.slane %v4873, %v5024
  %5027 = vbcast.lane.b32.xlu0 %v5025, 256
  %v5028 = vpop.permute.xlu0 %5027
  %v5029 = vlaneseq
  %v5030 = vshrl.u32 %v5029, 7
  %v5031 = vsub.s32 6, %v5030
  %v5032 = vrot.slane %v4873, %v5031
  %5034 = vbcast.lane.b32.xlu0 %v5032, 256
  %v5035 = vpop.permute.xlu0 %5034
  %v5036 = vlaneseq
  %v5037 = vshrl.u32 %v5036, 7
  %v5038 = vsub.s32 7, %v5037
  %v5039 = vrot.slane %v4873, %v5038
  %5041 = vbcast.lane.b32.xlu0 %v5039, 256
  %v5042 = vpop.permute.xlu0 %5041
  %v5043 = vlaneseq
  %v5044 = vshrl.u32 %v5043, 7
  %v5045 = vsub.s32 0, %v5044
  %v5046 = vrot.slane %v4874, %v5045
  %5048 = vbcast.lane.b32.xlu0 %v5046, 256
  %v5049 = vpop.permute.xlu0 %5048
  %v5050 = vlaneseq
  %v5051 = vshrl.u32 %v5050, 7
  %v5052 = vsub.s32 1, %v5051
  %v5053 = vrot.slane %v4874, %v5052
  %5055 = vbcast.lane.b32.xlu0 %v5053, 256
  %v5056 = vpop.permute.xlu0 %5055
  %v5057 = vlaneseq
  %v5058 = vshrl.u32 %v5057, 7
  %v5059 = vsub.s32 2, %v5058
  %v5060 = vrot.slane %v4874, %v5059
  %5062 = vbcast.lane.b32.xlu0 %v5060, 256
  %v5063 = vpop.permute.xlu0 %5062
  %v5064 = vlaneseq
  %v5065 = vshrl.u32 %v5064, 7
  %v5066 = vsub.s32 3, %v5065
  %v5067 = vrot.slane %v4874, %v5066
  %5069 = vbcast.lane.b32.xlu0 %v5067, 256
  %v5070 = vpop.permute.xlu0 %5069
  %v5071 = vlaneseq
  %v5072 = vshrl.u32 %v5071, 7
  %v5073 = vsub.s32 4, %v5072
  %v5074 = vrot.slane %v4874, %v5073
  %5076 = vbcast.lane.b32.xlu0 %v5074, 256
  %v5077 = vpop.permute.xlu0 %5076
  %v5078 = vlaneseq
  %v5079 = vshrl.u32 %v5078, 7
  %v5080 = vsub.s32 5, %v5079
  %v5081 = vrot.slane %v4874, %v5080
  %5083 = vbcast.lane.b32.xlu0 %v5081, 256
  %v5084 = vpop.permute.xlu0 %5083
  %v5085 = vlaneseq
  %v5086 = vshrl.u32 %v5085, 7
  %v5087 = vsub.s32 6, %v5086
  %v5088 = vrot.slane %v4874, %v5087
  %5090 = vbcast.lane.b32.xlu0 %v5088, 256
  %v5091 = vpop.permute.xlu0 %5090
  %v5092 = vlaneseq
  %v5093 = vshrl.u32 %v5092, 7
  %v5094 = vsub.s32 7, %v5093
  %v5095 = vrot.slane %v4874, %v5094
  %5097 = vbcast.lane.b32.xlu0 %v5095, 256
  %v5098 = vpop.permute.xlu0 %5097
  %v5099 = vlaneseq
  %v5100 = vshrl.u32 %v5099, 7
  %v5101 = vsub.s32 0, %v5100
  %v5102 = vrot.slane %v912, %v5101
  %v5103 = vlaneseq
  %v5104 = vshrl.u32 %v5103, 7
  %v5105 = vsub.s32 0, %v5104
  %v5106 = vrot.slane %v917, %v5105
  %v5107 = vlaneseq
  %v5108 = vshrl.u32 %v5107, 7
  %v5109 = vsub.s32 0, %v5108
  %v5110 = vrot.slane %v922, %v5109
  %v5111 = vlaneseq
  %v5112 = vshrl.u32 %v5111, 7
  %v5113 = vsub.s32 0, %v5112
  %v5114 = vrot.slane %v927, %v5113
  %v5115 = vlaneseq
  %v5116 = vshrl.u32 %v5115, 7
  %v5117 = vsub.s32 0, %v5116
  %v5118 = vrot.slane %v932, %v5117
  %v5119 = vlaneseq
  %v5120 = vshrl.u32 %v5119, 7
  %v5121 = vsub.s32 0, %v5120
  %v5122 = vrot.slane %v937, %v5121
  %v5123 = vlaneseq
  %v5124 = vshrl.u32 %v5123, 7
  %v5125 = vsub.s32 0, %v5124
  %v5126 = vrot.slane %v942, %v5125
  %v5127 = vlaneseq
  %v5128 = vshrl.u32 %v5127, 7
  %v5129 = vsub.s32 0, %v5128
  %v5130 = vrot.slane %v947, %v5129
  %v5131 = vlaneseq
  %v5132 = vshrl.u32 %v5131, 7
  %v5133 = vsub.s32 0, %v5132
  %v5134 = vrot.slane %v952, %v5133
  %v5135 = vlaneseq
  %v5136 = vshrl.u32 %v5135, 7
  %v5137 = vsub.s32 0, %v5136
  %v5138 = vrot.slane %v957, %v5137
  %v5139 = vlaneseq
  %v5140 = vshrl.u32 %v5139, 7
  %v5141 = vsub.s32 0, %v5140
  %v5142 = vrot.slane %v962, %v5141
  %v5143 = vlaneseq
  %v5144 = vshrl.u32 %v5143, 7
  %v5145 = vsub.s32 0, %v5144
  %v5146 = vrot.slane %v967, %v5145
  %v5147 = vlaneseq
  %v5148 = vshrl.u32 %v5147, 7
  %v5149 = vsub.s32 0, %v5148
  %v5150 = vrot.slane %v972, %v5149
  %v5151 = vlaneseq
  %v5152 = vshrl.u32 %v5151, 7
  %v5153 = vsub.s32 0, %v5152
  %v5154 = vrot.slane %v977, %v5153
  %v5155 = vlaneseq
  %v5156 = vshrl.u32 %v5155, 7
  %v5157 = vsub.s32 0, %v5156
  %v5158 = vrot.slane %v982, %v5157
  %v5159 = vlaneseq
  %v5160 = vshrl.u32 %v5159, 7
  %v5161 = vsub.s32 0, %v5160
  %v5162 = vrot.slane %v987, %v5161
  %v5163 = vlaneseq
  %v5164 = vshrl.u32 %v5163, 7
  %v5165 = vsub.s32 0, %v5164
  %v5166 = vrot.slane %v992, %v5165
  %v5167 = vlaneseq
  %v5168 = vshrl.u32 %v5167, 7
  %v5169 = vsub.s32 0, %v5168
  %v5170 = vrot.slane %v997, %v5169
  %v5171 = vlaneseq
  %v5172 = vshrl.u32 %v5171, 7
  %v5173 = vsub.s32 0, %v5172
  %v5174 = vrot.slane %v1002, %v5173
  %v5175 = vlaneseq
  %v5176 = vshrl.u32 %v5175, 7
  %v5177 = vsub.s32 0, %v5176
  %v5178 = vrot.slane %v1007, %v5177
  %v5179 = vlaneseq
  %v5180 = vshrl.u32 %v5179, 7
  %v5181 = vsub.s32 0, %v5180
  %v5182 = vrot.slane %v1012, %v5181
  %v5183 = vlaneseq
  %v5184 = vshrl.u32 %v5183, 7
  %v5185 = vsub.s32 0, %v5184
  %v5186 = vrot.slane %v1017, %v5185
  %v5187 = vlaneseq
  %v5188 = vshrl.u32 %v5187, 7
  %v5189 = vsub.s32 0, %v5188
  %v5190 = vrot.slane %v1022, %v5189
  %v5191 = vlaneseq
  %v5192 = vshrl.u32 %v5191, 7
  %v5193 = vsub.s32 0, %v5192
  %v5194 = vrot.slane %v1027, %v5193
  %v5195 = vlaneseq
  %v5196 = vshrl.u32 %v5195, 7
  %v5197 = vsub.s32 0, %v5196
  %v5198 = vrot.slane %v1032, %v5197
  %v5199 = vlaneseq
  %v5200 = vshrl.u32 %v5199, 7
  %v5201 = vsub.s32 0, %v5200
  %v5202 = vrot.slane %v1037, %v5201
  %v5203 = vlaneseq
  %v5204 = vshrl.u32 %v5203, 7
  %v5205 = vsub.s32 0, %v5204
  %v5206 = vrot.slane %v1042, %v5205
  %v5207 = vlaneseq
  %v5208 = vshrl.u32 %v5207, 7
  %v5209 = vsub.s32 0, %v5208
  %v5210 = vrot.slane %v1047, %v5209
  %v5211 = vlaneseq
  %v5212 = vshrl.u32 %v5211, 7
  %v5213 = vsub.s32 0, %v5212
  %v5214 = vrot.slane %v1052, %v5213
  %v5215 = vlaneseq
  %v5216 = vshrl.u32 %v5215, 7
  %v5217 = vsub.s32 0, %v5216
  %v5218 = vrot.slane %v1057, %v5217
  %v5219 = vlaneseq
  %v5220 = vshrl.u32 %v5219, 7
  %v5221 = vsub.s32 0, %v5220
  %v5222 = vrot.slane %v1062, %v5221
  %v5223 = vlaneseq
  %v5224 = vshrl.u32 %v5223, 7
  %v5225 = vsub.s32 0, %v5224
  %v5226 = vrot.slane %v1067, %v5225
  %v5227 = vmul.f32 %v4881, %v5102
  %v5228 = vmul.f32 %v4888, %v5106
  %v5229 = vmul.f32 %v4895, %v5110
  %v5230 = vmul.f32 %v4902, %v5114
  %v5231 = vmul.f32 %v4909, %v5118
  %v5232 = vmul.f32 %v4916, %v5122
  %v5233 = vmul.f32 %v4923, %v5126
  %v5234 = vmul.f32 %v4930, %v5130
  %v5235 = vmul.f32 %v4937, %v5134
  %v5236 = vmul.f32 %v4944, %v5138
  %v5237 = vmul.f32 %v4951, %v5142
  %v5238 = vmul.f32 %v4958, %v5146
  %v5239 = vmul.f32 %v4965, %v5150
  %v5240 = vmul.f32 %v4972, %v5154
  %v5241 = vmul.f32 %v4979, %v5158
  %v5242 = vmul.f32 %v4986, %v5162
  %v5243 = vmul.f32 %v4993, %v5166
  %v5244 = vmul.f32 %v5000, %v5170
  %v5245 = vmul.f32 %v5007, %v5174
  %v5246 = vmul.f32 %v5014, %v5178
  %v5247 = vmul.f32 %v5021, %v5182
  %v5248 = vmul.f32 %v5028, %v5186
  %v5249 = vmul.f32 %v5035, %v5190
  %v5250 = vmul.f32 %v5042, %v5194
  %v5251 = vmul.f32 %v5049, %v5198
  %v5252 = vmul.f32 %v5056, %v5202
  %v5253 = vmul.f32 %v5063, %v5206
  %v5254 = vmul.f32 %v5070, %v5210
  %v5255 = vmul.f32 %v5077, %v5214
  %v5256 = vmul.f32 %v5084, %v5218
  %v5257 = vmul.f32 %v5091, %v5222
  %v5258 = vmul.f32 %v5098, %v5226
  %v5259 = vmul.f32 %v4748, %v4867
  %v5260 = vmul.f32 %v4750, %v4868
  %v5261 = vmul.f32 %v4752, %v4869
  %v5262 = vmul.f32 %v4754, %v4870
  %v5263 = vlaneseq
  %v5264 = vshrl.u32 %v5263, 7
  %v5265 = vsub.s32 0, %v5264
  %v5266 = vrot.slane %v5259, %v5265
  %5268 = vbcast.lane.b32.xlu0 %v5266, 256
  %v5269 = vpop.permute.xlu0 %5268
  %v5270 = vlaneseq
  %v5271 = vshrl.u32 %v5270, 7
  %v5272 = vsub.s32 1, %v5271
  %v5273 = vrot.slane %v5259, %v5272
  %5275 = vbcast.lane.b32.xlu0 %v5273, 256
  %v5276 = vpop.permute.xlu0 %5275
  %v5277 = vlaneseq
  %v5278 = vshrl.u32 %v5277, 7
  %v5279 = vsub.s32 2, %v5278
  %v5280 = vrot.slane %v5259, %v5279
  %5282 = vbcast.lane.b32.xlu0 %v5280, 256
  %v5283 = vpop.permute.xlu0 %5282
  %v5284 = vlaneseq
  %v5285 = vshrl.u32 %v5284, 7
  %v5286 = vsub.s32 3, %v5285
  %v5287 = vrot.slane %v5259, %v5286
  %5289 = vbcast.lane.b32.xlu0 %v5287, 256
  %v5290 = vpop.permute.xlu0 %5289
  %v5291 = vlaneseq
  %v5292 = vshrl.u32 %v5291, 7
  %v5293 = vsub.s32 4, %v5292
  %v5294 = vrot.slane %v5259, %v5293
  %5296 = vbcast.lane.b32.xlu0 %v5294, 256
  %v5297 = vpop.permute.xlu0 %5296
  %v5298 = vlaneseq
  %v5299 = vshrl.u32 %v5298, 7
  %v5300 = vsub.s32 5, %v5299
  %v5301 = vrot.slane %v5259, %v5300
  %5303 = vbcast.lane.b32.xlu0 %v5301, 256
  %v5304 = vpop.permute.xlu0 %5303
  %v5305 = vlaneseq
  %v5306 = vshrl.u32 %v5305, 7
  %v5307 = vsub.s32 6, %v5306
  %v5308 = vrot.slane %v5259, %v5307
  %5310 = vbcast.lane.b32.xlu0 %v5308, 256
  %v5311 = vpop.permute.xlu0 %5310
  %v5312 = vlaneseq
  %v5313 = vshrl.u32 %v5312, 7
  %v5314 = vsub.s32 7, %v5313
  %v5315 = vrot.slane %v5259, %v5314
  %5317 = vbcast.lane.b32.xlu0 %v5315, 256
  %v5318 = vpop.permute.xlu0 %5317
  %v5319 = vlaneseq
  %v5320 = vshrl.u32 %v5319, 7
  %v5321 = vsub.s32 0, %v5320
  %v5322 = vrot.slane %v5260, %v5321
  %5324 = vbcast.lane.b32.xlu0 %v5322, 256
  %v5325 = vpop.permute.xlu0 %5324
  %v5326 = vlaneseq
  %v5327 = vshrl.u32 %v5326, 7
  %v5328 = vsub.s32 1, %v5327
  %v5329 = vrot.slane %v5260, %v5328
  %5331 = vbcast.lane.b32.xlu0 %v5329, 256
  %v5332 = vpop.permute.xlu0 %5331
  %v5333 = vlaneseq
  %v5334 = vshrl.u32 %v5333, 7
  %v5335 = vsub.s32 2, %v5334
  %v5336 = vrot.slane %v5260, %v5335
  %5338 = vbcast.lane.b32.xlu0 %v5336, 256
  %v5339 = vpop.permute.xlu0 %5338
  %v5340 = vlaneseq
  %v5341 = vshrl.u32 %v5340, 7
  %v5342 = vsub.s32 3, %v5341
  %v5343 = vrot.slane %v5260, %v5342
  %5345 = vbcast.lane.b32.xlu0 %v5343, 256
  %v5346 = vpop.permute.xlu0 %5345
  %v5347 = vlaneseq
  %v5348 = vshrl.u32 %v5347, 7
  %v5349 = vsub.s32 4, %v5348
  %v5350 = vrot.slane %v5260, %v5349
  %5352 = vbcast.lane.b32.xlu0 %v5350, 256
  %v5353 = vpop.permute.xlu0 %5352
  %v5354 = vlaneseq
  %v5355 = vshrl.u32 %v5354, 7
  %v5356 = vsub.s32 5, %v5355
  %v5357 = vrot.slane %v5260, %v5356
  %5359 = vbcast.lane.b32.xlu0 %v5357, 256
  %v5360 = vpop.permute.xlu0 %5359
  %v5361 = vlaneseq
  %v5362 = vshrl.u32 %v5361, 7
  %v5363 = vsub.s32 6, %v5362
  %v5364 = vrot.slane %v5260, %v5363
  %5366 = vbcast.lane.b32.xlu0 %v5364, 256
  %v5367 = vpop.permute.xlu0 %5366
  %v5368 = vlaneseq
  %v5369 = vshrl.u32 %v5368, 7
  %v5370 = vsub.s32 7, %v5369
  %v5371 = vrot.slane %v5260, %v5370
  %5373 = vbcast.lane.b32.xlu0 %v5371, 256
  %v5374 = vpop.permute.xlu0 %5373
  %v5375 = vlaneseq
  %v5376 = vshrl.u32 %v5375, 7
  %v5377 = vsub.s32 0, %v5376
  %v5378 = vrot.slane %v5261, %v5377
  %5380 = vbcast.lane.b32.xlu0 %v5378, 256
  %v5381 = vpop.permute.xlu0 %5380
  %v5382 = vlaneseq
  %v5383 = vshrl.u32 %v5382, 7
  %v5384 = vsub.s32 1, %v5383
  %v5385 = vrot.slane %v5261, %v5384
  %5387 = vbcast.lane.b32.xlu0 %v5385, 256
  %v5388 = vpop.permute.xlu0 %5387
  %v5389 = vlaneseq
  %v5390 = vshrl.u32 %v5389, 7
  %v5391 = vsub.s32 2, %v5390
  %v5392 = vrot.slane %v5261, %v5391
  %5394 = vbcast.lane.b32.xlu0 %v5392, 256
  %v5395 = vpop.permute.xlu0 %5394
  %v5396 = vlaneseq
  %v5397 = vshrl.u32 %v5396, 7
  %v5398 = vsub.s32 3, %v5397
  %v5399 = vrot.slane %v5261, %v5398
  %5401 = vbcast.lane.b32.xlu0 %v5399, 256
  %v5402 = vpop.permute.xlu0 %5401
  %v5403 = vlaneseq
  %v5404 = vshrl.u32 %v5403, 7
  %v5405 = vsub.s32 4, %v5404
  %v5406 = vrot.slane %v5261, %v5405
  %5408 = vbcast.lane.b32.xlu0 %v5406, 256
  %v5409 = vpop.permute.xlu0 %5408
  %v5410 = vlaneseq
  %v5411 = vshrl.u32 %v5410, 7
  %v5412 = vsub.s32 5, %v5411
  %v5413 = vrot.slane %v5261, %v5412
  %5415 = vbcast.lane.b32.xlu0 %v5413, 256
  %v5416 = vpop.permute.xlu0 %5415
  %v5417 = vlaneseq
  %v5418 = vshrl.u32 %v5417, 7
  %v5419 = vsub.s32 6, %v5418
  %v5420 = vrot.slane %v5261, %v5419
  %5422 = vbcast.lane.b32.xlu0 %v5420, 256
  %v5423 = vpop.permute.xlu0 %5422
  %v5424 = vlaneseq
  %v5425 = vshrl.u32 %v5424, 7
  %v5426 = vsub.s32 7, %v5425
  %v5427 = vrot.slane %v5261, %v5426
  %5429 = vbcast.lane.b32.xlu0 %v5427, 256
  %v5430 = vpop.permute.xlu0 %5429
  %v5431 = vlaneseq
  %v5432 = vshrl.u32 %v5431, 7
  %v5433 = vsub.s32 0, %v5432
  %v5434 = vrot.slane %v5262, %v5433
  %5436 = vbcast.lane.b32.xlu0 %v5434, 256
  %v5437 = vpop.permute.xlu0 %5436
  %v5438 = vlaneseq
  %v5439 = vshrl.u32 %v5438, 7
  %v5440 = vsub.s32 1, %v5439
  %v5441 = vrot.slane %v5262, %v5440
  %5443 = vbcast.lane.b32.xlu0 %v5441, 256
  %v5444 = vpop.permute.xlu0 %5443
  %v5445 = vlaneseq
  %v5446 = vshrl.u32 %v5445, 7
  %v5447 = vsub.s32 2, %v5446
  %v5448 = vrot.slane %v5262, %v5447
  %5450 = vbcast.lane.b32.xlu0 %v5448, 256
  %v5451 = vpop.permute.xlu0 %5450
  %v5452 = vlaneseq
  %v5453 = vshrl.u32 %v5452, 7
  %v5454 = vsub.s32 3, %v5453
  %v5455 = vrot.slane %v5262, %v5454
  %5457 = vbcast.lane.b32.xlu0 %v5455, 256
  %v5458 = vpop.permute.xlu0 %5457
  %v5459 = vlaneseq
  %v5460 = vshrl.u32 %v5459, 7
  %v5461 = vsub.s32 4, %v5460
  %v5462 = vrot.slane %v5262, %v5461
  %5464 = vbcast.lane.b32.xlu0 %v5462, 256
  %v5465 = vpop.permute.xlu0 %5464
  %v5466 = vlaneseq
  %v5467 = vshrl.u32 %v5466, 7
  %v5468 = vsub.s32 5, %v5467
  %v5469 = vrot.slane %v5262, %v5468
  %5471 = vbcast.lane.b32.xlu0 %v5469, 256
  %v5472 = vpop.permute.xlu0 %5471
  %v5473 = vlaneseq
  %v5474 = vshrl.u32 %v5473, 7
  %v5475 = vsub.s32 6, %v5474
  %v5476 = vrot.slane %v5262, %v5475
  %5478 = vbcast.lane.b32.xlu0 %v5476, 256
  %v5479 = vpop.permute.xlu0 %5478
  %v5480 = vlaneseq
  %v5481 = vshrl.u32 %v5480, 7
  %v5482 = vsub.s32 7, %v5481
  %v5483 = vrot.slane %v5262, %v5482
  %5485 = vbcast.lane.b32.xlu0 %v5483, 256
  %v5486 = vpop.permute.xlu0 %5485
  %v5487 = vlaneseq
  %v5488 = vshrl.u32 %v5487, 7
  %v5489 = vsub.s32 1, %v5488
  %v5490 = vrot.slane %v912, %v5489
  %v5491 = vlaneseq
  %v5492 = vshrl.u32 %v5491, 7
  %v5493 = vsub.s32 1, %v5492
  %v5494 = vrot.slane %v917, %v5493
  %v5495 = vlaneseq
  %v5496 = vshrl.u32 %v5495, 7
  %v5497 = vsub.s32 1, %v5496
  %v5498 = vrot.slane %v922, %v5497
  %v5499 = vlaneseq
  %v5500 = vshrl.u32 %v5499, 7
  %v5501 = vsub.s32 1, %v5500
  %v5502 = vrot.slane %v927, %v5501
  %v5503 = vlaneseq
  %v5504 = vshrl.u32 %v5503, 7
  %v5505 = vsub.s32 1, %v5504
  %v5506 = vrot.slane %v932, %v5505
  %v5507 = vlaneseq
  %v5508 = vshrl.u32 %v5507, 7
  %v5509 = vsub.s32 1, %v5508
  %v5510 = vrot.slane %v937, %v5509
  %v5511 = vlaneseq
  %v5512 = vshrl.u32 %v5511, 7
  %v5513 = vsub.s32 1, %v5512
  %v5514 = vrot.slane %v942, %v5513
  %v5515 = vlaneseq
  %v5516 = vshrl.u32 %v5515, 7
  %v5517 = vsub.s32 1, %v5516
  %v5518 = vrot.slane %v947, %v5517
  %v5519 = vlaneseq
  %v5520 = vshrl.u32 %v5519, 7
  %v5521 = vsub.s32 1, %v5520
  %v5522 = vrot.slane %v952, %v5521
  %v5523 = vlaneseq
  %v5524 = vshrl.u32 %v5523, 7
  %v5525 = vsub.s32 1, %v5524
  %v5526 = vrot.slane %v957, %v5525
  %v5527 = vlaneseq
  %v5528 = vshrl.u32 %v5527, 7
  %v5529 = vsub.s32 1, %v5528
  %v5530 = vrot.slane %v962, %v5529
  %v5531 = vlaneseq
  %v5532 = vshrl.u32 %v5531, 7
  %v5533 = vsub.s32 1, %v5532
  %v5534 = vrot.slane %v967, %v5533
  %v5535 = vlaneseq
  %v5536 = vshrl.u32 %v5535, 7
  %v5537 = vsub.s32 1, %v5536
  %v5538 = vrot.slane %v972, %v5537
  %v5539 = vlaneseq
  %v5540 = vshrl.u32 %v5539, 7
  %v5541 = vsub.s32 1, %v5540
  %v5542 = vrot.slane %v977, %v5541
  %v5543 = vlaneseq
  %v5544 = vshrl.u32 %v5543, 7
  %v5545 = vsub.s32 1, %v5544
  %v5546 = vrot.slane %v982, %v5545
  %v5547 = vlaneseq
  %v5548 = vshrl.u32 %v5547, 7
  %v5549 = vsub.s32 1, %v5548
  %v5550 = vrot.slane %v987, %v5549
  %v5551 = vlaneseq
  %v5552 = vshrl.u32 %v5551, 7
  %v5553 = vsub.s32 1, %v5552
  %v5554 = vrot.slane %v992, %v5553
  %v5555 = vlaneseq
  %v5556 = vshrl.u32 %v5555, 7
  %v5557 = vsub.s32 1, %v5556
  %v5558 = vrot.slane %v997, %v5557
  %v5559 = vlaneseq
  %v5560 = vshrl.u32 %v5559, 7
  %v5561 = vsub.s32 1, %v5560
  %v5562 = vrot.slane %v1002, %v5561
  %v5563 = vlaneseq
  %v5564 = vshrl.u32 %v5563, 7
  %v5565 = vsub.s32 1, %v5564
  %v5566 = vrot.slane %v1007, %v5565
  %v5567 = vlaneseq
  %v5568 = vshrl.u32 %v5567, 7
  %v5569 = vsub.s32 1, %v5568
  %v5570 = vrot.slane %v1012, %v5569
  %v5571 = vlaneseq
  %v5572 = vshrl.u32 %v5571, 7
  %v5573 = vsub.s32 1, %v5572
  %v5574 = vrot.slane %v1017, %v5573
  %v5575 = vlaneseq
  %v5576 = vshrl.u32 %v5575, 7
  %v5577 = vsub.s32 1, %v5576
  %v5578 = vrot.slane %v1022, %v5577
  %v5579 = vlaneseq
  %v5580 = vshrl.u32 %v5579, 7
  %v5581 = vsub.s32 1, %v5580
  %v5582 = vrot.slane %v1027, %v5581
  %v5583 = vlaneseq
  %v5584 = vshrl.u32 %v5583, 7
  %v5585 = vsub.s32 1, %v5584
  %v5586 = vrot.slane %v1032, %v5585
  %v5587 = vlaneseq
  %v5588 = vshrl.u32 %v5587, 7
  %v5589 = vsub.s32 1, %v5588
  %v5590 = vrot.slane %v1037, %v5589
  %v5591 = vlaneseq
  %v5592 = vshrl.u32 %v5591, 7
  %v5593 = vsub.s32 1, %v5592
  %v5594 = vrot.slane %v1042, %v5593
  %v5595 = vlaneseq
  %v5596 = vshrl.u32 %v5595, 7
  %v5597 = vsub.s32 1, %v5596
  %v5598 = vrot.slane %v1047, %v5597
  %v5599 = vlaneseq
  %v5600 = vshrl.u32 %v5599, 7
  %v5601 = vsub.s32 1, %v5600
  %v5602 = vrot.slane %v1052, %v5601
  %v5603 = vlaneseq
  %v5604 = vshrl.u32 %v5603, 7
  %v5605 = vsub.s32 1, %v5604
  %v5606 = vrot.slane %v1057, %v5605
  %v5607 = vlaneseq
  %v5608 = vshrl.u32 %v5607, 7
  %v5609 = vsub.s32 1, %v5608
  %v5610 = vrot.slane %v1062, %v5609
  %v5611 = vlaneseq
  %v5612 = vshrl.u32 %v5611, 7
  %v5613 = vsub.s32 1, %v5612
  %v5614 = vrot.slane %v1067, %v5613
  %v5615 = vmul.f32 %v5269, %v5490
  %v5616 = vmul.f32 %v5276, %v5494
  %v5617 = vmul.f32 %v5283, %v5498
  %v5618 = vmul.f32 %v5290, %v5502
  %v5619 = vmul.f32 %v5297, %v5506
  %v5620 = vmul.f32 %v5304, %v5510
  %v5621 = vmul.f32 %v5311, %v5514
  %v5622 = vmul.f32 %v5318, %v5518
  %v5623 = vmul.f32 %v5325, %v5522
  %v5624 = vmul.f32 %v5332, %v5526
  %v5625 = vmul.f32 %v5339, %v5530
  %v5626 = vmul.f32 %v5346, %v5534
  %v5627 = vmul.f32 %v5353, %v5538
  %v5628 = vmul.f32 %v5360, %v5542
  %v5629 = vmul.f32 %v5367, %v5546
  %v5630 = vmul.f32 %v5374, %v5550
  %v5631 = vmul.f32 %v5381, %v5554
  %v5632 = vmul.f32 %v5388, %v5558
  %v5633 = vmul.f32 %v5395, %v5562
  %v5634 = vmul.f32 %v5402, %v5566
  %v5635 = vmul.f32 %v5409, %v5570
  %v5636 = vmul.f32 %v5416, %v5574
  %v5637 = vmul.f32 %v5423, %v5578
  %v5638 = vmul.f32 %v5430, %v5582
  %v5639 = vmul.f32 %v5437, %v5586
  %v5640 = vmul.f32 %v5444, %v5590
  %v5641 = vmul.f32 %v5451, %v5594
  %v5642 = vmul.f32 %v5458, %v5598
  %v5643 = vmul.f32 %v5465, %v5602
  %v5644 = vmul.f32 %v5472, %v5606
  %v5645 = vmul.f32 %v5479, %v5610
  %v5646 = vmul.f32 %v5486, %v5614
  %v5647 = vadd.f32 %v5227, %v5615
  %v5648 = vadd.f32 %v5228, %v5616
  %v5649 = vadd.f32 %v5229, %v5617
  %v5650 = vadd.f32 %v5230, %v5618
  %v5651 = vadd.f32 %v5231, %v5619
  %v5652 = vadd.f32 %v5232, %v5620
  %v5653 = vadd.f32 %v5233, %v5621
  %v5654 = vadd.f32 %v5234, %v5622
  %v5655 = vadd.f32 %v5235, %v5623
  %v5656 = vadd.f32 %v5236, %v5624
  %v5657 = vadd.f32 %v5237, %v5625
  %v5658 = vadd.f32 %v5238, %v5626
  %v5659 = vadd.f32 %v5239, %v5627
  %v5660 = vadd.f32 %v5240, %v5628
  %v5661 = vadd.f32 %v5241, %v5629
  %v5662 = vadd.f32 %v5242, %v5630
  %v5663 = vadd.f32 %v5243, %v5631
  %v5664 = vadd.f32 %v5244, %v5632
  %v5665 = vadd.f32 %v5245, %v5633
  %v5666 = vadd.f32 %v5246, %v5634
  %v5667 = vadd.f32 %v5247, %v5635
  %v5668 = vadd.f32 %v5248, %v5636
  %v5669 = vadd.f32 %v5249, %v5637
  %v5670 = vadd.f32 %v5250, %v5638
  %v5671 = vadd.f32 %v5251, %v5639
  %v5672 = vadd.f32 %v5252, %v5640
  %v5673 = vadd.f32 %v5253, %v5641
  %v5674 = vadd.f32 %v5254, %v5642
  %v5675 = vadd.f32 %v5255, %v5643
  %v5676 = vadd.f32 %v5256, %v5644
  %v5677 = vadd.f32 %v5257, %v5645
  %v5678 = vadd.f32 %v5258, %v5646
  %v5679 = vmul.f32 %v4760, %v4867
  %v5680 = vmul.f32 %v4762, %v4868
  %v5681 = vmul.f32 %v4764, %v4869
  %v5682 = vmul.f32 %v4766, %v4870
  %v5683 = vlaneseq
  %v5684 = vshrl.u32 %v5683, 7
  %v5685 = vsub.s32 0, %v5684
  %v5686 = vrot.slane %v5679, %v5685
  %5688 = vbcast.lane.b32.xlu0 %v5686, 256
  %v5689 = vpop.permute.xlu0 %5688
  %v5690 = vlaneseq
  %v5691 = vshrl.u32 %v5690, 7
  %v5692 = vsub.s32 1, %v5691
  %v5693 = vrot.slane %v5679, %v5692
  %5695 = vbcast.lane.b32.xlu0 %v5693, 256
  %v5696 = vpop.permute.xlu0 %5695
  %v5697 = vlaneseq
  %v5698 = vshrl.u32 %v5697, 7
  %v5699 = vsub.s32 2, %v5698
  %v5700 = vrot.slane %v5679, %v5699
  %5702 = vbcast.lane.b32.xlu0 %v5700, 256
  %v5703 = vpop.permute.xlu0 %5702
  %v5704 = vlaneseq
  %v5705 = vshrl.u32 %v5704, 7
  %v5706 = vsub.s32 3, %v5705
  %v5707 = vrot.slane %v5679, %v5706
  %5709 = vbcast.lane.b32.xlu0 %v5707, 256
  %v5710 = vpop.permute.xlu0 %5709
  %v5711 = vlaneseq
  %v5712 = vshrl.u32 %v5711, 7
  %v5713 = vsub.s32 4, %v5712
  %v5714 = vrot.slane %v5679, %v5713
  %5716 = vbcast.lane.b32.xlu0 %v5714, 256
  %v5717 = vpop.permute.xlu0 %5716
  %v5718 = vlaneseq
  %v5719 = vshrl.u32 %v5718, 7
  %v5720 = vsub.s32 5, %v5719
  %v5721 = vrot.slane %v5679, %v5720
  %5723 = vbcast.lane.b32.xlu0 %v5721, 256
  %v5724 = vpop.permute.xlu0 %5723
  %v5725 = vlaneseq
  %v5726 = vshrl.u32 %v5725, 7
  %v5727 = vsub.s32 6, %v5726
  %v5728 = vrot.slane %v5679, %v5727
  %5730 = vbcast.lane.b32.xlu0 %v5728, 256
  %v5731 = vpop.permute.xlu0 %5730
  %v5732 = vlaneseq
  %v5733 = vshrl.u32 %v5732, 7
  %v5734 = vsub.s32 7, %v5733
  %v5735 = vrot.slane %v5679, %v5734
  %5737 = vbcast.lane.b32.xlu0 %v5735, 256
  %v5738 = vpop.permute.xlu0 %5737
  %v5739 = vlaneseq
  %v5740 = vshrl.u32 %v5739, 7
  %v5741 = vsub.s32 0, %v5740
  %v5742 = vrot.slane %v5680, %v5741
  %5744 = vbcast.lane.b32.xlu0 %v5742, 256
  %v5745 = vpop.permute.xlu0 %5744
  %v5746 = vlaneseq
  %v5747 = vshrl.u32 %v5746, 7
  %v5748 = vsub.s32 1, %v5747
  %v5749 = vrot.slane %v5680, %v5748
  %5751 = vbcast.lane.b32.xlu0 %v5749, 256
  %v5752 = vpop.permute.xlu0 %5751
  %v5753 = vlaneseq
  %v5754 = vshrl.u32 %v5753, 7
  %v5755 = vsub.s32 2, %v5754
  %v5756 = vrot.slane %v5680, %v5755
  %5758 = vbcast.lane.b32.xlu0 %v5756, 256
  %v5759 = vpop.permute.xlu0 %5758
  %v5760 = vlaneseq
  %v5761 = vshrl.u32 %v5760, 7
  %v5762 = vsub.s32 3, %v5761
  %v5763 = vrot.slane %v5680, %v5762
  %5765 = vbcast.lane.b32.xlu0 %v5763, 256
  %v5766 = vpop.permute.xlu0 %5765
  %v5767 = vlaneseq
  %v5768 = vshrl.u32 %v5767, 7
  %v5769 = vsub.s32 4, %v5768
  %v5770 = vrot.slane %v5680, %v5769
  %5772 = vbcast.lane.b32.xlu0 %v5770, 256
  %v5773 = vpop.permute.xlu0 %5772
  %v5774 = vlaneseq
  %v5775 = vshrl.u32 %v5774, 7
  %v5776 = vsub.s32 5, %v5775
  %v5777 = vrot.slane %v5680, %v5776
  %5779 = vbcast.lane.b32.xlu0 %v5777, 256
  %v5780 = vpop.permute.xlu0 %5779
  %v5781 = vlaneseq
  %v5782 = vshrl.u32 %v5781, 7
  %v5783 = vsub.s32 6, %v5782
  %v5784 = vrot.slane %v5680, %v5783
  %5786 = vbcast.lane.b32.xlu0 %v5784, 256
  %v5787 = vpop.permute.xlu0 %5786
  %v5788 = vlaneseq
  %v5789 = vshrl.u32 %v5788, 7
  %v5790 = vsub.s32 7, %v5789
  %v5791 = vrot.slane %v5680, %v5790
  %5793 = vbcast.lane.b32.xlu0 %v5791, 256
  %v5794 = vpop.permute.xlu0 %5793
  %v5795 = vlaneseq
  %v5796 = vshrl.u32 %v5795, 7
  %v5797 = vsub.s32 0, %v5796
  %v5798 = vrot.slane %v5681, %v5797
  %5800 = vbcast.lane.b32.xlu0 %v5798, 256
  %v5801 = vpop.permute.xlu0 %5800
  %v5802 = vlaneseq
  %v5803 = vshrl.u32 %v5802, 7
  %v5804 = vsub.s32 1, %v5803
  %v5805 = vrot.slane %v5681, %v5804
  %5807 = vbcast.lane.b32.xlu0 %v5805, 256
  %v5808 = vpop.permute.xlu0 %5807
  %v5809 = vlaneseq
  %v5810 = vshrl.u32 %v5809, 7
  %v5811 = vsub.s32 2, %v5810
  %v5812 = vrot.slane %v5681, %v5811
  %5814 = vbcast.lane.b32.xlu0 %v5812, 256
  %v5815 = vpop.permute.xlu0 %5814
  %v5816 = vlaneseq
  %v5817 = vshrl.u32 %v5816, 7
  %v5818 = vsub.s32 3, %v5817
  %v5819 = vrot.slane %v5681, %v5818
  %5821 = vbcast.lane.b32.xlu0 %v5819, 256
  %v5822 = vpop.permute.xlu0 %5821
  %v5823 = vlaneseq
  %v5824 = vshrl.u32 %v5823, 7
  %v5825 = vsub.s32 4, %v5824
  %v5826 = vrot.slane %v5681, %v5825
  %5828 = vbcast.lane.b32.xlu0 %v5826, 256
  %v5829 = vpop.permute.xlu0 %5828
  %v5830 = vlaneseq
  %v5831 = vshrl.u32 %v5830, 7
  %v5832 = vsub.s32 5, %v5831
  %v5833 = vrot.slane %v5681, %v5832
  %5835 = vbcast.lane.b32.xlu0 %v5833, 256
  %v5836 = vpop.permute.xlu0 %5835
  %v5837 = vlaneseq
  %v5838 = vshrl.u32 %v5837, 7
  %v5839 = vsub.s32 6, %v5838
  %v5840 = vrot.slane %v5681, %v5839
  %5842 = vbcast.lane.b32.xlu0 %v5840, 256
  %v5843 = vpop.permute.xlu0 %5842
  %v5844 = vlaneseq
  %v5845 = vshrl.u32 %v5844, 7
  %v5846 = vsub.s32 7, %v5845
  %v5847 = vrot.slane %v5681, %v5846
  %5849 = vbcast.lane.b32.xlu0 %v5847, 256
  %v5850 = vpop.permute.xlu0 %5849
  %v5851 = vlaneseq
  %v5852 = vshrl.u32 %v5851, 7
  %v5853 = vsub.s32 0, %v5852
  %v5854 = vrot.slane %v5682, %v5853
  %5856 = vbcast.lane.b32.xlu0 %v5854, 256
  %v5857 = vpop.permute.xlu0 %5856
  %v5858 = vlaneseq
  %v5859 = vshrl.u32 %v5858, 7
  %v5860 = vsub.s32 1, %v5859
  %v5861 = vrot.slane %v5682, %v5860
  %5863 = vbcast.lane.b32.xlu0 %v5861, 256
  %v5864 = vpop.permute.xlu0 %5863
  %v5865 = vlaneseq
  %v5866 = vshrl.u32 %v5865, 7
  %v5867 = vsub.s32 2, %v5866
  %v5868 = vrot.slane %v5682, %v5867
  %5870 = vbcast.lane.b32.xlu0 %v5868, 256
  %v5871 = vpop.permute.xlu0 %5870
  %v5872 = vlaneseq
  %v5873 = vshrl.u32 %v5872, 7
  %v5874 = vsub.s32 3, %v5873
  %v5875 = vrot.slane %v5682, %v5874
  %5877 = vbcast.lane.b32.xlu0 %v5875, 256
  %v5878 = vpop.permute.xlu0 %5877
  %v5879 = vlaneseq
  %v5880 = vshrl.u32 %v5879, 7
  %v5881 = vsub.s32 4, %v5880
  %v5882 = vrot.slane %v5682, %v5881
  %5884 = vbcast.lane.b32.xlu0 %v5882, 256
  %v5885 = vpop.permute.xlu0 %5884
  %v5886 = vlaneseq
  %v5887 = vshrl.u32 %v5886, 7
  %v5888 = vsub.s32 5, %v5887
  %v5889 = vrot.slane %v5682, %v5888
  %5891 = vbcast.lane.b32.xlu0 %v5889, 256
  %v5892 = vpop.permute.xlu0 %5891
  %v5893 = vlaneseq
  %v5894 = vshrl.u32 %v5893, 7
  %v5895 = vsub.s32 6, %v5894
  %v5896 = vrot.slane %v5682, %v5895
  %5898 = vbcast.lane.b32.xlu0 %v5896, 256
  %v5899 = vpop.permute.xlu0 %5898
  %v5900 = vlaneseq
  %v5901 = vshrl.u32 %v5900, 7
  %v5902 = vsub.s32 7, %v5901
  %v5903 = vrot.slane %v5682, %v5902
  %5905 = vbcast.lane.b32.xlu0 %v5903, 256
  %v5906 = vpop.permute.xlu0 %5905
  %v5907 = vlaneseq
  %v5908 = vshrl.u32 %v5907, 7
  %v5909 = vsub.s32 2, %v5908
  %v5910 = vrot.slane %v912, %v5909
  %v5911 = vlaneseq
  %v5912 = vshrl.u32 %v5911, 7
  %v5913 = vsub.s32 2, %v5912
  %v5914 = vrot.slane %v917, %v5913
  %v5915 = vlaneseq
  %v5916 = vshrl.u32 %v5915, 7
  %v5917 = vsub.s32 2, %v5916
  %v5918 = vrot.slane %v922, %v5917
  %v5919 = vlaneseq
  %v5920 = vshrl.u32 %v5919, 7
  %v5921 = vsub.s32 2, %v5920
  %v5922 = vrot.slane %v927, %v5921
  %v5923 = vlaneseq
  %v5924 = vshrl.u32 %v5923, 7
  %v5925 = vsub.s32 2, %v5924
  %v5926 = vrot.slane %v932, %v5925
  %v5927 = vlaneseq
  %v5928 = vshrl.u32 %v5927, 7
  %v5929 = vsub.s32 2, %v5928
  %v5930 = vrot.slane %v937, %v5929
  %v5931 = vlaneseq
  %v5932 = vshrl.u32 %v5931, 7
  %v5933 = vsub.s32 2, %v5932
  %v5934 = vrot.slane %v942, %v5933
  %v5935 = vlaneseq
  %v5936 = vshrl.u32 %v5935, 7
  %v5937 = vsub.s32 2, %v5936
  %v5938 = vrot.slane %v947, %v5937
  %v5939 = vlaneseq
  %v5940 = vshrl.u32 %v5939, 7
  %v5941 = vsub.s32 2, %v5940
  %v5942 = vrot.slane %v952, %v5941
  %v5943 = vlaneseq
  %v5944 = vshrl.u32 %v5943, 7
  %v5945 = vsub.s32 2, %v5944
  %v5946 = vrot.slane %v957, %v5945
  %v5947 = vlaneseq
  %v5948 = vshrl.u32 %v5947, 7
  %v5949 = vsub.s32 2, %v5948
  %v5950 = vrot.slane %v962, %v5949
  %v5951 = vlaneseq
  %v5952 = vshrl.u32 %v5951, 7
  %v5953 = vsub.s32 2, %v5952
  %v5954 = vrot.slane %v967, %v5953
  %v5955 = vlaneseq
  %v5956 = vshrl.u32 %v5955, 7
  %v5957 = vsub.s32 2, %v5956
  %v5958 = vrot.slane %v972, %v5957
  %v5959 = vlaneseq
  %v5960 = vshrl.u32 %v5959, 7
  %v5961 = vsub.s32 2, %v5960
  %v5962 = vrot.slane %v977, %v5961
  %v5963 = vlaneseq
  %v5964 = vshrl.u32 %v5963, 7
  %v5965 = vsub.s32 2, %v5964
  %v5966 = vrot.slane %v982, %v5965
  %v5967 = vlaneseq
  %v5968 = vshrl.u32 %v5967, 7
  %v5969 = vsub.s32 2, %v5968
  %v5970 = vrot.slane %v987, %v5969
  %v5971 = vlaneseq
  %v5972 = vshrl.u32 %v5971, 7
  %v5973 = vsub.s32 2, %v5972
  %v5974 = vrot.slane %v992, %v5973
  %v5975 = vlaneseq
  %v5976 = vshrl.u32 %v5975, 7
  %v5977 = vsub.s32 2, %v5976
  %v5978 = vrot.slane %v997, %v5977
  %v5979 = vlaneseq
  %v5980 = vshrl.u32 %v5979, 7
  %v5981 = vsub.s32 2, %v5980
  %v5982 = vrot.slane %v1002, %v5981
  %v5983 = vlaneseq
  %v5984 = vshrl.u32 %v5983, 7
  %v5985 = vsub.s32 2, %v5984
  %v5986 = vrot.slane %v1007, %v5985
  %v5987 = vlaneseq
  %v5988 = vshrl.u32 %v5987, 7
  %v5989 = vsub.s32 2, %v5988
  %v5990 = vrot.slane %v1012, %v5989
  %v5991 = vlaneseq
  %v5992 = vshrl.u32 %v5991, 7
  %v5993 = vsub.s32 2, %v5992
  %v5994 = vrot.slane %v1017, %v5993
  %v5995 = vlaneseq
  %v5996 = vshrl.u32 %v5995, 7
  %v5997 = vsub.s32 2, %v5996
  %v5998 = vrot.slane %v1022, %v5997
  %v5999 = vlaneseq
  %v6000 = vshrl.u32 %v5999, 7
  %v6001 = vsub.s32 2, %v6000
  %v6002 = vrot.slane %v1027, %v6001
  %v6003 = vlaneseq
  %v6004 = vshrl.u32 %v6003, 7
  %v6005 = vsub.s32 2, %v6004
  %v6006 = vrot.slane %v1032, %v6005
  %v6007 = vlaneseq
  %v6008 = vshrl.u32 %v6007, 7
  %v6009 = vsub.s32 2, %v6008
  %v6010 = vrot.slane %v1037, %v6009
  %v6011 = vlaneseq
  %v6012 = vshrl.u32 %v6011, 7
  %v6013 = vsub.s32 2, %v6012
  %v6014 = vrot.slane %v1042, %v6013
  %v6015 = vlaneseq
  %v6016 = vshrl.u32 %v6015, 7
  %v6017 = vsub.s32 2, %v6016
  %v6018 = vrot.slane %v1047, %v6017
  %v6019 = vlaneseq
  %v6020 = vshrl.u32 %v6019, 7
  %v6021 = vsub.s32 2, %v6020
  %v6022 = vrot.slane %v1052, %v6021
  %v6023 = vlaneseq
  %v6024 = vshrl.u32 %v6023, 7
  %v6025 = vsub.s32 2, %v6024
  %v6026 = vrot.slane %v1057, %v6025
  %v6027 = vlaneseq
  %v6028 = vshrl.u32 %v6027, 7
  %v6029 = vsub.s32 2, %v6028
  %v6030 = vrot.slane %v1062, %v6029
  %v6031 = vlaneseq
  %v6032 = vshrl.u32 %v6031, 7
  %v6033 = vsub.s32 2, %v6032
  %v6034 = vrot.slane %v1067, %v6033
  %v6035 = vmul.f32 %v5689, %v5910
  %v6036 = vmul.f32 %v5696, %v5914
  %v6037 = vmul.f32 %v5703, %v5918
  %v6038 = vmul.f32 %v5710, %v5922
  %v6039 = vmul.f32 %v5717, %v5926
  %v6040 = vmul.f32 %v5724, %v5930
  %v6041 = vmul.f32 %v5731, %v5934
  %v6042 = vmul.f32 %v5738, %v5938
  %v6043 = vmul.f32 %v5745, %v5942
  %v6044 = vmul.f32 %v5752, %v5946
  %v6045 = vmul.f32 %v5759, %v5950
  %v6046 = vmul.f32 %v5766, %v5954
  %v6047 = vmul.f32 %v5773, %v5958
  %v6048 = vmul.f32 %v5780, %v5962
  %v6049 = vmul.f32 %v5787, %v5966
  %v6050 = vmul.f32 %v5794, %v5970
  %v6051 = vmul.f32 %v5801, %v5974
  %v6052 = vmul.f32 %v5808, %v5978
  %v6053 = vmul.f32 %v5815, %v5982
  %v6054 = vmul.f32 %v5822, %v5986
  %v6055 = vmul.f32 %v5829, %v5990
  %v6056 = vmul.f32 %v5836, %v5994
  %v6057 = vmul.f32 %v5843, %v5998
  %v6058 = vmul.f32 %v5850, %v6002
  %v6059 = vmul.f32 %v5857, %v6006
  %v6060 = vmul.f32 %v5864, %v6010
  %v6061 = vmul.f32 %v5871, %v6014
  %v6062 = vmul.f32 %v5878, %v6018
  %v6063 = vmul.f32 %v5885, %v6022
  %v6064 = vmul.f32 %v5892, %v6026
  %v6065 = vmul.f32 %v5899, %v6030
  %v6066 = vmul.f32 %v5906, %v6034
  %v6067 = vadd.f32 %v5647, %v6035
  %v6068 = vadd.f32 %v5648, %v6036
  %v6069 = vadd.f32 %v5649, %v6037
  %v6070 = vadd.f32 %v5650, %v6038
  %v6071 = vadd.f32 %v5651, %v6039
  %v6072 = vadd.f32 %v5652, %v6040
  %v6073 = vadd.f32 %v5653, %v6041
  %v6074 = vadd.f32 %v5654, %v6042
  %v6075 = vadd.f32 %v5655, %v6043
  %v6076 = vadd.f32 %v5656, %v6044
  %v6077 = vadd.f32 %v5657, %v6045
  %v6078 = vadd.f32 %v5658, %v6046
  %v6079 = vadd.f32 %v5659, %v6047
  %v6080 = vadd.f32 %v5660, %v6048
  %v6081 = vadd.f32 %v5661, %v6049
  %v6082 = vadd.f32 %v5662, %v6050
  %v6083 = vadd.f32 %v5663, %v6051
  %v6084 = vadd.f32 %v5664, %v6052
  %v6085 = vadd.f32 %v5665, %v6053
  %v6086 = vadd.f32 %v5666, %v6054
  %v6087 = vadd.f32 %v5667, %v6055
  %v6088 = vadd.f32 %v5668, %v6056
  %v6089 = vadd.f32 %v5669, %v6057
  %v6090 = vadd.f32 %v5670, %v6058
  %v6091 = vadd.f32 %v5671, %v6059
  %v6092 = vadd.f32 %v5672, %v6060
  %v6093 = vadd.f32 %v5673, %v6061
  %v6094 = vadd.f32 %v5674, %v6062
  %v6095 = vadd.f32 %v5675, %v6063
  %v6096 = vadd.f32 %v5676, %v6064
  %v6097 = vadd.f32 %v5677, %v6065
  %v6098 = vadd.f32 %v5678, %v6066
  %v6099 = vmul.f32 %v4772, %v4867
  %v6100 = vmul.f32 %v4774, %v4868
  %v6101 = vmul.f32 %v4776, %v4869
  %v6102 = vmul.f32 %v4778, %v4870
  %v6103 = vlaneseq
  %v6104 = vshrl.u32 %v6103, 7
  %v6105 = vsub.s32 0, %v6104
  %v6106 = vrot.slane %v6099, %v6105
  %6108 = vbcast.lane.b32.xlu0 %v6106, 256
  %v6109 = vpop.permute.xlu0 %6108
  %v6110 = vlaneseq
  %v6111 = vshrl.u32 %v6110, 7
  %v6112 = vsub.s32 1, %v6111
  %v6113 = vrot.slane %v6099, %v6112
  %6115 = vbcast.lane.b32.xlu0 %v6113, 256
  %v6116 = vpop.permute.xlu0 %6115
  %v6117 = vlaneseq
  %v6118 = vshrl.u32 %v6117, 7
  %v6119 = vsub.s32 2, %v6118
  %v6120 = vrot.slane %v6099, %v6119
  %6122 = vbcast.lane.b32.xlu0 %v6120, 256
  %v6123 = vpop.permute.xlu0 %6122
  %v6124 = vlaneseq
  %v6125 = vshrl.u32 %v6124, 7
  %v6126 = vsub.s32 3, %v6125
  %v6127 = vrot.slane %v6099, %v6126
  %6129 = vbcast.lane.b32.xlu0 %v6127, 256
  %v6130 = vpop.permute.xlu0 %6129
  %v6131 = vlaneseq
  %v6132 = vshrl.u32 %v6131, 7
  %v6133 = vsub.s32 4, %v6132
  %v6134 = vrot.slane %v6099, %v6133
  %6136 = vbcast.lane.b32.xlu0 %v6134, 256
  %v6137 = vpop.permute.xlu0 %6136
  %v6138 = vlaneseq
  %v6139 = vshrl.u32 %v6138, 7
  %v6140 = vsub.s32 5, %v6139
  %v6141 = vrot.slane %v6099, %v6140
  %6143 = vbcast.lane.b32.xlu0 %v6141, 256
  %v6144 = vpop.permute.xlu0 %6143
  %v6145 = vlaneseq
  %v6146 = vshrl.u32 %v6145, 7
  %v6147 = vsub.s32 6, %v6146
  %v6148 = vrot.slane %v6099, %v6147
  %6150 = vbcast.lane.b32.xlu0 %v6148, 256
  %v6151 = vpop.permute.xlu0 %6150
  %v6152 = vlaneseq
  %v6153 = vshrl.u32 %v6152, 7
  %v6154 = vsub.s32 7, %v6153
  %v6155 = vrot.slane %v6099, %v6154
  %6157 = vbcast.lane.b32.xlu0 %v6155, 256
  %v6158 = vpop.permute.xlu0 %6157
  %v6159 = vlaneseq
  %v6160 = vshrl.u32 %v6159, 7
  %v6161 = vsub.s32 0, %v6160
  %v6162 = vrot.slane %v6100, %v6161
  %6164 = vbcast.lane.b32.xlu0 %v6162, 256
  %v6165 = vpop.permute.xlu0 %6164
  %v6166 = vlaneseq
  %v6167 = vshrl.u32 %v6166, 7
  %v6168 = vsub.s32 1, %v6167
  %v6169 = vrot.slane %v6100, %v6168
  %6171 = vbcast.lane.b32.xlu0 %v6169, 256
  %v6172 = vpop.permute.xlu0 %6171
  %v6173 = vlaneseq
  %v6174 = vshrl.u32 %v6173, 7
  %v6175 = vsub.s32 2, %v6174
  %v6176 = vrot.slane %v6100, %v6175
  %6178 = vbcast.lane.b32.xlu0 %v6176, 256
  %v6179 = vpop.permute.xlu0 %6178
  %v6180 = vlaneseq
  %v6181 = vshrl.u32 %v6180, 7
  %v6182 = vsub.s32 3, %v6181
  %v6183 = vrot.slane %v6100, %v6182
  %6185 = vbcast.lane.b32.xlu0 %v6183, 256
  %v6186 = vpop.permute.xlu0 %6185
  %v6187 = vlaneseq
  %v6188 = vshrl.u32 %v6187, 7
  %v6189 = vsub.s32 4, %v6188
  %v6190 = vrot.slane %v6100, %v6189
  %6192 = vbcast.lane.b32.xlu0 %v6190, 256
  %v6193 = vpop.permute.xlu0 %6192
  %v6194 = vlaneseq
  %v6195 = vshrl.u32 %v6194, 7
  %v6196 = vsub.s32 5, %v6195
  %v6197 = vrot.slane %v6100, %v6196
  %6199 = vbcast.lane.b32.xlu0 %v6197, 256
  %v6200 = vpop.permute.xlu0 %6199
  %v6201 = vlaneseq
  %v6202 = vshrl.u32 %v6201, 7
  %v6203 = vsub.s32 6, %v6202
  %v6204 = vrot.slane %v6100, %v6203
  %6206 = vbcast.lane.b32.xlu0 %v6204, 256
  %v6207 = vpop.permute.xlu0 %6206
  %v6208 = vlaneseq
  %v6209 = vshrl.u32 %v6208, 7
  %v6210 = vsub.s32 7, %v6209
  %v6211 = vrot.slane %v6100, %v6210
  %6213 = vbcast.lane.b32.xlu0 %v6211, 256
  %v6214 = vpop.permute.xlu0 %6213
  %v6215 = vlaneseq
  %v6216 = vshrl.u32 %v6215, 7
  %v6217 = vsub.s32 0, %v6216
  %v6218 = vrot.slane %v6101, %v6217
  %6220 = vbcast.lane.b32.xlu0 %v6218, 256
  %v6221 = vpop.permute.xlu0 %6220
  %v6222 = vlaneseq
  %v6223 = vshrl.u32 %v6222, 7
  %v6224 = vsub.s32 1, %v6223
  %v6225 = vrot.slane %v6101, %v6224
  %6227 = vbcast.lane.b32.xlu0 %v6225, 256
  %v6228 = vpop.permute.xlu0 %6227
  %v6229 = vlaneseq
  %v6230 = vshrl.u32 %v6229, 7
  %v6231 = vsub.s32 2, %v6230
  %v6232 = vrot.slane %v6101, %v6231
  %6234 = vbcast.lane.b32.xlu0 %v6232, 256
  %v6235 = vpop.permute.xlu0 %6234
  %v6236 = vlaneseq
  %v6237 = vshrl.u32 %v6236, 7
  %v6238 = vsub.s32 3, %v6237
  %v6239 = vrot.slane %v6101, %v6238
  %6241 = vbcast.lane.b32.xlu0 %v6239, 256
  %v6242 = vpop.permute.xlu0 %6241
  %v6243 = vlaneseq
  %v6244 = vshrl.u32 %v6243, 7
  %v6245 = vsub.s32 4, %v6244
  %v6246 = vrot.slane %v6101, %v6245
  %6248 = vbcast.lane.b32.xlu0 %v6246, 256
  %v6249 = vpop.permute.xlu0 %6248
  %v6250 = vlaneseq
  %v6251 = vshrl.u32 %v6250, 7
  %v6252 = vsub.s32 5, %v6251
  %v6253 = vrot.slane %v6101, %v6252
  %6255 = vbcast.lane.b32.xlu0 %v6253, 256
  %v6256 = vpop.permute.xlu0 %6255
  %v6257 = vlaneseq
  %v6258 = vshrl.u32 %v6257, 7
  %v6259 = vsub.s32 6, %v6258
  %v6260 = vrot.slane %v6101, %v6259
  %6262 = vbcast.lane.b32.xlu0 %v6260, 256
  %v6263 = vpop.permute.xlu0 %6262
  %v6264 = vlaneseq
  %v6265 = vshrl.u32 %v6264, 7
  %v6266 = vsub.s32 7, %v6265
  %v6267 = vrot.slane %v6101, %v6266
  %6269 = vbcast.lane.b32.xlu0 %v6267, 256
  %v6270 = vpop.permute.xlu0 %6269
  %v6271 = vlaneseq
  %v6272 = vshrl.u32 %v6271, 7
  %v6273 = vsub.s32 0, %v6272
  %v6274 = vrot.slane %v6102, %v6273
  %6276 = vbcast.lane.b32.xlu0 %v6274, 256
  %v6277 = vpop.permute.xlu0 %6276
  %v6278 = vlaneseq
  %v6279 = vshrl.u32 %v6278, 7
  %v6280 = vsub.s32 1, %v6279
  %v6281 = vrot.slane %v6102, %v6280
  %6283 = vbcast.lane.b32.xlu0 %v6281, 256
  %v6284 = vpop.permute.xlu0 %6283
  %v6285 = vlaneseq
  %v6286 = vshrl.u32 %v6285, 7
  %v6287 = vsub.s32 2, %v6286
  %v6288 = vrot.slane %v6102, %v6287
  %6290 = vbcast.lane.b32.xlu0 %v6288, 256
  %v6291 = vpop.permute.xlu0 %6290
  %v6292 = vlaneseq
  %v6293 = vshrl.u32 %v6292, 7
  %v6294 = vsub.s32 3, %v6293
  %v6295 = vrot.slane %v6102, %v6294
  %6297 = vbcast.lane.b32.xlu0 %v6295, 256
  %v6298 = vpop.permute.xlu0 %6297
  %v6299 = vlaneseq
  %v6300 = vshrl.u32 %v6299, 7
  %v6301 = vsub.s32 4, %v6300
  %v6302 = vrot.slane %v6102, %v6301
  %6304 = vbcast.lane.b32.xlu0 %v6302, 256
  %v6305 = vpop.permute.xlu0 %6304
  %v6306 = vlaneseq
  %v6307 = vshrl.u32 %v6306, 7
  %v6308 = vsub.s32 5, %v6307
  %v6309 = vrot.slane %v6102, %v6308
  %6311 = vbcast.lane.b32.xlu0 %v6309, 256
  %v6312 = vpop.permute.xlu0 %6311
  %v6313 = vlaneseq
  %v6314 = vshrl.u32 %v6313, 7
  %v6315 = vsub.s32 6, %v6314
  %v6316 = vrot.slane %v6102, %v6315
  %6318 = vbcast.lane.b32.xlu0 %v6316, 256
  %v6319 = vpop.permute.xlu0 %6318
  %v6320 = vlaneseq
  %v6321 = vshrl.u32 %v6320, 7
  %v6322 = vsub.s32 7, %v6321
  %v6323 = vrot.slane %v6102, %v6322
  %6325 = vbcast.lane.b32.xlu0 %v6323, 256
  %v6326 = vpop.permute.xlu0 %6325
  %v6327 = vlaneseq
  %v6328 = vshrl.u32 %v6327, 7
  %v6329 = vsub.s32 3, %v6328
  %v6330 = vrot.slane %v912, %v6329
  %v6331 = vlaneseq
  %v6332 = vshrl.u32 %v6331, 7
  %v6333 = vsub.s32 3, %v6332
  %v6334 = vrot.slane %v917, %v6333
  %v6335 = vlaneseq
  %v6336 = vshrl.u32 %v6335, 7
  %v6337 = vsub.s32 3, %v6336
  %v6338 = vrot.slane %v922, %v6337
  %v6339 = vlaneseq
  %v6340 = vshrl.u32 %v6339, 7
  %v6341 = vsub.s32 3, %v6340
  %v6342 = vrot.slane %v927, %v6341
  %v6343 = vlaneseq
  %v6344 = vshrl.u32 %v6343, 7
  %v6345 = vsub.s32 3, %v6344
  %v6346 = vrot.slane %v932, %v6345
  %v6347 = vlaneseq
  %v6348 = vshrl.u32 %v6347, 7
  %v6349 = vsub.s32 3, %v6348
  %v6350 = vrot.slane %v937, %v6349
  %v6351 = vlaneseq
  %v6352 = vshrl.u32 %v6351, 7
  %v6353 = vsub.s32 3, %v6352
  %v6354 = vrot.slane %v942, %v6353
  %v6355 = vlaneseq
  %v6356 = vshrl.u32 %v6355, 7
  %v6357 = vsub.s32 3, %v6356
  %v6358 = vrot.slane %v947, %v6357
  %v6359 = vlaneseq
  %v6360 = vshrl.u32 %v6359, 7
  %v6361 = vsub.s32 3, %v6360
  %v6362 = vrot.slane %v952, %v6361
  %v6363 = vlaneseq
  %v6364 = vshrl.u32 %v6363, 7
  %v6365 = vsub.s32 3, %v6364
  %v6366 = vrot.slane %v957, %v6365
  %v6367 = vlaneseq
  %v6368 = vshrl.u32 %v6367, 7
  %v6369 = vsub.s32 3, %v6368
  %v6370 = vrot.slane %v962, %v6369
  %v6371 = vlaneseq
  %v6372 = vshrl.u32 %v6371, 7
  %v6373 = vsub.s32 3, %v6372
  %v6374 = vrot.slane %v967, %v6373
  %v6375 = vlaneseq
  %v6376 = vshrl.u32 %v6375, 7
  %v6377 = vsub.s32 3, %v6376
  %v6378 = vrot.slane %v972, %v6377
  %v6379 = vlaneseq
  %v6380 = vshrl.u32 %v6379, 7
  %v6381 = vsub.s32 3, %v6380
  %v6382 = vrot.slane %v977, %v6381
  %v6383 = vlaneseq
  %v6384 = vshrl.u32 %v6383, 7
  %v6385 = vsub.s32 3, %v6384
  %v6386 = vrot.slane %v982, %v6385
  %v6387 = vlaneseq
  %v6388 = vshrl.u32 %v6387, 7
  %v6389 = vsub.s32 3, %v6388
  %v6390 = vrot.slane %v987, %v6389
  %v6391 = vlaneseq
  %v6392 = vshrl.u32 %v6391, 7
  %v6393 = vsub.s32 3, %v6392
  %v6394 = vrot.slane %v992, %v6393
  %v6395 = vlaneseq
  %v6396 = vshrl.u32 %v6395, 7
  %v6397 = vsub.s32 3, %v6396
  %v6398 = vrot.slane %v997, %v6397
  %v6399 = vlaneseq
  %v6400 = vshrl.u32 %v6399, 7
  %v6401 = vsub.s32 3, %v6400
  %v6402 = vrot.slane %v1002, %v6401
  %v6403 = vlaneseq
  %v6404 = vshrl.u32 %v6403, 7
  %v6405 = vsub.s32 3, %v6404
  %v6406 = vrot.slane %v1007, %v6405
  %v6407 = vlaneseq
  %v6408 = vshrl.u32 %v6407, 7
  %v6409 = vsub.s32 3, %v6408
  %v6410 = vrot.slane %v1012, %v6409
  %v6411 = vlaneseq
  %v6412 = vshrl.u32 %v6411, 7
  %v6413 = vsub.s32 3, %v6412
  %v6414 = vrot.slane %v1017, %v6413
  %v6415 = vlaneseq
  %v6416 = vshrl.u32 %v6415, 7
  %v6417 = vsub.s32 3, %v6416
  %v6418 = vrot.slane %v1022, %v6417
  %v6419 = vlaneseq
  %v6420 = vshrl.u32 %v6419, 7
  %v6421 = vsub.s32 3, %v6420
  %v6422 = vrot.slane %v1027, %v6421
  %v6423 = vlaneseq
  %v6424 = vshrl.u32 %v6423, 7
  %v6425 = vsub.s32 3, %v6424
  %v6426 = vrot.slane %v1032, %v6425
  %v6427 = vlaneseq
  %v6428 = vshrl.u32 %v6427, 7
  %v6429 = vsub.s32 3, %v6428
  %v6430 = vrot.slane %v1037, %v6429
  %v6431 = vlaneseq
  %v6432 = vshrl.u32 %v6431, 7
  %v6433 = vsub.s32 3, %v6432
  %v6434 = vrot.slane %v1042, %v6433
  %v6435 = vlaneseq
  %v6436 = vshrl.u32 %v6435, 7
  %v6437 = vsub.s32 3, %v6436
  %v6438 = vrot.slane %v1047, %v6437
  %v6439 = vlaneseq
  %v6440 = vshrl.u32 %v6439, 7
  %v6441 = vsub.s32 3, %v6440
  %v6442 = vrot.slane %v1052, %v6441
  %v6443 = vlaneseq
  %v6444 = vshrl.u32 %v6443, 7
  %v6445 = vsub.s32 3, %v6444
  %v6446 = vrot.slane %v1057, %v6445
  %v6447 = vlaneseq
  %v6448 = vshrl.u32 %v6447, 7
  %v6449 = vsub.s32 3, %v6448
  %v6450 = vrot.slane %v1062, %v6449
  %v6451 = vlaneseq
  %v6452 = vshrl.u32 %v6451, 7
  %v6453 = vsub.s32 3, %v6452
  %v6454 = vrot.slane %v1067, %v6453
  %v6455 = vmul.f32 %v6109, %v6330
  %v6456 = vmul.f32 %v6116, %v6334
  %v6457 = vmul.f32 %v6123, %v6338
  %v6458 = vmul.f32 %v6130, %v6342
  %v6459 = vmul.f32 %v6137, %v6346
  %v6460 = vmul.f32 %v6144, %v6350
  %v6461 = vmul.f32 %v6151, %v6354
  %v6462 = vmul.f32 %v6158, %v6358
  %v6463 = vmul.f32 %v6165, %v6362
  %v6464 = vmul.f32 %v6172, %v6366
  %v6465 = vmul.f32 %v6179, %v6370
  %v6466 = vmul.f32 %v6186, %v6374
  %v6467 = vmul.f32 %v6193, %v6378
  %v6468 = vmul.f32 %v6200, %v6382
  %v6469 = vmul.f32 %v6207, %v6386
  %v6470 = vmul.f32 %v6214, %v6390
  %v6471 = vmul.f32 %v6221, %v6394
  %v6472 = vmul.f32 %v6228, %v6398
  %v6473 = vmul.f32 %v6235, %v6402
  %v6474 = vmul.f32 %v6242, %v6406
  %v6475 = vmul.f32 %v6249, %v6410
  %v6476 = vmul.f32 %v6256, %v6414
  %v6477 = vmul.f32 %v6263, %v6418
  %v6478 = vmul.f32 %v6270, %v6422
  %v6479 = vmul.f32 %v6277, %v6426
  %v6480 = vmul.f32 %v6284, %v6430
  %v6481 = vmul.f32 %v6291, %v6434
  %v6482 = vmul.f32 %v6298, %v6438
  %v6483 = vmul.f32 %v6305, %v6442
  %v6484 = vmul.f32 %v6312, %v6446
  %v6485 = vmul.f32 %v6319, %v6450
  %v6486 = vmul.f32 %v6326, %v6454
  %v6487 = vadd.f32 %v6067, %v6455
  %v6488 = vadd.f32 %v6068, %v6456
  %v6489 = vadd.f32 %v6069, %v6457
  %v6490 = vadd.f32 %v6070, %v6458
  %v6491 = vadd.f32 %v6071, %v6459
  %v6492 = vadd.f32 %v6072, %v6460
  %v6493 = vadd.f32 %v6073, %v6461
  %v6494 = vadd.f32 %v6074, %v6462
  %v6495 = vadd.f32 %v6075, %v6463
  %v6496 = vadd.f32 %v6076, %v6464
  %v6497 = vadd.f32 %v6077, %v6465
  %v6498 = vadd.f32 %v6078, %v6466
  %v6499 = vadd.f32 %v6079, %v6467
  %v6500 = vadd.f32 %v6080, %v6468
  %v6501 = vadd.f32 %v6081, %v6469
  %v6502 = vadd.f32 %v6082, %v6470
  %v6503 = vadd.f32 %v6083, %v6471
  %v6504 = vadd.f32 %v6084, %v6472
  %v6505 = vadd.f32 %v6085, %v6473
  %v6506 = vadd.f32 %v6086, %v6474
  %v6507 = vadd.f32 %v6087, %v6475
  %v6508 = vadd.f32 %v6088, %v6476
  %v6509 = vadd.f32 %v6089, %v6477
  %v6510 = vadd.f32 %v6090, %v6478
  %v6511 = vadd.f32 %v6091, %v6479
  %v6512 = vadd.f32 %v6092, %v6480
  %v6513 = vadd.f32 %v6093, %v6481
  %v6514 = vadd.f32 %v6094, %v6482
  %v6515 = vadd.f32 %v6095, %v6483
  %v6516 = vadd.f32 %v6096, %v6484
  %v6517 = vadd.f32 %v6097, %v6485
  %v6518 = vadd.f32 %v6098, %v6486
  %v6519 = vmul.f32 %v4784, %v4867
  %v6520 = vmul.f32 %v4786, %v4868
  %v6521 = vmul.f32 %v4788, %v4869
  %v6522 = vmul.f32 %v4790, %v4870
  %v6523 = vlaneseq
  %v6524 = vshrl.u32 %v6523, 7
  %v6525 = vsub.s32 0, %v6524
  %v6526 = vrot.slane %v6519, %v6525
  %6528 = vbcast.lane.b32.xlu0 %v6526, 256
  %v6529 = vpop.permute.xlu0 %6528
  %v6530 = vlaneseq
  %v6531 = vshrl.u32 %v6530, 7
  %v6532 = vsub.s32 1, %v6531
  %v6533 = vrot.slane %v6519, %v6532
  %6535 = vbcast.lane.b32.xlu0 %v6533, 256
  %v6536 = vpop.permute.xlu0 %6535
  %v6537 = vlaneseq
  %v6538 = vshrl.u32 %v6537, 7
  %v6539 = vsub.s32 2, %v6538
  %v6540 = vrot.slane %v6519, %v6539
  %6542 = vbcast.lane.b32.xlu0 %v6540, 256
  %v6543 = vpop.permute.xlu0 %6542
  %v6544 = vlaneseq
  %v6545 = vshrl.u32 %v6544, 7
  %v6546 = vsub.s32 3, %v6545
  %v6547 = vrot.slane %v6519, %v6546
  %6549 = vbcast.lane.b32.xlu0 %v6547, 256
  %v6550 = vpop.permute.xlu0 %6549
  %v6551 = vlaneseq
  %v6552 = vshrl.u32 %v6551, 7
  %v6553 = vsub.s32 4, %v6552
  %v6554 = vrot.slane %v6519, %v6553
  %6556 = vbcast.lane.b32.xlu0 %v6554, 256
  %v6557 = vpop.permute.xlu0 %6556
  %v6558 = vlaneseq
  %v6559 = vshrl.u32 %v6558, 7
  %v6560 = vsub.s32 5, %v6559
  %v6561 = vrot.slane %v6519, %v6560
  %6563 = vbcast.lane.b32.xlu0 %v6561, 256
  %v6564 = vpop.permute.xlu0 %6563
  %v6565 = vlaneseq
  %v6566 = vshrl.u32 %v6565, 7
  %v6567 = vsub.s32 6, %v6566
  %v6568 = vrot.slane %v6519, %v6567
  %6570 = vbcast.lane.b32.xlu0 %v6568, 256
  %v6571 = vpop.permute.xlu0 %6570
  %v6572 = vlaneseq
  %v6573 = vshrl.u32 %v6572, 7
  %v6574 = vsub.s32 7, %v6573
  %v6575 = vrot.slane %v6519, %v6574
  %6577 = vbcast.lane.b32.xlu0 %v6575, 256
  %v6578 = vpop.permute.xlu0 %6577
  %v6579 = vlaneseq
  %v6580 = vshrl.u32 %v6579, 7
  %v6581 = vsub.s32 0, %v6580
  %v6582 = vrot.slane %v6520, %v6581
  %6584 = vbcast.lane.b32.xlu0 %v6582, 256
  %v6585 = vpop.permute.xlu0 %6584
  %v6586 = vlaneseq
  %v6587 = vshrl.u32 %v6586, 7
  %v6588 = vsub.s32 1, %v6587
  %v6589 = vrot.slane %v6520, %v6588
  %6591 = vbcast.lane.b32.xlu0 %v6589, 256
  %v6592 = vpop.permute.xlu0 %6591
  %v6593 = vlaneseq
  %v6594 = vshrl.u32 %v6593, 7
  %v6595 = vsub.s32 2, %v6594
  %v6596 = vrot.slane %v6520, %v6595
  %6598 = vbcast.lane.b32.xlu0 %v6596, 256
  %v6599 = vpop.permute.xlu0 %6598
  %v6600 = vlaneseq
  %v6601 = vshrl.u32 %v6600, 7
  %v6602 = vsub.s32 3, %v6601
  %v6603 = vrot.slane %v6520, %v6602
  %6605 = vbcast.lane.b32.xlu0 %v6603, 256
  %v6606 = vpop.permute.xlu0 %6605
  %v6607 = vlaneseq
  %v6608 = vshrl.u32 %v6607, 7
  %v6609 = vsub.s32 4, %v6608
  %v6610 = vrot.slane %v6520, %v6609
  %6612 = vbcast.lane.b32.xlu0 %v6610, 256
  %v6613 = vpop.permute.xlu0 %6612
  %v6614 = vlaneseq
  %v6615 = vshrl.u32 %v6614, 7
  %v6616 = vsub.s32 5, %v6615
  %v6617 = vrot.slane %v6520, %v6616
  %6619 = vbcast.lane.b32.xlu0 %v6617, 256
  %v6620 = vpop.permute.xlu0 %6619
  %v6621 = vlaneseq
  %v6622 = vshrl.u32 %v6621, 7
  %v6623 = vsub.s32 6, %v6622
  %v6624 = vrot.slane %v6520, %v6623
  %6626 = vbcast.lane.b32.xlu0 %v6624, 256
  %v6627 = vpop.permute.xlu0 %6626
  %v6628 = vlaneseq
  %v6629 = vshrl.u32 %v6628, 7
  %v6630 = vsub.s32 7, %v6629
  %v6631 = vrot.slane %v6520, %v6630
  %6633 = vbcast.lane.b32.xlu0 %v6631, 256
  %v6634 = vpop.permute.xlu0 %6633
  %v6635 = vlaneseq
  %v6636 = vshrl.u32 %v6635, 7
  %v6637 = vsub.s32 0, %v6636
  %v6638 = vrot.slane %v6521, %v6637
  %6640 = vbcast.lane.b32.xlu0 %v6638, 256
  %v6641 = vpop.permute.xlu0 %6640
  %v6642 = vlaneseq
  %v6643 = vshrl.u32 %v6642, 7
  %v6644 = vsub.s32 1, %v6643
  %v6645 = vrot.slane %v6521, %v6644
  %6647 = vbcast.lane.b32.xlu0 %v6645, 256
  %v6648 = vpop.permute.xlu0 %6647
  %v6649 = vlaneseq
  %v6650 = vshrl.u32 %v6649, 7
  %v6651 = vsub.s32 2, %v6650
  %v6652 = vrot.slane %v6521, %v6651
  %6654 = vbcast.lane.b32.xlu0 %v6652, 256
  %v6655 = vpop.permute.xlu0 %6654
  %v6656 = vlaneseq
  %v6657 = vshrl.u32 %v6656, 7
  %v6658 = vsub.s32 3, %v6657
  %v6659 = vrot.slane %v6521, %v6658
  %6661 = vbcast.lane.b32.xlu0 %v6659, 256
  %v6662 = vpop.permute.xlu0 %6661
  %v6663 = vlaneseq
  %v6664 = vshrl.u32 %v6663, 7
  %v6665 = vsub.s32 4, %v6664
  %v6666 = vrot.slane %v6521, %v6665
  %6668 = vbcast.lane.b32.xlu0 %v6666, 256
  %v6669 = vpop.permute.xlu0 %6668
  %v6670 = vlaneseq
  %v6671 = vshrl.u32 %v6670, 7
  %v6672 = vsub.s32 5, %v6671
  %v6673 = vrot.slane %v6521, %v6672
  %6675 = vbcast.lane.b32.xlu0 %v6673, 256
  %v6676 = vpop.permute.xlu0 %6675
  %v6677 = vlaneseq
  %v6678 = vshrl.u32 %v6677, 7
  %v6679 = vsub.s32 6, %v6678
  %v6680 = vrot.slane %v6521, %v6679
  %6682 = vbcast.lane.b32.xlu0 %v6680, 256
  %v6683 = vpop.permute.xlu0 %6682
  %v6684 = vlaneseq
  %v6685 = vshrl.u32 %v6684, 7
  %v6686 = vsub.s32 7, %v6685
  %v6687 = vrot.slane %v6521, %v6686
  %6689 = vbcast.lane.b32.xlu0 %v6687, 256
  %v6690 = vpop.permute.xlu0 %6689
  %v6691 = vlaneseq
  %v6692 = vshrl.u32 %v6691, 7
  %v6693 = vsub.s32 0, %v6692
  %v6694 = vrot.slane %v6522, %v6693
  %6696 = vbcast.lane.b32.xlu0 %v6694, 256
  %v6697 = vpop.permute.xlu0 %6696
  %v6698 = vlaneseq
  %v6699 = vshrl.u32 %v6698, 7
  %v6700 = vsub.s32 1, %v6699
  %v6701 = vrot.slane %v6522, %v6700
  %6703 = vbcast.lane.b32.xlu0 %v6701, 256
  %v6704 = vpop.permute.xlu0 %6703
  %v6705 = vlaneseq
  %v6706 = vshrl.u32 %v6705, 7
  %v6707 = vsub.s32 2, %v6706
  %v6708 = vrot.slane %v6522, %v6707
  %6710 = vbcast.lane.b32.xlu0 %v6708, 256
  %v6711 = vpop.permute.xlu0 %6710
  %v6712 = vlaneseq
  %v6713 = vshrl.u32 %v6712, 7
  %v6714 = vsub.s32 3, %v6713
  %v6715 = vrot.slane %v6522, %v6714
  %6717 = vbcast.lane.b32.xlu0 %v6715, 256
  %v6718 = vpop.permute.xlu0 %6717
  %v6719 = vlaneseq
  %v6720 = vshrl.u32 %v6719, 7
  %v6721 = vsub.s32 4, %v6720
  %v6722 = vrot.slane %v6522, %v6721
  %6724 = vbcast.lane.b32.xlu0 %v6722, 256
  %v6725 = vpop.permute.xlu0 %6724
  %v6726 = vlaneseq
  %v6727 = vshrl.u32 %v6726, 7
  %v6728 = vsub.s32 5, %v6727
  %v6729 = vrot.slane %v6522, %v6728
  %6731 = vbcast.lane.b32.xlu0 %v6729, 256
  %v6732 = vpop.permute.xlu0 %6731
  %v6733 = vlaneseq
  %v6734 = vshrl.u32 %v6733, 7
  %v6735 = vsub.s32 6, %v6734
  %v6736 = vrot.slane %v6522, %v6735
  %6738 = vbcast.lane.b32.xlu0 %v6736, 256
  %v6739 = vpop.permute.xlu0 %6738
  %v6740 = vlaneseq
  %v6741 = vshrl.u32 %v6740, 7
  %v6742 = vsub.s32 7, %v6741
  %v6743 = vrot.slane %v6522, %v6742
  %6745 = vbcast.lane.b32.xlu0 %v6743, 256
  %v6746 = vpop.permute.xlu0 %6745
  %v6747 = vlaneseq
  %v6748 = vshrl.u32 %v6747, 7
  %v6749 = vsub.s32 4, %v6748
  %v6750 = vrot.slane %v912, %v6749
  %v6751 = vlaneseq
  %v6752 = vshrl.u32 %v6751, 7
  %v6753 = vsub.s32 4, %v6752
  %v6754 = vrot.slane %v917, %v6753
  %v6755 = vlaneseq
  %v6756 = vshrl.u32 %v6755, 7
  %v6757 = vsub.s32 4, %v6756
  %v6758 = vrot.slane %v922, %v6757
  %v6759 = vlaneseq
  %v6760 = vshrl.u32 %v6759, 7
  %v6761 = vsub.s32 4, %v6760
  %v6762 = vrot.slane %v927, %v6761
  %v6763 = vlaneseq
  %v6764 = vshrl.u32 %v6763, 7
  %v6765 = vsub.s32 4, %v6764
  %v6766 = vrot.slane %v932, %v6765
  %v6767 = vlaneseq
  %v6768 = vshrl.u32 %v6767, 7
  %v6769 = vsub.s32 4, %v6768
  %v6770 = vrot.slane %v937, %v6769
  %v6771 = vlaneseq
  %v6772 = vshrl.u32 %v6771, 7
  %v6773 = vsub.s32 4, %v6772
  %v6774 = vrot.slane %v942, %v6773
  %v6775 = vlaneseq
  %v6776 = vshrl.u32 %v6775, 7
  %v6777 = vsub.s32 4, %v6776
  %v6778 = vrot.slane %v947, %v6777
  %v6779 = vlaneseq
  %v6780 = vshrl.u32 %v6779, 7
  %v6781 = vsub.s32 4, %v6780
  %v6782 = vrot.slane %v952, %v6781
  %v6783 = vlaneseq
  %v6784 = vshrl.u32 %v6783, 7
  %v6785 = vsub.s32 4, %v6784
  %v6786 = vrot.slane %v957, %v6785
  %v6787 = vlaneseq
  %v6788 = vshrl.u32 %v6787, 7
  %v6789 = vsub.s32 4, %v6788
  %v6790 = vrot.slane %v962, %v6789
  %v6791 = vlaneseq
  %v6792 = vshrl.u32 %v6791, 7
  %v6793 = vsub.s32 4, %v6792
  %v6794 = vrot.slane %v967, %v6793
  %v6795 = vlaneseq
  %v6796 = vshrl.u32 %v6795, 7
  %v6797 = vsub.s32 4, %v6796
  %v6798 = vrot.slane %v972, %v6797
  %v6799 = vlaneseq
  %v6800 = vshrl.u32 %v6799, 7
  %v6801 = vsub.s32 4, %v6800
  %v6802 = vrot.slane %v977, %v6801
  %v6803 = vlaneseq
  %v6804 = vshrl.u32 %v6803, 7
  %v6805 = vsub.s32 4, %v6804
  %v6806 = vrot.slane %v982, %v6805
  %v6807 = vlaneseq
  %v6808 = vshrl.u32 %v6807, 7
  %v6809 = vsub.s32 4, %v6808
  %v6810 = vrot.slane %v987, %v6809
  %v6811 = vlaneseq
  %v6812 = vshrl.u32 %v6811, 7
  %v6813 = vsub.s32 4, %v6812
  %v6814 = vrot.slane %v992, %v6813
  %v6815 = vlaneseq
  %v6816 = vshrl.u32 %v6815, 7
  %v6817 = vsub.s32 4, %v6816
  %v6818 = vrot.slane %v997, %v6817
  %v6819 = vlaneseq
  %v6820 = vshrl.u32 %v6819, 7
  %v6821 = vsub.s32 4, %v6820
  %v6822 = vrot.slane %v1002, %v6821
  %v6823 = vlaneseq
  %v6824 = vshrl.u32 %v6823, 7
  %v6825 = vsub.s32 4, %v6824
  %v6826 = vrot.slane %v1007, %v6825
  %v6827 = vlaneseq
  %v6828 = vshrl.u32 %v6827, 7
  %v6829 = vsub.s32 4, %v6828
  %v6830 = vrot.slane %v1012, %v6829
  %v6831 = vlaneseq
  %v6832 = vshrl.u32 %v6831, 7
  %v6833 = vsub.s32 4, %v6832
  %v6834 = vrot.slane %v1017, %v6833
  %v6835 = vlaneseq
  %v6836 = vshrl.u32 %v6835, 7
  %v6837 = vsub.s32 4, %v6836
  %v6838 = vrot.slane %v1022, %v6837
  %v6839 = vlaneseq
  %v6840 = vshrl.u32 %v6839, 7
  %v6841 = vsub.s32 4, %v6840
  %v6842 = vrot.slane %v1027, %v6841
  %v6843 = vlaneseq
  %v6844 = vshrl.u32 %v6843, 7
  %v6845 = vsub.s32 4, %v6844
  %v6846 = vrot.slane %v1032, %v6845
  %v6847 = vlaneseq
  %v6848 = vshrl.u32 %v6847, 7
  %v6849 = vsub.s32 4, %v6848
  %v6850 = vrot.slane %v1037, %v6849
  %v6851 = vlaneseq
  %v6852 = vshrl.u32 %v6851, 7
  %v6853 = vsub.s32 4, %v6852
  %v6854 = vrot.slane %v1042, %v6853
  %v6855 = vlaneseq
  %v6856 = vshrl.u32 %v6855, 7
  %v6857 = vsub.s32 4, %v6856
  %v6858 = vrot.slane %v1047, %v6857
  %v6859 = vlaneseq
  %v6860 = vshrl.u32 %v6859, 7
  %v6861 = vsub.s32 4, %v6860
  %v6862 = vrot.slane %v1052, %v6861
  %v6863 = vlaneseq
  %v6864 = vshrl.u32 %v6863, 7
  %v6865 = vsub.s32 4, %v6864
  %v6866 = vrot.slane %v1057, %v6865
  %v6867 = vlaneseq
  %v6868 = vshrl.u32 %v6867, 7
  %v6869 = vsub.s32 4, %v6868
  %v6870 = vrot.slane %v1062, %v6869
  %v6871 = vlaneseq
  %v6872 = vshrl.u32 %v6871, 7
  %v6873 = vsub.s32 4, %v6872
  %v6874 = vrot.slane %v1067, %v6873
  %v6875 = vmul.f32 %v6529, %v6750
  %v6876 = vmul.f32 %v6536, %v6754
  %v6877 = vmul.f32 %v6543, %v6758
  %v6878 = vmul.f32 %v6550, %v6762
  %v6879 = vmul.f32 %v6557, %v6766
  %v6880 = vmul.f32 %v6564, %v6770
  %v6881 = vmul.f32 %v6571, %v6774
  %v6882 = vmul.f32 %v6578, %v6778
  %v6883 = vmul.f32 %v6585, %v6782
  %v6884 = vmul.f32 %v6592, %v6786
  %v6885 = vmul.f32 %v6599, %v6790
  %v6886 = vmul.f32 %v6606, %v6794
  %v6887 = vmul.f32 %v6613, %v6798
  %v6888 = vmul.f32 %v6620, %v6802
  %v6889 = vmul.f32 %v6627, %v6806
  %v6890 = vmul.f32 %v6634, %v6810
  %v6891 = vmul.f32 %v6641, %v6814
  %v6892 = vmul.f32 %v6648, %v6818
  %v6893 = vmul.f32 %v6655, %v6822
  %v6894 = vmul.f32 %v6662, %v6826
  %v6895 = vmul.f32 %v6669, %v6830
  %v6896 = vmul.f32 %v6676, %v6834
  %v6897 = vmul.f32 %v6683, %v6838
  %v6898 = vmul.f32 %v6690, %v6842
  %v6899 = vmul.f32 %v6697, %v6846
  %v6900 = vmul.f32 %v6704, %v6850
  %v6901 = vmul.f32 %v6711, %v6854
  %v6902 = vmul.f32 %v6718, %v6858
  %v6903 = vmul.f32 %v6725, %v6862
  %v6904 = vmul.f32 %v6732, %v6866
  %v6905 = vmul.f32 %v6739, %v6870
  %v6906 = vmul.f32 %v6746, %v6874
  %v6907 = vadd.f32 %v6487, %v6875
  %v6908 = vadd.f32 %v6488, %v6876
  %v6909 = vadd.f32 %v6489, %v6877
  %v6910 = vadd.f32 %v6490, %v6878
  %v6911 = vadd.f32 %v6491, %v6879
  %v6912 = vadd.f32 %v6492, %v6880
  %v6913 = vadd.f32 %v6493, %v6881
  %v6914 = vadd.f32 %v6494, %v6882
  %v6915 = vadd.f32 %v6495, %v6883
  %v6916 = vadd.f32 %v6496, %v6884
  %v6917 = vadd.f32 %v6497, %v6885
  %v6918 = vadd.f32 %v6498, %v6886
  %v6919 = vadd.f32 %v6499, %v6887
  %v6920 = vadd.f32 %v6500, %v6888
  %v6921 = vadd.f32 %v6501, %v6889
  %v6922 = vadd.f32 %v6502, %v6890
  %v6923 = vadd.f32 %v6503, %v6891
  %v6924 = vadd.f32 %v6504, %v6892
  %v6925 = vadd.f32 %v6505, %v6893
  %v6926 = vadd.f32 %v6506, %v6894
  %v6927 = vadd.f32 %v6507, %v6895
  %v6928 = vadd.f32 %v6508, %v6896
  %v6929 = vadd.f32 %v6509, %v6897
  %v6930 = vadd.f32 %v6510, %v6898
  %v6931 = vadd.f32 %v6511, %v6899
  %v6932 = vadd.f32 %v6512, %v6900
  %v6933 = vadd.f32 %v6513, %v6901
  %v6934 = vadd.f32 %v6514, %v6902
  %v6935 = vadd.f32 %v6515, %v6903
  %v6936 = vadd.f32 %v6516, %v6904
  %v6937 = vadd.f32 %v6517, %v6905
  %v6938 = vadd.f32 %v6518, %v6906
  %v6939 = vmul.f32 %v4796, %v4867
  %v6940 = vmul.f32 %v4798, %v4868
  %v6941 = vmul.f32 %v4800, %v4869
  %v6942 = vmul.f32 %v4802, %v4870
  %v6943 = vlaneseq
  %v6944 = vshrl.u32 %v6943, 7
  %v6945 = vsub.s32 0, %v6944
  %v6946 = vrot.slane %v6939, %v6945
  %6948 = vbcast.lane.b32.xlu0 %v6946, 256
  %v6949 = vpop.permute.xlu0 %6948
  %v6950 = vlaneseq
  %v6951 = vshrl.u32 %v6950, 7
  %v6952 = vsub.s32 1, %v6951
  %v6953 = vrot.slane %v6939, %v6952
  %6955 = vbcast.lane.b32.xlu0 %v6953, 256
  %v6956 = vpop.permute.xlu0 %6955
  %v6957 = vlaneseq
  %v6958 = vshrl.u32 %v6957, 7
  %v6959 = vsub.s32 2, %v6958
  %v6960 = vrot.slane %v6939, %v6959
  %6962 = vbcast.lane.b32.xlu0 %v6960, 256
  %v6963 = vpop.permute.xlu0 %6962
  %v6964 = vlaneseq
  %v6965 = vshrl.u32 %v6964, 7
  %v6966 = vsub.s32 3, %v6965
  %v6967 = vrot.slane %v6939, %v6966
  %6969 = vbcast.lane.b32.xlu0 %v6967, 256
  %v6970 = vpop.permute.xlu0 %6969
  %v6971 = vlaneseq
  %v6972 = vshrl.u32 %v6971, 7
  %v6973 = vsub.s32 4, %v6972
  %v6974 = vrot.slane %v6939, %v6973
  %6976 = vbcast.lane.b32.xlu0 %v6974, 256
  %v6977 = vpop.permute.xlu0 %6976
  %v6978 = vlaneseq
  %v6979 = vshrl.u32 %v6978, 7
  %v6980 = vsub.s32 5, %v6979
  %v6981 = vrot.slane %v6939, %v6980
  %6983 = vbcast.lane.b32.xlu0 %v6981, 256
  %v6984 = vpop.permute.xlu0 %6983
  %v6985 = vlaneseq
  %v6986 = vshrl.u32 %v6985, 7
  %v6987 = vsub.s32 6, %v6986
  %v6988 = vrot.slane %v6939, %v6987
  %6990 = vbcast.lane.b32.xlu0 %v6988, 256
  %v6991 = vpop.permute.xlu0 %6990
  %v6992 = vlaneseq
  %v6993 = vshrl.u32 %v6992, 7
  %v6994 = vsub.s32 7, %v6993
  %v6995 = vrot.slane %v6939, %v6994
  %6997 = vbcast.lane.b32.xlu0 %v6995, 256
  %v6998 = vpop.permute.xlu0 %6997
  %v6999 = vlaneseq
  %v7000 = vshrl.u32 %v6999, 7
  %v7001 = vsub.s32 0, %v7000
  %v7002 = vrot.slane %v6940, %v7001
  %7004 = vbcast.lane.b32.xlu0 %v7002, 256
  %v7005 = vpop.permute.xlu0 %7004
  %v7006 = vlaneseq
  %v7007 = vshrl.u32 %v7006, 7
  %v7008 = vsub.s32 1, %v7007
  %v7009 = vrot.slane %v6940, %v7008
  %7011 = vbcast.lane.b32.xlu0 %v7009, 256
  %v7012 = vpop.permute.xlu0 %7011
  %v7013 = vlaneseq
  %v7014 = vshrl.u32 %v7013, 7
  %v7015 = vsub.s32 2, %v7014
  %v7016 = vrot.slane %v6940, %v7015
  %7018 = vbcast.lane.b32.xlu0 %v7016, 256
  %v7019 = vpop.permute.xlu0 %7018
  %v7020 = vlaneseq
  %v7021 = vshrl.u32 %v7020, 7
  %v7022 = vsub.s32 3, %v7021
  %v7023 = vrot.slane %v6940, %v7022
  %7025 = vbcast.lane.b32.xlu0 %v7023, 256
  %v7026 = vpop.permute.xlu0 %7025
  %v7027 = vlaneseq
  %v7028 = vshrl.u32 %v7027, 7
  %v7029 = vsub.s32 4, %v7028
  %v7030 = vrot.slane %v6940, %v7029
  %7032 = vbcast.lane.b32.xlu0 %v7030, 256
  %v7033 = vpop.permute.xlu0 %7032
  %v7034 = vlaneseq
  %v7035 = vshrl.u32 %v7034, 7
  %v7036 = vsub.s32 5, %v7035
  %v7037 = vrot.slane %v6940, %v7036
  %7039 = vbcast.lane.b32.xlu0 %v7037, 256
  %v7040 = vpop.permute.xlu0 %7039
  %v7041 = vlaneseq
  %v7042 = vshrl.u32 %v7041, 7
  %v7043 = vsub.s32 6, %v7042
  %v7044 = vrot.slane %v6940, %v7043
  %7046 = vbcast.lane.b32.xlu0 %v7044, 256
  %v7047 = vpop.permute.xlu0 %7046
  %v7048 = vlaneseq
  %v7049 = vshrl.u32 %v7048, 7
  %v7050 = vsub.s32 7, %v7049
  %v7051 = vrot.slane %v6940, %v7050
  %7053 = vbcast.lane.b32.xlu0 %v7051, 256
  %v7054 = vpop.permute.xlu0 %7053
  %v7055 = vlaneseq
  %v7056 = vshrl.u32 %v7055, 7
  %v7057 = vsub.s32 0, %v7056
  %v7058 = vrot.slane %v6941, %v7057
  %7060 = vbcast.lane.b32.xlu0 %v7058, 256
  %v7061 = vpop.permute.xlu0 %7060
  %v7062 = vlaneseq
  %v7063 = vshrl.u32 %v7062, 7
  %v7064 = vsub.s32 1, %v7063
  %v7065 = vrot.slane %v6941, %v7064
  %7067 = vbcast.lane.b32.xlu0 %v7065, 256
  %v7068 = vpop.permute.xlu0 %7067
  %v7069 = vlaneseq
  %v7070 = vshrl.u32 %v7069, 7
  %v7071 = vsub.s32 2, %v7070
  %v7072 = vrot.slane %v6941, %v7071
  %7074 = vbcast.lane.b32.xlu0 %v7072, 256
  %v7075 = vpop.permute.xlu0 %7074
  %v7076 = vlaneseq
  %v7077 = vshrl.u32 %v7076, 7
  %v7078 = vsub.s32 3, %v7077
  %v7079 = vrot.slane %v6941, %v7078
  %7081 = vbcast.lane.b32.xlu0 %v7079, 256
  %v7082 = vpop.permute.xlu0 %7081
  %v7083 = vlaneseq
  %v7084 = vshrl.u32 %v7083, 7
  %v7085 = vsub.s32 4, %v7084
  %v7086 = vrot.slane %v6941, %v7085
  %7088 = vbcast.lane.b32.xlu0 %v7086, 256
  %v7089 = vpop.permute.xlu0 %7088
  %v7090 = vlaneseq
  %v7091 = vshrl.u32 %v7090, 7
  %v7092 = vsub.s32 5, %v7091
  %v7093 = vrot.slane %v6941, %v7092
  %7095 = vbcast.lane.b32.xlu0 %v7093, 256
  %v7096 = vpop.permute.xlu0 %7095
  %v7097 = vlaneseq
  %v7098 = vshrl.u32 %v7097, 7
  %v7099 = vsub.s32 6, %v7098
  %v7100 = vrot.slane %v6941, %v7099
  %7102 = vbcast.lane.b32.xlu0 %v7100, 256
  %v7103 = vpop.permute.xlu0 %7102
  %v7104 = vlaneseq
  %v7105 = vshrl.u32 %v7104, 7
  %v7106 = vsub.s32 7, %v7105
  %v7107 = vrot.slane %v6941, %v7106
  %7109 = vbcast.lane.b32.xlu0 %v7107, 256
  %v7110 = vpop.permute.xlu0 %7109
  %v7111 = vlaneseq
  %v7112 = vshrl.u32 %v7111, 7
  %v7113 = vsub.s32 0, %v7112
  %v7114 = vrot.slane %v6942, %v7113
  %7116 = vbcast.lane.b32.xlu0 %v7114, 256
  %v7117 = vpop.permute.xlu0 %7116
  %v7118 = vlaneseq
  %v7119 = vshrl.u32 %v7118, 7
  %v7120 = vsub.s32 1, %v7119
  %v7121 = vrot.slane %v6942, %v7120
  %7123 = vbcast.lane.b32.xlu0 %v7121, 256
  %v7124 = vpop.permute.xlu0 %7123
  %v7125 = vlaneseq
  %v7126 = vshrl.u32 %v7125, 7
  %v7127 = vsub.s32 2, %v7126
  %v7128 = vrot.slane %v6942, %v7127
  %7130 = vbcast.lane.b32.xlu0 %v7128, 256
  %v7131 = vpop.permute.xlu0 %7130
  %v7132 = vlaneseq
  %v7133 = vshrl.u32 %v7132, 7
  %v7134 = vsub.s32 3, %v7133
  %v7135 = vrot.slane %v6942, %v7134
  %7137 = vbcast.lane.b32.xlu0 %v7135, 256
  %v7138 = vpop.permute.xlu0 %7137
  %v7139 = vlaneseq
  %v7140 = vshrl.u32 %v7139, 7
  %v7141 = vsub.s32 4, %v7140
  %v7142 = vrot.slane %v6942, %v7141
  %7144 = vbcast.lane.b32.xlu0 %v7142, 256
  %v7145 = vpop.permute.xlu0 %7144
  %v7146 = vlaneseq
  %v7147 = vshrl.u32 %v7146, 7
  %v7148 = vsub.s32 5, %v7147
  %v7149 = vrot.slane %v6942, %v7148
  %7151 = vbcast.lane.b32.xlu0 %v7149, 256
  %v7152 = vpop.permute.xlu0 %7151
  %v7153 = vlaneseq
  %v7154 = vshrl.u32 %v7153, 7
  %v7155 = vsub.s32 6, %v7154
  %v7156 = vrot.slane %v6942, %v7155
  %7158 = vbcast.lane.b32.xlu0 %v7156, 256
  %v7159 = vpop.permute.xlu0 %7158
  %v7160 = vlaneseq
  %v7161 = vshrl.u32 %v7160, 7
  %v7162 = vsub.s32 7, %v7161
  %v7163 = vrot.slane %v6942, %v7162
  %7165 = vbcast.lane.b32.xlu0 %v7163, 256
  %v7166 = vpop.permute.xlu0 %7165
  %v7167 = vlaneseq
  %v7168 = vshrl.u32 %v7167, 7
  %v7169 = vsub.s32 5, %v7168
  %v7170 = vrot.slane %v912, %v7169
  %v7171 = vlaneseq
  %v7172 = vshrl.u32 %v7171, 7
  %v7173 = vsub.s32 5, %v7172
  %v7174 = vrot.slane %v917, %v7173
  %v7175 = vlaneseq
  %v7176 = vshrl.u32 %v7175, 7
  %v7177 = vsub.s32 5, %v7176
  %v7178 = vrot.slane %v922, %v7177
  %v7179 = vlaneseq
  %v7180 = vshrl.u32 %v7179, 7
  %v7181 = vsub.s32 5, %v7180
  %v7182 = vrot.slane %v927, %v7181
  %v7183 = vlaneseq
  %v7184 = vshrl.u32 %v7183, 7
  %v7185 = vsub.s32 5, %v7184
  %v7186 = vrot.slane %v932, %v7185
  %v7187 = vlaneseq
  %v7188 = vshrl.u32 %v7187, 7
  %v7189 = vsub.s32 5, %v7188
  %v7190 = vrot.slane %v937, %v7189
  %v7191 = vlaneseq
  %v7192 = vshrl.u32 %v7191, 7
  %v7193 = vsub.s32 5, %v7192
  %v7194 = vrot.slane %v942, %v7193
  %v7195 = vlaneseq
  %v7196 = vshrl.u32 %v7195, 7
  %v7197 = vsub.s32 5, %v7196
  %v7198 = vrot.slane %v947, %v7197
  %v7199 = vlaneseq
  %v7200 = vshrl.u32 %v7199, 7
  %v7201 = vsub.s32 5, %v7200
  %v7202 = vrot.slane %v952, %v7201
  %v7203 = vlaneseq
  %v7204 = vshrl.u32 %v7203, 7
  %v7205 = vsub.s32 5, %v7204
  %v7206 = vrot.slane %v957, %v7205
  %v7207 = vlaneseq
  %v7208 = vshrl.u32 %v7207, 7
  %v7209 = vsub.s32 5, %v7208
  %v7210 = vrot.slane %v962, %v7209
  %v7211 = vlaneseq
  %v7212 = vshrl.u32 %v7211, 7
  %v7213 = vsub.s32 5, %v7212
  %v7214 = vrot.slane %v967, %v7213
  %v7215 = vlaneseq
  %v7216 = vshrl.u32 %v7215, 7
  %v7217 = vsub.s32 5, %v7216
  %v7218 = vrot.slane %v972, %v7217
  %v7219 = vlaneseq
  %v7220 = vshrl.u32 %v7219, 7
  %v7221 = vsub.s32 5, %v7220
  %v7222 = vrot.slane %v977, %v7221
  %v7223 = vlaneseq
  %v7224 = vshrl.u32 %v7223, 7
  %v7225 = vsub.s32 5, %v7224
  %v7226 = vrot.slane %v982, %v7225
  %v7227 = vlaneseq
  %v7228 = vshrl.u32 %v7227, 7
  %v7229 = vsub.s32 5, %v7228
  %v7230 = vrot.slane %v987, %v7229
  %v7231 = vlaneseq
  %v7232 = vshrl.u32 %v7231, 7
  %v7233 = vsub.s32 5, %v7232
  %v7234 = vrot.slane %v992, %v7233
  %v7235 = vlaneseq
  %v7236 = vshrl.u32 %v7235, 7
  %v7237 = vsub.s32 5, %v7236
  %v7238 = vrot.slane %v997, %v7237
  %v7239 = vlaneseq
  %v7240 = vshrl.u32 %v7239, 7
  %v7241 = vsub.s32 5, %v7240
  %v7242 = vrot.slane %v1002, %v7241
  %v7243 = vlaneseq
  %v7244 = vshrl.u32 %v7243, 7
  %v7245 = vsub.s32 5, %v7244
  %v7246 = vrot.slane %v1007, %v7245
  %v7247 = vlaneseq
  %v7248 = vshrl.u32 %v7247, 7
  %v7249 = vsub.s32 5, %v7248
  %v7250 = vrot.slane %v1012, %v7249
  %v7251 = vlaneseq
  %v7252 = vshrl.u32 %v7251, 7
  %v7253 = vsub.s32 5, %v7252
  %v7254 = vrot.slane %v1017, %v7253
  %v7255 = vlaneseq
  %v7256 = vshrl.u32 %v7255, 7
  %v7257 = vsub.s32 5, %v7256
  %v7258 = vrot.slane %v1022, %v7257
  %v7259 = vlaneseq
  %v7260 = vshrl.u32 %v7259, 7
  %v7261 = vsub.s32 5, %v7260
  %v7262 = vrot.slane %v1027, %v7261
  %v7263 = vlaneseq
  %v7264 = vshrl.u32 %v7263, 7
  %v7265 = vsub.s32 5, %v7264
  %v7266 = vrot.slane %v1032, %v7265
  %v7267 = vlaneseq
  %v7268 = vshrl.u32 %v7267, 7
  %v7269 = vsub.s32 5, %v7268
  %v7270 = vrot.slane %v1037, %v7269
  %v7271 = vlaneseq
  %v7272 = vshrl.u32 %v7271, 7
  %v7273 = vsub.s32 5, %v7272
  %v7274 = vrot.slane %v1042, %v7273
  %v7275 = vlaneseq
  %v7276 = vshrl.u32 %v7275, 7
  %v7277 = vsub.s32 5, %v7276
  %v7278 = vrot.slane %v1047, %v7277
  %v7279 = vlaneseq
  %v7280 = vshrl.u32 %v7279, 7
  %v7281 = vsub.s32 5, %v7280
  %v7282 = vrot.slane %v1052, %v7281
  %v7283 = vlaneseq
  %v7284 = vshrl.u32 %v7283, 7
  %v7285 = vsub.s32 5, %v7284
  %v7286 = vrot.slane %v1057, %v7285
  %v7287 = vlaneseq
  %v7288 = vshrl.u32 %v7287, 7
  %v7289 = vsub.s32 5, %v7288
  %v7290 = vrot.slane %v1062, %v7289
  %v7291 = vlaneseq
  %v7292 = vshrl.u32 %v7291, 7
  %v7293 = vsub.s32 5, %v7292
  %v7294 = vrot.slane %v1067, %v7293
  %v7295 = vmul.f32 %v6949, %v7170
  %v7296 = vmul.f32 %v6956, %v7174
  %v7297 = vmul.f32 %v6963, %v7178
  %v7298 = vmul.f32 %v6970, %v7182
  %v7299 = vmul.f32 %v6977, %v7186
  %v7300 = vmul.f32 %v6984, %v7190
  %v7301 = vmul.f32 %v6991, %v7194
  %v7302 = vmul.f32 %v6998, %v7198
  %v7303 = vmul.f32 %v7005, %v7202
  %v7304 = vmul.f32 %v7012, %v7206
  %v7305 = vmul.f32 %v7019, %v7210
  %v7306 = vmul.f32 %v7026, %v7214
  %v7307 = vmul.f32 %v7033, %v7218
  %v7308 = vmul.f32 %v7040, %v7222
  %v7309 = vmul.f32 %v7047, %v7226
  %v7310 = vmul.f32 %v7054, %v7230
  %v7311 = vmul.f32 %v7061, %v7234
  %v7312 = vmul.f32 %v7068, %v7238
  %v7313 = vmul.f32 %v7075, %v7242
  %v7314 = vmul.f32 %v7082, %v7246
  %v7315 = vmul.f32 %v7089, %v7250
  %v7316 = vmul.f32 %v7096, %v7254
  %v7317 = vmul.f32 %v7103, %v7258
  %v7318 = vmul.f32 %v7110, %v7262
  %v7319 = vmul.f32 %v7117, %v7266
  %v7320 = vmul.f32 %v7124, %v7270
  %v7321 = vmul.f32 %v7131, %v7274
  %v7322 = vmul.f32 %v7138, %v7278
  %v7323 = vmul.f32 %v7145, %v7282
  %v7324 = vmul.f32 %v7152, %v7286
  %v7325 = vmul.f32 %v7159, %v7290
  %v7326 = vmul.f32 %v7166, %v7294
  %v7327 = vadd.f32 %v6907, %v7295
  %v7328 = vadd.f32 %v6908, %v7296
  %v7329 = vadd.f32 %v6909, %v7297
  %v7330 = vadd.f32 %v6910, %v7298
  %v7331 = vadd.f32 %v6911, %v7299
  %v7332 = vadd.f32 %v6912, %v7300
  %v7333 = vadd.f32 %v6913, %v7301
  %v7334 = vadd.f32 %v6914, %v7302
  %v7335 = vadd.f32 %v6915, %v7303
  %v7336 = vadd.f32 %v6916, %v7304
  %v7337 = vadd.f32 %v6917, %v7305
  %v7338 = vadd.f32 %v6918, %v7306
  %v7339 = vadd.f32 %v6919, %v7307
  %v7340 = vadd.f32 %v6920, %v7308
  %v7341 = vadd.f32 %v6921, %v7309
  %v7342 = vadd.f32 %v6922, %v7310
  %v7343 = vadd.f32 %v6923, %v7311
  %v7344 = vadd.f32 %v6924, %v7312
  %v7345 = vadd.f32 %v6925, %v7313
  %v7346 = vadd.f32 %v6926, %v7314
  %v7347 = vadd.f32 %v6927, %v7315
  %v7348 = vadd.f32 %v6928, %v7316
  %v7349 = vadd.f32 %v6929, %v7317
  %v7350 = vadd.f32 %v6930, %v7318
  %v7351 = vadd.f32 %v6931, %v7319
  %v7352 = vadd.f32 %v6932, %v7320
  %v7353 = vadd.f32 %v6933, %v7321
  %v7354 = vadd.f32 %v6934, %v7322
  %v7355 = vadd.f32 %v6935, %v7323
  %v7356 = vadd.f32 %v6936, %v7324
  %v7357 = vadd.f32 %v6937, %v7325
  %v7358 = vadd.f32 %v6938, %v7326
  %v7359 = vmul.f32 %v4808, %v4867
  %v7360 = vmul.f32 %v4810, %v4868
  %v7361 = vmul.f32 %v4812, %v4869
  %v7362 = vmul.f32 %v4814, %v4870
  %v7363 = vlaneseq
  %v7364 = vshrl.u32 %v7363, 7
  %v7365 = vsub.s32 0, %v7364
  %v7366 = vrot.slane %v7359, %v7365
  %7368 = vbcast.lane.b32.xlu0 %v7366, 256
  %v7369 = vpop.permute.xlu0 %7368
  %v7370 = vlaneseq
  %v7371 = vshrl.u32 %v7370, 7
  %v7372 = vsub.s32 1, %v7371
  %v7373 = vrot.slane %v7359, %v7372
  %7375 = vbcast.lane.b32.xlu0 %v7373, 256
  %v7376 = vpop.permute.xlu0 %7375
  %v7377 = vlaneseq
  %v7378 = vshrl.u32 %v7377, 7
  %v7379 = vsub.s32 2, %v7378
  %v7380 = vrot.slane %v7359, %v7379
  %7382 = vbcast.lane.b32.xlu0 %v7380, 256
  %v7383 = vpop.permute.xlu0 %7382
  %v7384 = vlaneseq
  %v7385 = vshrl.u32 %v7384, 7
  %v7386 = vsub.s32 3, %v7385
  %v7387 = vrot.slane %v7359, %v7386
  %7389 = vbcast.lane.b32.xlu0 %v7387, 256
  %v7390 = vpop.permute.xlu0 %7389
  %v7391 = vlaneseq
  %v7392 = vshrl.u32 %v7391, 7
  %v7393 = vsub.s32 4, %v7392
  %v7394 = vrot.slane %v7359, %v7393
  %7396 = vbcast.lane.b32.xlu0 %v7394, 256
  %v7397 = vpop.permute.xlu0 %7396
  %v7398 = vlaneseq
  %v7399 = vshrl.u32 %v7398, 7
  %v7400 = vsub.s32 5, %v7399
  %v7401 = vrot.slane %v7359, %v7400
  %7403 = vbcast.lane.b32.xlu0 %v7401, 256
  %v7404 = vpop.permute.xlu0 %7403
  %v7405 = vlaneseq
  %v7406 = vshrl.u32 %v7405, 7
  %v7407 = vsub.s32 6, %v7406
  %v7408 = vrot.slane %v7359, %v7407
  %7410 = vbcast.lane.b32.xlu0 %v7408, 256
  %v7411 = vpop.permute.xlu0 %7410
  %v7412 = vlaneseq
  %v7413 = vshrl.u32 %v7412, 7
  %v7414 = vsub.s32 7, %v7413
  %v7415 = vrot.slane %v7359, %v7414
  %7417 = vbcast.lane.b32.xlu0 %v7415, 256
  %v7418 = vpop.permute.xlu0 %7417
  %v7419 = vlaneseq
  %v7420 = vshrl.u32 %v7419, 7
  %v7421 = vsub.s32 0, %v7420
  %v7422 = vrot.slane %v7360, %v7421
  %7424 = vbcast.lane.b32.xlu0 %v7422, 256
  %v7425 = vpop.permute.xlu0 %7424
  %v7426 = vlaneseq
  %v7427 = vshrl.u32 %v7426, 7
  %v7428 = vsub.s32 1, %v7427
  %v7429 = vrot.slane %v7360, %v7428
  %7431 = vbcast.lane.b32.xlu0 %v7429, 256
  %v7432 = vpop.permute.xlu0 %7431
  %v7433 = vlaneseq
  %v7434 = vshrl.u32 %v7433, 7
  %v7435 = vsub.s32 2, %v7434
  %v7436 = vrot.slane %v7360, %v7435
  %7438 = vbcast.lane.b32.xlu0 %v7436, 256
  %v7439 = vpop.permute.xlu0 %7438
  %v7440 = vlaneseq
  %v7441 = vshrl.u32 %v7440, 7
  %v7442 = vsub.s32 3, %v7441
  %v7443 = vrot.slane %v7360, %v7442
  %7445 = vbcast.lane.b32.xlu0 %v7443, 256
  %v7446 = vpop.permute.xlu0 %7445
  %v7447 = vlaneseq
  %v7448 = vshrl.u32 %v7447, 7
  %v7449 = vsub.s32 4, %v7448
  %v7450 = vrot.slane %v7360, %v7449
  %7452 = vbcast.lane.b32.xlu0 %v7450, 256
  %v7453 = vpop.permute.xlu0 %7452
  %v7454 = vlaneseq
  %v7455 = vshrl.u32 %v7454, 7
  %v7456 = vsub.s32 5, %v7455
  %v7457 = vrot.slane %v7360, %v7456
  %7459 = vbcast.lane.b32.xlu0 %v7457, 256
  %v7460 = vpop.permute.xlu0 %7459
  %v7461 = vlaneseq
  %v7462 = vshrl.u32 %v7461, 7
  %v7463 = vsub.s32 6, %v7462
  %v7464 = vrot.slane %v7360, %v7463
  %7466 = vbcast.lane.b32.xlu0 %v7464, 256
  %v7467 = vpop.permute.xlu0 %7466
  %v7468 = vlaneseq
  %v7469 = vshrl.u32 %v7468, 7
  %v7470 = vsub.s32 7, %v7469
  %v7471 = vrot.slane %v7360, %v7470
  %7473 = vbcast.lane.b32.xlu0 %v7471, 256
  %v7474 = vpop.permute.xlu0 %7473
  %v7475 = vlaneseq
  %v7476 = vshrl.u32 %v7475, 7
  %v7477 = vsub.s32 0, %v7476
  %v7478 = vrot.slane %v7361, %v7477
  %7480 = vbcast.lane.b32.xlu0 %v7478, 256
  %v7481 = vpop.permute.xlu0 %7480
  %v7482 = vlaneseq
  %v7483 = vshrl.u32 %v7482, 7
  %v7484 = vsub.s32 1, %v7483
  %v7485 = vrot.slane %v7361, %v7484
  %7487 = vbcast.lane.b32.xlu0 %v7485, 256
  %v7488 = vpop.permute.xlu0 %7487
  %v7489 = vlaneseq
  %v7490 = vshrl.u32 %v7489, 7
  %v7491 = vsub.s32 2, %v7490
  %v7492 = vrot.slane %v7361, %v7491
  %7494 = vbcast.lane.b32.xlu0 %v7492, 256
  %v7495 = vpop.permute.xlu0 %7494
  %v7496 = vlaneseq
  %v7497 = vshrl.u32 %v7496, 7
  %v7498 = vsub.s32 3, %v7497
  %v7499 = vrot.slane %v7361, %v7498
  %7501 = vbcast.lane.b32.xlu0 %v7499, 256
  %v7502 = vpop.permute.xlu0 %7501
  %v7503 = vlaneseq
  %v7504 = vshrl.u32 %v7503, 7
  %v7505 = vsub.s32 4, %v7504
  %v7506 = vrot.slane %v7361, %v7505
  %7508 = vbcast.lane.b32.xlu0 %v7506, 256
  %v7509 = vpop.permute.xlu0 %7508
  %v7510 = vlaneseq
  %v7511 = vshrl.u32 %v7510, 7
  %v7512 = vsub.s32 5, %v7511
  %v7513 = vrot.slane %v7361, %v7512
  %7515 = vbcast.lane.b32.xlu0 %v7513, 256
  %v7516 = vpop.permute.xlu0 %7515
  %v7517 = vlaneseq
  %v7518 = vshrl.u32 %v7517, 7
  %v7519 = vsub.s32 6, %v7518
  %v7520 = vrot.slane %v7361, %v7519
  %7522 = vbcast.lane.b32.xlu0 %v7520, 256
  %v7523 = vpop.permute.xlu0 %7522
  %v7524 = vlaneseq
  %v7525 = vshrl.u32 %v7524, 7
  %v7526 = vsub.s32 7, %v7525
  %v7527 = vrot.slane %v7361, %v7526
  %7529 = vbcast.lane.b32.xlu0 %v7527, 256
  %v7530 = vpop.permute.xlu0 %7529
  %v7531 = vlaneseq
  %v7532 = vshrl.u32 %v7531, 7
  %v7533 = vsub.s32 0, %v7532
  %v7534 = vrot.slane %v7362, %v7533
  %7536 = vbcast.lane.b32.xlu0 %v7534, 256
  %v7537 = vpop.permute.xlu0 %7536
  %v7538 = vlaneseq
  %v7539 = vshrl.u32 %v7538, 7
  %v7540 = vsub.s32 1, %v7539
  %v7541 = vrot.slane %v7362, %v7540
  %7543 = vbcast.lane.b32.xlu0 %v7541, 256
  %v7544 = vpop.permute.xlu0 %7543
  %v7545 = vlaneseq
  %v7546 = vshrl.u32 %v7545, 7
  %v7547 = vsub.s32 2, %v7546
  %v7548 = vrot.slane %v7362, %v7547
  %7550 = vbcast.lane.b32.xlu0 %v7548, 256
  %v7551 = vpop.permute.xlu0 %7550
  %v7552 = vlaneseq
  %v7553 = vshrl.u32 %v7552, 7
  %v7554 = vsub.s32 3, %v7553
  %v7555 = vrot.slane %v7362, %v7554
  %7557 = vbcast.lane.b32.xlu0 %v7555, 256
  %v7558 = vpop.permute.xlu0 %7557
  %v7559 = vlaneseq
  %v7560 = vshrl.u32 %v7559, 7
  %v7561 = vsub.s32 4, %v7560
  %v7562 = vrot.slane %v7362, %v7561
  %7564 = vbcast.lane.b32.xlu0 %v7562, 256
  %v7565 = vpop.permute.xlu0 %7564
  %v7566 = vlaneseq
  %v7567 = vshrl.u32 %v7566, 7
  %v7568 = vsub.s32 5, %v7567
  %v7569 = vrot.slane %v7362, %v7568
  %7571 = vbcast.lane.b32.xlu0 %v7569, 256
  %v7572 = vpop.permute.xlu0 %7571
  %v7573 = vlaneseq
  %v7574 = vshrl.u32 %v7573, 7
  %v7575 = vsub.s32 6, %v7574
  %v7576 = vrot.slane %v7362, %v7575
  %7578 = vbcast.lane.b32.xlu0 %v7576, 256
  %v7579 = vpop.permute.xlu0 %7578
  %v7580 = vlaneseq
  %v7581 = vshrl.u32 %v7580, 7
  %v7582 = vsub.s32 7, %v7581
  %v7583 = vrot.slane %v7362, %v7582
  %7585 = vbcast.lane.b32.xlu0 %v7583, 256
  %v7586 = vpop.permute.xlu0 %7585
  %v7587 = vlaneseq
  %v7588 = vshrl.u32 %v7587, 7
  %v7589 = vsub.s32 6, %v7588
  %v7590 = vrot.slane %v912, %v7589
  %v7591 = vlaneseq
  %v7592 = vshrl.u32 %v7591, 7
  %v7593 = vsub.s32 6, %v7592
  %v7594 = vrot.slane %v917, %v7593
  %v7595 = vlaneseq
  %v7596 = vshrl.u32 %v7595, 7
  %v7597 = vsub.s32 6, %v7596
  %v7598 = vrot.slane %v922, %v7597
  %v7599 = vlaneseq
  %v7600 = vshrl.u32 %v7599, 7
  %v7601 = vsub.s32 6, %v7600
  %v7602 = vrot.slane %v927, %v7601
  %v7603 = vlaneseq
  %v7604 = vshrl.u32 %v7603, 7
  %v7605 = vsub.s32 6, %v7604
  %v7606 = vrot.slane %v932, %v7605
  %v7607 = vlaneseq
  %v7608 = vshrl.u32 %v7607, 7
  %v7609 = vsub.s32 6, %v7608
  %v7610 = vrot.slane %v937, %v7609
  %v7611 = vlaneseq
  %v7612 = vshrl.u32 %v7611, 7
  %v7613 = vsub.s32 6, %v7612
  %v7614 = vrot.slane %v942, %v7613
  %v7615 = vlaneseq
  %v7616 = vshrl.u32 %v7615, 7
  %v7617 = vsub.s32 6, %v7616
  %v7618 = vrot.slane %v947, %v7617
  %v7619 = vlaneseq
  %v7620 = vshrl.u32 %v7619, 7
  %v7621 = vsub.s32 6, %v7620
  %v7622 = vrot.slane %v952, %v7621
  %v7623 = vlaneseq
  %v7624 = vshrl.u32 %v7623, 7
  %v7625 = vsub.s32 6, %v7624
  %v7626 = vrot.slane %v957, %v7625
  %v7627 = vlaneseq
  %v7628 = vshrl.u32 %v7627, 7
  %v7629 = vsub.s32 6, %v7628
  %v7630 = vrot.slane %v962, %v7629
  %v7631 = vlaneseq
  %v7632 = vshrl.u32 %v7631, 7
  %v7633 = vsub.s32 6, %v7632
  %v7634 = vrot.slane %v967, %v7633
  %v7635 = vlaneseq
  %v7636 = vshrl.u32 %v7635, 7
  %v7637 = vsub.s32 6, %v7636
  %v7638 = vrot.slane %v972, %v7637
  %v7639 = vlaneseq
  %v7640 = vshrl.u32 %v7639, 7
  %v7641 = vsub.s32 6, %v7640
  %v7642 = vrot.slane %v977, %v7641
  %v7643 = vlaneseq
  %v7644 = vshrl.u32 %v7643, 7
  %v7645 = vsub.s32 6, %v7644
  %v7646 = vrot.slane %v982, %v7645
  %v7647 = vlaneseq
  %v7648 = vshrl.u32 %v7647, 7
  %v7649 = vsub.s32 6, %v7648
  %v7650 = vrot.slane %v987, %v7649
  %v7651 = vlaneseq
  %v7652 = vshrl.u32 %v7651, 7
  %v7653 = vsub.s32 6, %v7652
  %v7654 = vrot.slane %v992, %v7653
  %v7655 = vlaneseq
  %v7656 = vshrl.u32 %v7655, 7
  %v7657 = vsub.s32 6, %v7656
  %v7658 = vrot.slane %v997, %v7657
  %v7659 = vlaneseq
  %v7660 = vshrl.u32 %v7659, 7
  %v7661 = vsub.s32 6, %v7660
  %v7662 = vrot.slane %v1002, %v7661
  %v7663 = vlaneseq
  %v7664 = vshrl.u32 %v7663, 7
  %v7665 = vsub.s32 6, %v7664
  %v7666 = vrot.slane %v1007, %v7665
  %v7667 = vlaneseq
  %v7668 = vshrl.u32 %v7667, 7
  %v7669 = vsub.s32 6, %v7668
  %v7670 = vrot.slane %v1012, %v7669
  %v7671 = vlaneseq
  %v7672 = vshrl.u32 %v7671, 7
  %v7673 = vsub.s32 6, %v7672
  %v7674 = vrot.slane %v1017, %v7673
  %v7675 = vlaneseq
  %v7676 = vshrl.u32 %v7675, 7
  %v7677 = vsub.s32 6, %v7676
  %v7678 = vrot.slane %v1022, %v7677
  %v7679 = vlaneseq
  %v7680 = vshrl.u32 %v7679, 7
  %v7681 = vsub.s32 6, %v7680
  %v7682 = vrot.slane %v1027, %v7681
  %v7683 = vlaneseq
  %v7684 = vshrl.u32 %v7683, 7
  %v7685 = vsub.s32 6, %v7684
  %v7686 = vrot.slane %v1032, %v7685
  %v7687 = vlaneseq
  %v7688 = vshrl.u32 %v7687, 7
  %v7689 = vsub.s32 6, %v7688
  %v7690 = vrot.slane %v1037, %v7689
  %v7691 = vlaneseq
  %v7692 = vshrl.u32 %v7691, 7
  %v7693 = vsub.s32 6, %v7692
  %v7694 = vrot.slane %v1042, %v7693
  %v7695 = vlaneseq
  %v7696 = vshrl.u32 %v7695, 7
  %v7697 = vsub.s32 6, %v7696
  %v7698 = vrot.slane %v1047, %v7697
  %v7699 = vlaneseq
  %v7700 = vshrl.u32 %v7699, 7
  %v7701 = vsub.s32 6, %v7700
  %v7702 = vrot.slane %v1052, %v7701
  %v7703 = vlaneseq
  %v7704 = vshrl.u32 %v7703, 7
  %v7705 = vsub.s32 6, %v7704
  %v7706 = vrot.slane %v1057, %v7705
  %v7707 = vlaneseq
  %v7708 = vshrl.u32 %v7707, 7
  %v7709 = vsub.s32 6, %v7708
  %v7710 = vrot.slane %v1062, %v7709
  %v7711 = vlaneseq
  %v7712 = vshrl.u32 %v7711, 7
  %v7713 = vsub.s32 6, %v7712
  %v7714 = vrot.slane %v1067, %v7713
  %v7715 = vmul.f32 %v7369, %v7590
  %v7716 = vmul.f32 %v7376, %v7594
  %v7717 = vmul.f32 %v7383, %v7598
  %v7718 = vmul.f32 %v7390, %v7602
  %v7719 = vmul.f32 %v7397, %v7606
  %v7720 = vmul.f32 %v7404, %v7610
  %v7721 = vmul.f32 %v7411, %v7614
  %v7722 = vmul.f32 %v7418, %v7618
  %v7723 = vmul.f32 %v7425, %v7622
  %v7724 = vmul.f32 %v7432, %v7626
  %v7725 = vmul.f32 %v7439, %v7630
  %v7726 = vmul.f32 %v7446, %v7634
  %v7727 = vmul.f32 %v7453, %v7638
  %v7728 = vmul.f32 %v7460, %v7642
  %v7729 = vmul.f32 %v7467, %v7646
  %v7730 = vmul.f32 %v7474, %v7650
  %v7731 = vmul.f32 %v7481, %v7654
  %v7732 = vmul.f32 %v7488, %v7658
  %v7733 = vmul.f32 %v7495, %v7662
  %v7734 = vmul.f32 %v7502, %v7666
  %v7735 = vmul.f32 %v7509, %v7670
  %v7736 = vmul.f32 %v7516, %v7674
  %v7737 = vmul.f32 %v7523, %v7678
  %v7738 = vmul.f32 %v7530, %v7682
  %v7739 = vmul.f32 %v7537, %v7686
  %v7740 = vmul.f32 %v7544, %v7690
  %v7741 = vmul.f32 %v7551, %v7694
  %v7742 = vmul.f32 %v7558, %v7698
  %v7743 = vmul.f32 %v7565, %v7702
  %v7744 = vmul.f32 %v7572, %v7706
  %v7745 = vmul.f32 %v7579, %v7710
  %v7746 = vmul.f32 %v7586, %v7714
  %v7747 = vadd.f32 %v7327, %v7715
  %v7748 = vadd.f32 %v7328, %v7716
  %v7749 = vadd.f32 %v7329, %v7717
  %v7750 = vadd.f32 %v7330, %v7718
  %v7751 = vadd.f32 %v7331, %v7719
  %v7752 = vadd.f32 %v7332, %v7720
  %v7753 = vadd.f32 %v7333, %v7721
  %v7754 = vadd.f32 %v7334, %v7722
  %v7755 = vadd.f32 %v7335, %v7723
  %v7756 = vadd.f32 %v7336, %v7724
  %v7757 = vadd.f32 %v7337, %v7725
  %v7758 = vadd.f32 %v7338, %v7726
  %v7759 = vadd.f32 %v7339, %v7727
  %v7760 = vadd.f32 %v7340, %v7728
  %v7761 = vadd.f32 %v7341, %v7729
  %v7762 = vadd.f32 %v7342, %v7730
  %v7763 = vadd.f32 %v7343, %v7731
  %v7764 = vadd.f32 %v7344, %v7732
  %v7765 = vadd.f32 %v7345, %v7733
  %v7766 = vadd.f32 %v7346, %v7734
  %v7767 = vadd.f32 %v7347, %v7735
  %v7768 = vadd.f32 %v7348, %v7736
  %v7769 = vadd.f32 %v7349, %v7737
  %v7770 = vadd.f32 %v7350, %v7738
  %v7771 = vadd.f32 %v7351, %v7739
  %v7772 = vadd.f32 %v7352, %v7740
  %v7773 = vadd.f32 %v7353, %v7741
  %v7774 = vadd.f32 %v7354, %v7742
  %v7775 = vadd.f32 %v7355, %v7743
  %v7776 = vadd.f32 %v7356, %v7744
  %v7777 = vadd.f32 %v7357, %v7745
  %v7778 = vadd.f32 %v7358, %v7746
  %v7779 = vmul.f32 %v4820, %v4867
  %v7780 = vmul.f32 %v4822, %v4868
  %v7781 = vmul.f32 %v4824, %v4869
  %v7782 = vmul.f32 %v4826, %v4870
  %v7783 = vlaneseq
  %v7784 = vshrl.u32 %v7783, 7
  %v7785 = vsub.s32 0, %v7784
  %v7786 = vrot.slane %v7779, %v7785
  %7788 = vbcast.lane.b32.xlu0 %v7786, 256
  %v7789 = vpop.permute.xlu0 %7788
  %v7790 = vlaneseq
  %v7791 = vshrl.u32 %v7790, 7
  %v7792 = vsub.s32 1, %v7791
  %v7793 = vrot.slane %v7779, %v7792
  %7795 = vbcast.lane.b32.xlu0 %v7793, 256
  %v7796 = vpop.permute.xlu0 %7795
  %v7797 = vlaneseq
  %v7798 = vshrl.u32 %v7797, 7
  %v7799 = vsub.s32 2, %v7798
  %v7800 = vrot.slane %v7779, %v7799
  %7802 = vbcast.lane.b32.xlu0 %v7800, 256
  %v7803 = vpop.permute.xlu0 %7802
  %v7804 = vlaneseq
  %v7805 = vshrl.u32 %v7804, 7
  %v7806 = vsub.s32 3, %v7805
  %v7807 = vrot.slane %v7779, %v7806
  %7809 = vbcast.lane.b32.xlu0 %v7807, 256
  %v7810 = vpop.permute.xlu0 %7809
  %v7811 = vlaneseq
  %v7812 = vshrl.u32 %v7811, 7
  %v7813 = vsub.s32 4, %v7812
  %v7814 = vrot.slane %v7779, %v7813
  %7816 = vbcast.lane.b32.xlu0 %v7814, 256
  %v7817 = vpop.permute.xlu0 %7816
  %v7818 = vlaneseq
  %v7819 = vshrl.u32 %v7818, 7
  %v7820 = vsub.s32 5, %v7819
  %v7821 = vrot.slane %v7779, %v7820
  %7823 = vbcast.lane.b32.xlu0 %v7821, 256
  %v7824 = vpop.permute.xlu0 %7823
  %v7825 = vlaneseq
  %v7826 = vshrl.u32 %v7825, 7
  %v7827 = vsub.s32 6, %v7826
  %v7828 = vrot.slane %v7779, %v7827
  %7830 = vbcast.lane.b32.xlu0 %v7828, 256
  %v7831 = vpop.permute.xlu0 %7830
  %v7832 = vlaneseq
  %v7833 = vshrl.u32 %v7832, 7
  %v7834 = vsub.s32 7, %v7833
  %v7835 = vrot.slane %v7779, %v7834
  %7837 = vbcast.lane.b32.xlu0 %v7835, 256
  %v7838 = vpop.permute.xlu0 %7837
  %v7839 = vlaneseq
  %v7840 = vshrl.u32 %v7839, 7
  %v7841 = vsub.s32 0, %v7840
  %v7842 = vrot.slane %v7780, %v7841
  %7844 = vbcast.lane.b32.xlu0 %v7842, 256
  %v7845 = vpop.permute.xlu0 %7844
  %v7846 = vlaneseq
  %v7847 = vshrl.u32 %v7846, 7
  %v7848 = vsub.s32 1, %v7847
  %v7849 = vrot.slane %v7780, %v7848
  %7851 = vbcast.lane.b32.xlu0 %v7849, 256
  %v7852 = vpop.permute.xlu0 %7851
  %v7853 = vlaneseq
  %v7854 = vshrl.u32 %v7853, 7
  %v7855 = vsub.s32 2, %v7854
  %v7856 = vrot.slane %v7780, %v7855
  %7858 = vbcast.lane.b32.xlu0 %v7856, 256
  %v7859 = vpop.permute.xlu0 %7858
  %v7860 = vlaneseq
  %v7861 = vshrl.u32 %v7860, 7
  %v7862 = vsub.s32 3, %v7861
  %v7863 = vrot.slane %v7780, %v7862
  %7865 = vbcast.lane.b32.xlu0 %v7863, 256
  %v7866 = vpop.permute.xlu0 %7865
  %v7867 = vlaneseq
  %v7868 = vshrl.u32 %v7867, 7
  %v7869 = vsub.s32 4, %v7868
  %v7870 = vrot.slane %v7780, %v7869
  %7872 = vbcast.lane.b32.xlu0 %v7870, 256
  %v7873 = vpop.permute.xlu0 %7872
  %v7874 = vlaneseq
  %v7875 = vshrl.u32 %v7874, 7
  %v7876 = vsub.s32 5, %v7875
  %v7877 = vrot.slane %v7780, %v7876
  %7879 = vbcast.lane.b32.xlu0 %v7877, 256
  %v7880 = vpop.permute.xlu0 %7879
  %v7881 = vlaneseq
  %v7882 = vshrl.u32 %v7881, 7
  %v7883 = vsub.s32 6, %v7882
  %v7884 = vrot.slane %v7780, %v7883
  %7886 = vbcast.lane.b32.xlu0 %v7884, 256
  %v7887 = vpop.permute.xlu0 %7886
  %v7888 = vlaneseq
  %v7889 = vshrl.u32 %v7888, 7
  %v7890 = vsub.s32 7, %v7889
  %v7891 = vrot.slane %v7780, %v7890
  %7893 = vbcast.lane.b32.xlu0 %v7891, 256
  %v7894 = vpop.permute.xlu0 %7893
  %v7895 = vlaneseq
  %v7896 = vshrl.u32 %v7895, 7
  %v7897 = vsub.s32 0, %v7896
  %v7898 = vrot.slane %v7781, %v7897
  %7900 = vbcast.lane.b32.xlu0 %v7898, 256
  %v7901 = vpop.permute.xlu0 %7900
  %v7902 = vlaneseq
  %v7903 = vshrl.u32 %v7902, 7
  %v7904 = vsub.s32 1, %v7903
  %v7905 = vrot.slane %v7781, %v7904
  %7907 = vbcast.lane.b32.xlu0 %v7905, 256
  %v7908 = vpop.permute.xlu0 %7907
  %v7909 = vlaneseq
  %v7910 = vshrl.u32 %v7909, 7
  %v7911 = vsub.s32 2, %v7910
  %v7912 = vrot.slane %v7781, %v7911
  %7914 = vbcast.lane.b32.xlu0 %v7912, 256
  %v7915 = vpop.permute.xlu0 %7914
  %v7916 = vlaneseq
  %v7917 = vshrl.u32 %v7916, 7
  %v7918 = vsub.s32 3, %v7917
  %v7919 = vrot.slane %v7781, %v7918
  %7921 = vbcast.lane.b32.xlu0 %v7919, 256
  %v7922 = vpop.permute.xlu0 %7921
  %v7923 = vlaneseq
  %v7924 = vshrl.u32 %v7923, 7
  %v7925 = vsub.s32 4, %v7924
  %v7926 = vrot.slane %v7781, %v7925
  %7928 = vbcast.lane.b32.xlu0 %v7926, 256
  %v7929 = vpop.permute.xlu0 %7928
  %v7930 = vlaneseq
  %v7931 = vshrl.u32 %v7930, 7
  %v7932 = vsub.s32 5, %v7931
  %v7933 = vrot.slane %v7781, %v7932
  %7935 = vbcast.lane.b32.xlu0 %v7933, 256
  %v7936 = vpop.permute.xlu0 %7935
  %v7937 = vlaneseq
  %v7938 = vshrl.u32 %v7937, 7
  %v7939 = vsub.s32 6, %v7938
  %v7940 = vrot.slane %v7781, %v7939
  %7942 = vbcast.lane.b32.xlu0 %v7940, 256
  %v7943 = vpop.permute.xlu0 %7942
  %v7944 = vlaneseq
  %v7945 = vshrl.u32 %v7944, 7
  %v7946 = vsub.s32 7, %v7945
  %v7947 = vrot.slane %v7781, %v7946
  %7949 = vbcast.lane.b32.xlu0 %v7947, 256
  %v7950 = vpop.permute.xlu0 %7949
  %v7951 = vlaneseq
  %v7952 = vshrl.u32 %v7951, 7
  %v7953 = vsub.s32 0, %v7952
  %v7954 = vrot.slane %v7782, %v7953
  %7956 = vbcast.lane.b32.xlu0 %v7954, 256
  %v7957 = vpop.permute.xlu0 %7956
  %v7958 = vlaneseq
  %v7959 = vshrl.u32 %v7958, 7
  %v7960 = vsub.s32 1, %v7959
  %v7961 = vrot.slane %v7782, %v7960
  %7963 = vbcast.lane.b32.xlu0 %v7961, 256
  %v7964 = vpop.permute.xlu0 %7963
  %v7965 = vlaneseq
  %v7966 = vshrl.u32 %v7965, 7
  %v7967 = vsub.s32 2, %v7966
  %v7968 = vrot.slane %v7782, %v7967
  %7970 = vbcast.lane.b32.xlu0 %v7968, 256
  %v7971 = vpop.permute.xlu0 %7970
  %v7972 = vlaneseq
  %v7973 = vshrl.u32 %v7972, 7
  %v7974 = vsub.s32 3, %v7973
  %v7975 = vrot.slane %v7782, %v7974
  %7977 = vbcast.lane.b32.xlu0 %v7975, 256
  %v7978 = vpop.permute.xlu0 %7977
  %v7979 = vlaneseq
  %v7980 = vshrl.u32 %v7979, 7
  %v7981 = vsub.s32 4, %v7980
  %v7982 = vrot.slane %v7782, %v7981
  %7984 = vbcast.lane.b32.xlu0 %v7982, 256
  %v7985 = vpop.permute.xlu0 %7984
  %v7986 = vlaneseq
  %v7987 = vshrl.u32 %v7986, 7
  %v7988 = vsub.s32 5, %v7987
  %v7989 = vrot.slane %v7782, %v7988
  %7991 = vbcast.lane.b32.xlu0 %v7989, 256
  %v7992 = vpop.permute.xlu0 %7991
  %v7993 = vlaneseq
  %v7994 = vshrl.u32 %v7993, 7
  %v7995 = vsub.s32 6, %v7994
  %v7996 = vrot.slane %v7782, %v7995
  %7998 = vbcast.lane.b32.xlu0 %v7996, 256
  %v7999 = vpop.permute.xlu0 %7998
  %v8000 = vlaneseq
  %v8001 = vshrl.u32 %v8000, 7
  %v8002 = vsub.s32 7, %v8001
  %v8003 = vrot.slane %v7782, %v8002
  %8005 = vbcast.lane.b32.xlu0 %v8003, 256
  %v8006 = vpop.permute.xlu0 %8005
  %v8007 = vlaneseq
  %v8008 = vshrl.u32 %v8007, 7
  %v8009 = vsub.s32 7, %v8008
  %v8010 = vrot.slane %v912, %v8009
  %v8011 = vlaneseq
  %v8012 = vshrl.u32 %v8011, 7
  %v8013 = vsub.s32 7, %v8012
  %v8014 = vrot.slane %v917, %v8013
  %v8015 = vlaneseq
  %v8016 = vshrl.u32 %v8015, 7
  %v8017 = vsub.s32 7, %v8016
  %v8018 = vrot.slane %v922, %v8017
  %v8019 = vlaneseq
  %v8020 = vshrl.u32 %v8019, 7
  %v8021 = vsub.s32 7, %v8020
  %v8022 = vrot.slane %v927, %v8021
  %v8023 = vlaneseq
  %v8024 = vshrl.u32 %v8023, 7
  %v8025 = vsub.s32 7, %v8024
  %v8026 = vrot.slane %v932, %v8025
  %v8027 = vlaneseq
  %v8028 = vshrl.u32 %v8027, 7
  %v8029 = vsub.s32 7, %v8028
  %v8030 = vrot.slane %v937, %v8029
  %v8031 = vlaneseq
  %v8032 = vshrl.u32 %v8031, 7
  %v8033 = vsub.s32 7, %v8032
  %v8034 = vrot.slane %v942, %v8033
  %v8035 = vlaneseq
  %v8036 = vshrl.u32 %v8035, 7
  %v8037 = vsub.s32 7, %v8036
  %v8038 = vrot.slane %v947, %v8037
  %v8039 = vlaneseq
  %v8040 = vshrl.u32 %v8039, 7
  %v8041 = vsub.s32 7, %v8040
  %v8042 = vrot.slane %v952, %v8041
  %v8043 = vlaneseq
  %v8044 = vshrl.u32 %v8043, 7
  %v8045 = vsub.s32 7, %v8044
  %v8046 = vrot.slane %v957, %v8045
  %v8047 = vlaneseq
  %v8048 = vshrl.u32 %v8047, 7
  %v8049 = vsub.s32 7, %v8048
  %v8050 = vrot.slane %v962, %v8049
  %v8051 = vlaneseq
  %v8052 = vshrl.u32 %v8051, 7
  %v8053 = vsub.s32 7, %v8052
  %v8054 = vrot.slane %v967, %v8053
  %v8055 = vlaneseq
  %v8056 = vshrl.u32 %v8055, 7
  %v8057 = vsub.s32 7, %v8056
  %v8058 = vrot.slane %v972, %v8057
  %v8059 = vlaneseq
  %v8060 = vshrl.u32 %v8059, 7
  %v8061 = vsub.s32 7, %v8060
  %v8062 = vrot.slane %v977, %v8061
  %v8063 = vlaneseq
  %v8064 = vshrl.u32 %v8063, 7
  %v8065 = vsub.s32 7, %v8064
  %v8066 = vrot.slane %v982, %v8065
  %v8067 = vlaneseq
  %v8068 = vshrl.u32 %v8067, 7
  %v8069 = vsub.s32 7, %v8068
  %v8070 = vrot.slane %v987, %v8069
  %v8071 = vlaneseq
  %v8072 = vshrl.u32 %v8071, 7
  %v8073 = vsub.s32 7, %v8072
  %v8074 = vrot.slane %v992, %v8073
  %v8075 = vlaneseq
  %v8076 = vshrl.u32 %v8075, 7
  %v8077 = vsub.s32 7, %v8076
  %v8078 = vrot.slane %v997, %v8077
  %v8079 = vlaneseq
  %v8080 = vshrl.u32 %v8079, 7
  %v8081 = vsub.s32 7, %v8080
  %v8082 = vrot.slane %v1002, %v8081
  %v8083 = vlaneseq
  %v8084 = vshrl.u32 %v8083, 7
  %v8085 = vsub.s32 7, %v8084
  %v8086 = vrot.slane %v1007, %v8085
  %v8087 = vlaneseq
  %v8088 = vshrl.u32 %v8087, 7
  %v8089 = vsub.s32 7, %v8088
  %v8090 = vrot.slane %v1012, %v8089
  %v8091 = vlaneseq
  %v8092 = vshrl.u32 %v8091, 7
  %v8093 = vsub.s32 7, %v8092
  %v8094 = vrot.slane %v1017, %v8093
  %v8095 = vlaneseq
  %v8096 = vshrl.u32 %v8095, 7
  %v8097 = vsub.s32 7, %v8096
  %v8098 = vrot.slane %v1022, %v8097
  %v8099 = vlaneseq
  %v8100 = vshrl.u32 %v8099, 7
  %v8101 = vsub.s32 7, %v8100
  %v8102 = vrot.slane %v1027, %v8101
  %v8103 = vlaneseq
  %v8104 = vshrl.u32 %v8103, 7
  %v8105 = vsub.s32 7, %v8104
  %v8106 = vrot.slane %v1032, %v8105
  %v8107 = vlaneseq
  %v8108 = vshrl.u32 %v8107, 7
  %v8109 = vsub.s32 7, %v8108
  %v8110 = vrot.slane %v1037, %v8109
  %v8111 = vlaneseq
  %v8112 = vshrl.u32 %v8111, 7
  %v8113 = vsub.s32 7, %v8112
  %v8114 = vrot.slane %v1042, %v8113
  %v8115 = vlaneseq
  %v8116 = vshrl.u32 %v8115, 7
  %v8117 = vsub.s32 7, %v8116
  %v8118 = vrot.slane %v1047, %v8117
  %v8119 = vlaneseq
  %v8120 = vshrl.u32 %v8119, 7
  %v8121 = vsub.s32 7, %v8120
  %v8122 = vrot.slane %v1052, %v8121
  %v8123 = vlaneseq
  %v8124 = vshrl.u32 %v8123, 7
  %v8125 = vsub.s32 7, %v8124
  %v8126 = vrot.slane %v1057, %v8125
  %v8127 = vlaneseq
  %v8128 = vshrl.u32 %v8127, 7
  %v8129 = vsub.s32 7, %v8128
  %v8130 = vrot.slane %v1062, %v8129
  %v8131 = vlaneseq
  %v8132 = vshrl.u32 %v8131, 7
  %v8133 = vsub.s32 7, %v8132
  %v8134 = vrot.slane %v1067, %v8133
  %v8135 = vmul.f32 %v7789, %v8010
  %v8136 = vmul.f32 %v7796, %v8014
  %v8137 = vmul.f32 %v7803, %v8018
  %v8138 = vmul.f32 %v7810, %v8022
  %v8139 = vmul.f32 %v7817, %v8026
  %v8140 = vmul.f32 %v7824, %v8030
  %v8141 = vmul.f32 %v7831, %v8034
  %v8142 = vmul.f32 %v7838, %v8038
  %v8143 = vmul.f32 %v7845, %v8042
  %v8144 = vmul.f32 %v7852, %v8046
  %v8145 = vmul.f32 %v7859, %v8050
  %v8146 = vmul.f32 %v7866, %v8054
  %v8147 = vmul.f32 %v7873, %v8058
  %v8148 = vmul.f32 %v7880, %v8062
  %v8149 = vmul.f32 %v7887, %v8066
  %v8150 = vmul.f32 %v7894, %v8070
  %v8151 = vmul.f32 %v7901, %v8074
  %v8152 = vmul.f32 %v7908, %v8078
  %v8153 = vmul.f32 %v7915, %v8082
  %v8154 = vmul.f32 %v7922, %v8086
  %v8155 = vmul.f32 %v7929, %v8090
  %v8156 = vmul.f32 %v7936, %v8094
  %v8157 = vmul.f32 %v7943, %v8098
  %v8158 = vmul.f32 %v7950, %v8102
  %v8159 = vmul.f32 %v7957, %v8106
  %v8160 = vmul.f32 %v7964, %v8110
  %v8161 = vmul.f32 %v7971, %v8114
  %v8162 = vmul.f32 %v7978, %v8118
  %v8163 = vmul.f32 %v7985, %v8122
  %v8164 = vmul.f32 %v7992, %v8126
  %v8165 = vmul.f32 %v7999, %v8130
  %v8166 = vmul.f32 %v8006, %v8134
  %v8167 = vadd.f32 %v7747, %v8135
  %v8168 = vadd.f32 %v7748, %v8136
  %v8169 = vadd.f32 %v7749, %v8137
  %v8170 = vadd.f32 %v7750, %v8138
  %v8171 = vadd.f32 %v7751, %v8139
  %v8172 = vadd.f32 %v7752, %v8140
  %v8173 = vadd.f32 %v7753, %v8141
  %v8174 = vadd.f32 %v7754, %v8142
  %v8175 = vadd.f32 %v7755, %v8143
  %v8176 = vadd.f32 %v7756, %v8144
  %v8177 = vadd.f32 %v7757, %v8145
  %v8178 = vadd.f32 %v7758, %v8146
  %v8179 = vadd.f32 %v7759, %v8147
  %v8180 = vadd.f32 %v7760, %v8148
  %v8181 = vadd.f32 %v7761, %v8149
  %v8182 = vadd.f32 %v7762, %v8150
  %v8183 = vadd.f32 %v7763, %v8151
  %v8184 = vadd.f32 %v7764, %v8152
  %v8185 = vadd.f32 %v7765, %v8153
  %v8186 = vadd.f32 %v7766, %v8154
  %v8187 = vadd.f32 %v7767, %v8155
  %v8188 = vadd.f32 %v7768, %v8156
  %v8189 = vadd.f32 %v7769, %v8157
  %v8190 = vadd.f32 %v7770, %v8158
  %v8191 = vadd.f32 %v7771, %v8159
  %v8192 = vadd.f32 %v7772, %v8160
  %v8193 = vadd.f32 %v7773, %v8161
  %v8194 = vadd.f32 %v7774, %v8162
  %v8195 = vadd.f32 %v7775, %v8163
  %v8196 = vadd.f32 %v7776, %v8164
  %v8197 = vadd.f32 %v7777, %v8165
  %v8198 = vadd.f32 %v7778, %v8166
  %v8199 = vld [vmem:[%s6] sm:$0xff]
  %v8200 = vld [vmem:[%s6 + $0x8] sm:$0xff]
  %v8201 = vld [vmem:[%s6 + $0x10] sm:$0xff]
  %v8202 = vld [vmem:[%s6 + $0x18] sm:$0xff]
  %v8203 = vld [vmem:[%s6 + $0x20] sm:$0xff]
  %v8204 = vld [vmem:[%s6 + $0x28] sm:$0xff]
  %v8205 = vld [vmem:[%s6 + $0x30] sm:$0xff]
  %v8206 = vld [vmem:[%s6 + $0x38] sm:$0xff]
  %v8207 = vld [vmem:[%s6 + $0x40] sm:$0xff]
  %v8208 = vld [vmem:[%s6 + $0x48] sm:$0xff]
  %v8209 = vld [vmem:[%s6 + $0x50] sm:$0xff]
  %v8210 = vld [vmem:[%s6 + $0x58] sm:$0xff]
  %v8211 = vld [vmem:[%s6 + $0x60] sm:$0xff]
  %v8212 = vld [vmem:[%s6 + $0x68] sm:$0xff]
  %v8213 = vld [vmem:[%s6 + $0x70] sm:$0xff]
  %v8214 = vld [vmem:[%s6 + $0x78] sm:$0xff]
  %v8215 = vld [vmem:[%s7] sm:$0x1]
  %v8217 = vlaneseq
  %v8218 = vshrl.u32 %v8217, 7
  %v8219 = vsub.s32 0, %v8218
  %v8220 = vrot.slane %v8215, %v8219
  %8222 = vmatprep.subr.mxu0 0.0
  %8223 = vmatpush1.msra.mxu0 %v8214
  %8224 = vmatprep.subr.mxu0 0.0
  %8225 = vmatpush1.msra.mxu0 %v8213
  %8226 = vmatprep.subr.mxu0 0.0
  %8227 = vmatpush1.msra.mxu0 %v8212
  %8228 = vmatprep.subr.mxu0 0.0
  %8229 = vmatpush1.msra.mxu0 %v8211
  %8230 = vmatprep.subr.mxu0 0.0
  %8231 = vmatpush1.msra.mxu0 %v8210
  %8232 = vmatprep.subr.mxu0 0.0
  %8233 = vmatpush1.msra.mxu0 %v8209
  %8234 = vmatprep.subr.mxu0 0.0
  %8235 = vmatpush1.msra.mxu0 %v8208
  %8236 = vmatprep.subr.mxu0 0.0
  %8237 = vmatpush1.msra.mxu0 %v8207
  %8238 = vmatprep.subr.mxu0 0.0
  %8239 = vmatpush1.msra.mxu0 %v8206
  %8240 = vmatprep.subr.mxu0 0.0
  %8241 = vmatpush1.msra.mxu0 %v8205
  %8242 = vmatprep.subr.mxu0 0.0
  %8243 = vmatpush1.msra.mxu0 %v8204
  %8244 = vmatprep.subr.mxu0 0.0
  %8245 = vmatpush1.msra.mxu0 %v8203
  %8246 = vmatprep.subr.mxu0 0.0
  %8247 = vmatpush1.msra.mxu0 %v8202
  %8248 = vmatprep.subr.mxu0 0.0
  %8249 = vmatpush1.msra.mxu0 %v8201
  %8250 = vmatprep.subr.mxu0 0.0
  %8251 = vmatpush1.msra.mxu0 %v8200
  %8252 = vmatprep.subr.mxu0 0.0
  %8253 = vmatpush1.msra.mxu0 %v8199
  %8254 = vmatprep.subr.mxu0 0.0
  %8255 = vmatpush2.msra.mxu0 0.0
  %8256 = vmatprep.subr.mxu0 0.0
  %8257 = vmatpush2.msra.mxu0 0.0
  %8258 = vmatprep.subr.mxu0 0.0
  %8259 = vmatpush2.msra.mxu0 0.0
  %8260 = vmatprep.subr.mxu0 0.0
  %8261 = vmatpush2.msra.mxu0 0.0
  %8262 = vmatprep.subr.mxu0 0.0
  %8263 = vmatpush2.msra.mxu0 0.0
  %8264 = vmatprep.subr.mxu0 0.0
  %8265 = vmatpush2.msra.mxu0 0.0
  %8266 = vmatprep.subr.mxu0 0.0
  %8267 = vmatpush2.msra.mxu0 0.0
  %8268 = vmatprep.subr.mxu0 0.0
  %8269 = vmatpush2.msra.mxu0 0.0
  %8270 = vmatprep.subr.mxu0 0.0
  %8271 = vmatpush2.msra.mxu0 0.0
  %8272 = vmatprep.subr.mxu0 0.0
  %8273 = vmatpush2.msra.mxu0 0.0
  %8274 = vmatprep.subr.mxu0 0.0
  %8275 = vmatpush2.msra.mxu0 0.0
  %8276 = vmatprep.subr.mxu0 0.0
  %8277 = vmatpush2.msra.mxu0 0.0
  %8278 = vmatprep.subr.mxu0 0.0
  %8279 = vmatpush2.msra.mxu0 0.0
  %8280 = vmatprep.subr.mxu0 0.0
  %8281 = vmatpush2.msra.mxu0 0.0
  %8282 = vmatprep.subr.mxu0 0.0
  %8283 = vmatpush2.msra.mxu0 0.0
  %8284 = vmatprep.subr.mxu0 0.0
  %8285 = vmatpush2.msra.mxu0 0.0
  %8286 = vmatprep.mubr.f32.mxu0 0.0
  %8287 = vmatmul.mubr.f32.gmra.mxu0 %v8167
  %v8288 = vpop.f32.mrf.mxu0
  %v8289 = vadd.f32 %v8220, %v8288
  %v8290 = vpop.f32.mrf.mxu0
  %8291 = vmatprep.mubr.f32.mxu0 0.0
  %8292 = vmatmul.mubr.f32.gmra.mxu0 %v8168
  %v8293 = vpop.f32.mrf.mxu0
  %v8294 = vadd.f32 %v8220, %v8293
  %v8295 = vpop.f32.mrf.mxu0
  %8296 = vmatprep.mubr.f32.mxu0 0.0
  %8297 = vmatmul.mubr.f32.gmra.mxu0 %v8169
  %v8298 = vpop.f32.mrf.mxu0
  %v8299 = vadd.f32 %v8220, %v8298
  %v8300 = vpop.f32.mrf.mxu0
  %8301 = vmatprep.mubr.f32.mxu0 0.0
  %8302 = vmatmul.mubr.f32.gmra.mxu0 %v8170
  %v8303 = vpop.f32.mrf.mxu0
  %v8304 = vadd.f32 %v8220, %v8303
  %v8305 = vpop.f32.mrf.mxu0
  %8306 = vmatprep.mubr.f32.mxu0 0.0
  %8307 = vmatmul.mubr.f32.gmra.mxu0 %v8171
  %v8308 = vpop.f32.mrf.mxu0
  %v8309 = vadd.f32 %v8220, %v8308
  %v8310 = vpop.f32.mrf.mxu0
  %8311 = vmatprep.mubr.f32.mxu0 0.0
  %8312 = vmatmul.mubr.f32.gmra.mxu0 %v8172
  %v8313 = vpop.f32.mrf.mxu0
  %v8314 = vadd.f32 %v8220, %v8313
  %v8315 = vpop.f32.mrf.mxu0
  %8316 = vmatprep.mubr.f32.mxu0 0.0
  %8317 = vmatmul.mubr.f32.gmra.mxu0 %v8173
  %v8318 = vpop.f32.mrf.mxu0
  %v8319 = vadd.f32 %v8220, %v8318
  %v8320 = vpop.f32.mrf.mxu0
  %8321 = vmatprep.mubr.f32.mxu0 0.0
  %8322 = vmatmul.mubr.f32.gmra.mxu0 %v8174
  %v8323 = vpop.f32.mrf.mxu0
  %v8324 = vadd.f32 %v8220, %v8323
  %v8325 = vpop.f32.mrf.mxu0
  %8326 = vmatprep.mubr.f32.mxu0 0.0
  %8327 = vmatmul.mubr.f32.gmra.mxu0 %v8175
  %v8328 = vpop.f32.mrf.mxu0
  %v8329 = vadd.f32 %v8220, %v8328
  %v8330 = vpop.f32.mrf.mxu0
  %8331 = vmatprep.mubr.f32.mxu0 0.0
  %8332 = vmatmul.mubr.f32.gmra.mxu0 %v8176
  %v8333 = vpop.f32.mrf.mxu0
  %v8334 = vadd.f32 %v8220, %v8333
  %v8335 = vpop.f32.mrf.mxu0
  %8336 = vmatprep.mubr.f32.mxu0 0.0
  %8337 = vmatmul.mubr.f32.gmra.mxu0 %v8177
  %v8338 = vpop.f32.mrf.mxu0
  %v8339 = vadd.f32 %v8220, %v8338
  %v8340 = vpop.f32.mrf.mxu0
  %8341 = vmatprep.mubr.f32.mxu0 0.0
  %8342 = vmatmul.mubr.f32.gmra.mxu0 %v8178
  %v8343 = vpop.f32.mrf.mxu0
  %v8344 = vadd.f32 %v8220, %v8343
  %v8345 = vpop.f32.mrf.mxu0
  %8346 = vmatprep.mubr.f32.mxu0 0.0
  %8347 = vmatmul.mubr.f32.gmra.mxu0 %v8179
  %v8348 = vpop.f32.mrf.mxu0
  %v8349 = vadd.f32 %v8220, %v8348
  %v8350 = vpop.f32.mrf.mxu0
  %8351 = vmatprep.mubr.f32.mxu0 0.0
  %8352 = vmatmul.mubr.f32.gmra.mxu0 %v8180
  %v8353 = vpop.f32.mrf.mxu0
  %v8354 = vadd.f32 %v8220, %v8353
  %v8355 = vpop.f32.mrf.mxu0
  %8356 = vmatprep.mubr.f32.mxu0 0.0
  %8357 = vmatmul.mubr.f32.gmra.mxu0 %v8181
  %v8358 = vpop.f32.mrf.mxu0
  %v8359 = vadd.f32 %v8220, %v8358
  %v8360 = vpop.f32.mrf.mxu0
  %8361 = vmatprep.mubr.f32.mxu0 0.0
  %8362 = vmatmul.mubr.f32.gmra.mxu0 %v8182
  %v8363 = vpop.f32.mrf.mxu0
  %v8364 = vadd.f32 %v8220, %v8363
  %v8365 = vpop.f32.mrf.mxu0
  %8366 = vmatprep.mubr.f32.mxu0 0.0
  %8367 = vmatmul.mubr.f32.gmra.mxu0 %v8183
  %v8368 = vpop.f32.mrf.mxu0
  %v8369 = vadd.f32 %v8220, %v8368
  %v8370 = vpop.f32.mrf.mxu0
  %8371 = vmatprep.mubr.f32.mxu0 0.0
  %8372 = vmatmul.mubr.f32.gmra.mxu0 %v8184
  %v8373 = vpop.f32.mrf.mxu0
  %v8374 = vadd.f32 %v8220, %v8373
  %v8375 = vpop.f32.mrf.mxu0
  %8376 = vmatprep.mubr.f32.mxu0 0.0
  %8377 = vmatmul.mubr.f32.gmra.mxu0 %v8185
  %v8378 = vpop.f32.mrf.mxu0
  %v8379 = vadd.f32 %v8220, %v8378
  %v8380 = vpop.f32.mrf.mxu0
  %8381 = vmatprep.mubr.f32.mxu0 0.0
  %8382 = vmatmul.mubr.f32.gmra.mxu0 %v8186
  %v8383 = vpop.f32.mrf.mxu0
  %v8384 = vadd.f32 %v8220, %v8383
  %v8385 = vpop.f32.mrf.mxu0
  %8386 = vmatprep.mubr.f32.mxu0 0.0
  %8387 = vmatmul.mubr.f32.gmra.mxu0 %v8187
  %v8388 = vpop.f32.mrf.mxu0
  %v8389 = vadd.f32 %v8220, %v8388
  %v8390 = vpop.f32.mrf.mxu0
  %8391 = vmatprep.mubr.f32.mxu0 0.0
  %8392 = vmatmul.mubr.f32.gmra.mxu0 %v8188
  %v8393 = vpop.f32.mrf.mxu0
  %v8394 = vadd.f32 %v8220, %v8393
  %v8395 = vpop.f32.mrf.mxu0
  %8396 = vmatprep.mubr.f32.mxu0 0.0
  %8397 = vmatmul.mubr.f32.gmra.mxu0 %v8189
  %v8398 = vpop.f32.mrf.mxu0
  %v8399 = vadd.f32 %v8220, %v8398
  %v8400 = vpop.f32.mrf.mxu0
  %8401 = vmatprep.mubr.f32.mxu0 0.0
  %8402 = vmatmul.mubr.f32.gmra.mxu0 %v8190
  %v8403 = vpop.f32.mrf.mxu0
  %v8404 = vadd.f32 %v8220, %v8403
  %v8405 = vpop.f32.mrf.mxu0
  %8406 = vmatprep.mubr.f32.mxu0 0.0
  %8407 = vmatmul.mubr.f32.gmra.mxu0 %v8191
  %v8408 = vpop.f32.mrf.mxu0
  %v8409 = vadd.f32 %v8220, %v8408
  %v8410 = vpop.f32.mrf.mxu0
  %8411 = vmatprep.mubr.f32.mxu0 0.0
  %8412 = vmatmul.mubr.f32.gmra.mxu0 %v8192
  %v8413 = vpop.f32.mrf.mxu0
  %v8414 = vadd.f32 %v8220, %v8413
  %v8415 = vpop.f32.mrf.mxu0
  %8416 = vmatprep.mubr.f32.mxu0 0.0
  %8417 = vmatmul.mubr.f32.gmra.mxu0 %v8193
  %v8418 = vpop.f32.mrf.mxu0
  %v8419 = vadd.f32 %v8220, %v8418
  %v8420 = vpop.f32.mrf.mxu0
  %8421 = vmatprep.mubr.f32.mxu0 0.0
  %8422 = vmatmul.mubr.f32.gmra.mxu0 %v8194
  %v8423 = vpop.f32.mrf.mxu0
  %v8424 = vadd.f32 %v8220, %v8423
  %v8425 = vpop.f32.mrf.mxu0
  %8426 = vmatprep.mubr.f32.mxu0 0.0
  %8427 = vmatmul.mubr.f32.gmra.mxu0 %v8195
  %v8428 = vpop.f32.mrf.mxu0
  %v8429 = vadd.f32 %v8220, %v8428
  %v8430 = vpop.f32.mrf.mxu0
  %8431 = vmatprep.mubr.f32.mxu0 0.0
  %8432 = vmatmul.mubr.f32.gmra.mxu0 %v8196
  %v8433 = vpop.f32.mrf.mxu0
  %v8434 = vadd.f32 %v8220, %v8433
  %v8435 = vpop.f32.mrf.mxu0
  %8436 = vmatprep.mubr.f32.mxu0 0.0
  %8437 = vmatmul.mubr.f32.gmra.mxu0 %v8197
  %v8438 = vpop.f32.mrf.mxu0
  %v8439 = vadd.f32 %v8220, %v8438
  %v8440 = vpop.f32.mrf.mxu0
  %8441 = vmatprep.mubr.f32.mxu0 0.0
  %8442 = vmatmul.mubr.f32.gmra.mxu0 %v8198
  %v8443 = vpop.f32.mrf.mxu0
  %v8444 = vadd.f32 %v8220, %v8443
  %v8445 = vpop.f32.mrf.mxu0
  %8446 = vdwg.mxu0
  %v8447 = vadd.f32 %v61, %v8289
  %v8448 = vadd.f32 %v62, %v8294
  %v8449 = vadd.f32 %v63, %v8299
  %v8450 = vadd.f32 %v64, %v8304
  %v8451 = vadd.f32 %v65, %v8309
  %v8452 = vadd.f32 %v66, %v8314
  %v8453 = vadd.f32 %v67, %v8319
  %v8454 = vadd.f32 %v68, %v8324
  %v8455 = vadd.f32 %v69, %v8329
  %v8456 = vadd.f32 %v70, %v8334
  %v8457 = vadd.f32 %v71, %v8339
  %v8458 = vadd.f32 %v72, %v8344
  %v8459 = vadd.f32 %v73, %v8349
  %v8460 = vadd.f32 %v74, %v8354
  %v8461 = vadd.f32 %v75, %v8359
  %v8462 = vadd.f32 %v76, %v8364
  %v8463 = vadd.f32 %v77, %v8369
  %v8464 = vadd.f32 %v78, %v8374
  %v8465 = vadd.f32 %v79, %v8379
  %v8466 = vadd.f32 %v80, %v8384
  %v8467 = vadd.f32 %v81, %v8389
  %v8468 = vadd.f32 %v82, %v8394
  %v8469 = vadd.f32 %v83, %v8399
  %v8470 = vadd.f32 %v84, %v8404
  %v8471 = vadd.f32 %v85, %v8409
  %v8472 = vadd.f32 %v86, %v8414
  %v8473 = vadd.f32 %v87, %v8419
  %v8474 = vadd.f32 %v88, %v8424
  %v8475 = vadd.f32 %v89, %v8429
  %v8476 = vadd.f32 %v90, %v8434
  %v8477 = vadd.f32 %v91, %v8439
  %v8478 = vadd.f32 %v92, %v8444
  %8479 = vst [vmem:[%s8] sm:$0xff] %v8447
  %8480 = vst [vmem:[%s8 + $0x8] sm:$0xff] %v8448
  %8481 = vst [vmem:[%s8 + $0x10] sm:$0xff] %v8449
  %8482 = vst [vmem:[%s8 + $0x18] sm:$0xff] %v8450
  %8483 = vst [vmem:[%s8 + $0x20] sm:$0xff] %v8451
  %8484 = vst [vmem:[%s8 + $0x28] sm:$0xff] %v8452
  %8485 = vst [vmem:[%s8 + $0x30] sm:$0xff] %v8453
  %8486 = vst [vmem:[%s8 + $0x38] sm:$0xff] %v8454
  %8487 = vst [vmem:[%s8 + $0x40] sm:$0xff] %v8455
  %8488 = vst [vmem:[%s8 + $0x48] sm:$0xff] %v8456
  %8489 = vst [vmem:[%s8 + $0x50] sm:$0xff] %v8457
  %8490 = vst [vmem:[%s8 + $0x58] sm:$0xff] %v8458
  %8491 = vst [vmem:[%s8 + $0x60] sm:$0xff] %v8459
  %8492 = vst [vmem:[%s8 + $0x68] sm:$0xff] %v8460
  %8493 = vst [vmem:[%s8 + $0x70] sm:$0xff] %v8461
  %8494 = vst [vmem:[%s8 + $0x78] sm:$0xff] %v8462
  %8495 = vst [vmem:[%s8 + $0x80] sm:$0xff] %v8463
  %8496 = vst [vmem:[%s8 + $0x88] sm:$0xff] %v8464
  %8497 = vst [vmem:[%s8 + $0x90] sm:$0xff] %v8465
  %8498 = vst [vmem:[%s8 + $0x98] sm:$0xff] %v8466
  %8499 = vst [vmem:[%s8 + $0xa0] sm:$0xff] %v8467
  %8500 = vst [vmem:[%s8 + $0xa8] sm:$0xff] %v8468
  %8501 = vst [vmem:[%s8 + $0xb0] sm:$0xff] %v8469
  %8502 = vst [vmem:[%s8 + $0xb8] sm:$0xff] %v8470
  %8503 = vst [vmem:[%s8 + $0xc0] sm:$0xff] %v8471
  %8504 = vst [vmem:[%s8 + $0xc8] sm:$0xff] %v8472
  %8505 = vst [vmem:[%s8 + $0xd0] sm:$0xff] %v8473
  %8506 = vst [vmem:[%s8 + $0xd8] sm:$0xff] %v8474
  %8507 = vst [vmem:[%s8 + $0xe0] sm:$0xff] %v8475
  %8508 = vst [vmem:[%s8 + $0xe8] sm:$0xff] %v8476
  %8509 = vst [vmem:[%s8 + $0xf0] sm:$0xff] %v8477
  %8510 = vst [vmem:[%s8 + $0xf8] sm:$0xff] %v8478
  // Predicated region
  $region34: #{causal_temporal_attn_block.1} parent=0 // pred_check
    _
  $region35: #{causal_temporal_attn_block.1} parent=0 // pred_check_branch
    %8512 = sbr.rel (0) target = $region37
  $region36: #{causal_temporal_attn_block.1} parent=0 // pred_region
    _
  $region37: #{causal_temporal_attn_block.1} parent=0 // pred_fallthru
    _
  // Predicated region
  $region38: #{causal_temporal_attn_block.1} parent=0 // pred_check
    _
  $region39: #{causal_temporal_attn_block.1} parent=0 // pred_check_branch
    %8514 = sbr.rel (0) target = $region41
  $region40: #{causal_temporal_attn_block.1} parent=0 // pred_region
    _
  $region41: #{causal_temporal_attn_block.1} parent=0 // pred_fallthru
    _

</llo_original>
